<compile_context>
chip_gen: v7x
topology: tpu7x:2x2x1
jax: 0.10.0
libtpu: 0.0.40
codegen_flags: <defaults>
</compile_context>

<pallas_src>
import functools
import math

import numpy as np

import jax
import jax.numpy as jnp
from jax import lax
from jax.experimental import pallas as pl
from jax.experimental.pallas import tpu as pltpu


# --------------------------------------------------------------------------
# Padded-flat geometry helpers
#
# Canonical in-network layout: (N, LP, C) where index j = py*(W+2) + px over a
# zero-padded (H+3, W+2) grid; valid pixels live at py in [1, H], px in [1, W];
# everything else is zero.  For output pixel (y, x) stored at j = (y+1)*Wp +
# (x+1), conv tap (dh, dw) reads input index j + (dh-1)*Wp + (dw-1), i.e. the
# contiguous run of NR = H*Wp outputs starting at B = Wp+1 reads the 9 shifted
# runs starting at dh*Wp + dw.  Positions with px in {0, W+1} inside the run
# are junk and are masked back to zero before any store.
# --------------------------------------------------------------------------
def _geom(h, w):
    wp = w + 2           # padded row stride
    b = wp + 1           # flat index of valid pixel (0, 0)
    nr = h * wp          # contiguous run covering every valid output
    lp = (h + 3) * wp    # padded-flat length (>= 2*wp + 2 + nr)
    return wp, b, nr, lp


def _tap_shifts(wp):
    return [dh * wp + dw for dh in range(3) for dw in range(3)]


def _valid_mask(h, w):
    """(NR, 1) float32: 1 on valid image columns, 0 on the 2 junk pad columns."""
    wp, b, nr, _ = _geom(h, w)
    col = (np.arange(nr) + b) % wp
    m = ((col >= 1) & (col <= w)).astype(np.float32)
    return jnp.asarray(m.reshape(nr, 1))


def to_padded_flat(x_nhwc):
    """(N, H, W, C) -> (N, LP, C) padded-flat layout."""
    n, h, w, c = x_nhwc.shape
    xp = jnp.pad(x_nhwc, ((0, 0), (1, 2), (1, 1), (0, 0)))
    return xp.reshape(n, (h + 3) * (w + 2), c)


def from_run(run, h, w):
    """(N, NR, C) run layout -> (N, H, W, C)."""
    n, _, c = run.shape
    return run.reshape(n, h, w + 2, c)[:, :, :w, :]


# --------------------------------------------------------------------------
# In-kernel 3x3 conv: 9 shifted window matmuls accumulated in f32
# --------------------------------------------------------------------------
def _conv_taps(read, w_ref, shifts, nr):
    """sum_t read(shift_t) @ w_ref[t]; read(s) -> (nr, cin); w_ref: (9, cin, cout)."""
    cout = w_ref.shape[-1]
    acc = jnp.zeros((nr, cout), jnp.float32)
    for t, s in enumerate(shifts):
        acc = acc + jnp.dot(read(s), w_ref[t], preferred_element_type=jnp.float32)
    return acc


# --------------------------------------------------------------------------
# Pallas kernels (grid = (batch,), one whole image per step)
# --------------------------------------------------------------------------
def _in_conv_kernel(mask_ref, x_ref, w_ref, o_ref, *, h, w):
    # u0 = in_conv(xin), written back in padded-flat layout.
    wp, b, nr, lp = _geom(h, w)
    shifts = _tap_shifts(wp)
    f = o_ref.shape[-1]
    val = _conv_taps(lambda s: x_ref[0, s:s + nr, :], w_ref, shifts, nr)
    o_ref[0, 0:b, :] = jnp.zeros((b, f), jnp.float32)
    o_ref[0, b:b + nr, :] = val * mask_ref[...]
    o_ref[0, b + nr:lp, :] = jnp.zeros((lp - b - nr, f), jnp.float32)


def _dfb_block_kernel(gamma_ref, lam_ref, mask_ref, u_ref, xref_ref,
                      wt_ref, wc_ref, o_ref, tmp_ref, *, h, w):
    # Fused DFB block:
    #   tmp = x_ref - conv_t(u_in)
    #   g1  = u_in + gamma * conv(tmp)
    #   p1  = g1 - gamma * (relu(g1/gamma - l/gamma) - relu(-g1/gamma - l/gamma))
    wp, b, nr, lp = _geom(h, w)
    shifts = _tap_shifts(wp)
    c = tmp_ref.shape[-1]
    f = o_ref.shape[-1]
    gamma = gamma_ref[0]
    lam = lam_ref[0]
    mask = mask_ref[...]

    # tmp = x_ref - conv_t(u_in), placed into a padded-flat VMEM scratch so the
    # second conv can read its halo without any HBM round-trip.
    ct = _conv_taps(lambda s: u_ref[0, s:s + nr, :], wt_ref, shifts, nr)
    tmp_ref[0:b, :] = jnp.zeros((b, c), jnp.float32)
    tmp_ref[b:b + nr, :] = (xref_ref[0, b:b + nr, :] - ct) * mask
    tmp_ref[b + nr:lp, :] = jnp.zeros((lp - b - nr, c), jnp.float32)

    # g1 = u_in + gamma * conv(tmp)
    cv = _conv_taps(lambda s: tmp_ref[s:s + nr, :], wc_ref, shifts, nr)
    g1 = u_ref[0, b:b + nr, :] + gamma * cv

    # p1 = g1 - gamma * SoftShk(g1/gamma, lam/gamma)
    inv_gamma = 1.0 / gamma
    z = g1 * inv_gamma
    thr = lam * inv_gamma
    nl = jnp.maximum(z - thr, 0.0) - jnp.maximum(-z - thr, 0.0)
    p1 = g1 - gamma * nl

    o_ref[0, 0:b, :] = jnp.zeros((b, f), jnp.float32)
    o_ref[0, b:b + nr, :] = p1 * mask
    o_ref[0, b + nr:lp, :] = jnp.zeros((lp - b - nr, f), jnp.float32)


def _out_conv_kernel(u_ref, xref_ref, wt_ref, o_ref, *, h, w):
    # out = clamp(x_ref - out_conv(u), 0, 1), written in run layout (cropped in XLA).
    wp, b, nr, _ = _geom(h, w)
    shifts = _tap_shifts(wp)
    ct = _conv_taps(lambda s: u_ref[0, s:s + nr, :], wt_ref, shifts, nr)
    o_ref[0, :, :] = jnp.clip(xref_ref[0, b:b + nr, :] - ct, 0.0, 1.0)


def _normal_op_kernel(mask_ref, x_ref, wc_ref, wt_ref, o_ref, v_ref, *, h, w):
    # y = conv_t(conv(x)) for the power iteration (both convs fused).
    wp, b, nr, lp = _geom(h, w)
    shifts = _tap_shifts(wp)
    c = o_ref.shape[-1]
    f = v_ref.shape[-1]
    mask = mask_ref[...]

    cv = _conv_taps(lambda s: x_ref[0, s:s + nr, :], wc_ref, shifts, nr)
    v_ref[0:b, :] = jnp.zeros((b, f), jnp.float32)
    v_ref[b:b + nr, :] = cv * mask
    v_ref[b + nr:lp, :] = jnp.zeros((lp - b - nr, f), jnp.float32)

    ct = _conv_taps(lambda s: v_ref[s:s + nr, :], wt_ref, shifts, nr)
    o_ref[0, 0:b, :] = jnp.zeros((b, c), jnp.float32)
    o_ref[0, b:b + nr, :] = ct * mask
    o_ref[0, b + nr:lp, :] = jnp.zeros((lp - b - nr, c), jnp.float32)


# --------------------------------------------------------------------------
# pallas_call wrappers
# --------------------------------------------------------------------------
_PARALLEL = pltpu.CompilerParams(dimension_semantics=("parallel",))
_SMEM_SPEC = pl.BlockSpec(memory_space=pltpu.MemorySpace.SMEM)


def _img_spec(rows, ch):
    return pl.BlockSpec((1, rows, ch), lambda i: (i, 0, 0))


def _bcast_spec(rows, ch):
    return pl.BlockSpec((rows, ch), lambda i: (0, 0))


def _w_spec(cin, cout):
    return pl.BlockSpec((9, cin, cout), lambda i: (0, 0, 0))


def in_conv_pf(x_pf, w_hwio, h, w):
    n, lp, c = x_pf.shape
    f = w_hwio.shape[-1]
    _, _, nr, _ = _geom(h, w)
    return pl.pallas_call(
        functools.partial(_in_conv_kernel, h=h, w=w),
        out_shape=jax.ShapeDtypeStruct((n, lp, f), jnp.float32),
        grid=(n,),
        in_specs=[_bcast_spec(nr, 1), _img_spec(lp, c), _w_spec(c, f)],
        out_specs=_img_spec(lp, f),
        compiler_params=_PARALLEL,
    )(_valid_mask(h, w), x_pf, w_hwio.reshape(9, c, f))


def dfb_block_pf(u_pf, xref_pf, gamma, lam, w_c, w_t, h, w):
    n, lp, f = u_pf.shape
    c = xref_pf.shape[-1]
    _, _, nr, _ = _geom(h, w)
    gamma_arr = jnp.asarray(gamma, jnp.float32).reshape(1)
    lam_arr = jnp.asarray(lam, jnp.float32).reshape(1)
    return pl.pallas_call(
        functools.partial(_dfb_block_kernel, h=h, w=w),
        out_shape=jax.ShapeDtypeStruct((n, lp, f), jnp.float32),
        grid=(n,),
        in_specs=[_SMEM_SPEC, _SMEM_SPEC, _bcast_spec(nr, 1),
                  _img_spec(lp, f), _img_spec(lp, c),
                  _w_spec(f, c), _w_spec(c, f)],
        out_specs=_img_spec(lp, f),
        scratch_shapes=[pltpu.VMEM((lp, c), jnp.float32)],
        compiler_params=_PARALLEL,
    )(gamma_arr, lam_arr, _valid_mask(h, w), u_pf, xref_pf,
      w_t.reshape(9, f, c), w_c.reshape(9, c, f))


def out_conv_pf(u_pf, xref_pf, w_t, h, w):
    n, lp, f = u_pf.shape
    c = xref_pf.shape[-1]
    _, _, nr, _ = _geom(h, w)
    return pl.pallas_call(
        functools.partial(_out_conv_kernel, h=h, w=w),
        out_shape=jax.ShapeDtypeStruct((n, nr, c), jnp.float32),
        grid=(n,),
        in_specs=[_img_spec(lp, f), _img_spec(lp, c), _w_spec(f, c)],
        out_specs=_img_spec(nr, c),
        compiler_params=_PARALLEL,
    )(u_pf, xref_pf, w_t.reshape(9, f, c))


def normal_op_pf(x_pf, w_c, w_t, h, w):
    n, lp, c = x_pf.shape
    f = w_c.shape[-1]
    _, _, nr, _ = _geom(h, w)
    return pl.pallas_call(
        functools.partial(_normal_op_kernel, h=h, w=w),
        out_shape=jax.ShapeDtypeStruct((n, lp, c), jnp.float32),
        grid=(n,),
        in_specs=[_bcast_spec(nr, 1), _img_spec(lp, c),
                  _w_spec(c, f), _w_spec(f, c)],
        out_specs=_img_spec(lp, c),
        scratch_shapes=[pltpu.VMEM((lp, f), jnp.float32)],
        compiler_params=_PARALLEL,
    )(_valid_mask(h, w), x_pf, w_c.reshape(9, c, f), w_t.reshape(9, f, c))


# --------------------------------------------------------------------------
# DFBNet: gamma precomputation (hoisted power iteration) + forward pass
# --------------------------------------------------------------------------
def op_norm2(w_c, w_t, h, w, channels, key, tol=1e-4, max_iter=300):
    """Power iteration on conv_t(conv(.)) — matches DFBBlock.op_norm2."""
    # TODO(synk): torch.randn init replaced by jax.random.normal (converges to
    # the same operator norm); the data-dependent early stop is a while_loop.
    x0 = jax.random.normal(key, (1, h, w, channels), jnp.float32)
    x0 = x0 / jnp.linalg.norm(x0.reshape(-1))
    x_pf = to_padded_flat(x0)

    def cond(state):
        _, _, rel, k = state
        return jnp.logical_and(k < max_iter, rel >= tol)

    def body(state):
        x, val, _, k = state
        y = normal_op_pf(x, w_c, w_t, h, w)
        new_val = jnp.linalg.norm(y.reshape(-1))
        rel = jnp.abs(new_val - val) / val
        return (y / new_val, new_val, rel, k + 1)

    init = (x_pf, jnp.float32(1.0), jnp.float32(jnp.inf), jnp.int32(0))
    _, val, _, _ = lax.while_loop(cond, body, init)
    return val


def precompute_gammas(params, key, *, height, width):
    """gamma = 1.8/lip2 per block, computed once per weight set (weights are
    fixed during a forward, so this equals the value DFBBlock.forward would
    recompute)."""
    channels = params["in_w"].shape[2]
    blocks = params["blocks"]
    if not blocks:
        return jnp.zeros((0,), jnp.float32)
    keys = jax.random.split(key, len(blocks))
    gammas = [1.8 / op_norm2(w_c, w_t, height, width, channels, keys[i])
              for i, (w_c, w_t) in enumerate(blocks)]
    return jnp.stack(gammas)


def dfbnet_forward(params, gammas, xref_nchw, xin_nchw, lam):
    """Equivalent of DFBNet.forward(xref, xin, l) with u=None (gamma hoisted)."""
    n, c, h, w = xref_nchw.shape
    xref = to_padded_flat(jnp.transpose(xref_nchw, (0, 2, 3, 1)).astype(jnp.float32))
    xin = to_padded_flat(jnp.transpose(xin_nchw, (0, 2, 3, 1)).astype(jnp.float32))

    u = in_conv_pf(xin, params["in_w"], h, w)
    for i, (w_c, w_t) in enumerate(params["blocks"]):
        u = dfb_block_pf(u, xref, gammas[i], lam, w_c, w_t, h, w)
    out_run = out_conv_pf(u, xref, params["in_w_t"], h, w)

    out = from_run(out_run, h, w)                     # (N, H, W, C)
    return jnp.transpose(out, (0, 3, 1, 2))           # back to NCHW


# --------------------------------------------------------------------------
# Deterministic synthetic parameters
# --------------------------------------------------------------------------
def _adjoint_weight(w_hwio):
    # ConvTranspose2d sharing a Conv2d weight == adjoint conv:
    # flip spatially and swap in/out channel axes.
    return jnp.transpose(w_hwio[::-1, ::-1, :, :], (0, 1, 3, 2))


def init_params(key, channels, features, num_of_layers):
    num_blocks = num_of_layers - 2

    def make_w(k, cin, cout):
        bound = 1.0 / math.sqrt(cin * 9)  # kaiming-uniform-like
        w_oihw = jax.random.uniform(k, (cout, cin, 3, 3), jnp.float32, -bound, bound)
        return jnp.transpose(w_oihw, (2, 3, 1, 0))  # HWIO

    keys = jax.random.split(key, num_blocks + 1)
    in_w = make_w(keys[0], channels, features)
    blocks = []
    for i in range(num_blocks):
        w_c = make_w(keys[i + 1], channels, features)
        blocks.append((w_c, _adjoint_weight(w_c)))
    return {"in_w": in_w, "in_w_t": _adjoint_weight(in_w), "blocks": blocks}


# --------------------------------------------------------------------------
# Demo
# --------------------------------------------------------------------------
if __name__ == "__main__":
    channels, features, num_of_layers = 3, 16, 4   # -> 2 DFB blocks
    n, h, w = 2, 16, 16

    key = jax.random.PRNGKey(0)
    k_par, k_ref, k_in, k_pow = jax.random.split(key, 4)

    params = init_params(k_par, channels, features, num_of_layers)
    xref = jax.random.uniform(k_ref, (n, channels, h, w), jnp.float32)
    xin = jax.random.uniform(k_in, (n, channels, h, w), jnp.float32)
    lam = jnp.float32(0.05)

    # lip2 / gamma precomputed once per weight set (hoisted out of the forward).
    gamma_fn = jax.jit(functools.partial(precompute_gammas, height=h, width=w))
    gammas = jax.block_until_ready(gamma_fn(params, k_pow))

    fwd = jax.jit(dfbnet_forward)
    out = jax.block_until_ready(fwd(params, gammas, xref, xin, lam))

    assert out.shape == (n, channels, h, w)
    assert out.dtype == jnp.float32
    assert bool(jnp.all(jnp.isfinite(out)))
    assert bool(jnp.all(out >= 0.0)) and bool(jnp.all(out <= 1.0))
    print("KERNEL_OK")
</pallas_src>

<mosaic_0001>
module attributes {stable_mosaic.version = 11 : i64} {
  func.func @_normal_op_kernel(%arg0: i32, %arg1: memref<288x1xf32, #tpu.memory_space<vmem>>, %arg2: memref<1x342x3xf32, #tpu.memory_space<vmem>>, %arg3: memref<9x3x16xf32, #tpu.memory_space<vmem>>, %arg4: memref<9x16x3xf32, #tpu.memory_space<vmem>>, %arg5: memref<1x342x3xf32, #tpu.memory_space<vmem>>, %arg6: memref<342x16xf32, #tpu.memory_space<vmem>>) attributes {dimension_semantics = [#tpu.dimension_semantics<parallel>], iteration_bounds = array<i64: 1>, scalar_prefetch = 0 : i64, scratch_operands = 1 : i64, tpu.core_type = #tpu.core_type<tc>, window_params = [{pipeline_mode = #tpu.pipeline_mode<synchronous>, transform_indices = @transform_0, window_bounds = array<i64: 288, 1>}, {transform_indices = @transform_1, window_bounds = array<i64: 1, 342, 3>}, {pipeline_mode = #tpu.pipeline_mode<synchronous>, transform_indices = @transform_2, window_bounds = array<i64: 9, 3, 16>}, {pipeline_mode = #tpu.pipeline_mode<synchronous>, transform_indices = @transform_3, window_bounds = array<i64: 9, 16, 3>}, {transform_indices = @transform_4, window_bounds = array<i64: 1, 342, 3>}]} {
    %c0 = arith.constant 0 : index
    %c0_0 = arith.constant 0 : index
    %0 = vector.load %arg1[%c0, %c0_0] : memref<288x1xf32, #tpu.memory_space<vmem>>, vector<288x1xf32>
    %cst = arith.constant 0.000000e+00 : f32
    %1 = vector.broadcast %cst : f32 to vector<288x16xf32>
    %c0_1 = arith.constant 0 : index
    %c0_2 = arith.constant 0 : index
    %c0_3 = arith.constant 0 : index
    %2 = vector.load %arg2[%c0_1, %c0_2, %c0_3] : memref<1x342x3xf32, #tpu.memory_space<vmem>>, vector<1x288x3xf32>
    %3 = vector.shape_cast %2 : vector<1x288x3xf32> to vector<288x3xf32>
    %c0_4 = arith.constant 0 : index
    %c0_5 = arith.constant 0 : index
    %c0_6 = arith.constant 0 : index
    %4 = vector.load %arg3[%c0_4, %c0_5, %c0_6] : memref<9x3x16xf32, #tpu.memory_space<vmem>>, vector<1x3x16xf32>
    %5 = vector.shape_cast %4 : vector<1x3x16xf32> to vector<3x16xf32>
    %cst_7 = arith.constant dense<0.000000e+00> : vector<288x16xf32>
    %6 = tpu.matmul %3, %5, %cst_7 {dimension_numbers = #tpu.dot_dimension_numbers<[1], [0], [0], [1], [0, 0, 1, 1], [], []>} : vector<288x3xf32>, vector<3x16xf32>, vector<288x16xf32> -> vector<288x16xf32>
    %7 = arith.addf %1, %6 : vector<288x16xf32>
    %c0_8 = arith.constant 0 : index
    %c1 = arith.constant 1 : index
    %c0_9 = arith.constant 0 : index
    %8 = vector.load %arg2[%c0_8, %c1, %c0_9] : memref<1x342x3xf32, #tpu.memory_space<vmem>>, vector<1x288x3xf32>
    %9 = vector.shape_cast %8 : vector<1x288x3xf32> to vector<288x3xf32>
    %c1_10 = arith.constant 1 : index
    %c0_11 = arith.constant 0 : index
    %c0_12 = arith.constant 0 : index
    %10 = vector.load %arg3[%c1_10, %c0_11, %c0_12] : memref<9x3x16xf32, #tpu.memory_space<vmem>>, vector<1x3x16xf32>
    %11 = vector.shape_cast %10 : vector<1x3x16xf32> to vector<3x16xf32>
    %cst_13 = arith.constant dense<0.000000e+00> : vector<288x16xf32>
    %12 = tpu.matmul %9, %11, %cst_13 {dimension_numbers = #tpu.dot_dimension_numbers<[1], [0], [0], [1], [0, 0, 1, 1], [], []>} : vector<288x3xf32>, vector<3x16xf32>, vector<288x16xf32> -> vector<288x16xf32>
    %13 = arith.addf %7, %12 : vector<288x16xf32>
    %c0_14 = arith.constant 0 : index
    %c2 = arith.constant 2 : index
    %c0_15 = arith.constant 0 : index
    %14 = vector.load %arg2[%c0_14, %c2, %c0_15] : memref<1x342x3xf32, #tpu.memory_space<vmem>>, vector<1x288x3xf32>
    %15 = vector.shape_cast %14 : vector<1x288x3xf32> to vector<288x3xf32>
    %c2_16 = arith.constant 2 : index
    %c0_17 = arith.constant 0 : index
    %c0_18 = arith.constant 0 : index
    %16 = vector.load %arg3[%c2_16, %c0_17, %c0_18] : memref<9x3x16xf32, #tpu.memory_space<vmem>>, vector<1x3x16xf32>
    %17 = vector.shape_cast %16 : vector<1x3x16xf32> to vector<3x16xf32>
    %cst_19 = arith.constant dense<0.000000e+00> : vector<288x16xf32>
    %18 = tpu.matmul %15, %17, %cst_19 {dimension_numbers = #tpu.dot_dimension_numbers<[1], [0], [0], [1], [0, 0, 1, 1], [], []>} : vector<288x3xf32>, vector<3x16xf32>, vector<288x16xf32> -> vector<288x16xf32>
    %19 = arith.addf %13, %18 : vector<288x16xf32>
    %c0_20 = arith.constant 0 : index
    %c18 = arith.constant 18 : index
    %c0_21 = arith.constant 0 : index
    %20 = vector.load %arg2[%c0_20, %c18, %c0_21] : memref<1x342x3xf32, #tpu.memory_space<vmem>>, vector<1x288x3xf32>
    %21 = vector.shape_cast %20 : vector<1x288x3xf32> to vector<288x3xf32>
    %c3 = arith.constant 3 : index
    %c0_22 = arith.constant 0 : index
    %c0_23 = arith.constant 0 : index
    %22 = vector.load %arg3[%c3, %c0_22, %c0_23] : memref<9x3x16xf32, #tpu.memory_space<vmem>>, vector<1x3x16xf32>
    %23 = vector.shape_cast %22 : vector<1x3x16xf32> to vector<3x16xf32>
    %cst_24 = arith.constant dense<0.000000e+00> : vector<288x16xf32>
    %24 = tpu.matmul %21, %23, %cst_24 {dimension_numbers = #tpu.dot_dimension_numbers<[1], [0], [0], [1], [0, 0, 1, 1], [], []>} : vector<288x3xf32>, vector<3x16xf32>, vector<288x16xf32> -> vector<288x16xf32>
    %25 = arith.addf %19, %24 : vector<288x16xf32>
    %c0_25 = arith.constant 0 : index
    %c19 = arith.constant 19 : index
    %c0_26 = arith.constant 0 : index
    %26 = vector.load %arg2[%c0_25, %c19, %c0_26] : memref<1x342x3xf32, #tpu.memory_space<vmem>>, vector<1x288x3xf32>
    %27 = vector.shape_cast %26 : vector<1x288x3xf32> to vector<288x3xf32>
    %c4 = arith.constant 4 : index
    %c0_27 = arith.constant 0 : index
    %c0_28 = arith.constant 0 : index
    %28 = vector.load %arg3[%c4, %c0_27, %c0_28] : memref<9x3x16xf32, #tpu.memory_space<vmem>>, vector<1x3x16xf32>
    %29 = vector.shape_cast %28 : vector<1x3x16xf32> to vector<3x16xf32>
    %cst_29 = arith.constant dense<0.000000e+00> : vector<288x16xf32>
    %30 = tpu.matmul %27, %29, %cst_29 {dimension_numbers = #tpu.dot_dimension_numbers<[1], [0], [0], [1], [0, 0, 1, 1], [], []>} : vector<288x3xf32>, vector<3x16xf32>, vector<288x16xf32> -> vector<288x16xf32>
    %31 = arith.addf %25, %30 : vector<288x16xf32>
    %c0_30 = arith.constant 0 : index
    %c20 = arith.constant 20 : index
    %c0_31 = arith.constant 0 : index
    %32 = vector.load %arg2[%c0_30, %c20, %c0_31] : memref<1x342x3xf32, #tpu.memory_space<vmem>>, vector<1x288x3xf32>
    %33 = vector.shape_cast %32 : vector<1x288x3xf32> to vector<288x3xf32>
    %c5 = arith.constant 5 : index
    %c0_32 = arith.constant 0 : index
    %c0_33 = arith.constant 0 : index
    %34 = vector.load %arg3[%c5, %c0_32, %c0_33] : memref<9x3x16xf32, #tpu.memory_space<vmem>>, vector<1x3x16xf32>
    %35 = vector.shape_cast %34 : vector<1x3x16xf32> to vector<3x16xf32>
    %cst_34 = arith.constant dense<0.000000e+00> : vector<288x16xf32>
    %36 = tpu.matmul %33, %35, %cst_34 {dimension_numbers = #tpu.dot_dimension_numbers<[1], [0], [0], [1], [0, 0, 1, 1], [], []>} : vector<288x3xf32>, vector<3x16xf32>, vector<288x16xf32> -> vector<288x16xf32>
    %37 = arith.addf %31, %36 : vector<288x16xf32>
    %c0_35 = arith.constant 0 : index
    %c36 = arith.constant 36 : index
    %c0_36 = arith.constant 0 : index
    %38 = vector.load %arg2[%c0_35, %c36, %c0_36] : memref<1x342x3xf32, #tpu.memory_space<vmem>>, vector<1x288x3xf32>
    %39 = vector.shape_cast %38 : vector<1x288x3xf32> to vector<288x3xf32>
    %c6 = arith.constant 6 : index
    %c0_37 = arith.constant 0 : index
    %c0_38 = arith.constant 0 : index
    %40 = vector.load %arg3[%c6, %c0_37, %c0_38] : memref<9x3x16xf32, #tpu.memory_space<vmem>>, vector<1x3x16xf32>
    %41 = vector.shape_cast %40 : vector<1x3x16xf32> to vector<3x16xf32>
    %cst_39 = arith.constant dense<0.000000e+00> : vector<288x16xf32>
    %42 = tpu.matmul %39, %41, %cst_39 {dimension_numbers = #tpu.dot_dimension_numbers<[1], [0], [0], [1], [0, 0, 1, 1], [], []>} : vector<288x3xf32>, vector<3x16xf32>, vector<288x16xf32> -> vector<288x16xf32>
    %43 = arith.addf %37, %42 : vector<288x16xf32>
    %c0_40 = arith.constant 0 : index
    %c37 = arith.constant 37 : index
    %c0_41 = arith.constant 0 : index
    %44 = vector.load %arg2[%c0_40, %c37, %c0_41] : memref<1x342x3xf32, #tpu.memory_space<vmem>>, vector<1x288x3xf32>
    %45 = vector.shape_cast %44 : vector<1x288x3xf32> to vector<288x3xf32>
    %c7 = arith.constant 7 : index
    %c0_42 = arith.constant 0 : index
    %c0_43 = arith.constant 0 : index
    %46 = vector.load %arg3[%c7, %c0_42, %c0_43] : memref<9x3x16xf32, #tpu.memory_space<vmem>>, vector<1x3x16xf32>
    %47 = vector.shape_cast %46 : vector<1x3x16xf32> to vector<3x16xf32>
    %cst_44 = arith.constant dense<0.000000e+00> : vector<288x16xf32>
    %48 = tpu.matmul %45, %47, %cst_44 {dimension_numbers = #tpu.dot_dimension_numbers<[1], [0], [0], [1], [0, 0, 1, 1], [], []>} : vector<288x3xf32>, vector<3x16xf32>, vector<288x16xf32> -> vector<288x16xf32>
    %49 = arith.addf %43, %48 : vector<288x16xf32>
    %c0_45 = arith.constant 0 : index
    %c38 = arith.constant 38 : index
    %c0_46 = arith.constant 0 : index
    %50 = vector.load %arg2[%c0_45, %c38, %c0_46] : memref<1x342x3xf32, #tpu.memory_space<vmem>>, vector<1x288x3xf32>
    %51 = vector.shape_cast %50 : vector<1x288x3xf32> to vector<288x3xf32>
    %c8 = arith.constant 8 : index
    %c0_47 = arith.constant 0 : index
    %c0_48 = arith.constant 0 : index
    %52 = vector.load %arg3[%c8, %c0_47, %c0_48] : memref<9x3x16xf32, #tpu.memory_space<vmem>>, vector<1x3x16xf32>
    %53 = vector.shape_cast %52 : vector<1x3x16xf32> to vector<3x16xf32>
    %cst_49 = arith.constant dense<0.000000e+00> : vector<288x16xf32>
    %54 = tpu.matmul %51, %53, %cst_49 {dimension_numbers = #tpu.dot_dimension_numbers<[1], [0], [0], [1], [0, 0, 1, 1], [], []>} : vector<288x3xf32>, vector<3x16xf32>, vector<288x16xf32> -> vector<288x16xf32>
    %55 = arith.addf %49, %54 : vector<288x16xf32>
    %cst_50 = arith.constant 0.000000e+00 : f32
    %56 = vector.broadcast %cst_50 : f32 to vector<19x16xf32>
    %c0_51 = arith.constant 0 : index
    %c0_52 = arith.constant 0 : index
    %57 = vector.load %arg6[%c0_51, %c0_52] : memref<342x16xf32, #tpu.memory_space<vmem>>, vector<19x16xf32>
    tpu.vector_store %arg6[%c0_51, %c0_52], %56 {strides = array<i32>} : memref<342x16xf32, #tpu.memory_space<vmem>>, vector<19x16xf32>,
    %58 = vector.broadcast %0 : vector<288x1xf32> to vector<288x16xf32>
    %59 = arith.mulf %55, %58 : vector<288x16xf32>
    %c19_53 = arith.constant 19 : index
    %c0_54 = arith.constant 0 : index
    %60 = vector.load %arg6[%c19_53, %c0_54] : memref<342x16xf32, #tpu.memory_space<vmem>>, vector<288x16xf32>
    tpu.vector_store %arg6[%c19_53, %c0_54], %59 {strides = array<i32>} : memref<342x16xf32, #tpu.memory_space<vmem>>, vector<288x16xf32>,
    %cst_55 = arith.constant 0.000000e+00 : f32
    %61 = vector.broadcast %cst_55 : f32 to vector<35x16xf32>
    %c307 = arith.constant 307 : index
    %c0_56 = arith.constant 0 : index
    %62 = vector.load %arg6[%c307, %c0_56] : memref<342x16xf32, #tpu.memory_space<vmem>>, vector<35x16xf32>
    tpu.vector_store %arg6[%c307, %c0_56], %61 {strides = array<i32>} : memref<342x16xf32, #tpu.memory_space<vmem>>, vector<35x16xf32>,
    %cst_57 = arith.constant 0.000000e+00 : f32
    %63 = vector.broadcast %cst_57 : f32 to vector<288x3xf32>
    %c0_58 = arith.constant 0 : index
    %c0_59 = arith.constant 0 : index
    %64 = vector.load %arg6[%c0_58, %c0_59] : memref<342x16xf32, #tpu.memory_space<vmem>>, vector<288x16xf32>
    %c0_60 = arith.constant 0 : index
    %c0_61 = arith.constant 0 : index
    %c0_62 = arith.constant 0 : index
    %65 = vector.load %arg4[%c0_60, %c0_61, %c0_62] : memref<9x16x3xf32, #tpu.memory_space<vmem>>, vector<1x16x3xf32>
    %66 = vector.shape_cast %65 : vector<1x16x3xf32> to vector<16x3xf32>
    %cst_63 = arith.constant dense<0.000000e+00> : vector<288x3xf32>
    %67 = tpu.matmul %64, %66, %cst_63 {dimension_numbers = #tpu.dot_dimension_numbers<[1], [0], [0], [1], [0, 0, 1, 1], [], []>} : vector<288x16xf32>, vector<16x3xf32>, vector<288x3xf32> -> vector<288x3xf32>
    %68 = arith.addf %63, %67 : vector<288x3xf32>
    %c1_64 = arith.constant 1 : index
    %c0_65 = arith.constant 0 : index
    %69 = vector.load %arg6[%c1_64, %c0_65] : memref<342x16xf32, #tpu.memory_space<vmem>>, vector<288x16xf32>
    %c1_66 = arith.constant 1 : index
    %c0_67 = arith.constant 0 : index
    %c0_68 = arith.constant 0 : index
    %70 = vector.load %arg4[%c1_66, %c0_67, %c0_68] : memref<9x16x3xf32, #tpu.memory_space<vmem>>, vector<1x16x3xf32>
    %71 = vector.shape_cast %70 : vector<1x16x3xf32> to vector<16x3xf32>
    %cst_69 = arith.constant dense<0.000000e+00> : vector<288x3xf32>
    %72 = tpu.matmul %69, %71, %cst_69 {dimension_numbers = #tpu.dot_dimension_numbers<[1], [0], [0], [1], [0, 0, 1, 1], [], []>} : vector<288x16xf32>, vector<16x3xf32>, vector<288x3xf32> -> vector<288x3xf32>
    %73 = arith.addf %68, %72 : vector<288x3xf32>
    %c2_70 = arith.constant 2 : index
    %c0_71 = arith.constant 0 : index
    %74 = vector.load %arg6[%c2_70, %c0_71] : memref<342x16xf32, #tpu.memory_space<vmem>>, vector<288x16xf32>
    %c2_72 = arith.constant 2 : index
    %c0_73 = arith.constant 0 : index
    %c0_74 = arith.constant 0 : index
    %75 = vector.load %arg4[%c2_72, %c0_73, %c0_74] : memref<9x16x3xf32, #tpu.memory_space<vmem>>, vector<1x16x3xf32>
    %76 = vector.shape_cast %75 : vector<1x16x3xf32> to vector<16x3xf32>
    %cst_75 = arith.constant dense<0.000000e+00> : vector<288x3xf32>
    %77 = tpu.matmul %74, %76, %cst_75 {dimension_numbers = #tpu.dot_dimension_numbers<[1], [0], [0], [1], [0, 0, 1, 1], [], []>} : vector<288x16xf32>, vector<16x3xf32>, vector<288x3xf32> -> vector<288x3xf32>
    %78 = arith.addf %73, %77 : vector<288x3xf32>
    %c18_76 = arith.constant 18 : index
    %c0_77 = arith.constant 0 : index
    %79 = vector.load %arg6[%c18_76, %c0_77] : memref<342x16xf32, #tpu.memory_space<vmem>>, vector<288x16xf32>
    %c3_78 = arith.constant 3 : index
    %c0_79 = arith.constant 0 : index
    %c0_80 = arith.constant 0 : index
    %80 = vector.load %arg4[%c3_78, %c0_79, %c0_80] : memref<9x16x3xf32, #tpu.memory_space<vmem>>, vector<1x16x3xf32>
    %81 = vector.shape_cast %80 : vector<1x16x3xf32> to vector<16x3xf32>
    %cst_81 = arith.constant dense<0.000000e+00> : vector<288x3xf32>
    %82 = tpu.matmul %79, %81, %cst_81 {dimension_numbers = #tpu.dot_dimension_numbers<[1], [0], [0], [1], [0, 0, 1, 1], [], []>} : vector<288x16xf32>, vector<16x3xf32>, vector<288x3xf32> -> vector<288x3xf32>
    %83 = arith.addf %78, %82 : vector<288x3xf32>
    %c19_82 = arith.constant 19 : index
    %c0_83 = arith.constant 0 : index
    %84 = vector.load %arg6[%c19_82, %c0_83] : memref<342x16xf32, #tpu.memory_space<vmem>>, vector<288x16xf32>
    %c4_84 = arith.constant 4 : index
    %c0_85 = arith.constant 0 : index
    %c0_86 = arith.constant 0 : index
    %85 = vector.load %arg4[%c4_84, %c0_85, %c0_86] : memref<9x16x3xf32, #tpu.memory_space<vmem>>, vector<1x16x3xf32>
    %86 = vector.shape_cast %85 : vector<1x16x3xf32> to vector<16x3xf32>
    %cst_87 = arith.constant dense<0.000000e+00> : vector<288x3xf32>
    %87 = tpu.matmul %84, %86, %cst_87 {dimension_numbers = #tpu.dot_dimension_numbers<[1], [0], [0], [1], [0, 0, 1, 1], [], []>} : vector<288x16xf32>, vector<16x3xf32>, vector<288x3xf32> -> vector<288x3xf32>
    %88 = arith.addf %83, %87 : vector<288x3xf32>
    %c20_88 = arith.constant 20 : index
    %c0_89 = arith.constant 0 : index
    %89 = vector.load %arg6[%c20_88, %c0_89] : memref<342x16xf32, #tpu.memory_space<vmem>>, vector<288x16xf32>
    %c5_90 = arith.constant 5 : index
    %c0_91 = arith.constant 0 : index
    %c0_92 = arith.constant 0 : index
    %90 = vector.load %arg4[%c5_90, %c0_91, %c0_92] : memref<9x16x3xf32, #tpu.memory_space<vmem>>, vector<1x16x3xf32>
    %91 = vector.shape_cast %90 : vector<1x16x3xf32> to vector<16x3xf32>
    %cst_93 = arith.constant dense<0.000000e+00> : vector<288x3xf32>
    %92 = tpu.matmul %89, %91, %cst_93 {dimension_numbers = #tpu.dot_dimension_numbers<[1], [0], [0], [1], [0, 0, 1, 1], [], []>} : vector<288x16xf32>, vector<16x3xf32>, vector<288x3xf32> -> vector<288x3xf32>
    %93 = arith.addf %88, %92 : vector<288x3xf32>
    %c36_94 = arith.constant 36 : index
    %c0_95 = arith.constant 0 : index
    %94 = vector.load %arg6[%c36_94, %c0_95] : memref<342x16xf32, #tpu.memory_space<vmem>>, vector<288x16xf32>
    %c6_96 = arith.constant 6 : index
    %c0_97 = arith.constant 0 : index
    %c0_98 = arith.constant 0 : index
    %95 = vector.load %arg4[%c6_96, %c0_97, %c0_98] : memref<9x16x3xf32, #tpu.memory_space<vmem>>, vector<1x16x3xf32>
    %96 = vector.shape_cast %95 : vector<1x16x3xf32> to vector<16x3xf32>
    %cst_99 = arith.constant dense<0.000000e+00> : vector<288x3xf32>
    %97 = tpu.matmul %94, %96, %cst_99 {dimension_numbers = #tpu.dot_dimension_numbers<[1], [0], [0], [1], [0, 0, 1, 1], [], []>} : vector<288x16xf32>, vector<16x3xf32>, vector<288x3xf32> -> vector<288x3xf32>
    %98 = arith.addf %93, %97 : vector<288x3xf32>
    %c37_100 = arith.constant 37 : index
    %c0_101 = arith.constant 0 : index
    %99 = vector.load %arg6[%c37_100, %c0_101] : memref<342x16xf32, #tpu.memory_space<vmem>>, vector<288x16xf32>
    %c7_102 = arith.constant 7 : index
    %c0_103 = arith.constant 0 : index
    %c0_104 = arith.constant 0 : index
    %100 = vector.load %arg4[%c7_102, %c0_103, %c0_104] : memref<9x16x3xf32, #tpu.memory_space<vmem>>, vector<1x16x3xf32>
    %101 = vector.shape_cast %100 : vector<1x16x3xf32> to vector<16x3xf32>
    %cst_105 = arith.constant dense<0.000000e+00> : vector<288x3xf32>
    %102 = tpu.matmul %99, %101, %cst_105 {dimension_numbers = #tpu.dot_dimension_numbers<[1], [0], [0], [1], [0, 0, 1, 1], [], []>} : vector<288x16xf32>, vector<16x3xf32>, vector<288x3xf32> -> vector<288x3xf32>
    %103 = arith.addf %98, %102 : vector<288x3xf32>
    %c38_106 = arith.constant 38 : index
    %c0_107 = arith.constant 0 : index
    %104 = vector.load %arg6[%c38_106, %c0_107] : memref<342x16xf32, #tpu.memory_space<vmem>>, vector<288x16xf32>
    %c8_108 = arith.constant 8 : index
    %c0_109 = arith.constant 0 : index
    %c0_110 = arith.constant 0 : index
    %105 = vector.load %arg4[%c8_108, %c0_109, %c0_110] : memref<9x16x3xf32, #tpu.memory_space<vmem>>, vector<1x16x3xf32>
    %106 = vector.shape_cast %105 : vector<1x16x3xf32> to vector<16x3xf32>
    %cst_111 = arith.constant dense<0.000000e+00> : vector<288x3xf32>
    %107 = tpu.matmul %104, %106, %cst_111 {dimension_numbers = #tpu.dot_dimension_numbers<[1], [0], [0], [1], [0, 0, 1, 1], [], []>} : vector<288x16xf32>, vector<16x3xf32>, vector<288x3xf32> -> vector<288x3xf32>
    %108 = arith.addf %103, %107 : vector<288x3xf32>
    %cst_112 = arith.constant 0.000000e+00 : f32
    %109 = vector.broadcast %cst_112 : f32 to vector<19x3xf32>
    %c0_113 = arith.constant 0 : index
    %c0_114 = arith.constant 0 : index
    %c0_115 = arith.constant 0 : index
    %110 = vector.load %arg5[%c0_113, %c0_114, %c0_115] : memref<1x342x3xf32, #tpu.memory_space<vmem>>, vector<1x19x3xf32>
    %111 = vector.shape_cast %110 : vector<1x19x3xf32> to vector<19x3xf32>
    %112 = vector.shape_cast %109 : vector<19x3xf32> to vector<1x19x3xf32>
    tpu.vector_store %arg5[%c0_113, %c0_114, %c0_115], %112 {strides = array<i32>} : memref<1x342x3xf32, #tpu.memory_space<vmem>>, vector<1x19x3xf32>,
    %113 = vector.broadcast %0 : vector<288x1xf32> to vector<288x3xf32>
    %114 = arith.mulf %108, %113 : vector<288x3xf32>
    %c0_116 = arith.constant 0 : index
    %c19_117 = arith.constant 19 : index
    %c0_118 = arith.constant 0 : index
    %115 = vector.load %arg5[%c0_116, %c19_117, %c0_118] : memref<1x342x3xf32, #tpu.memory_space<vmem>>, vector<1x288x3xf32>
    %116 = vector.shape_cast %115 : vector<1x288x3xf32> to vector<288x3xf32>
    %117 = vector.shape_cast %114 : vector<288x3xf32> to vector<1x288x3xf32>
    tpu.vector_store %arg5[%c0_116, %c19_117, %c0_118], %117 {strides = array<i32>} : memref<1x342x3xf32, #tpu.memory_space<vmem>>, vector<1x288x3xf32>,
    %cst_119 = arith.constant 0.000000e+00 : f32
    %118 = vector.broadcast %cst_119 : f32 to vector<35x3xf32>
    %c0_120 = arith.constant 0 : index
    %c307_121 = arith.constant 307 : index
    %c0_122 = arith.constant 0 : index
    %119 = vector.load %arg5[%c0_120, %c307_121, %c0_122] : memref<1x342x3xf32, #tpu.memory_space<vmem>>, vector<1x35x3xf32>
    %120 = vector.shape_cast %119 : vector<1x35x3xf32> to vector<35x3xf32>
    %121 = vector.shape_cast %118 : vector<35x3xf32> to vector<1x35x3xf32>
    tpu.vector_store %arg5[%c0_120, %c307_121, %c0_122], %121 {strides = array<i32>} : memref<1x342x3xf32, #tpu.memory_space<vmem>>, vector<1x35x3xf32>,
    return
  }
  func.func @transform_0(%arg0: i32) -> (i32, i32) {
    %c0_i32 = arith.constant 0 : i32
    %c0_i32_0 = arith.constant 0 : i32
    %c0_i32_1 = arith.constant 0 : i32
    return %c0_i32, %c0_i32_0 : i32, i32
  }
  func.func @transform_1(%arg0: i32) -> (i32, i32, i32) {
    %c0_i32 = arith.constant 0 : i32
    %c0_i32_0 = arith.constant 0 : i32
    %c0_i32_1 = arith.constant 0 : i32
    return %arg0, %c0_i32, %c0_i32_0 : i32, i32, i32
  }
  func.func @transform_2(%arg0: i32) -> (i32, i32, i32) {
    %c0_i32 = arith.constant 0 : i32
    %c0_i32_0 = arith.constant 0 : i32
    %c0_i32_1 = arith.constant 0 : i32
    %c0_i32_2 = arith.constant 0 : i32
    return %c0_i32, %c0_i32_0, %c0_i32_1 : i32, i32, i32
  }
  func.func @transform_3(%arg0: i32) -> (i32, i32, i32) {
    %c0_i32 = arith.constant 0 : i32
    %c0_i32_0 = arith.constant 0 : i32
    %c0_i32_1 = arith.constant 0 : i32
    %c0_i32_2 = arith.constant 0 : i32
    return %c0_i32, %c0_i32_0, %c0_i32_1 : i32, i32, i32
  }
  func.func @transform_4(%arg0: i32) -> (i32, i32, i32) {
    %c0_i32 = arith.constant 0 : i32
    %c0_i32_0 = arith.constant 0 : i32
    %c0_i32_1 = arith.constant 0 : i32
    return %arg0, %c0_i32, %c0_i32_0 : i32, i32, i32
  }
}

</mosaic_0001>

<llo_original>
// kernel: body.6
$region0: #{body.6}
  #allocation0 [shape = 'u32[]', space=smem, size = 0x4, offset = 0x4, fixed_abs, tag = 'smem constant byte address 0x4 - core index']
  #allocation1 [shape = 'u32[144,128]{1,0:T(1,128)}', space=vmem, size = 0x12000, scoped, tag = 'internal scratch']
  #allocation2 [shape = 'f32[342,16]{1,0:T(8,128)}', space=vmem, size = 0x2b000, scoped, tag = 'scratch operand']
  %s0 = inlined_call_operand.vmem [shape: f32[288,1], index: 0, kind: input, shape index: {}]
  %s1 = inlined_call_operand.vmem [shape: f32[1,342,3], index: 1, kind: input, shape index: {}]
  %s2 = inlined_call_operand.vmem [shape: f32[9,3,16], index: 2, kind: input, shape index: {}]
  %s3 = inlined_call_operand.vmem [shape: f32[9,16,3], index: 3, kind: input, shape index: {}]
  %s4 = inlined_call_operand.vmem [shape: f32[1,342,3], index: 4, kind: output, shape index: {}]
  %s5 = sld [smem:[#allocation0]]
  $region26: #{body.6} parent=0
    _
  %s7 = ssub.s32 1, %s5
  %s8 = scalar_select 0, %s7, %s5
  // Predicated region
  $region2: #{body.6} parent=0 // pred_check
    _
  $region3: #{body.6} parent=0 // pred_check_branch
    %10 = sbr.rel (0) target = $region5
  $region4: #{body.6} parent=0 // pred_region
    _
  $region5: #{body.6} parent=0 // pred_fallthru
    _
  // Predicated region
  $region6: #{body.6} parent=0 // pred_check
    _
  $region7: #{body.6} parent=0 // pred_check_branch
    %12 = sbr.rel (0) target = $region9
  $region8: #{body.6} parent=0 // pred_region
    _
  $region9: #{body.6} parent=0 // pred_fallthru
    _
  // Predicated region
  $region10: #{body.6} parent=0 // pred_check
    _
  $region11: #{body.6} parent=0 // pred_check_branch
    %14 = sbr.rel (0) target = $region13
  $region12: #{body.6} parent=0 // pred_region
    _
  $region13: #{body.6} parent=0 // pred_fallthru
    _
  // Predicated region
  $region14: #{body.6} parent=0 // pred_check
    _
  $region15: #{body.6} parent=0 // pred_check_branch
    %16 = sbr.rel (0) target = $region17
  $region16: #{body.6} parent=0 // pred_region
    _
  $region17: #{body.6} parent=0 // pred_fallthru
    _
  %v17 = vld [vmem:[%s0] sm:$0xff]
  %v18 = vld [vmem:[%s0 + $0x8] sm:$0xff]
  %v19 = vld [vmem:[%s0 + $0x10] sm:$0xff]
  %v20 = vld [vmem:[%s0 + $0x18] sm:$0xff]
  %v21 = vld [vmem:[%s0 + $0x20] sm:$0xff]
  %v22 = vld [vmem:[%s0 + $0x28] sm:$0xff]
  %v23 = vld [vmem:[%s0 + $0x30] sm:$0xff]
  %v24 = vld [vmem:[%s0 + $0x38] sm:$0xff]
  %v25 = vld [vmem:[%s0 + $0x40] sm:$0xff]
  %v26 = vld [vmem:[%s0 + $0x48] sm:$0xff]
  %v27 = vld [vmem:[%s0 + $0x50] sm:$0xff]
  %v28 = vld [vmem:[%s0 + $0x58] sm:$0xff]
  %v29 = vld [vmem:[%s0 + $0x60] sm:$0xff]
  %v30 = vld [vmem:[%s0 + $0x68] sm:$0xff]
  %v31 = vld [vmem:[%s0 + $0x70] sm:$0xff]
  %v32 = vld [vmem:[%s0 + $0x78] sm:$0xff]
  %v33 = vld [vmem:[%s0 + $0x80] sm:$0xff]
  %v34 = vld [vmem:[%s0 + $0x88] sm:$0xff]
  %v35 = vld [vmem:[%s0 + $0x90] sm:$0xff]
  %v36 = vld [vmem:[%s0 + $0x98] sm:$0xff]
  %v37 = vld [vmem:[%s0 + $0xa0] sm:$0xff]
  %v38 = vld [vmem:[%s0 + $0xa8] sm:$0xff]
  %v39 = vld [vmem:[%s0 + $0xb0] sm:$0xff]
  %v40 = vld [vmem:[%s0 + $0xb8] sm:$0xff]
  %v41 = vld [vmem:[%s0 + $0xc0] sm:$0xff]
  %v42 = vld [vmem:[%s0 + $0xc8] sm:$0xff]
  %v43 = vld [vmem:[%s0 + $0xd0] sm:$0xff]
  %v44 = vld [vmem:[%s0 + $0xd8] sm:$0xff]
  %v45 = vld [vmem:[%s0 + $0xe0] sm:$0xff]
  %v46 = vld [vmem:[%s0 + $0xe8] sm:$0xff]
  %v47 = vld [vmem:[%s0 + $0xf0] sm:$0xff]
  %v48 = vld [vmem:[%s0 + $0xf8] sm:$0xff]
  %v49 = vld [vmem:[%s0 + $0x100] sm:$0xff]
  %v50 = vld [vmem:[%s0 + $0x108] sm:$0xff]
  %v51 = vld [vmem:[%s0 + $0x110] sm:$0xff]
  %v52 = vld [vmem:[%s0 + $0x118] sm:$0xff]
  %v53 = vld [vmem:[%s1] sm:$0xff]
  %v54 = vld [vmem:[%s1 + $0x8] sm:$0xff]
  %v55 = vld [vmem:[%s1 + $0x10] sm:$0xff]
  %v56 = vld [vmem:[%s1 + $0x18] sm:$0xff]
  %v57 = vld [vmem:[%s1 + $0x20] sm:$0xff]
  %v58 = vld [vmem:[%s1 + $0x28] sm:$0xff]
  %v59 = vld [vmem:[%s1 + $0x30] sm:$0xff]
  %v60 = vld [vmem:[%s1 + $0x38] sm:$0xff]
  %v61 = vld [vmem:[%s1 + $0x40] sm:$0xff]
  %v62 = vld [vmem:[%s1 + $0x48] sm:$0xff]
  %v63 = vld [vmem:[%s1 + $0x50] sm:$0xff]
  %v64 = vld [vmem:[%s1 + $0x58] sm:$0xff]
  %v65 = vld [vmem:[%s1 + $0x60] sm:$0xff]
  %v66 = vld [vmem:[%s1 + $0x68] sm:$0xff]
  %v67 = vld [vmem:[%s1 + $0x70] sm:$0xff]
  %v68 = vld [vmem:[%s1 + $0x78] sm:$0xff]
  %v69 = vld [vmem:[%s1 + $0x80] sm:$0xff]
  %v70 = vld [vmem:[%s1 + $0x88] sm:$0xff]
  %v71 = vld [vmem:[%s1 + $0x90] sm:$0xff]
  %v72 = vld [vmem:[%s1 + $0x98] sm:$0xff]
  %v73 = vld [vmem:[%s1 + $0xa0] sm:$0xff]
  %v74 = vld [vmem:[%s1 + $0xa8] sm:$0xff]
  %v75 = vld [vmem:[%s1 + $0xb0] sm:$0xff]
  %v76 = vld [vmem:[%s1 + $0xb8] sm:$0xff]
  %v77 = vld [vmem:[%s1 + $0xc0] sm:$0xff]
  %v78 = vld [vmem:[%s1 + $0xc8] sm:$0xff]
  %v79 = vld [vmem:[%s1 + $0xd0] sm:$0xff]
  %v80 = vld [vmem:[%s1 + $0xd8] sm:$0xff]
  %v81 = vld [vmem:[%s1 + $0xe0] sm:$0xff]
  %v82 = vld [vmem:[%s1 + $0xe8] sm:$0xff]
  %v83 = vld [vmem:[%s1 + $0xf0] sm:$0xff]
  %v84 = vld [vmem:[%s1 + $0xf8] sm:$0xff]
  %v85 = vld [vmem:[%s1 + $0x100] sm:$0xff]
  %v86 = vld [vmem:[%s1 + $0x108] sm:$0xff]
  %v87 = vld [vmem:[%s1 + $0x110] sm:$0xff]
  %v88 = vld [vmem:[%s1 + $0x118] sm:$0xff]
  %v89 = vld [vmem:[%s2] sm:$0x7]
  %v90 = vld [vmem:[%s1 + $0x1] sm:$0xff]
  %v91 = vld [vmem:[%s1 + $0x9] sm:$0xff]
  %v92 = vld [vmem:[%s1 + $0x11] sm:$0xff]
  %v93 = vld [vmem:[%s1 + $0x19] sm:$0xff]
  %v94 = vld [vmem:[%s1 + $0x21] sm:$0xff]
  %v95 = vld [vmem:[%s1 + $0x29] sm:$0xff]
  %v96 = vld [vmem:[%s1 + $0x31] sm:$0xff]
  %v97 = vld [vmem:[%s1 + $0x39] sm:$0xff]
  %v98 = vld [vmem:[%s1 + $0x41] sm:$0xff]
  %v99 = vld [vmem:[%s1 + $0x49] sm:$0xff]
  %v100 = vld [vmem:[%s1 + $0x51] sm:$0xff]
  %v101 = vld [vmem:[%s1 + $0x59] sm:$0xff]
  %v102 = vld [vmem:[%s1 + $0x61] sm:$0xff]
  %v103 = vld [vmem:[%s1 + $0x69] sm:$0xff]
  %v104 = vld [vmem:[%s1 + $0x71] sm:$0xff]
  %v105 = vld [vmem:[%s1 + $0x79] sm:$0xff]
  %v106 = vld [vmem:[%s1 + $0x81] sm:$0xff]
  %v107 = vld [vmem:[%s1 + $0x89] sm:$0xff]
  %v108 = vld [vmem:[%s1 + $0x91] sm:$0xff]
  %v109 = vld [vmem:[%s1 + $0x99] sm:$0xff]
  %v110 = vld [vmem:[%s1 + $0xa1] sm:$0xff]
  %v111 = vld [vmem:[%s1 + $0xa9] sm:$0xff]
  %v112 = vld [vmem:[%s1 + $0xb1] sm:$0xff]
  %v113 = vld [vmem:[%s1 + $0xb9] sm:$0xff]
  %v114 = vld [vmem:[%s1 + $0xc1] sm:$0xff]
  %v115 = vld [vmem:[%s1 + $0xc9] sm:$0xff]
  %v116 = vld [vmem:[%s1 + $0xd1] sm:$0xff]
  %v117 = vld [vmem:[%s1 + $0xd9] sm:$0xff]
  %v118 = vld [vmem:[%s1 + $0xe1] sm:$0xff]
  %v119 = vld [vmem:[%s1 + $0xe9] sm:$0xff]
  %v120 = vld [vmem:[%s1 + $0xf1] sm:$0xff]
  %v121 = vld [vmem:[%s1 + $0xf9] sm:$0xff]
  %v122 = vld [vmem:[%s1 + $0x101] sm:$0xff]
  %v123 = vld [vmem:[%s1 + $0x109] sm:$0xff]
  %v124 = vld [vmem:[%s1 + $0x111] sm:$0xff]
  %v125 = vld [vmem:[%s1 + $0x119] sm:$0xff]
  %s126 = scalar_lea.vmem %s2, 4
  %v127 = vld [vmem:[%s126] sm:$0x7]
  %vm128 = vcmask 23552
  %v130 = vsel %vm128, %v90, 0
  %v133 = vsel %vm128, %v91, 0
  %v136 = vsel %vm128, %v92, 0
  %v139 = vsel %vm128, %v93, 0
  %v142 = vsel %vm128, %v94, 0
  %v145 = vsel %vm128, %v95, 0
  %v148 = vsel %vm128, %v96, 0
  %v151 = vsel %vm128, %v97, 0
  %v154 = vsel %vm128, %v98, 0
  %v157 = vsel %vm128, %v99, 0
  %v160 = vsel %vm128, %v100, 0
  %v163 = vsel %vm128, %v101, 0
  %v166 = vsel %vm128, %v102, 0
  %v169 = vsel %vm128, %v103, 0
  %v172 = vsel %vm128, %v104, 0
  %v175 = vsel %vm128, %v105, 0
  %v178 = vsel %vm128, %v106, 0
  %v181 = vsel %vm128, %v107, 0
  %v184 = vsel %vm128, %v108, 0
  %v187 = vsel %vm128, %v109, 0
  %v190 = vsel %vm128, %v110, 0
  %v193 = vsel %vm128, %v111, 0
  %v196 = vsel %vm128, %v112, 0
  %v199 = vsel %vm128, %v113, 0
  %v202 = vsel %vm128, %v114, 0
  %v205 = vsel %vm128, %v115, 0
  %v208 = vsel %vm128, %v116, 0
  %v211 = vsel %vm128, %v117, 0
  %v214 = vsel %vm128, %v118, 0
  %v217 = vsel %vm128, %v119, 0
  %v220 = vsel %vm128, %v120, 0
  %v223 = vsel %vm128, %v121, 0
  %v226 = vsel %vm128, %v122, 0
  %v229 = vsel %vm128, %v123, 0
  %v232 = vsel %vm128, %v124, 0
  %v235 = vsel %vm128, %v125, 0
  %vm237 = vcmask 1042432
  %v239 = vsel %vm237, %v127, 0
  %241 = vmatprep.subr.mxu0 0.0
  %242 = vmatpush1.msra.mxu0 %v239
  %243 = vmatprep.subr.mxu0 0.0
  %244 = vmatpush1.msra.mxu0 0.0
  %245 = vmatprep.subr.mxu0 0.0
  %246 = vmatpush1.msra.mxu0 0.0
  %247 = vmatprep.subr.mxu0 0.0
  %248 = vmatpush1.msra.mxu0 0.0
  %249 = vmatprep.subr.mxu0 0.0
  %250 = vmatpush1.msra.mxu0 0.0
  %251 = vmatprep.subr.mxu0 0.0
  %252 = vmatpush1.msra.mxu0 0.0
  %253 = vmatprep.subr.mxu0 0.0
  %254 = vmatpush1.msra.mxu0 0.0
  %255 = vmatprep.subr.mxu0 0.0
  %256 = vmatpush1.msra.mxu0 0.0
  %257 = vmatprep.subr.mxu0 0.0
  %258 = vmatpush1.msra.mxu0 0.0
  %259 = vmatprep.subr.mxu0 0.0
  %260 = vmatpush1.msra.mxu0 0.0
  %261 = vmatprep.subr.mxu0 0.0
  %262 = vmatpush1.msra.mxu0 0.0
  %263 = vmatprep.subr.mxu0 0.0
  %264 = vmatpush1.msra.mxu0 0.0
  %265 = vmatprep.subr.mxu0 0.0
  %266 = vmatpush1.msra.mxu0 0.0
  %267 = vmatprep.subr.mxu0 0.0
  %268 = vmatpush1.msra.mxu0 0.0
  %269 = vmatprep.subr.mxu0 0.0
  %270 = vmatpush1.msra.mxu0 0.0
  %271 = vmatprep.subr.mxu0 0.0
  %272 = vmatpush1.msra.mxu0 0.0
  %273 = vmatprep.subr.mxu0 0.0
  %274 = vmatpush1.msra.mxu0 0.0
  %275 = vmatprep.subr.mxu0 0.0
  %276 = vmatpush1.msra.mxu0 0.0
  %277 = vmatprep.subr.mxu0 0.0
  %278 = vmatpush1.msra.mxu0 0.0
  %279 = vmatprep.subr.mxu0 0.0
  %280 = vmatpush1.msra.mxu0 0.0
  %281 = vmatprep.subr.mxu0 0.0
  %282 = vmatpush1.msra.mxu0 0.0
  %283 = vmatprep.subr.mxu0 0.0
  %284 = vmatpush1.msra.mxu0 0.0
  %285 = vmatprep.subr.mxu0 0.0
  %286 = vmatpush1.msra.mxu0 0.0
  %287 = vmatprep.subr.mxu0 0.0
  %288 = vmatpush1.msra.mxu0 0.0
  %289 = vmatprep.subr.mxu0 0.0
  %290 = vmatpush1.msra.mxu0 0.0
  %291 = vmatprep.subr.mxu0 0.0
  %292 = vmatpush1.msra.mxu0 0.0
  %293 = vmatprep.subr.mxu0 0.0
  %294 = vmatpush1.msra.mxu0 0.0
  %295 = vmatprep.subr.mxu0 0.0
  %296 = vmatpush1.msra.mxu0 0.0
  %297 = vmatprep.subr.mxu0 0.0
  %298 = vmatpush1.msra.mxu0 0.0
  %299 = vmatprep.subr.mxu0 0.0
  %300 = vmatpush1.msra.mxu0 0.0
  %301 = vmatprep.subr.mxu0 0.0
  %302 = vmatpush1.msra.mxu0 0.0
  %303 = vmatprep.subr.mxu0 0.0
  %304 = vmatpush1.msra.mxu0 0.0
  %305 = vmatprep.mubr.f32.mxu0 0.0
  %306 = vmatmul.mubr.f32.gmra.mrb[0].mxu0 %v130
  %v307 = vpop.f32.mrb[0].mxu0
  %v308 = vadd.f32 0.0, %v307
  %v309 = vpop.f32.mrb[0].mxu0
  %310 = vmatprep.mubr.f32.mxu0 0.0
  %311 = vmatmul.mubr.f32.gmra.mrb[0].mxu0 %v133
  %v312 = vpop.f32.mrb[0].mxu0
  %v313 = vadd.f32 0.0, %v312
  %v314 = vpop.f32.mrb[0].mxu0
  %315 = vmatprep.mubr.f32.mxu0 0.0
  %316 = vmatmul.mubr.f32.gmra.mrb[0].mxu0 %v136
  %v317 = vpop.f32.mrb[0].mxu0
  %v318 = vadd.f32 0.0, %v317
  %v319 = vpop.f32.mrb[0].mxu0
  %320 = vmatprep.mubr.f32.mxu0 0.0
  %321 = vmatmul.mubr.f32.gmra.mrb[0].mxu0 %v139
  %v322 = vpop.f32.mrb[0].mxu0
  %v323 = vadd.f32 0.0, %v322
  %v324 = vpop.f32.mrb[0].mxu0
  %325 = vmatprep.mubr.f32.mxu0 0.0
  %326 = vmatmul.mubr.f32.gmra.mrb[0].mxu0 %v142
  %v327 = vpop.f32.mrb[0].mxu0
  %v328 = vadd.f32 0.0, %v327
  %v329 = vpop.f32.mrb[0].mxu0
  %330 = vmatprep.mubr.f32.mxu0 0.0
  %331 = vmatmul.mubr.f32.gmra.mrb[0].mxu0 %v145
  %v332 = vpop.f32.mrb[0].mxu0
  %v333 = vadd.f32 0.0, %v332
  %v334 = vpop.f32.mrb[0].mxu0
  %335 = vmatprep.mubr.f32.mxu0 0.0
  %336 = vmatmul.mubr.f32.gmra.mrb[0].mxu0 %v148
  %v337 = vpop.f32.mrb[0].mxu0
  %v338 = vadd.f32 0.0, %v337
  %v339 = vpop.f32.mrb[0].mxu0
  %340 = vmatprep.mubr.f32.mxu0 0.0
  %341 = vmatmul.mubr.f32.gmra.mrb[0].mxu0 %v151
  %v342 = vpop.f32.mrb[0].mxu0
  %v343 = vadd.f32 0.0, %v342
  %v344 = vpop.f32.mrb[0].mxu0
  %345 = vmatprep.mubr.f32.mxu0 0.0
  %346 = vmatmul.mubr.f32.gmra.mrb[0].mxu0 %v154
  %v347 = vpop.f32.mrb[0].mxu0
  %v348 = vadd.f32 0.0, %v347
  %v349 = vpop.f32.mrb[0].mxu0
  %350 = vmatprep.mubr.f32.mxu0 0.0
  %351 = vmatmul.mubr.f32.gmra.mrb[0].mxu0 %v157
  %v352 = vpop.f32.mrb[0].mxu0
  %v353 = vadd.f32 0.0, %v352
  %v354 = vpop.f32.mrb[0].mxu0
  %355 = vmatprep.mubr.f32.mxu0 0.0
  %356 = vmatmul.mubr.f32.gmra.mrb[0].mxu0 %v160
  %v357 = vpop.f32.mrb[0].mxu0
  %v358 = vadd.f32 0.0, %v357
  %v359 = vpop.f32.mrb[0].mxu0
  %360 = vmatprep.mubr.f32.mxu0 0.0
  %361 = vmatmul.mubr.f32.gmra.mrb[0].mxu0 %v163
  %v362 = vpop.f32.mrb[0].mxu0
  %v363 = vadd.f32 0.0, %v362
  %v364 = vpop.f32.mrb[0].mxu0
  %365 = vmatprep.mubr.f32.mxu0 0.0
  %366 = vmatmul.mubr.f32.gmra.mrb[0].mxu0 %v166
  %v367 = vpop.f32.mrb[0].mxu0
  %v368 = vadd.f32 0.0, %v367
  %v369 = vpop.f32.mrb[0].mxu0
  %370 = vmatprep.mubr.f32.mxu0 0.0
  %371 = vmatmul.mubr.f32.gmra.mrb[0].mxu0 %v169
  %v372 = vpop.f32.mrb[0].mxu0
  %v373 = vadd.f32 0.0, %v372
  %v374 = vpop.f32.mrb[0].mxu0
  %375 = vmatprep.mubr.f32.mxu0 0.0
  %376 = vmatmul.mubr.f32.gmra.mrb[0].mxu0 %v172
  %v377 = vpop.f32.mrb[0].mxu0
  %v378 = vadd.f32 0.0, %v377
  %v379 = vpop.f32.mrb[0].mxu0
  %380 = vmatprep.mubr.f32.mxu0 0.0
  %381 = vmatmul.mubr.f32.gmra.mrb[0].mxu0 %v175
  %v382 = vpop.f32.mrb[0].mxu0
  %v383 = vadd.f32 0.0, %v382
  %v384 = vpop.f32.mrb[0].mxu0
  %385 = vmatprep.mubr.f32.mxu0 0.0
  %386 = vmatmul.mubr.f32.gmra.mrb[0].mxu0 %v178
  %v387 = vpop.f32.mrb[0].mxu0
  %v388 = vadd.f32 0.0, %v387
  %v389 = vpop.f32.mrb[0].mxu0
  %390 = vmatprep.mubr.f32.mxu0 0.0
  %391 = vmatmul.mubr.f32.gmra.mrb[0].mxu0 %v181
  %v392 = vpop.f32.mrb[0].mxu0
  %v393 = vadd.f32 0.0, %v392
  %v394 = vpop.f32.mrb[0].mxu0
  %395 = vmatprep.mubr.f32.mxu0 0.0
  %396 = vmatmul.mubr.f32.gmra.mrb[0].mxu0 %v184
  %v397 = vpop.f32.mrb[0].mxu0
  %v398 = vadd.f32 0.0, %v397
  %v399 = vpop.f32.mrb[0].mxu0
  %400 = vmatprep.mubr.f32.mxu0 0.0
  %401 = vmatmul.mubr.f32.gmra.mrb[0].mxu0 %v187
  %v402 = vpop.f32.mrb[0].mxu0
  %v403 = vadd.f32 0.0, %v402
  %v404 = vpop.f32.mrb[0].mxu0
  %405 = vmatprep.mubr.f32.mxu0 0.0
  %406 = vmatmul.mubr.f32.gmra.mrb[0].mxu0 %v190
  %v407 = vpop.f32.mrb[0].mxu0
  %v408 = vadd.f32 0.0, %v407
  %v409 = vpop.f32.mrb[0].mxu0
  %410 = vmatprep.mubr.f32.mxu0 0.0
  %411 = vmatmul.mubr.f32.gmra.mrb[0].mxu0 %v193
  %v412 = vpop.f32.mrb[0].mxu0
  %v413 = vadd.f32 0.0, %v412
  %v414 = vpop.f32.mrb[0].mxu0
  %415 = vmatprep.mubr.f32.mxu0 0.0
  %416 = vmatmul.mubr.f32.gmra.mrb[0].mxu0 %v196
  %v417 = vpop.f32.mrb[0].mxu0
  %v418 = vadd.f32 0.0, %v417
  %v419 = vpop.f32.mrb[0].mxu0
  %420 = vmatprep.mubr.f32.mxu0 0.0
  %421 = vmatmul.mubr.f32.gmra.mrb[0].mxu0 %v199
  %v422 = vpop.f32.mrb[0].mxu0
  %v423 = vadd.f32 0.0, %v422
  %v424 = vpop.f32.mrb[0].mxu0
  %425 = vmatprep.mubr.f32.mxu0 0.0
  %426 = vmatmul.mubr.f32.gmra.mrb[0].mxu0 %v202
  %v427 = vpop.f32.mrb[0].mxu0
  %v428 = vadd.f32 0.0, %v427
  %v429 = vpop.f32.mrb[0].mxu0
  %430 = vmatprep.mubr.f32.mxu0 0.0
  %431 = vmatmul.mubr.f32.gmra.mrb[0].mxu0 %v205
  %v432 = vpop.f32.mrb[0].mxu0
  %v433 = vadd.f32 0.0, %v432
  %v434 = vpop.f32.mrb[0].mxu0
  %435 = vmatprep.mubr.f32.mxu0 0.0
  %436 = vmatmul.mubr.f32.gmra.mrb[0].mxu0 %v208
  %v437 = vpop.f32.mrb[0].mxu0
  %v438 = vadd.f32 0.0, %v437
  %v439 = vpop.f32.mrb[0].mxu0
  %440 = vmatprep.mubr.f32.mxu0 0.0
  %441 = vmatmul.mubr.f32.gmra.mrb[0].mxu0 %v211
  %v442 = vpop.f32.mrb[0].mxu0
  %v443 = vadd.f32 0.0, %v442
  %v444 = vpop.f32.mrb[0].mxu0
  %445 = vmatprep.mubr.f32.mxu0 0.0
  %446 = vmatmul.mubr.f32.gmra.mrb[0].mxu0 %v214
  %v447 = vpop.f32.mrb[0].mxu0
  %v448 = vadd.f32 0.0, %v447
  %v449 = vpop.f32.mrb[0].mxu0
  %450 = vmatprep.mubr.f32.mxu0 0.0
  %451 = vmatmul.mubr.f32.gmra.mrb[0].mxu0 %v217
  %v452 = vpop.f32.mrb[0].mxu0
  %v453 = vadd.f32 0.0, %v452
  %v454 = vpop.f32.mrb[0].mxu0
  %455 = vmatprep.mubr.f32.mxu0 0.0
  %456 = vmatmul.mubr.f32.gmra.mrb[0].mxu0 %v220
  %v457 = vpop.f32.mrb[0].mxu0
  %v458 = vadd.f32 0.0, %v457
  %v459 = vpop.f32.mrb[0].mxu0
  %460 = vmatprep.mubr.f32.mxu0 0.0
  %461 = vmatmul.mubr.f32.gmra.mrb[0].mxu0 %v223
  %v462 = vpop.f32.mrb[0].mxu0
  %v463 = vadd.f32 0.0, %v462
  %v464 = vpop.f32.mrb[0].mxu0
  %465 = vmatprep.mubr.f32.mxu0 0.0
  %466 = vmatmul.mubr.f32.gmra.mrb[0].mxu0 %v226
  %v467 = vpop.f32.mrb[0].mxu0
  %v468 = vadd.f32 0.0, %v467
  %v469 = vpop.f32.mrb[0].mxu0
  %470 = vmatprep.mubr.f32.mxu0 0.0
  %471 = vmatmul.mubr.f32.gmra.mrb[0].mxu0 %v229
  %v472 = vpop.f32.mrb[0].mxu0
  %v473 = vadd.f32 0.0, %v472
  %v474 = vpop.f32.mrb[0].mxu0
  %475 = vmatprep.mubr.f32.mxu0 0.0
  %476 = vmatmul.mubr.f32.gmra.mrb[0].mxu0 %v232
  %v477 = vpop.f32.mrb[0].mxu0
  %v478 = vadd.f32 0.0, %v477
  %v479 = vpop.f32.mrb[0].mxu0
  %480 = vmatprep.mubr.f32.mxu0 0.0
  %481 = vmatmul.mubr.f32.gmra.mrb[0].mxu0 %v235
  %v482 = vpop.f32.mrb[0].mxu0
  %v483 = vadd.f32 0.0, %v482
  %v484 = vpop.f32.mrb[0].mxu0
  %485 = vdwg.mxu0
  %v487 = vsel %vm128, %v53, 0
  %v490 = vsel %vm128, %v54, 0
  %v493 = vsel %vm128, %v55, 0
  %v496 = vsel %vm128, %v56, 0
  %v499 = vsel %vm128, %v57, 0
  %v502 = vsel %vm128, %v58, 0
  %v505 = vsel %vm128, %v59, 0
  %v508 = vsel %vm128, %v60, 0
  %v511 = vsel %vm128, %v61, 0
  %v514 = vsel %vm128, %v62, 0
  %v517 = vsel %vm128, %v63, 0
  %v520 = vsel %vm128, %v64, 0
  %v523 = vsel %vm128, %v65, 0
  %v526 = vsel %vm128, %v66, 0
  %v529 = vsel %vm128, %v67, 0
  %v532 = vsel %vm128, %v68, 0
  %v535 = vsel %vm128, %v69, 0
  %v538 = vsel %vm128, %v70, 0
  %v541 = vsel %vm128, %v71, 0
  %v544 = vsel %vm128, %v72, 0
  %v547 = vsel %vm128, %v73, 0
  %v550 = vsel %vm128, %v74, 0
  %v553 = vsel %vm128, %v75, 0
  %v556 = vsel %vm128, %v76, 0
  %v559 = vsel %vm128, %v77, 0
  %v562 = vsel %vm128, %v78, 0
  %v565 = vsel %vm128, %v79, 0
  %v568 = vsel %vm128, %v80, 0
  %v571 = vsel %vm128, %v81, 0
  %v574 = vsel %vm128, %v82, 0
  %v577 = vsel %vm128, %v83, 0
  %v580 = vsel %vm128, %v84, 0
  %v583 = vsel %vm128, %v85, 0
  %v586 = vsel %vm128, %v86, 0
  %v589 = vsel %vm128, %v87, 0
  %v592 = vsel %vm128, %v88, 0
  %v595 = vsel %vm237, %v89, 0
  %597 = vmatprep.subr.mxu0 0.0
  %598 = vmatpush1.msra.mxu0 %v595
  %599 = vmatprep.subr.mxu0 0.0
  %600 = vmatpush1.msra.mxu0 0.0
  %601 = vmatprep.subr.mxu0 0.0
  %602 = vmatpush1.msra.mxu0 0.0
  %603 = vmatprep.subr.mxu0 0.0
  %604 = vmatpush1.msra.mxu0 0.0
  %605 = vmatprep.subr.mxu0 0.0
  %606 = vmatpush1.msra.mxu0 0.0
  %607 = vmatprep.subr.mxu0 0.0
  %608 = vmatpush1.msra.mxu0 0.0
  %609 = vmatprep.subr.mxu0 0.0
  %610 = vmatpush1.msra.mxu0 0.0
  %611 = vmatprep.subr.mxu0 0.0
  %612 = vmatpush1.msra.mxu0 0.0
  %613 = vmatprep.subr.mxu0 0.0
  %614 = vmatpush1.msra.mxu0 0.0
  %615 = vmatprep.subr.mxu0 0.0
  %616 = vmatpush1.msra.mxu0 0.0
  %617 = vmatprep.subr.mxu0 0.0
  %618 = vmatpush1.msra.mxu0 0.0
  %619 = vmatprep.subr.mxu0 0.0
  %620 = vmatpush1.msra.mxu0 0.0
  %621 = vmatprep.subr.mxu0 0.0
  %622 = vmatpush1.msra.mxu0 0.0
  %623 = vmatprep.subr.mxu0 0.0
  %624 = vmatpush1.msra.mxu0 0.0
  %625 = vmatprep.subr.mxu0 0.0
  %626 = vmatpush1.msra.mxu0 0.0
  %627 = vmatprep.subr.mxu0 0.0
  %628 = vmatpush1.msra.mxu0 0.0
  %629 = vmatprep.subr.mxu0 0.0
  %630 = vmatpush1.msra.mxu0 0.0
  %631 = vmatprep.subr.mxu0 0.0
  %632 = vmatpush1.msra.mxu0 0.0
  %633 = vmatprep.subr.mxu0 0.0
  %634 = vmatpush1.msra.mxu0 0.0
  %635 = vmatprep.subr.mxu0 0.0
  %636 = vmatpush1.msra.mxu0 0.0
  %637 = vmatprep.subr.mxu0 0.0
  %638 = vmatpush1.msra.mxu0 0.0
  %639 = vmatprep.subr.mxu0 0.0
  %640 = vmatpush1.msra.mxu0 0.0
  %641 = vmatprep.subr.mxu0 0.0
  %642 = vmatpush1.msra.mxu0 0.0
  %643 = vmatprep.subr.mxu0 0.0
  %644 = vmatpush1.msra.mxu0 0.0
  %645 = vmatprep.subr.mxu0 0.0
  %646 = vmatpush1.msra.mxu0 0.0
  %647 = vmatprep.subr.mxu0 0.0
  %648 = vmatpush1.msra.mxu0 0.0
  %649 = vmatprep.subr.mxu0 0.0
  %650 = vmatpush1.msra.mxu0 0.0
  %651 = vmatprep.subr.mxu0 0.0
  %652 = vmatpush1.msra.mxu0 0.0
  %653 = vmatprep.subr.mxu0 0.0
  %654 = vmatpush1.msra.mxu0 0.0
  %655 = vmatprep.subr.mxu0 0.0
  %656 = vmatpush1.msra.mxu0 0.0
  %657 = vmatprep.subr.mxu0 0.0
  %658 = vmatpush1.msra.mxu0 0.0
  %659 = vmatprep.subr.mxu0 0.0
  %660 = vmatpush1.msra.mxu0 0.0
  %661 = vmatprep.mubr.f32.mxu0 0.0
  %662 = vmatmul.mubr.f32.gmra.mrb[0].mxu0 %v487
  %v663 = vpop.f32.mrb[0].mxu0
  %v664 = vadd.f32 %v308, %v663
  %v665 = vpop.f32.mrb[0].mxu0
  %666 = vmatprep.mubr.f32.mxu0 0.0
  %667 = vmatmul.mubr.f32.gmra.mrb[0].mxu0 %v490
  %v668 = vpop.f32.mrb[0].mxu0
  %v669 = vadd.f32 %v313, %v668
  %v670 = vpop.f32.mrb[0].mxu0
  %671 = vmatprep.mubr.f32.mxu0 0.0
  %672 = vmatmul.mubr.f32.gmra.mrb[0].mxu0 %v493
  %v673 = vpop.f32.mrb[0].mxu0
  %v674 = vadd.f32 %v318, %v673
  %v675 = vpop.f32.mrb[0].mxu0
  %676 = vmatprep.mubr.f32.mxu0 0.0
  %677 = vmatmul.mubr.f32.gmra.mrb[0].mxu0 %v496
  %v678 = vpop.f32.mrb[0].mxu0
  %v679 = vadd.f32 %v323, %v678
  %v680 = vpop.f32.mrb[0].mxu0
  %681 = vmatprep.mubr.f32.mxu0 0.0
  %682 = vmatmul.mubr.f32.gmra.mrb[0].mxu0 %v499
  %v683 = vpop.f32.mrb[0].mxu0
  %v684 = vadd.f32 %v328, %v683
  %v685 = vpop.f32.mrb[0].mxu0
  %686 = vmatprep.mubr.f32.mxu0 0.0
  %687 = vmatmul.mubr.f32.gmra.mrb[0].mxu0 %v502
  %v688 = vpop.f32.mrb[0].mxu0
  %v689 = vadd.f32 %v333, %v688
  %v690 = vpop.f32.mrb[0].mxu0
  %691 = vmatprep.mubr.f32.mxu0 0.0
  %692 = vmatmul.mubr.f32.gmra.mrb[0].mxu0 %v505
  %v693 = vpop.f32.mrb[0].mxu0
  %v694 = vadd.f32 %v338, %v693
  %v695 = vpop.f32.mrb[0].mxu0
  %696 = vmatprep.mubr.f32.mxu0 0.0
  %697 = vmatmul.mubr.f32.gmra.mrb[0].mxu0 %v508
  %v698 = vpop.f32.mrb[0].mxu0
  %v699 = vadd.f32 %v343, %v698
  %v700 = vpop.f32.mrb[0].mxu0
  %701 = vmatprep.mubr.f32.mxu0 0.0
  %702 = vmatmul.mubr.f32.gmra.mrb[0].mxu0 %v511
  %v703 = vpop.f32.mrb[0].mxu0
  %v704 = vadd.f32 %v348, %v703
  %v705 = vpop.f32.mrb[0].mxu0
  %706 = vmatprep.mubr.f32.mxu0 0.0
  %707 = vmatmul.mubr.f32.gmra.mrb[0].mxu0 %v514
  %v708 = vpop.f32.mrb[0].mxu0
  %v709 = vadd.f32 %v353, %v708
  %v710 = vpop.f32.mrb[0].mxu0
  %711 = vmatprep.mubr.f32.mxu0 0.0
  %712 = vmatmul.mubr.f32.gmra.mrb[0].mxu0 %v517
  %v713 = vpop.f32.mrb[0].mxu0
  %v714 = vadd.f32 %v358, %v713
  %v715 = vpop.f32.mrb[0].mxu0
  %716 = vmatprep.mubr.f32.mxu0 0.0
  %717 = vmatmul.mubr.f32.gmra.mrb[0].mxu0 %v520
  %v718 = vpop.f32.mrb[0].mxu0
  %v719 = vadd.f32 %v363, %v718
  %v720 = vpop.f32.mrb[0].mxu0
  %721 = vmatprep.mubr.f32.mxu0 0.0
  %722 = vmatmul.mubr.f32.gmra.mrb[0].mxu0 %v523
  %v723 = vpop.f32.mrb[0].mxu0
  %v724 = vadd.f32 %v368, %v723
  %v725 = vpop.f32.mrb[0].mxu0
  %726 = vmatprep.mubr.f32.mxu0 0.0
  %727 = vmatmul.mubr.f32.gmra.mrb[0].mxu0 %v526
  %v728 = vpop.f32.mrb[0].mxu0
  %v729 = vadd.f32 %v373, %v728
  %v730 = vpop.f32.mrb[0].mxu0
  %731 = vmatprep.mubr.f32.mxu0 0.0
  %732 = vmatmul.mubr.f32.gmra.mrb[0].mxu0 %v529
  %v733 = vpop.f32.mrb[0].mxu0
  %v734 = vadd.f32 %v378, %v733
  %v735 = vpop.f32.mrb[0].mxu0
  %736 = vmatprep.mubr.f32.mxu0 0.0
  %737 = vmatmul.mubr.f32.gmra.mrb[0].mxu0 %v532
  %v738 = vpop.f32.mrb[0].mxu0
  %v739 = vadd.f32 %v383, %v738
  %v740 = vpop.f32.mrb[0].mxu0
  %741 = vmatprep.mubr.f32.mxu0 0.0
  %742 = vmatmul.mubr.f32.gmra.mrb[0].mxu0 %v535
  %v743 = vpop.f32.mrb[0].mxu0
  %v744 = vadd.f32 %v388, %v743
  %v745 = vpop.f32.mrb[0].mxu0
  %746 = vmatprep.mubr.f32.mxu0 0.0
  %747 = vmatmul.mubr.f32.gmra.mrb[0].mxu0 %v538
  %v748 = vpop.f32.mrb[0].mxu0
  %v749 = vadd.f32 %v393, %v748
  %v750 = vpop.f32.mrb[0].mxu0
  %751 = vmatprep.mubr.f32.mxu0 0.0
  %752 = vmatmul.mubr.f32.gmra.mrb[0].mxu0 %v541
  %v753 = vpop.f32.mrb[0].mxu0
  %v754 = vadd.f32 %v398, %v753
  %v755 = vpop.f32.mrb[0].mxu0
  %756 = vmatprep.mubr.f32.mxu0 0.0
  %757 = vmatmul.mubr.f32.gmra.mrb[0].mxu0 %v544
  %v758 = vpop.f32.mrb[0].mxu0
  %v759 = vadd.f32 %v403, %v758
  %v760 = vpop.f32.mrb[0].mxu0
  %761 = vmatprep.mubr.f32.mxu0 0.0
  %762 = vmatmul.mubr.f32.gmra.mrb[0].mxu0 %v547
  %v763 = vpop.f32.mrb[0].mxu0
  %v764 = vadd.f32 %v408, %v763
  %v765 = vpop.f32.mrb[0].mxu0
  %766 = vmatprep.mubr.f32.mxu0 0.0
  %767 = vmatmul.mubr.f32.gmra.mrb[0].mxu0 %v550
  %v768 = vpop.f32.mrb[0].mxu0
  %v769 = vadd.f32 %v413, %v768
  %v770 = vpop.f32.mrb[0].mxu0
  %771 = vmatprep.mubr.f32.mxu0 0.0
  %772 = vmatmul.mubr.f32.gmra.mrb[0].mxu0 %v553
  %v773 = vpop.f32.mrb[0].mxu0
  %v774 = vadd.f32 %v418, %v773
  %v775 = vpop.f32.mrb[0].mxu0
  %776 = vmatprep.mubr.f32.mxu0 0.0
  %777 = vmatmul.mubr.f32.gmra.mrb[0].mxu0 %v556
  %v778 = vpop.f32.mrb[0].mxu0
  %v779 = vadd.f32 %v423, %v778
  %v780 = vpop.f32.mrb[0].mxu0
  %781 = vmatprep.mubr.f32.mxu0 0.0
  %782 = vmatmul.mubr.f32.gmra.mrb[0].mxu0 %v559
  %v783 = vpop.f32.mrb[0].mxu0
  %v784 = vadd.f32 %v428, %v783
  %v785 = vpop.f32.mrb[0].mxu0
  %786 = vmatprep.mubr.f32.mxu0 0.0
  %787 = vmatmul.mubr.f32.gmra.mrb[0].mxu0 %v562
  %v788 = vpop.f32.mrb[0].mxu0
  %v789 = vadd.f32 %v433, %v788
  %v790 = vpop.f32.mrb[0].mxu0
  %791 = vmatprep.mubr.f32.mxu0 0.0
  %792 = vmatmul.mubr.f32.gmra.mrb[0].mxu0 %v565
  %v793 = vpop.f32.mrb[0].mxu0
  %v794 = vadd.f32 %v438, %v793
  %v795 = vpop.f32.mrb[0].mxu0
  %796 = vmatprep.mubr.f32.mxu0 0.0
  %797 = vmatmul.mubr.f32.gmra.mrb[0].mxu0 %v568
  %v798 = vpop.f32.mrb[0].mxu0
  %v799 = vadd.f32 %v443, %v798
  %v800 = vpop.f32.mrb[0].mxu0
  %801 = vmatprep.mubr.f32.mxu0 0.0
  %802 = vmatmul.mubr.f32.gmra.mrb[0].mxu0 %v571
  %v803 = vpop.f32.mrb[0].mxu0
  %v804 = vadd.f32 %v448, %v803
  %v805 = vpop.f32.mrb[0].mxu0
  %806 = vmatprep.mubr.f32.mxu0 0.0
  %807 = vmatmul.mubr.f32.gmra.mrb[0].mxu0 %v574
  %v808 = vpop.f32.mrb[0].mxu0
  %v809 = vadd.f32 %v453, %v808
  %v810 = vpop.f32.mrb[0].mxu0
  %811 = vmatprep.mubr.f32.mxu0 0.0
  %812 = vmatmul.mubr.f32.gmra.mrb[0].mxu0 %v577
  %v813 = vpop.f32.mrb[0].mxu0
  %v814 = vadd.f32 %v458, %v813
  %v815 = vpop.f32.mrb[0].mxu0
  %816 = vmatprep.mubr.f32.mxu0 0.0
  %817 = vmatmul.mubr.f32.gmra.mrb[0].mxu0 %v580
  %v818 = vpop.f32.mrb[0].mxu0
  %v819 = vadd.f32 %v463, %v818
  %v820 = vpop.f32.mrb[0].mxu0
  %821 = vmatprep.mubr.f32.mxu0 0.0
  %822 = vmatmul.mubr.f32.gmra.mrb[0].mxu0 %v583
  %v823 = vpop.f32.mrb[0].mxu0
  %v824 = vadd.f32 %v468, %v823
  %v825 = vpop.f32.mrb[0].mxu0
  %826 = vmatprep.mubr.f32.mxu0 0.0
  %827 = vmatmul.mubr.f32.gmra.mrb[0].mxu0 %v586
  %v828 = vpop.f32.mrb[0].mxu0
  %v829 = vadd.f32 %v473, %v828
  %v830 = vpop.f32.mrb[0].mxu0
  %831 = vmatprep.mubr.f32.mxu0 0.0
  %832 = vmatmul.mubr.f32.gmra.mrb[0].mxu0 %v589
  %v833 = vpop.f32.mrb[0].mxu0
  %v834 = vadd.f32 %v478, %v833
  %v835 = vpop.f32.mrb[0].mxu0
  %836 = vmatprep.mubr.f32.mxu0 0.0
  %837 = vmatmul.mubr.f32.gmra.mrb[0].mxu0 %v592
  %v838 = vpop.f32.mrb[0].mxu0
  %v839 = vadd.f32 %v483, %v838
  %v840 = vpop.f32.mrb[0].mxu0
  %841 = vdwg.mxu0
  %v842 = vld [vmem:[%s1 + $0x2] sm:$0xff]
  %v843 = vld [vmem:[%s1 + $0xa] sm:$0xff]
  %v844 = vld [vmem:[%s1 + $0x12] sm:$0xff]
  %v845 = vld [vmem:[%s1 + $0x1a] sm:$0xff]
  %v846 = vld [vmem:[%s1 + $0x22] sm:$0xff]
  %v847 = vld [vmem:[%s1 + $0x2a] sm:$0xff]
  %v848 = vld [vmem:[%s1 + $0x32] sm:$0xff]
  %v849 = vld [vmem:[%s1 + $0x3a] sm:$0xff]
  %v850 = vld [vmem:[%s1 + $0x42] sm:$0xff]
  %v851 = vld [vmem:[%s1 + $0x4a] sm:$0xff]
  %v852 = vld [vmem:[%s1 + $0x52] sm:$0xff]
  %v853 = vld [vmem:[%s1 + $0x5a] sm:$0xff]
  %v854 = vld [vmem:[%s1 + $0x62] sm:$0xff]
  %v855 = vld [vmem:[%s1 + $0x6a] sm:$0xff]
  %v856 = vld [vmem:[%s1 + $0x72] sm:$0xff]
  %v857 = vld [vmem:[%s1 + $0x7a] sm:$0xff]
  %v858 = vld [vmem:[%s1 + $0x82] sm:$0xff]
  %v859 = vld [vmem:[%s1 + $0x8a] sm:$0xff]
  %v860 = vld [vmem:[%s1 + $0x92] sm:$0xff]
  %v861 = vld [vmem:[%s1 + $0x9a] sm:$0xff]
  %v862 = vld [vmem:[%s1 + $0xa2] sm:$0xff]
  %v863 = vld [vmem:[%s1 + $0xaa] sm:$0xff]
  %v864 = vld [vmem:[%s1 + $0xb2] sm:$0xff]
  %v865 = vld [vmem:[%s1 + $0xba] sm:$0xff]
  %v866 = vld [vmem:[%s1 + $0xc2] sm:$0xff]
  %v867 = vld [vmem:[%s1 + $0xca] sm:$0xff]
  %v868 = vld [vmem:[%s1 + $0xd2] sm:$0xff]
  %v869 = vld [vmem:[%s1 + $0xda] sm:$0xff]
  %v870 = vld [vmem:[%s1 + $0xe2] sm:$0xff]
  %v871 = vld [vmem:[%s1 + $0xea] sm:$0xff]
  %v872 = vld [vmem:[%s1 + $0xf2] sm:$0xff]
  %v873 = vld [vmem:[%s1 + $0xfa] sm:$0xff]
  %v874 = vld [vmem:[%s1 + $0x102] sm:$0xff]
  %v875 = vld [vmem:[%s1 + $0x10a] sm:$0xff]
  %v876 = vld [vmem:[%s1 + $0x112] sm:$0xff]
  %v877 = vld [vmem:[%s1 + $0x11a] sm:$0xff]
  %s878 = scalar_lea.vmem %s2, 8
  %v879 = vld [vmem:[%s878] sm:$0x7]
  %v881 = vsel %vm128, %v842, 0
  %v884 = vsel %vm128, %v843, 0
  %v887 = vsel %vm128, %v844, 0
  %v890 = vsel %vm128, %v845, 0
  %v893 = vsel %vm128, %v846, 0
  %v896 = vsel %vm128, %v847, 0
  %v899 = vsel %vm128, %v848, 0
  %v902 = vsel %vm128, %v849, 0
  %v905 = vsel %vm128, %v850, 0
  %v908 = vsel %vm128, %v851, 0
  %v911 = vsel %vm128, %v852, 0
  %v914 = vsel %vm128, %v853, 0
  %v917 = vsel %vm128, %v854, 0
  %v920 = vsel %vm128, %v855, 0
  %v923 = vsel %vm128, %v856, 0
  %v926 = vsel %vm128, %v857, 0
  %v929 = vsel %vm128, %v858, 0
  %v932 = vsel %vm128, %v859, 0
  %v935 = vsel %vm128, %v860, 0
  %v938 = vsel %vm128, %v861, 0
  %v941 = vsel %vm128, %v862, 0
  %v944 = vsel %vm128, %v863, 0
  %v947 = vsel %vm128, %v864, 0
  %v950 = vsel %vm128, %v865, 0
  %v953 = vsel %vm128, %v866, 0
  %v956 = vsel %vm128, %v867, 0
  %v959 = vsel %vm128, %v868, 0
  %v962 = vsel %vm128, %v869, 0
  %v965 = vsel %vm128, %v870, 0
  %v968 = vsel %vm128, %v871, 0
  %v971 = vsel %vm128, %v872, 0
  %v974 = vsel %vm128, %v873, 0
  %v977 = vsel %vm128, %v874, 0
  %v980 = vsel %vm128, %v875, 0
  %v983 = vsel %vm128, %v876, 0
  %v986 = vsel %vm128, %v877, 0
  %v989 = vsel %vm237, %v879, 0
  %991 = vmatprep.subr.mxu0 0.0
  %992 = vmatpush1.msra.mxu0 %v989
  %993 = vmatprep.subr.mxu0 0.0
  %994 = vmatpush1.msra.mxu0 0.0
  %995 = vmatprep.subr.mxu0 0.0
  %996 = vmatpush1.msra.mxu0 0.0
  %997 = vmatprep.subr.mxu0 0.0
  %998 = vmatpush1.msra.mxu0 0.0
  %999 = vmatprep.subr.mxu0 0.0
  %1000 = vmatpush1.msra.mxu0 0.0
  %1001 = vmatprep.subr.mxu0 0.0
  %1002 = vmatpush1.msra.mxu0 0.0
  %1003 = vmatprep.subr.mxu0 0.0
  %1004 = vmatpush1.msra.mxu0 0.0
  %1005 = vmatprep.subr.mxu0 0.0
  %1006 = vmatpush1.msra.mxu0 0.0
  %1007 = vmatprep.subr.mxu0 0.0
  %1008 = vmatpush1.msra.mxu0 0.0
  %1009 = vmatprep.subr.mxu0 0.0
  %1010 = vmatpush1.msra.mxu0 0.0
  %1011 = vmatprep.subr.mxu0 0.0
  %1012 = vmatpush1.msra.mxu0 0.0
  %1013 = vmatprep.subr.mxu0 0.0
  %1014 = vmatpush1.msra.mxu0 0.0
  %1015 = vmatprep.subr.mxu0 0.0
  %1016 = vmatpush1.msra.mxu0 0.0
  %1017 = vmatprep.subr.mxu0 0.0
  %1018 = vmatpush1.msra.mxu0 0.0
  %1019 = vmatprep.subr.mxu0 0.0
  %1020 = vmatpush1.msra.mxu0 0.0
  %1021 = vmatprep.subr.mxu0 0.0
  %1022 = vmatpush1.msra.mxu0 0.0
  %1023 = vmatprep.subr.mxu0 0.0
  %1024 = vmatpush1.msra.mxu0 0.0
  %1025 = vmatprep.subr.mxu0 0.0
  %1026 = vmatpush1.msra.mxu0 0.0
  %1027 = vmatprep.subr.mxu0 0.0
  %1028 = vmatpush1.msra.mxu0 0.0
  %1029 = vmatprep.subr.mxu0 0.0
  %1030 = vmatpush1.msra.mxu0 0.0
  %1031 = vmatprep.subr.mxu0 0.0
  %1032 = vmatpush1.msra.mxu0 0.0
  %1033 = vmatprep.subr.mxu0 0.0
  %1034 = vmatpush1.msra.mxu0 0.0
  %1035 = vmatprep.subr.mxu0 0.0
  %1036 = vmatpush1.msra.mxu0 0.0
  %1037 = vmatprep.subr.mxu0 0.0
  %1038 = vmatpush1.msra.mxu0 0.0
  %1039 = vmatprep.subr.mxu0 0.0
  %1040 = vmatpush1.msra.mxu0 0.0
  %1041 = vmatprep.subr.mxu0 0.0
  %1042 = vmatpush1.msra.mxu0 0.0
  %1043 = vmatprep.subr.mxu0 0.0
  %1044 = vmatpush1.msra.mxu0 0.0
  %1045 = vmatprep.subr.mxu0 0.0
  %1046 = vmatpush1.msra.mxu0 0.0
  %1047 = vmatprep.subr.mxu0 0.0
  %1048 = vmatpush1.msra.mxu0 0.0
  %1049 = vmatprep.subr.mxu0 0.0
  %1050 = vmatpush1.msra.mxu0 0.0
  %1051 = vmatprep.subr.mxu0 0.0
  %1052 = vmatpush1.msra.mxu0 0.0
  %1053 = vmatprep.subr.mxu0 0.0
  %1054 = vmatpush1.msra.mxu0 0.0
  %1055 = vmatprep.mubr.f32.mxu0 0.0
  %1056 = vmatmul.mubr.f32.gmra.mrb[0].mxu0 %v881
  %v1057 = vpop.f32.mrb[0].mxu0
  %v1058 = vadd.f32 0.0, %v1057
  %v1059 = vpop.f32.mrb[0].mxu0
  %1060 = vmatprep.mubr.f32.mxu0 0.0
  %1061 = vmatmul.mubr.f32.gmra.mrb[0].mxu0 %v884
  %v1062 = vpop.f32.mrb[0].mxu0
  %v1063 = vadd.f32 0.0, %v1062
  %v1064 = vpop.f32.mrb[0].mxu0
  %1065 = vmatprep.mubr.f32.mxu0 0.0
  %1066 = vmatmul.mubr.f32.gmra.mrb[0].mxu0 %v887
  %v1067 = vpop.f32.mrb[0].mxu0
  %v1068 = vadd.f32 0.0, %v1067
  %v1069 = vpop.f32.mrb[0].mxu0
  %1070 = vmatprep.mubr.f32.mxu0 0.0
  %1071 = vmatmul.mubr.f32.gmra.mrb[0].mxu0 %v890
  %v1072 = vpop.f32.mrb[0].mxu0
  %v1073 = vadd.f32 0.0, %v1072
  %v1074 = vpop.f32.mrb[0].mxu0
  %1075 = vmatprep.mubr.f32.mxu0 0.0
  %1076 = vmatmul.mubr.f32.gmra.mrb[0].mxu0 %v893
  %v1077 = vpop.f32.mrb[0].mxu0
  %v1078 = vadd.f32 0.0, %v1077
  %v1079 = vpop.f32.mrb[0].mxu0
  %1080 = vmatprep.mubr.f32.mxu0 0.0
  %1081 = vmatmul.mubr.f32.gmra.mrb[0].mxu0 %v896
  %v1082 = vpop.f32.mrb[0].mxu0
  %v1083 = vadd.f32 0.0, %v1082
  %v1084 = vpop.f32.mrb[0].mxu0
  %1085 = vmatprep.mubr.f32.mxu0 0.0
  %1086 = vmatmul.mubr.f32.gmra.mrb[0].mxu0 %v899
  %v1087 = vpop.f32.mrb[0].mxu0
  %v1088 = vadd.f32 0.0, %v1087
  %v1089 = vpop.f32.mrb[0].mxu0
  %1090 = vmatprep.mubr.f32.mxu0 0.0
  %1091 = vmatmul.mubr.f32.gmra.mrb[0].mxu0 %v902
  %v1092 = vpop.f32.mrb[0].mxu0
  %v1093 = vadd.f32 0.0, %v1092
  %v1094 = vpop.f32.mrb[0].mxu0
  %1095 = vmatprep.mubr.f32.mxu0 0.0
  %1096 = vmatmul.mubr.f32.gmra.mrb[0].mxu0 %v905
  %v1097 = vpop.f32.mrb[0].mxu0
  %v1098 = vadd.f32 0.0, %v1097
  %v1099 = vpop.f32.mrb[0].mxu0
  %1100 = vmatprep.mubr.f32.mxu0 0.0
  %1101 = vmatmul.mubr.f32.gmra.mrb[0].mxu0 %v908
  %v1102 = vpop.f32.mrb[0].mxu0
  %v1103 = vadd.f32 0.0, %v1102
  %v1104 = vpop.f32.mrb[0].mxu0
  %1105 = vmatprep.mubr.f32.mxu0 0.0
  %1106 = vmatmul.mubr.f32.gmra.mrb[0].mxu0 %v911
  %v1107 = vpop.f32.mrb[0].mxu0
  %v1108 = vadd.f32 0.0, %v1107
  %v1109 = vpop.f32.mrb[0].mxu0
  %1110 = vmatprep.mubr.f32.mxu0 0.0
  %1111 = vmatmul.mubr.f32.gmra.mrb[0].mxu0 %v914
  %v1112 = vpop.f32.mrb[0].mxu0
  %v1113 = vadd.f32 0.0, %v1112
  %v1114 = vpop.f32.mrb[0].mxu0
  %1115 = vmatprep.mubr.f32.mxu0 0.0
  %1116 = vmatmul.mubr.f32.gmra.mrb[0].mxu0 %v917
  %v1117 = vpop.f32.mrb[0].mxu0
  %v1118 = vadd.f32 0.0, %v1117
  %v1119 = vpop.f32.mrb[0].mxu0
  %1120 = vmatprep.mubr.f32.mxu0 0.0
  %1121 = vmatmul.mubr.f32.gmra.mrb[0].mxu0 %v920
  %v1122 = vpop.f32.mrb[0].mxu0
  %v1123 = vadd.f32 0.0, %v1122
  %v1124 = vpop.f32.mrb[0].mxu0
  %1125 = vmatprep.mubr.f32.mxu0 0.0
  %1126 = vmatmul.mubr.f32.gmra.mrb[0].mxu0 %v923
  %v1127 = vpop.f32.mrb[0].mxu0
  %v1128 = vadd.f32 0.0, %v1127
  %v1129 = vpop.f32.mrb[0].mxu0
  %1130 = vmatprep.mubr.f32.mxu0 0.0
  %1131 = vmatmul.mubr.f32.gmra.mrb[0].mxu0 %v926
  %v1132 = vpop.f32.mrb[0].mxu0
  %v1133 = vadd.f32 0.0, %v1132
  %v1134 = vpop.f32.mrb[0].mxu0
  %1135 = vmatprep.mubr.f32.mxu0 0.0
  %1136 = vmatmul.mubr.f32.gmra.mrb[0].mxu0 %v929
  %v1137 = vpop.f32.mrb[0].mxu0
  %v1138 = vadd.f32 0.0, %v1137
  %v1139 = vpop.f32.mrb[0].mxu0
  %1140 = vmatprep.mubr.f32.mxu0 0.0
  %1141 = vmatmul.mubr.f32.gmra.mrb[0].mxu0 %v932
  %v1142 = vpop.f32.mrb[0].mxu0
  %v1143 = vadd.f32 0.0, %v1142
  %v1144 = vpop.f32.mrb[0].mxu0
  %1145 = vmatprep.mubr.f32.mxu0 0.0
  %1146 = vmatmul.mubr.f32.gmra.mrb[0].mxu0 %v935
  %v1147 = vpop.f32.mrb[0].mxu0
  %v1148 = vadd.f32 0.0, %v1147
  %v1149 = vpop.f32.mrb[0].mxu0
  %1150 = vmatprep.mubr.f32.mxu0 0.0
  %1151 = vmatmul.mubr.f32.gmra.mrb[0].mxu0 %v938
  %v1152 = vpop.f32.mrb[0].mxu0
  %v1153 = vadd.f32 0.0, %v1152
  %v1154 = vpop.f32.mrb[0].mxu0
  %1155 = vmatprep.mubr.f32.mxu0 0.0
  %1156 = vmatmul.mubr.f32.gmra.mrb[0].mxu0 %v941
  %v1157 = vpop.f32.mrb[0].mxu0
  %v1158 = vadd.f32 0.0, %v1157
  %v1159 = vpop.f32.mrb[0].mxu0
  %1160 = vmatprep.mubr.f32.mxu0 0.0
  %1161 = vmatmul.mubr.f32.gmra.mrb[0].mxu0 %v944
  %v1162 = vpop.f32.mrb[0].mxu0
  %v1163 = vadd.f32 0.0, %v1162
  %v1164 = vpop.f32.mrb[0].mxu0
  %1165 = vmatprep.mubr.f32.mxu0 0.0
  %1166 = vmatmul.mubr.f32.gmra.mrb[0].mxu0 %v947
  %v1167 = vpop.f32.mrb[0].mxu0
  %v1168 = vadd.f32 0.0, %v1167
  %v1169 = vpop.f32.mrb[0].mxu0
  %1170 = vmatprep.mubr.f32.mxu0 0.0
  %1171 = vmatmul.mubr.f32.gmra.mrb[0].mxu0 %v950
  %v1172 = vpop.f32.mrb[0].mxu0
  %v1173 = vadd.f32 0.0, %v1172
  %v1174 = vpop.f32.mrb[0].mxu0
  %1175 = vmatprep.mubr.f32.mxu0 0.0
  %1176 = vmatmul.mubr.f32.gmra.mrb[0].mxu0 %v953
  %v1177 = vpop.f32.mrb[0].mxu0
  %v1178 = vadd.f32 0.0, %v1177
  %v1179 = vpop.f32.mrb[0].mxu0
  %1180 = vmatprep.mubr.f32.mxu0 0.0
  %1181 = vmatmul.mubr.f32.gmra.mrb[0].mxu0 %v956
  %v1182 = vpop.f32.mrb[0].mxu0
  %v1183 = vadd.f32 0.0, %v1182
  %v1184 = vpop.f32.mrb[0].mxu0
  %1185 = vmatprep.mubr.f32.mxu0 0.0
  %1186 = vmatmul.mubr.f32.gmra.mrb[0].mxu0 %v959
  %v1187 = vpop.f32.mrb[0].mxu0
  %v1188 = vadd.f32 0.0, %v1187
  %v1189 = vpop.f32.mrb[0].mxu0
  %1190 = vmatprep.mubr.f32.mxu0 0.0
  %1191 = vmatmul.mubr.f32.gmra.mrb[0].mxu0 %v962
  %v1192 = vpop.f32.mrb[0].mxu0
  %v1193 = vadd.f32 0.0, %v1192
  %v1194 = vpop.f32.mrb[0].mxu0
  %1195 = vmatprep.mubr.f32.mxu0 0.0
  %1196 = vmatmul.mubr.f32.gmra.mrb[0].mxu0 %v965
  %v1197 = vpop.f32.mrb[0].mxu0
  %v1198 = vadd.f32 0.0, %v1197
  %v1199 = vpop.f32.mrb[0].mxu0
  %1200 = vmatprep.mubr.f32.mxu0 0.0
  %1201 = vmatmul.mubr.f32.gmra.mrb[0].mxu0 %v968
  %v1202 = vpop.f32.mrb[0].mxu0
  %v1203 = vadd.f32 0.0, %v1202
  %v1204 = vpop.f32.mrb[0].mxu0
  %1205 = vmatprep.mubr.f32.mxu0 0.0
  %1206 = vmatmul.mubr.f32.gmra.mrb[0].mxu0 %v971
  %v1207 = vpop.f32.mrb[0].mxu0
  %v1208 = vadd.f32 0.0, %v1207
  %v1209 = vpop.f32.mrb[0].mxu0
  %1210 = vmatprep.mubr.f32.mxu0 0.0
  %1211 = vmatmul.mubr.f32.gmra.mrb[0].mxu0 %v974
  %v1212 = vpop.f32.mrb[0].mxu0
  %v1213 = vadd.f32 0.0, %v1212
  %v1214 = vpop.f32.mrb[0].mxu0
  %1215 = vmatprep.mubr.f32.mxu0 0.0
  %1216 = vmatmul.mubr.f32.gmra.mrb[0].mxu0 %v977
  %v1217 = vpop.f32.mrb[0].mxu0
  %v1218 = vadd.f32 0.0, %v1217
  %v1219 = vpop.f32.mrb[0].mxu0
  %1220 = vmatprep.mubr.f32.mxu0 0.0
  %1221 = vmatmul.mubr.f32.gmra.mrb[0].mxu0 %v980
  %v1222 = vpop.f32.mrb[0].mxu0
  %v1223 = vadd.f32 0.0, %v1222
  %v1224 = vpop.f32.mrb[0].mxu0
  %1225 = vmatprep.mubr.f32.mxu0 0.0
  %1226 = vmatmul.mubr.f32.gmra.mrb[0].mxu0 %v983
  %v1227 = vpop.f32.mrb[0].mxu0
  %v1228 = vadd.f32 0.0, %v1227
  %v1229 = vpop.f32.mrb[0].mxu0
  %1230 = vmatprep.mubr.f32.mxu0 0.0
  %1231 = vmatmul.mubr.f32.gmra.mrb[0].mxu0 %v986
  %v1232 = vpop.f32.mrb[0].mxu0
  %v1233 = vadd.f32 0.0, %v1232
  %v1234 = vpop.f32.mrb[0].mxu0
  %1235 = vdwg.mxu0
  %v1236 = vadd.f32 %v664, %v1058
  %v1237 = vadd.f32 %v669, %v1063
  %v1238 = vadd.f32 %v674, %v1068
  %v1239 = vadd.f32 %v679, %v1073
  %v1240 = vadd.f32 %v684, %v1078
  %v1241 = vadd.f32 %v689, %v1083
  %v1242 = vadd.f32 %v694, %v1088
  %v1243 = vadd.f32 %v699, %v1093
  %v1244 = vadd.f32 %v704, %v1098
  %v1245 = vadd.f32 %v709, %v1103
  %v1246 = vadd.f32 %v714, %v1108
  %v1247 = vadd.f32 %v719, %v1113
  %v1248 = vadd.f32 %v724, %v1118
  %v1249 = vadd.f32 %v729, %v1123
  %v1250 = vadd.f32 %v734, %v1128
  %v1251 = vadd.f32 %v739, %v1133
  %v1252 = vadd.f32 %v744, %v1138
  %v1253 = vadd.f32 %v749, %v1143
  %v1254 = vadd.f32 %v754, %v1148
  %v1255 = vadd.f32 %v759, %v1153
  %v1256 = vadd.f32 %v764, %v1158
  %v1257 = vadd.f32 %v769, %v1163
  %v1258 = vadd.f32 %v774, %v1168
  %v1259 = vadd.f32 %v779, %v1173
  %v1260 = vadd.f32 %v784, %v1178
  %v1261 = vadd.f32 %v789, %v1183
  %v1262 = vadd.f32 %v794, %v1188
  %v1263 = vadd.f32 %v799, %v1193
  %v1264 = vadd.f32 %v804, %v1198
  %v1265 = vadd.f32 %v809, %v1203
  %v1266 = vadd.f32 %v814, %v1208
  %v1267 = vadd.f32 %v819, %v1213
  %v1268 = vadd.f32 %v824, %v1218
  %v1269 = vadd.f32 %v829, %v1223
  %v1270 = vadd.f32 %v834, %v1228
  %v1271 = vadd.f32 %v839, %v1233
  %v1272 = vld [vmem:[%s1 + $0x12] sm:$0xff]
  %v1273 = vld [vmem:[%s1 + $0x1a] sm:$0xff]
  %v1274 = vld [vmem:[%s1 + $0x22] sm:$0xff]
  %v1275 = vld [vmem:[%s1 + $0x2a] sm:$0xff]
  %v1276 = vld [vmem:[%s1 + $0x32] sm:$0xff]
  %v1277 = vld [vmem:[%s1 + $0x3a] sm:$0xff]
  %v1278 = vld [vmem:[%s1 + $0x42] sm:$0xff]
  %v1279 = vld [vmem:[%s1 + $0x4a] sm:$0xff]
  %v1280 = vld [vmem:[%s1 + $0x52] sm:$0xff]
  %v1281 = vld [vmem:[%s1 + $0x5a] sm:$0xff]
  %v1282 = vld [vmem:[%s1 + $0x62] sm:$0xff]
  %v1283 = vld [vmem:[%s1 + $0x6a] sm:$0xff]
  %v1284 = vld [vmem:[%s1 + $0x72] sm:$0xff]
  %v1285 = vld [vmem:[%s1 + $0x7a] sm:$0xff]
  %v1286 = vld [vmem:[%s1 + $0x82] sm:$0xff]
  %v1287 = vld [vmem:[%s1 + $0x8a] sm:$0xff]
  %v1288 = vld [vmem:[%s1 + $0x92] sm:$0xff]
  %v1289 = vld [vmem:[%s1 + $0x9a] sm:$0xff]
  %v1290 = vld [vmem:[%s1 + $0xa2] sm:$0xff]
  %v1291 = vld [vmem:[%s1 + $0xaa] sm:$0xff]
  %v1292 = vld [vmem:[%s1 + $0xb2] sm:$0xff]
  %v1293 = vld [vmem:[%s1 + $0xba] sm:$0xff]
  %v1294 = vld [vmem:[%s1 + $0xc2] sm:$0xff]
  %v1295 = vld [vmem:[%s1 + $0xca] sm:$0xff]
  %v1296 = vld [vmem:[%s1 + $0xd2] sm:$0xff]
  %v1297 = vld [vmem:[%s1 + $0xda] sm:$0xff]
  %v1298 = vld [vmem:[%s1 + $0xe2] sm:$0xff]
  %v1299 = vld [vmem:[%s1 + $0xea] sm:$0xff]
  %v1300 = vld [vmem:[%s1 + $0xf2] sm:$0xff]
  %v1301 = vld [vmem:[%s1 + $0xfa] sm:$0xff]
  %v1302 = vld [vmem:[%s1 + $0x102] sm:$0xff]
  %v1303 = vld [vmem:[%s1 + $0x10a] sm:$0xff]
  %v1304 = vld [vmem:[%s1 + $0x112] sm:$0xff]
  %v1305 = vld [vmem:[%s1 + $0x11a] sm:$0xff]
  %v1306 = vld [vmem:[%s1 + $0x122] sm:$0xff]
  %v1307 = vld [vmem:[%s1 + $0x12a] sm:$0xff]
  %s1308 = scalar_lea.vmem %s2, 12
  %v1309 = vld [vmem:[%s1308] sm:$0x7]
  %v1311 = vsel %vm128, %v1272, 0
  %v1314 = vsel %vm128, %v1273, 0
  %v1317 = vsel %vm128, %v1274, 0
  %v1320 = vsel %vm128, %v1275, 0
  %v1323 = vsel %vm128, %v1276, 0
  %v1326 = vsel %vm128, %v1277, 0
  %v1329 = vsel %vm128, %v1278, 0
  %v1332 = vsel %vm128, %v1279, 0
  %v1335 = vsel %vm128, %v1280, 0
  %v1338 = vsel %vm128, %v1281, 0
  %v1341 = vsel %vm128, %v1282, 0
  %v1344 = vsel %vm128, %v1283, 0
  %v1347 = vsel %vm128, %v1284, 0
  %v1350 = vsel %vm128, %v1285, 0
  %v1353 = vsel %vm128, %v1286, 0
  %v1356 = vsel %vm128, %v1287, 0
  %v1359 = vsel %vm128, %v1288, 0
  %v1362 = vsel %vm128, %v1289, 0
  %v1365 = vsel %vm128, %v1290, 0
  %v1368 = vsel %vm128, %v1291, 0
  %v1371 = vsel %vm128, %v1292, 0
  %v1374 = vsel %vm128, %v1293, 0
  %v1377 = vsel %vm128, %v1294, 0
  %v1380 = vsel %vm128, %v1295, 0
  %v1383 = vsel %vm128, %v1296, 0
  %v1386 = vsel %vm128, %v1297, 0
  %v1389 = vsel %vm128, %v1298, 0
  %v1392 = vsel %vm128, %v1299, 0
  %v1395 = vsel %vm128, %v1300, 0
  %v1398 = vsel %vm128, %v1301, 0
  %v1401 = vsel %vm128, %v1302, 0
  %v1404 = vsel %vm128, %v1303, 0
  %v1407 = vsel %vm128, %v1304, 0
  %v1410 = vsel %vm128, %v1305, 0
  %v1413 = vsel %vm128, %v1306, 0
  %v1416 = vsel %vm128, %v1307, 0
  %v1419 = vsel %vm237, %v1309, 0
  %1421 = vmatprep.subr.mxu0 0.0
  %1422 = vmatpush1.msra.mxu0 %v1419
  %1423 = vmatprep.subr.mxu0 0.0
  %1424 = vmatpush1.msra.mxu0 0.0
  %1425 = vmatprep.subr.mxu0 0.0
  %1426 = vmatpush1.msra.mxu0 0.0
  %1427 = vmatprep.subr.mxu0 0.0
  %1428 = vmatpush1.msra.mxu0 0.0
  %1429 = vmatprep.subr.mxu0 0.0
  %1430 = vmatpush1.msra.mxu0 0.0
  %1431 = vmatprep.subr.mxu0 0.0
  %1432 = vmatpush1.msra.mxu0 0.0
  %1433 = vmatprep.subr.mxu0 0.0
  %1434 = vmatpush1.msra.mxu0 0.0
  %1435 = vmatprep.subr.mxu0 0.0
  %1436 = vmatpush1.msra.mxu0 0.0
  %1437 = vmatprep.subr.mxu0 0.0
  %1438 = vmatpush1.msra.mxu0 0.0
  %1439 = vmatprep.subr.mxu0 0.0
  %1440 = vmatpush1.msra.mxu0 0.0
  %1441 = vmatprep.subr.mxu0 0.0
  %1442 = vmatpush1.msra.mxu0 0.0
  %1443 = vmatprep.subr.mxu0 0.0
  %1444 = vmatpush1.msra.mxu0 0.0
  %1445 = vmatprep.subr.mxu0 0.0
  %1446 = vmatpush1.msra.mxu0 0.0
  %1447 = vmatprep.subr.mxu0 0.0
  %1448 = vmatpush1.msra.mxu0 0.0
  %1449 = vmatprep.subr.mxu0 0.0
  %1450 = vmatpush1.msra.mxu0 0.0
  %1451 = vmatprep.subr.mxu0 0.0
  %1452 = vmatpush1.msra.mxu0 0.0
  %1453 = vmatprep.subr.mxu0 0.0
  %1454 = vmatpush1.msra.mxu0 0.0
  %1455 = vmatprep.subr.mxu0 0.0
  %1456 = vmatpush1.msra.mxu0 0.0
  %1457 = vmatprep.subr.mxu0 0.0
  %1458 = vmatpush1.msra.mxu0 0.0
  %1459 = vmatprep.subr.mxu0 0.0
  %1460 = vmatpush1.msra.mxu0 0.0
  %1461 = vmatprep.subr.mxu0 0.0
  %1462 = vmatpush1.msra.mxu0 0.0
  %1463 = vmatprep.subr.mxu0 0.0
  %1464 = vmatpush1.msra.mxu0 0.0
  %1465 = vmatprep.subr.mxu0 0.0
  %1466 = vmatpush1.msra.mxu0 0.0
  %1467 = vmatprep.subr.mxu0 0.0
  %1468 = vmatpush1.msra.mxu0 0.0
  %1469 = vmatprep.subr.mxu0 0.0
  %1470 = vmatpush1.msra.mxu0 0.0
  %1471 = vmatprep.subr.mxu0 0.0
  %1472 = vmatpush1.msra.mxu0 0.0
  %1473 = vmatprep.subr.mxu0 0.0
  %1474 = vmatpush1.msra.mxu0 0.0
  %1475 = vmatprep.subr.mxu0 0.0
  %1476 = vmatpush1.msra.mxu0 0.0
  %1477 = vmatprep.subr.mxu0 0.0
  %1478 = vmatpush1.msra.mxu0 0.0
  %1479 = vmatprep.subr.mxu0 0.0
  %1480 = vmatpush1.msra.mxu0 0.0
  %1481 = vmatprep.subr.mxu0 0.0
  %1482 = vmatpush1.msra.mxu0 0.0
  %1483 = vmatprep.subr.mxu0 0.0
  %1484 = vmatpush1.msra.mxu0 0.0
  %1485 = vmatprep.mubr.f32.mxu0 0.0
  %1486 = vmatmul.mubr.f32.gmra.mrb[0].mxu0 %v1311
  %v1487 = vpop.f32.mrb[0].mxu0
  %v1488 = vadd.f32 0.0, %v1487
  %v1489 = vpop.f32.mrb[0].mxu0
  %1490 = vmatprep.mubr.f32.mxu0 0.0
  %1491 = vmatmul.mubr.f32.gmra.mrb[0].mxu0 %v1314
  %v1492 = vpop.f32.mrb[0].mxu0
  %v1493 = vadd.f32 0.0, %v1492
  %v1494 = vpop.f32.mrb[0].mxu0
  %1495 = vmatprep.mubr.f32.mxu0 0.0
  %1496 = vmatmul.mubr.f32.gmra.mrb[0].mxu0 %v1317
  %v1497 = vpop.f32.mrb[0].mxu0
  %v1498 = vadd.f32 0.0, %v1497
  %v1499 = vpop.f32.mrb[0].mxu0
  %1500 = vmatprep.mubr.f32.mxu0 0.0
  %1501 = vmatmul.mubr.f32.gmra.mrb[0].mxu0 %v1320
  %v1502 = vpop.f32.mrb[0].mxu0
  %v1503 = vadd.f32 0.0, %v1502
  %v1504 = vpop.f32.mrb[0].mxu0
  %1505 = vmatprep.mubr.f32.mxu0 0.0
  %1506 = vmatmul.mubr.f32.gmra.mrb[0].mxu0 %v1323
  %v1507 = vpop.f32.mrb[0].mxu0
  %v1508 = vadd.f32 0.0, %v1507
  %v1509 = vpop.f32.mrb[0].mxu0
  %1510 = vmatprep.mubr.f32.mxu0 0.0
  %1511 = vmatmul.mubr.f32.gmra.mrb[0].mxu0 %v1326
  %v1512 = vpop.f32.mrb[0].mxu0
  %v1513 = vadd.f32 0.0, %v1512
  %v1514 = vpop.f32.mrb[0].mxu0
  %1515 = vmatprep.mubr.f32.mxu0 0.0
  %1516 = vmatmul.mubr.f32.gmra.mrb[0].mxu0 %v1329
  %v1517 = vpop.f32.mrb[0].mxu0
  %v1518 = vadd.f32 0.0, %v1517
  %v1519 = vpop.f32.mrb[0].mxu0
  %1520 = vmatprep.mubr.f32.mxu0 0.0
  %1521 = vmatmul.mubr.f32.gmra.mrb[0].mxu0 %v1332
  %v1522 = vpop.f32.mrb[0].mxu0
  %v1523 = vadd.f32 0.0, %v1522
  %v1524 = vpop.f32.mrb[0].mxu0
  %1525 = vmatprep.mubr.f32.mxu0 0.0
  %1526 = vmatmul.mubr.f32.gmra.mrb[0].mxu0 %v1335
  %v1527 = vpop.f32.mrb[0].mxu0
  %v1528 = vadd.f32 0.0, %v1527
  %v1529 = vpop.f32.mrb[0].mxu0
  %1530 = vmatprep.mubr.f32.mxu0 0.0
  %1531 = vmatmul.mubr.f32.gmra.mrb[0].mxu0 %v1338
  %v1532 = vpop.f32.mrb[0].mxu0
  %v1533 = vadd.f32 0.0, %v1532
  %v1534 = vpop.f32.mrb[0].mxu0
  %1535 = vmatprep.mubr.f32.mxu0 0.0
  %1536 = vmatmul.mubr.f32.gmra.mrb[0].mxu0 %v1341
  %v1537 = vpop.f32.mrb[0].mxu0
  %v1538 = vadd.f32 0.0, %v1537
  %v1539 = vpop.f32.mrb[0].mxu0
  %1540 = vmatprep.mubr.f32.mxu0 0.0
  %1541 = vmatmul.mubr.f32.gmra.mrb[0].mxu0 %v1344
  %v1542 = vpop.f32.mrb[0].mxu0
  %v1543 = vadd.f32 0.0, %v1542
  %v1544 = vpop.f32.mrb[0].mxu0
  %1545 = vmatprep.mubr.f32.mxu0 0.0
  %1546 = vmatmul.mubr.f32.gmra.mrb[0].mxu0 %v1347
  %v1547 = vpop.f32.mrb[0].mxu0
  %v1548 = vadd.f32 0.0, %v1547
  %v1549 = vpop.f32.mrb[0].mxu0
  %1550 = vmatprep.mubr.f32.mxu0 0.0
  %1551 = vmatmul.mubr.f32.gmra.mrb[0].mxu0 %v1350
  %v1552 = vpop.f32.mrb[0].mxu0
  %v1553 = vadd.f32 0.0, %v1552
  %v1554 = vpop.f32.mrb[0].mxu0
  %1555 = vmatprep.mubr.f32.mxu0 0.0
  %1556 = vmatmul.mubr.f32.gmra.mrb[0].mxu0 %v1353
  %v1557 = vpop.f32.mrb[0].mxu0
  %v1558 = vadd.f32 0.0, %v1557
  %v1559 = vpop.f32.mrb[0].mxu0
  %1560 = vmatprep.mubr.f32.mxu0 0.0
  %1561 = vmatmul.mubr.f32.gmra.mrb[0].mxu0 %v1356
  %v1562 = vpop.f32.mrb[0].mxu0
  %v1563 = vadd.f32 0.0, %v1562
  %v1564 = vpop.f32.mrb[0].mxu0
  %1565 = vmatprep.mubr.f32.mxu0 0.0
  %1566 = vmatmul.mubr.f32.gmra.mrb[0].mxu0 %v1359
  %v1567 = vpop.f32.mrb[0].mxu0
  %v1568 = vadd.f32 0.0, %v1567
  %v1569 = vpop.f32.mrb[0].mxu0
  %1570 = vmatprep.mubr.f32.mxu0 0.0
  %1571 = vmatmul.mubr.f32.gmra.mrb[0].mxu0 %v1362
  %v1572 = vpop.f32.mrb[0].mxu0
  %v1573 = vadd.f32 0.0, %v1572
  %v1574 = vpop.f32.mrb[0].mxu0
  %1575 = vmatprep.mubr.f32.mxu0 0.0
  %1576 = vmatmul.mubr.f32.gmra.mrb[0].mxu0 %v1365
  %v1577 = vpop.f32.mrb[0].mxu0
  %v1578 = vadd.f32 0.0, %v1577
  %v1579 = vpop.f32.mrb[0].mxu0
  %1580 = vmatprep.mubr.f32.mxu0 0.0
  %1581 = vmatmul.mubr.f32.gmra.mrb[0].mxu0 %v1368
  %v1582 = vpop.f32.mrb[0].mxu0
  %v1583 = vadd.f32 0.0, %v1582
  %v1584 = vpop.f32.mrb[0].mxu0
  %1585 = vmatprep.mubr.f32.mxu0 0.0
  %1586 = vmatmul.mubr.f32.gmra.mrb[0].mxu0 %v1371
  %v1587 = vpop.f32.mrb[0].mxu0
  %v1588 = vadd.f32 0.0, %v1587
  %v1589 = vpop.f32.mrb[0].mxu0
  %1590 = vmatprep.mubr.f32.mxu0 0.0
  %1591 = vmatmul.mubr.f32.gmra.mrb[0].mxu0 %v1374
  %v1592 = vpop.f32.mrb[0].mxu0
  %v1593 = vadd.f32 0.0, %v1592
  %v1594 = vpop.f32.mrb[0].mxu0
  %1595 = vmatprep.mubr.f32.mxu0 0.0
  %1596 = vmatmul.mubr.f32.gmra.mrb[0].mxu0 %v1377
  %v1597 = vpop.f32.mrb[0].mxu0
  %v1598 = vadd.f32 0.0, %v1597
  %v1599 = vpop.f32.mrb[0].mxu0
  %1600 = vmatprep.mubr.f32.mxu0 0.0
  %1601 = vmatmul.mubr.f32.gmra.mrb[0].mxu0 %v1380
  %v1602 = vpop.f32.mrb[0].mxu0
  %v1603 = vadd.f32 0.0, %v1602
  %v1604 = vpop.f32.mrb[0].mxu0
  %1605 = vmatprep.mubr.f32.mxu0 0.0
  %1606 = vmatmul.mubr.f32.gmra.mrb[0].mxu0 %v1383
  %v1607 = vpop.f32.mrb[0].mxu0
  %v1608 = vadd.f32 0.0, %v1607
  %v1609 = vpop.f32.mrb[0].mxu0
  %1610 = vmatprep.mubr.f32.mxu0 0.0
  %1611 = vmatmul.mubr.f32.gmra.mrb[0].mxu0 %v1386
  %v1612 = vpop.f32.mrb[0].mxu0
  %v1613 = vadd.f32 0.0, %v1612
  %v1614 = vpop.f32.mrb[0].mxu0
  %1615 = vmatprep.mubr.f32.mxu0 0.0
  %1616 = vmatmul.mubr.f32.gmra.mrb[0].mxu0 %v1389
  %v1617 = vpop.f32.mrb[0].mxu0
  %v1618 = vadd.f32 0.0, %v1617
  %v1619 = vpop.f32.mrb[0].mxu0
  %1620 = vmatprep.mubr.f32.mxu0 0.0
  %1621 = vmatmul.mubr.f32.gmra.mrb[0].mxu0 %v1392
  %v1622 = vpop.f32.mrb[0].mxu0
  %v1623 = vadd.f32 0.0, %v1622
  %v1624 = vpop.f32.mrb[0].mxu0
  %1625 = vmatprep.mubr.f32.mxu0 0.0
  %1626 = vmatmul.mubr.f32.gmra.mrb[0].mxu0 %v1395
  %v1627 = vpop.f32.mrb[0].mxu0
  %v1628 = vadd.f32 0.0, %v1627
  %v1629 = vpop.f32.mrb[0].mxu0
  %1630 = vmatprep.mubr.f32.mxu0 0.0
  %1631 = vmatmul.mubr.f32.gmra.mrb[0].mxu0 %v1398
  %v1632 = vpop.f32.mrb[0].mxu0
  %v1633 = vadd.f32 0.0, %v1632
  %v1634 = vpop.f32.mrb[0].mxu0
  %1635 = vmatprep.mubr.f32.mxu0 0.0
  %1636 = vmatmul.mubr.f32.gmra.mrb[0].mxu0 %v1401
  %v1637 = vpop.f32.mrb[0].mxu0
  %v1638 = vadd.f32 0.0, %v1637
  %v1639 = vpop.f32.mrb[0].mxu0
  %1640 = vmatprep.mubr.f32.mxu0 0.0
  %1641 = vmatmul.mubr.f32.gmra.mrb[0].mxu0 %v1404
  %v1642 = vpop.f32.mrb[0].mxu0
  %v1643 = vadd.f32 0.0, %v1642
  %v1644 = vpop.f32.mrb[0].mxu0
  %1645 = vmatprep.mubr.f32.mxu0 0.0
  %1646 = vmatmul.mubr.f32.gmra.mrb[0].mxu0 %v1407
  %v1647 = vpop.f32.mrb[0].mxu0
  %v1648 = vadd.f32 0.0, %v1647
  %v1649 = vpop.f32.mrb[0].mxu0
  %1650 = vmatprep.mubr.f32.mxu0 0.0
  %1651 = vmatmul.mubr.f32.gmra.mrb[0].mxu0 %v1410
  %v1652 = vpop.f32.mrb[0].mxu0
  %v1653 = vadd.f32 0.0, %v1652
  %v1654 = vpop.f32.mrb[0].mxu0
  %1655 = vmatprep.mubr.f32.mxu0 0.0
  %1656 = vmatmul.mubr.f32.gmra.mrb[0].mxu0 %v1413
  %v1657 = vpop.f32.mrb[0].mxu0
  %v1658 = vadd.f32 0.0, %v1657
  %v1659 = vpop.f32.mrb[0].mxu0
  %1660 = vmatprep.mubr.f32.mxu0 0.0
  %1661 = vmatmul.mubr.f32.gmra.mrb[0].mxu0 %v1416
  %v1662 = vpop.f32.mrb[0].mxu0
  %v1663 = vadd.f32 0.0, %v1662
  %v1664 = vpop.f32.mrb[0].mxu0
  %1665 = vdwg.mxu0
  %v1666 = vadd.f32 %v1236, %v1488
  %v1667 = vadd.f32 %v1237, %v1493
  %v1668 = vadd.f32 %v1238, %v1498
  %v1669 = vadd.f32 %v1239, %v1503
  %v1670 = vadd.f32 %v1240, %v1508
  %v1671 = vadd.f32 %v1241, %v1513
  %v1672 = vadd.f32 %v1242, %v1518
  %v1673 = vadd.f32 %v1243, %v1523
  %v1674 = vadd.f32 %v1244, %v1528
  %v1675 = vadd.f32 %v1245, %v1533
  %v1676 = vadd.f32 %v1246, %v1538
  %v1677 = vadd.f32 %v1247, %v1543
  %v1678 = vadd.f32 %v1248, %v1548
  %v1679 = vadd.f32 %v1249, %v1553
  %v1680 = vadd.f32 %v1250, %v1558
  %v1681 = vadd.f32 %v1251, %v1563
  %v1682 = vadd.f32 %v1252, %v1568
  %v1683 = vadd.f32 %v1253, %v1573
  %v1684 = vadd.f32 %v1254, %v1578
  %v1685 = vadd.f32 %v1255, %v1583
  %v1686 = vadd.f32 %v1256, %v1588
  %v1687 = vadd.f32 %v1257, %v1593
  %v1688 = vadd.f32 %v1258, %v1598
  %v1689 = vadd.f32 %v1259, %v1603
  %v1690 = vadd.f32 %v1260, %v1608
  %v1691 = vadd.f32 %v1261, %v1613
  %v1692 = vadd.f32 %v1262, %v1618
  %v1693 = vadd.f32 %v1263, %v1623
  %v1694 = vadd.f32 %v1264, %v1628
  %v1695 = vadd.f32 %v1265, %v1633
  %v1696 = vadd.f32 %v1266, %v1638
  %v1697 = vadd.f32 %v1267, %v1643
  %v1698 = vadd.f32 %v1268, %v1648
  %v1699 = vadd.f32 %v1269, %v1653
  %v1700 = vadd.f32 %v1270, %v1658
  %v1701 = vadd.f32 %v1271, %v1663
  %v1702 = vld [vmem:[%s1 + $0x13] sm:$0xff]
  %v1703 = vld [vmem:[%s1 + $0x1b] sm:$0xff]
  %v1704 = vld [vmem:[%s1 + $0x23] sm:$0xff]
  %v1705 = vld [vmem:[%s1 + $0x2b] sm:$0xff]
  %v1706 = vld [vmem:[%s1 + $0x33] sm:$0xff]
  %v1707 = vld [vmem:[%s1 + $0x3b] sm:$0xff]
  %v1708 = vld [vmem:[%s1 + $0x43] sm:$0xff]
  %v1709 = vld [vmem:[%s1 + $0x4b] sm:$0xff]
  %v1710 = vld [vmem:[%s1 + $0x53] sm:$0xff]
  %v1711 = vld [vmem:[%s1 + $0x5b] sm:$0xff]
  %v1712 = vld [vmem:[%s1 + $0x63] sm:$0xff]
  %v1713 = vld [vmem:[%s1 + $0x6b] sm:$0xff]
  %v1714 = vld [vmem:[%s1 + $0x73] sm:$0xff]
  %v1715 = vld [vmem:[%s1 + $0x7b] sm:$0xff]
  %v1716 = vld [vmem:[%s1 + $0x83] sm:$0xff]
  %v1717 = vld [vmem:[%s1 + $0x8b] sm:$0xff]
  %v1718 = vld [vmem:[%s1 + $0x93] sm:$0xff]
  %v1719 = vld [vmem:[%s1 + $0x9b] sm:$0xff]
  %v1720 = vld [vmem:[%s1 + $0xa3] sm:$0xff]
  %v1721 = vld [vmem:[%s1 + $0xab] sm:$0xff]
  %v1722 = vld [vmem:[%s1 + $0xb3] sm:$0xff]
  %v1723 = vld [vmem:[%s1 + $0xbb] sm:$0xff]
  %v1724 = vld [vmem:[%s1 + $0xc3] sm:$0xff]
  %v1725 = vld [vmem:[%s1 + $0xcb] sm:$0xff]
  %v1726 = vld [vmem:[%s1 + $0xd3] sm:$0xff]
  %v1727 = vld [vmem:[%s1 + $0xdb] sm:$0xff]
  %v1728 = vld [vmem:[%s1 + $0xe3] sm:$0xff]
  %v1729 = vld [vmem:[%s1 + $0xeb] sm:$0xff]
  %v1730 = vld [vmem:[%s1 + $0xf3] sm:$0xff]
  %v1731 = vld [vmem:[%s1 + $0xfb] sm:$0xff]
  %v1732 = vld [vmem:[%s1 + $0x103] sm:$0xff]
  %v1733 = vld [vmem:[%s1 + $0x10b] sm:$0xff]
  %v1734 = vld [vmem:[%s1 + $0x113] sm:$0xff]
  %v1735 = vld [vmem:[%s1 + $0x11b] sm:$0xff]
  %v1736 = vld [vmem:[%s1 + $0x123] sm:$0xff]
  %v1737 = vld [vmem:[%s1 + $0x12b] sm:$0xff]
  %s1738 = scalar_lea.vmem %s2, 16
  %v1739 = vld [vmem:[%s1738] sm:$0x7]
  %v1741 = vsel %vm128, %v1702, 0
  %v1744 = vsel %vm128, %v1703, 0
  %v1747 = vsel %vm128, %v1704, 0
  %v1750 = vsel %vm128, %v1705, 0
  %v1753 = vsel %vm128, %v1706, 0
  %v1756 = vsel %vm128, %v1707, 0
  %v1759 = vsel %vm128, %v1708, 0
  %v1762 = vsel %vm128, %v1709, 0
  %v1765 = vsel %vm128, %v1710, 0
  %v1768 = vsel %vm128, %v1711, 0
  %v1771 = vsel %vm128, %v1712, 0
  %v1774 = vsel %vm128, %v1713, 0
  %v1777 = vsel %vm128, %v1714, 0
  %v1780 = vsel %vm128, %v1715, 0
  %v1783 = vsel %vm128, %v1716, 0
  %v1786 = vsel %vm128, %v1717, 0
  %v1789 = vsel %vm128, %v1718, 0
  %v1792 = vsel %vm128, %v1719, 0
  %v1795 = vsel %vm128, %v1720, 0
  %v1798 = vsel %vm128, %v1721, 0
  %v1801 = vsel %vm128, %v1722, 0
  %v1804 = vsel %vm128, %v1723, 0
  %v1807 = vsel %vm128, %v1724, 0
  %v1810 = vsel %vm128, %v1725, 0
  %v1813 = vsel %vm128, %v1726, 0
  %v1816 = vsel %vm128, %v1727, 0
  %v1819 = vsel %vm128, %v1728, 0
  %v1822 = vsel %vm128, %v1729, 0
  %v1825 = vsel %vm128, %v1730, 0
  %v1828 = vsel %vm128, %v1731, 0
  %v1831 = vsel %vm128, %v1732, 0
  %v1834 = vsel %vm128, %v1733, 0
  %v1837 = vsel %vm128, %v1734, 0
  %v1840 = vsel %vm128, %v1735, 0
  %v1843 = vsel %vm128, %v1736, 0
  %v1846 = vsel %vm128, %v1737, 0
  %v1849 = vsel %vm237, %v1739, 0
  %1851 = vmatprep.subr.mxu0 0.0
  %1852 = vmatpush1.msra.mxu0 %v1849
  %1853 = vmatprep.subr.mxu0 0.0
  %1854 = vmatpush1.msra.mxu0 0.0
  %1855 = vmatprep.subr.mxu0 0.0
  %1856 = vmatpush1.msra.mxu0 0.0
  %1857 = vmatprep.subr.mxu0 0.0
  %1858 = vmatpush1.msra.mxu0 0.0
  %1859 = vmatprep.subr.mxu0 0.0
  %1860 = vmatpush1.msra.mxu0 0.0
  %1861 = vmatprep.subr.mxu0 0.0
  %1862 = vmatpush1.msra.mxu0 0.0
  %1863 = vmatprep.subr.mxu0 0.0
  %1864 = vmatpush1.msra.mxu0 0.0
  %1865 = vmatprep.subr.mxu0 0.0
  %1866 = vmatpush1.msra.mxu0 0.0
  %1867 = vmatprep.subr.mxu0 0.0
  %1868 = vmatpush1.msra.mxu0 0.0
  %1869 = vmatprep.subr.mxu0 0.0
  %1870 = vmatpush1.msra.mxu0 0.0
  %1871 = vmatprep.subr.mxu0 0.0
  %1872 = vmatpush1.msra.mxu0 0.0
  %1873 = vmatprep.subr.mxu0 0.0
  %1874 = vmatpush1.msra.mxu0 0.0
  %1875 = vmatprep.subr.mxu0 0.0
  %1876 = vmatpush1.msra.mxu0 0.0
  %1877 = vmatprep.subr.mxu0 0.0
  %1878 = vmatpush1.msra.mxu0 0.0
  %1879 = vmatprep.subr.mxu0 0.0
  %1880 = vmatpush1.msra.mxu0 0.0
  %1881 = vmatprep.subr.mxu0 0.0
  %1882 = vmatpush1.msra.mxu0 0.0
  %1883 = vmatprep.subr.mxu0 0.0
  %1884 = vmatpush1.msra.mxu0 0.0
  %1885 = vmatprep.subr.mxu0 0.0
  %1886 = vmatpush1.msra.mxu0 0.0
  %1887 = vmatprep.subr.mxu0 0.0
  %1888 = vmatpush1.msra.mxu0 0.0
  %1889 = vmatprep.subr.mxu0 0.0
  %1890 = vmatpush1.msra.mxu0 0.0
  %1891 = vmatprep.subr.mxu0 0.0
  %1892 = vmatpush1.msra.mxu0 0.0
  %1893 = vmatprep.subr.mxu0 0.0
  %1894 = vmatpush1.msra.mxu0 0.0
  %1895 = vmatprep.subr.mxu0 0.0
  %1896 = vmatpush1.msra.mxu0 0.0
  %1897 = vmatprep.subr.mxu0 0.0
  %1898 = vmatpush1.msra.mxu0 0.0
  %1899 = vmatprep.subr.mxu0 0.0
  %1900 = vmatpush1.msra.mxu0 0.0
  %1901 = vmatprep.subr.mxu0 0.0
  %1902 = vmatpush1.msra.mxu0 0.0
  %1903 = vmatprep.subr.mxu0 0.0
  %1904 = vmatpush1.msra.mxu0 0.0
  %1905 = vmatprep.subr.mxu0 0.0
  %1906 = vmatpush1.msra.mxu0 0.0
  %1907 = vmatprep.subr.mxu0 0.0
  %1908 = vmatpush1.msra.mxu0 0.0
  %1909 = vmatprep.subr.mxu0 0.0
  %1910 = vmatpush1.msra.mxu0 0.0
  %1911 = vmatprep.subr.mxu0 0.0
  %1912 = vmatpush1.msra.mxu0 0.0
  %1913 = vmatprep.subr.mxu0 0.0
  %1914 = vmatpush1.msra.mxu0 0.0
  %1915 = vmatprep.mubr.f32.mxu0 0.0
  %1916 = vmatmul.mubr.f32.gmra.mrb[0].mxu0 %v1741
  %v1917 = vpop.f32.mrb[0].mxu0
  %v1918 = vadd.f32 0.0, %v1917
  %v1919 = vpop.f32.mrb[0].mxu0
  %1920 = vmatprep.mubr.f32.mxu0 0.0
  %1921 = vmatmul.mubr.f32.gmra.mrb[0].mxu0 %v1744
  %v1922 = vpop.f32.mrb[0].mxu0
  %v1923 = vadd.f32 0.0, %v1922
  %v1924 = vpop.f32.mrb[0].mxu0
  %1925 = vmatprep.mubr.f32.mxu0 0.0
  %1926 = vmatmul.mubr.f32.gmra.mrb[0].mxu0 %v1747
  %v1927 = vpop.f32.mrb[0].mxu0
  %v1928 = vadd.f32 0.0, %v1927
  %v1929 = vpop.f32.mrb[0].mxu0
  %1930 = vmatprep.mubr.f32.mxu0 0.0
  %1931 = vmatmul.mubr.f32.gmra.mrb[0].mxu0 %v1750
  %v1932 = vpop.f32.mrb[0].mxu0
  %v1933 = vadd.f32 0.0, %v1932
  %v1934 = vpop.f32.mrb[0].mxu0
  %1935 = vmatprep.mubr.f32.mxu0 0.0
  %1936 = vmatmul.mubr.f32.gmra.mrb[0].mxu0 %v1753
  %v1937 = vpop.f32.mrb[0].mxu0
  %v1938 = vadd.f32 0.0, %v1937
  %v1939 = vpop.f32.mrb[0].mxu0
  %1940 = vmatprep.mubr.f32.mxu0 0.0
  %1941 = vmatmul.mubr.f32.gmra.mrb[0].mxu0 %v1756
  %v1942 = vpop.f32.mrb[0].mxu0
  %v1943 = vadd.f32 0.0, %v1942
  %v1944 = vpop.f32.mrb[0].mxu0
  %1945 = vmatprep.mubr.f32.mxu0 0.0
  %1946 = vmatmul.mubr.f32.gmra.mrb[0].mxu0 %v1759
  %v1947 = vpop.f32.mrb[0].mxu0
  %v1948 = vadd.f32 0.0, %v1947
  %v1949 = vpop.f32.mrb[0].mxu0
  %1950 = vmatprep.mubr.f32.mxu0 0.0
  %1951 = vmatmul.mubr.f32.gmra.mrb[0].mxu0 %v1762
  %v1952 = vpop.f32.mrb[0].mxu0
  %v1953 = vadd.f32 0.0, %v1952
  %v1954 = vpop.f32.mrb[0].mxu0
  %1955 = vmatprep.mubr.f32.mxu0 0.0
  %1956 = vmatmul.mubr.f32.gmra.mrb[0].mxu0 %v1765
  %v1957 = vpop.f32.mrb[0].mxu0
  %v1958 = vadd.f32 0.0, %v1957
  %v1959 = vpop.f32.mrb[0].mxu0
  %1960 = vmatprep.mubr.f32.mxu0 0.0
  %1961 = vmatmul.mubr.f32.gmra.mrb[0].mxu0 %v1768
  %v1962 = vpop.f32.mrb[0].mxu0
  %v1963 = vadd.f32 0.0, %v1962
  %v1964 = vpop.f32.mrb[0].mxu0
  %1965 = vmatprep.mubr.f32.mxu0 0.0
  %1966 = vmatmul.mubr.f32.gmra.mrb[0].mxu0 %v1771
  %v1967 = vpop.f32.mrb[0].mxu0
  %v1968 = vadd.f32 0.0, %v1967
  %v1969 = vpop.f32.mrb[0].mxu0
  %1970 = vmatprep.mubr.f32.mxu0 0.0
  %1971 = vmatmul.mubr.f32.gmra.mrb[0].mxu0 %v1774
  %v1972 = vpop.f32.mrb[0].mxu0
  %v1973 = vadd.f32 0.0, %v1972
  %v1974 = vpop.f32.mrb[0].mxu0
  %1975 = vmatprep.mubr.f32.mxu0 0.0
  %1976 = vmatmul.mubr.f32.gmra.mrb[0].mxu0 %v1777
  %v1977 = vpop.f32.mrb[0].mxu0
  %v1978 = vadd.f32 0.0, %v1977
  %v1979 = vpop.f32.mrb[0].mxu0
  %1980 = vmatprep.mubr.f32.mxu0 0.0
  %1981 = vmatmul.mubr.f32.gmra.mrb[0].mxu0 %v1780
  %v1982 = vpop.f32.mrb[0].mxu0
  %v1983 = vadd.f32 0.0, %v1982
  %v1984 = vpop.f32.mrb[0].mxu0
  %1985 = vmatprep.mubr.f32.mxu0 0.0
  %1986 = vmatmul.mubr.f32.gmra.mrb[0].mxu0 %v1783
  %v1987 = vpop.f32.mrb[0].mxu0
  %v1988 = vadd.f32 0.0, %v1987
  %v1989 = vpop.f32.mrb[0].mxu0
  %1990 = vmatprep.mubr.f32.mxu0 0.0
  %1991 = vmatmul.mubr.f32.gmra.mrb[0].mxu0 %v1786
  %v1992 = vpop.f32.mrb[0].mxu0
  %v1993 = vadd.f32 0.0, %v1992
  %v1994 = vpop.f32.mrb[0].mxu0
  %1995 = vmatprep.mubr.f32.mxu0 0.0
  %1996 = vmatmul.mubr.f32.gmra.mrb[0].mxu0 %v1789
  %v1997 = vpop.f32.mrb[0].mxu0
  %v1998 = vadd.f32 0.0, %v1997
  %v1999 = vpop.f32.mrb[0].mxu0
  %2000 = vmatprep.mubr.f32.mxu0 0.0
  %2001 = vmatmul.mubr.f32.gmra.mrb[0].mxu0 %v1792
  %v2002 = vpop.f32.mrb[0].mxu0
  %v2003 = vadd.f32 0.0, %v2002
  %v2004 = vpop.f32.mrb[0].mxu0
  %2005 = vmatprep.mubr.f32.mxu0 0.0
  %2006 = vmatmul.mubr.f32.gmra.mrb[0].mxu0 %v1795
  %v2007 = vpop.f32.mrb[0].mxu0
  %v2008 = vadd.f32 0.0, %v2007
  %v2009 = vpop.f32.mrb[0].mxu0
  %2010 = vmatprep.mubr.f32.mxu0 0.0
  %2011 = vmatmul.mubr.f32.gmra.mrb[0].mxu0 %v1798
  %v2012 = vpop.f32.mrb[0].mxu0
  %v2013 = vadd.f32 0.0, %v2012
  %v2014 = vpop.f32.mrb[0].mxu0
  %2015 = vmatprep.mubr.f32.mxu0 0.0
  %2016 = vmatmul.mubr.f32.gmra.mrb[0].mxu0 %v1801
  %v2017 = vpop.f32.mrb[0].mxu0
  %v2018 = vadd.f32 0.0, %v2017
  %v2019 = vpop.f32.mrb[0].mxu0
  %2020 = vmatprep.mubr.f32.mxu0 0.0
  %2021 = vmatmul.mubr.f32.gmra.mrb[0].mxu0 %v1804
  %v2022 = vpop.f32.mrb[0].mxu0
  %v2023 = vadd.f32 0.0, %v2022
  %v2024 = vpop.f32.mrb[0].mxu0
  %2025 = vmatprep.mubr.f32.mxu0 0.0
  %2026 = vmatmul.mubr.f32.gmra.mrb[0].mxu0 %v1807
  %v2027 = vpop.f32.mrb[0].mxu0
  %v2028 = vadd.f32 0.0, %v2027
  %v2029 = vpop.f32.mrb[0].mxu0
  %2030 = vmatprep.mubr.f32.mxu0 0.0
  %2031 = vmatmul.mubr.f32.gmra.mrb[0].mxu0 %v1810
  %v2032 = vpop.f32.mrb[0].mxu0
  %v2033 = vadd.f32 0.0, %v2032
  %v2034 = vpop.f32.mrb[0].mxu0
  %2035 = vmatprep.mubr.f32.mxu0 0.0
  %2036 = vmatmul.mubr.f32.gmra.mrb[0].mxu0 %v1813
  %v2037 = vpop.f32.mrb[0].mxu0
  %v2038 = vadd.f32 0.0, %v2037
  %v2039 = vpop.f32.mrb[0].mxu0
  %2040 = vmatprep.mubr.f32.mxu0 0.0
  %2041 = vmatmul.mubr.f32.gmra.mrb[0].mxu0 %v1816
  %v2042 = vpop.f32.mrb[0].mxu0
  %v2043 = vadd.f32 0.0, %v2042
  %v2044 = vpop.f32.mrb[0].mxu0
  %2045 = vmatprep.mubr.f32.mxu0 0.0
  %2046 = vmatmul.mubr.f32.gmra.mrb[0].mxu0 %v1819
  %v2047 = vpop.f32.mrb[0].mxu0
  %v2048 = vadd.f32 0.0, %v2047
  %v2049 = vpop.f32.mrb[0].mxu0
  %2050 = vmatprep.mubr.f32.mxu0 0.0
  %2051 = vmatmul.mubr.f32.gmra.mrb[0].mxu0 %v1822
  %v2052 = vpop.f32.mrb[0].mxu0
  %v2053 = vadd.f32 0.0, %v2052
  %v2054 = vpop.f32.mrb[0].mxu0
  %2055 = vmatprep.mubr.f32.mxu0 0.0
  %2056 = vmatmul.mubr.f32.gmra.mrb[0].mxu0 %v1825
  %v2057 = vpop.f32.mrb[0].mxu0
  %v2058 = vadd.f32 0.0, %v2057
  %v2059 = vpop.f32.mrb[0].mxu0
  %2060 = vmatprep.mubr.f32.mxu0 0.0
  %2061 = vmatmul.mubr.f32.gmra.mrb[0].mxu0 %v1828
  %v2062 = vpop.f32.mrb[0].mxu0
  %v2063 = vadd.f32 0.0, %v2062
  %v2064 = vpop.f32.mrb[0].mxu0
  %2065 = vmatprep.mubr.f32.mxu0 0.0
  %2066 = vmatmul.mubr.f32.gmra.mrb[0].mxu0 %v1831
  %v2067 = vpop.f32.mrb[0].mxu0
  %v2068 = vadd.f32 0.0, %v2067
  %v2069 = vpop.f32.mrb[0].mxu0
  %2070 = vmatprep.mubr.f32.mxu0 0.0
  %2071 = vmatmul.mubr.f32.gmra.mrb[0].mxu0 %v1834
  %v2072 = vpop.f32.mrb[0].mxu0
  %v2073 = vadd.f32 0.0, %v2072
  %v2074 = vpop.f32.mrb[0].mxu0
  %2075 = vmatprep.mubr.f32.mxu0 0.0
  %2076 = vmatmul.mubr.f32.gmra.mrb[0].mxu0 %v1837
  %v2077 = vpop.f32.mrb[0].mxu0
  %v2078 = vadd.f32 0.0, %v2077
  %v2079 = vpop.f32.mrb[0].mxu0
  %2080 = vmatprep.mubr.f32.mxu0 0.0
  %2081 = vmatmul.mubr.f32.gmra.mrb[0].mxu0 %v1840
  %v2082 = vpop.f32.mrb[0].mxu0
  %v2083 = vadd.f32 0.0, %v2082
  %v2084 = vpop.f32.mrb[0].mxu0
  %2085 = vmatprep.mubr.f32.mxu0 0.0
  %2086 = vmatmul.mubr.f32.gmra.mrb[0].mxu0 %v1843
  %v2087 = vpop.f32.mrb[0].mxu0
  %v2088 = vadd.f32 0.0, %v2087
  %v2089 = vpop.f32.mrb[0].mxu0
  %2090 = vmatprep.mubr.f32.mxu0 0.0
  %2091 = vmatmul.mubr.f32.gmra.mrb[0].mxu0 %v1846
  %v2092 = vpop.f32.mrb[0].mxu0
  %v2093 = vadd.f32 0.0, %v2092
  %v2094 = vpop.f32.mrb[0].mxu0
  %2095 = vdwg.mxu0
  %v2096 = vadd.f32 %v1666, %v1918
  %v2097 = vadd.f32 %v1667, %v1923
  %v2098 = vadd.f32 %v1668, %v1928
  %v2099 = vadd.f32 %v1669, %v1933
  %v2100 = vadd.f32 %v1670, %v1938
  %v2101 = vadd.f32 %v1671, %v1943
  %v2102 = vadd.f32 %v1672, %v1948
  %v2103 = vadd.f32 %v1673, %v1953
  %v2104 = vadd.f32 %v1674, %v1958
  %v2105 = vadd.f32 %v1675, %v1963
  %v2106 = vadd.f32 %v1676, %v1968
  %v2107 = vadd.f32 %v1677, %v1973
  %v2108 = vadd.f32 %v1678, %v1978
  %v2109 = vadd.f32 %v1679, %v1983
  %v2110 = vadd.f32 %v1680, %v1988
  %v2111 = vadd.f32 %v1681, %v1993
  %v2112 = vadd.f32 %v1682, %v1998
  %v2113 = vadd.f32 %v1683, %v2003
  %v2114 = vadd.f32 %v1684, %v2008
  %v2115 = vadd.f32 %v1685, %v2013
  %v2116 = vadd.f32 %v1686, %v2018
  %v2117 = vadd.f32 %v1687, %v2023
  %v2118 = vadd.f32 %v1688, %v2028
  %v2119 = vadd.f32 %v1689, %v2033
  %v2120 = vadd.f32 %v1690, %v2038
  %v2121 = vadd.f32 %v1691, %v2043
  %v2122 = vadd.f32 %v1692, %v2048
  %v2123 = vadd.f32 %v1693, %v2053
  %v2124 = vadd.f32 %v1694, %v2058
  %v2125 = vadd.f32 %v1695, %v2063
  %v2126 = vadd.f32 %v1696, %v2068
  %v2127 = vadd.f32 %v1697, %v2073
  %v2128 = vadd.f32 %v1698, %v2078
  %v2129 = vadd.f32 %v1699, %v2083
  %v2130 = vadd.f32 %v1700, %v2088
  %v2131 = vadd.f32 %v1701, %v2093
  %v2132 = vld [vmem:[%s1 + $0x14] sm:$0xff]
  %v2133 = vld [vmem:[%s1 + $0x1c] sm:$0xff]
  %v2134 = vld [vmem:[%s1 + $0x24] sm:$0xff]
  %v2135 = vld [vmem:[%s1 + $0x2c] sm:$0xff]
  %v2136 = vld [vmem:[%s1 + $0x34] sm:$0xff]
  %v2137 = vld [vmem:[%s1 + $0x3c] sm:$0xff]
  %v2138 = vld [vmem:[%s1 + $0x44] sm:$0xff]
  %v2139 = vld [vmem:[%s1 + $0x4c] sm:$0xff]
  %v2140 = vld [vmem:[%s1 + $0x54] sm:$0xff]
  %v2141 = vld [vmem:[%s1 + $0x5c] sm:$0xff]
  %v2142 = vld [vmem:[%s1 + $0x64] sm:$0xff]
  %v2143 = vld [vmem:[%s1 + $0x6c] sm:$0xff]
  %v2144 = vld [vmem:[%s1 + $0x74] sm:$0xff]
  %v2145 = vld [vmem:[%s1 + $0x7c] sm:$0xff]
  %v2146 = vld [vmem:[%s1 + $0x84] sm:$0xff]
  %v2147 = vld [vmem:[%s1 + $0x8c] sm:$0xff]
  %v2148 = vld [vmem:[%s1 + $0x94] sm:$0xff]
  %v2149 = vld [vmem:[%s1 + $0x9c] sm:$0xff]
  %v2150 = vld [vmem:[%s1 + $0xa4] sm:$0xff]
  %v2151 = vld [vmem:[%s1 + $0xac] sm:$0xff]
  %v2152 = vld [vmem:[%s1 + $0xb4] sm:$0xff]
  %v2153 = vld [vmem:[%s1 + $0xbc] sm:$0xff]
  %v2154 = vld [vmem:[%s1 + $0xc4] sm:$0xff]
  %v2155 = vld [vmem:[%s1 + $0xcc] sm:$0xff]
  %v2156 = vld [vmem:[%s1 + $0xd4] sm:$0xff]
  %v2157 = vld [vmem:[%s1 + $0xdc] sm:$0xff]
  %v2158 = vld [vmem:[%s1 + $0xe4] sm:$0xff]
  %v2159 = vld [vmem:[%s1 + $0xec] sm:$0xff]
  %v2160 = vld [vmem:[%s1 + $0xf4] sm:$0xff]
  %v2161 = vld [vmem:[%s1 + $0xfc] sm:$0xff]
  %v2162 = vld [vmem:[%s1 + $0x104] sm:$0xff]
  %v2163 = vld [vmem:[%s1 + $0x10c] sm:$0xff]
  %v2164 = vld [vmem:[%s1 + $0x114] sm:$0xff]
  %v2165 = vld [vmem:[%s1 + $0x11c] sm:$0xff]
  %v2166 = vld [vmem:[%s1 + $0x124] sm:$0xff]
  %v2167 = vld [vmem:[%s1 + $0x12c] sm:$0xff]
  %s2168 = scalar_lea.vmem %s2, 20
  %v2169 = vld [vmem:[%s2168] sm:$0x7]
  %v2171 = vsel %vm128, %v2132, 0
  %v2174 = vsel %vm128, %v2133, 0
  %v2177 = vsel %vm128, %v2134, 0
  %v2180 = vsel %vm128, %v2135, 0
  %v2183 = vsel %vm128, %v2136, 0
  %v2186 = vsel %vm128, %v2137, 0
  %v2189 = vsel %vm128, %v2138, 0
  %v2192 = vsel %vm128, %v2139, 0
  %v2195 = vsel %vm128, %v2140, 0
  %v2198 = vsel %vm128, %v2141, 0
  %v2201 = vsel %vm128, %v2142, 0
  %v2204 = vsel %vm128, %v2143, 0
  %v2207 = vsel %vm128, %v2144, 0
  %v2210 = vsel %vm128, %v2145, 0
  %v2213 = vsel %vm128, %v2146, 0
  %v2216 = vsel %vm128, %v2147, 0
  %v2219 = vsel %vm128, %v2148, 0
  %v2222 = vsel %vm128, %v2149, 0
  %v2225 = vsel %vm128, %v2150, 0
  %v2228 = vsel %vm128, %v2151, 0
  %v2231 = vsel %vm128, %v2152, 0
  %v2234 = vsel %vm128, %v2153, 0
  %v2237 = vsel %vm128, %v2154, 0
  %v2240 = vsel %vm128, %v2155, 0
  %v2243 = vsel %vm128, %v2156, 0
  %v2246 = vsel %vm128, %v2157, 0
  %v2249 = vsel %vm128, %v2158, 0
  %v2252 = vsel %vm128, %v2159, 0
  %v2255 = vsel %vm128, %v2160, 0
  %v2258 = vsel %vm128, %v2161, 0
  %v2261 = vsel %vm128, %v2162, 0
  %v2264 = vsel %vm128, %v2163, 0
  %v2267 = vsel %vm128, %v2164, 0
  %v2270 = vsel %vm128, %v2165, 0
  %v2273 = vsel %vm128, %v2166, 0
  %v2276 = vsel %vm128, %v2167, 0
  %v2279 = vsel %vm237, %v2169, 0
  %2281 = vmatprep.subr.mxu0 0.0
  %2282 = vmatpush1.msra.mxu0 %v2279
  %2283 = vmatprep.subr.mxu0 0.0
  %2284 = vmatpush1.msra.mxu0 0.0
  %2285 = vmatprep.subr.mxu0 0.0
  %2286 = vmatpush1.msra.mxu0 0.0
  %2287 = vmatprep.subr.mxu0 0.0
  %2288 = vmatpush1.msra.mxu0 0.0
  %2289 = vmatprep.subr.mxu0 0.0
  %2290 = vmatpush1.msra.mxu0 0.0
  %2291 = vmatprep.subr.mxu0 0.0
  %2292 = vmatpush1.msra.mxu0 0.0
  %2293 = vmatprep.subr.mxu0 0.0
  %2294 = vmatpush1.msra.mxu0 0.0
  %2295 = vmatprep.subr.mxu0 0.0
  %2296 = vmatpush1.msra.mxu0 0.0
  %2297 = vmatprep.subr.mxu0 0.0
  %2298 = vmatpush1.msra.mxu0 0.0
  %2299 = vmatprep.subr.mxu0 0.0
  %2300 = vmatpush1.msra.mxu0 0.0
  %2301 = vmatprep.subr.mxu0 0.0
  %2302 = vmatpush1.msra.mxu0 0.0
  %2303 = vmatprep.subr.mxu0 0.0
  %2304 = vmatpush1.msra.mxu0 0.0
  %2305 = vmatprep.subr.mxu0 0.0
  %2306 = vmatpush1.msra.mxu0 0.0
  %2307 = vmatprep.subr.mxu0 0.0
  %2308 = vmatpush1.msra.mxu0 0.0
  %2309 = vmatprep.subr.mxu0 0.0
  %2310 = vmatpush1.msra.mxu0 0.0
  %2311 = vmatprep.subr.mxu0 0.0
  %2312 = vmatpush1.msra.mxu0 0.0
  %2313 = vmatprep.subr.mxu0 0.0
  %2314 = vmatpush1.msra.mxu0 0.0
  %2315 = vmatprep.subr.mxu0 0.0
  %2316 = vmatpush1.msra.mxu0 0.0
  %2317 = vmatprep.subr.mxu0 0.0
  %2318 = vmatpush1.msra.mxu0 0.0
  %2319 = vmatprep.subr.mxu0 0.0
  %2320 = vmatpush1.msra.mxu0 0.0
  %2321 = vmatprep.subr.mxu0 0.0
  %2322 = vmatpush1.msra.mxu0 0.0
  %2323 = vmatprep.subr.mxu0 0.0
  %2324 = vmatpush1.msra.mxu0 0.0
  %2325 = vmatprep.subr.mxu0 0.0
  %2326 = vmatpush1.msra.mxu0 0.0
  %2327 = vmatprep.subr.mxu0 0.0
  %2328 = vmatpush1.msra.mxu0 0.0
  %2329 = vmatprep.subr.mxu0 0.0
  %2330 = vmatpush1.msra.mxu0 0.0
  %2331 = vmatprep.subr.mxu0 0.0
  %2332 = vmatpush1.msra.mxu0 0.0
  %2333 = vmatprep.subr.mxu0 0.0
  %2334 = vmatpush1.msra.mxu0 0.0
  %2335 = vmatprep.subr.mxu0 0.0
  %2336 = vmatpush1.msra.mxu0 0.0
  %2337 = vmatprep.subr.mxu0 0.0
  %2338 = vmatpush1.msra.mxu0 0.0
  %2339 = vmatprep.subr.mxu0 0.0
  %2340 = vmatpush1.msra.mxu0 0.0
  %2341 = vmatprep.subr.mxu0 0.0
  %2342 = vmatpush1.msra.mxu0 0.0
  %2343 = vmatprep.subr.mxu0 0.0
  %2344 = vmatpush1.msra.mxu0 0.0
  %2345 = vmatprep.mubr.f32.mxu0 0.0
  %2346 = vmatmul.mubr.f32.gmra.mrb[0].mxu0 %v2171
  %v2347 = vpop.f32.mrb[0].mxu0
  %v2348 = vadd.f32 0.0, %v2347
  %v2349 = vpop.f32.mrb[0].mxu0
  %2350 = vmatprep.mubr.f32.mxu0 0.0
  %2351 = vmatmul.mubr.f32.gmra.mrb[0].mxu0 %v2174
  %v2352 = vpop.f32.mrb[0].mxu0
  %v2353 = vadd.f32 0.0, %v2352
  %v2354 = vpop.f32.mrb[0].mxu0
  %2355 = vmatprep.mubr.f32.mxu0 0.0
  %2356 = vmatmul.mubr.f32.gmra.mrb[0].mxu0 %v2177
  %v2357 = vpop.f32.mrb[0].mxu0
  %v2358 = vadd.f32 0.0, %v2357
  %v2359 = vpop.f32.mrb[0].mxu0
  %2360 = vmatprep.mubr.f32.mxu0 0.0
  %2361 = vmatmul.mubr.f32.gmra.mrb[0].mxu0 %v2180
  %v2362 = vpop.f32.mrb[0].mxu0
  %v2363 = vadd.f32 0.0, %v2362
  %v2364 = vpop.f32.mrb[0].mxu0
  %2365 = vmatprep.mubr.f32.mxu0 0.0
  %2366 = vmatmul.mubr.f32.gmra.mrb[0].mxu0 %v2183
  %v2367 = vpop.f32.mrb[0].mxu0
  %v2368 = vadd.f32 0.0, %v2367
  %v2369 = vpop.f32.mrb[0].mxu0
  %2370 = vmatprep.mubr.f32.mxu0 0.0
  %2371 = vmatmul.mubr.f32.gmra.mrb[0].mxu0 %v2186
  %v2372 = vpop.f32.mrb[0].mxu0
  %v2373 = vadd.f32 0.0, %v2372
  %v2374 = vpop.f32.mrb[0].mxu0
  %2375 = vmatprep.mubr.f32.mxu0 0.0
  %2376 = vmatmul.mubr.f32.gmra.mrb[0].mxu0 %v2189
  %v2377 = vpop.f32.mrb[0].mxu0
  %v2378 = vadd.f32 0.0, %v2377
  %v2379 = vpop.f32.mrb[0].mxu0
  %2380 = vmatprep.mubr.f32.mxu0 0.0
  %2381 = vmatmul.mubr.f32.gmra.mrb[0].mxu0 %v2192
  %v2382 = vpop.f32.mrb[0].mxu0
  %v2383 = vadd.f32 0.0, %v2382
  %v2384 = vpop.f32.mrb[0].mxu0
  %2385 = vmatprep.mubr.f32.mxu0 0.0
  %2386 = vmatmul.mubr.f32.gmra.mrb[0].mxu0 %v2195
  %v2387 = vpop.f32.mrb[0].mxu0
  %v2388 = vadd.f32 0.0, %v2387
  %v2389 = vpop.f32.mrb[0].mxu0
  %2390 = vmatprep.mubr.f32.mxu0 0.0
  %2391 = vmatmul.mubr.f32.gmra.mrb[0].mxu0 %v2198
  %v2392 = vpop.f32.mrb[0].mxu0
  %v2393 = vadd.f32 0.0, %v2392
  %v2394 = vpop.f32.mrb[0].mxu0
  %2395 = vmatprep.mubr.f32.mxu0 0.0
  %2396 = vmatmul.mubr.f32.gmra.mrb[0].mxu0 %v2201
  %v2397 = vpop.f32.mrb[0].mxu0
  %v2398 = vadd.f32 0.0, %v2397
  %v2399 = vpop.f32.mrb[0].mxu0
  %2400 = vmatprep.mubr.f32.mxu0 0.0
  %2401 = vmatmul.mubr.f32.gmra.mrb[0].mxu0 %v2204
  %v2402 = vpop.f32.mrb[0].mxu0
  %v2403 = vadd.f32 0.0, %v2402
  %v2404 = vpop.f32.mrb[0].mxu0
  %2405 = vmatprep.mubr.f32.mxu0 0.0
  %2406 = vmatmul.mubr.f32.gmra.mrb[0].mxu0 %v2207
  %v2407 = vpop.f32.mrb[0].mxu0
  %v2408 = vadd.f32 0.0, %v2407
  %v2409 = vpop.f32.mrb[0].mxu0
  %2410 = vmatprep.mubr.f32.mxu0 0.0
  %2411 = vmatmul.mubr.f32.gmra.mrb[0].mxu0 %v2210
  %v2412 = vpop.f32.mrb[0].mxu0
  %v2413 = vadd.f32 0.0, %v2412
  %v2414 = vpop.f32.mrb[0].mxu0
  %2415 = vmatprep.mubr.f32.mxu0 0.0
  %2416 = vmatmul.mubr.f32.gmra.mrb[0].mxu0 %v2213
  %v2417 = vpop.f32.mrb[0].mxu0
  %v2418 = vadd.f32 0.0, %v2417
  %v2419 = vpop.f32.mrb[0].mxu0
  %2420 = vmatprep.mubr.f32.mxu0 0.0
  %2421 = vmatmul.mubr.f32.gmra.mrb[0].mxu0 %v2216
  %v2422 = vpop.f32.mrb[0].mxu0
  %v2423 = vadd.f32 0.0, %v2422
  %v2424 = vpop.f32.mrb[0].mxu0
  %2425 = vmatprep.mubr.f32.mxu0 0.0
  %2426 = vmatmul.mubr.f32.gmra.mrb[0].mxu0 %v2219
  %v2427 = vpop.f32.mrb[0].mxu0
  %v2428 = vadd.f32 0.0, %v2427
  %v2429 = vpop.f32.mrb[0].mxu0
  %2430 = vmatprep.mubr.f32.mxu0 0.0
  %2431 = vmatmul.mubr.f32.gmra.mrb[0].mxu0 %v2222
  %v2432 = vpop.f32.mrb[0].mxu0
  %v2433 = vadd.f32 0.0, %v2432
  %v2434 = vpop.f32.mrb[0].mxu0
  %2435 = vmatprep.mubr.f32.mxu0 0.0
  %2436 = vmatmul.mubr.f32.gmra.mrb[0].mxu0 %v2225
  %v2437 = vpop.f32.mrb[0].mxu0
  %v2438 = vadd.f32 0.0, %v2437
  %v2439 = vpop.f32.mrb[0].mxu0
  %2440 = vmatprep.mubr.f32.mxu0 0.0
  %2441 = vmatmul.mubr.f32.gmra.mrb[0].mxu0 %v2228
  %v2442 = vpop.f32.mrb[0].mxu0
  %v2443 = vadd.f32 0.0, %v2442
  %v2444 = vpop.f32.mrb[0].mxu0
  %2445 = vmatprep.mubr.f32.mxu0 0.0
  %2446 = vmatmul.mubr.f32.gmra.mrb[0].mxu0 %v2231
  %v2447 = vpop.f32.mrb[0].mxu0
  %v2448 = vadd.f32 0.0, %v2447
  %v2449 = vpop.f32.mrb[0].mxu0
  %2450 = vmatprep.mubr.f32.mxu0 0.0
  %2451 = vmatmul.mubr.f32.gmra.mrb[0].mxu0 %v2234
  %v2452 = vpop.f32.mrb[0].mxu0
  %v2453 = vadd.f32 0.0, %v2452
  %v2454 = vpop.f32.mrb[0].mxu0
  %2455 = vmatprep.mubr.f32.mxu0 0.0
  %2456 = vmatmul.mubr.f32.gmra.mrb[0].mxu0 %v2237
  %v2457 = vpop.f32.mrb[0].mxu0
  %v2458 = vadd.f32 0.0, %v2457
  %v2459 = vpop.f32.mrb[0].mxu0
  %2460 = vmatprep.mubr.f32.mxu0 0.0
  %2461 = vmatmul.mubr.f32.gmra.mrb[0].mxu0 %v2240
  %v2462 = vpop.f32.mrb[0].mxu0
  %v2463 = vadd.f32 0.0, %v2462
  %v2464 = vpop.f32.mrb[0].mxu0
  %2465 = vmatprep.mubr.f32.mxu0 0.0
  %2466 = vmatmul.mubr.f32.gmra.mrb[0].mxu0 %v2243
  %v2467 = vpop.f32.mrb[0].mxu0
  %v2468 = vadd.f32 0.0, %v2467
  %v2469 = vpop.f32.mrb[0].mxu0
  %2470 = vmatprep.mubr.f32.mxu0 0.0
  %2471 = vmatmul.mubr.f32.gmra.mrb[0].mxu0 %v2246
  %v2472 = vpop.f32.mrb[0].mxu0
  %v2473 = vadd.f32 0.0, %v2472
  %v2474 = vpop.f32.mrb[0].mxu0
  %2475 = vmatprep.mubr.f32.mxu0 0.0
  %2476 = vmatmul.mubr.f32.gmra.mrb[0].mxu0 %v2249
  %v2477 = vpop.f32.mrb[0].mxu0
  %v2478 = vadd.f32 0.0, %v2477
  %v2479 = vpop.f32.mrb[0].mxu0
  %2480 = vmatprep.mubr.f32.mxu0 0.0
  %2481 = vmatmul.mubr.f32.gmra.mrb[0].mxu0 %v2252
  %v2482 = vpop.f32.mrb[0].mxu0
  %v2483 = vadd.f32 0.0, %v2482
  %v2484 = vpop.f32.mrb[0].mxu0
  %2485 = vmatprep.mubr.f32.mxu0 0.0
  %2486 = vmatmul.mubr.f32.gmra.mrb[0].mxu0 %v2255
  %v2487 = vpop.f32.mrb[0].mxu0
  %v2488 = vadd.f32 0.0, %v2487
  %v2489 = vpop.f32.mrb[0].mxu0
  %2490 = vmatprep.mubr.f32.mxu0 0.0
  %2491 = vmatmul.mubr.f32.gmra.mrb[0].mxu0 %v2258
  %v2492 = vpop.f32.mrb[0].mxu0
  %v2493 = vadd.f32 0.0, %v2492
  %v2494 = vpop.f32.mrb[0].mxu0
  %2495 = vmatprep.mubr.f32.mxu0 0.0
  %2496 = vmatmul.mubr.f32.gmra.mrb[0].mxu0 %v2261
  %v2497 = vpop.f32.mrb[0].mxu0
  %v2498 = vadd.f32 0.0, %v2497
  %v2499 = vpop.f32.mrb[0].mxu0
  %2500 = vmatprep.mubr.f32.mxu0 0.0
  %2501 = vmatmul.mubr.f32.gmra.mrb[0].mxu0 %v2264
  %v2502 = vpop.f32.mrb[0].mxu0
  %v2503 = vadd.f32 0.0, %v2502
  %v2504 = vpop.f32.mrb[0].mxu0
  %2505 = vmatprep.mubr.f32.mxu0 0.0
  %2506 = vmatmul.mubr.f32.gmra.mrb[0].mxu0 %v2267
  %v2507 = vpop.f32.mrb[0].mxu0
  %v2508 = vadd.f32 0.0, %v2507
  %v2509 = vpop.f32.mrb[0].mxu0
  %2510 = vmatprep.mubr.f32.mxu0 0.0
  %2511 = vmatmul.mubr.f32.gmra.mrb[0].mxu0 %v2270
  %v2512 = vpop.f32.mrb[0].mxu0
  %v2513 = vadd.f32 0.0, %v2512
  %v2514 = vpop.f32.mrb[0].mxu0
  %2515 = vmatprep.mubr.f32.mxu0 0.0
  %2516 = vmatmul.mubr.f32.gmra.mrb[0].mxu0 %v2273
  %v2517 = vpop.f32.mrb[0].mxu0
  %v2518 = vadd.f32 0.0, %v2517
  %v2519 = vpop.f32.mrb[0].mxu0
  %2520 = vmatprep.mubr.f32.mxu0 0.0
  %2521 = vmatmul.mubr.f32.gmra.mrb[0].mxu0 %v2276
  %v2522 = vpop.f32.mrb[0].mxu0
  %v2523 = vadd.f32 0.0, %v2522
  %v2524 = vpop.f32.mrb[0].mxu0
  %2525 = vdwg.mxu0
  %v2526 = vadd.f32 %v2096, %v2348
  %v2527 = vadd.f32 %v2097, %v2353
  %v2528 = vadd.f32 %v2098, %v2358
  %v2529 = vadd.f32 %v2099, %v2363
  %v2530 = vadd.f32 %v2100, %v2368
  %v2531 = vadd.f32 %v2101, %v2373
  %v2532 = vadd.f32 %v2102, %v2378
  %v2533 = vadd.f32 %v2103, %v2383
  %v2534 = vadd.f32 %v2104, %v2388
  %v2535 = vadd.f32 %v2105, %v2393
  %v2536 = vadd.f32 %v2106, %v2398
  %v2537 = vadd.f32 %v2107, %v2403
  %v2538 = vadd.f32 %v2108, %v2408
  %v2539 = vadd.f32 %v2109, %v2413
  %v2540 = vadd.f32 %v2110, %v2418
  %v2541 = vadd.f32 %v2111, %v2423
  %v2542 = vadd.f32 %v2112, %v2428
  %v2543 = vadd.f32 %v2113, %v2433
  %v2544 = vadd.f32 %v2114, %v2438
  %v2545 = vadd.f32 %v2115, %v2443
  %v2546 = vadd.f32 %v2116, %v2448
  %v2547 = vadd.f32 %v2117, %v2453
  %v2548 = vadd.f32 %v2118, %v2458
  %v2549 = vadd.f32 %v2119, %v2463
  %v2550 = vadd.f32 %v2120, %v2468
  %v2551 = vadd.f32 %v2121, %v2473
  %v2552 = vadd.f32 %v2122, %v2478
  %v2553 = vadd.f32 %v2123, %v2483
  %v2554 = vadd.f32 %v2124, %v2488
  %v2555 = vadd.f32 %v2125, %v2493
  %v2556 = vadd.f32 %v2126, %v2498
  %v2557 = vadd.f32 %v2127, %v2503
  %v2558 = vadd.f32 %v2128, %v2508
  %v2559 = vadd.f32 %v2129, %v2513
  %v2560 = vadd.f32 %v2130, %v2518
  %v2561 = vadd.f32 %v2131, %v2523
  %v2562 = vld [vmem:[%s1 + $0x24] sm:$0xff]
  %v2563 = vld [vmem:[%s1 + $0x2c] sm:$0xff]
  %v2564 = vld [vmem:[%s1 + $0x34] sm:$0xff]
  %v2565 = vld [vmem:[%s1 + $0x3c] sm:$0xff]
  %v2566 = vld [vmem:[%s1 + $0x44] sm:$0xff]
  %v2567 = vld [vmem:[%s1 + $0x4c] sm:$0xff]
  %v2568 = vld [vmem:[%s1 + $0x54] sm:$0xff]
  %v2569 = vld [vmem:[%s1 + $0x5c] sm:$0xff]
  %v2570 = vld [vmem:[%s1 + $0x64] sm:$0xff]
  %v2571 = vld [vmem:[%s1 + $0x6c] sm:$0xff]
  %v2572 = vld [vmem:[%s1 + $0x74] sm:$0xff]
  %v2573 = vld [vmem:[%s1 + $0x7c] sm:$0xff]
  %v2574 = vld [vmem:[%s1 + $0x84] sm:$0xff]
  %v2575 = vld [vmem:[%s1 + $0x8c] sm:$0xff]
  %v2576 = vld [vmem:[%s1 + $0x94] sm:$0xff]
  %v2577 = vld [vmem:[%s1 + $0x9c] sm:$0xff]
  %v2578 = vld [vmem:[%s1 + $0xa4] sm:$0xff]
  %v2579 = vld [vmem:[%s1 + $0xac] sm:$0xff]
  %v2580 = vld [vmem:[%s1 + $0xb4] sm:$0xff]
  %v2581 = vld [vmem:[%s1 + $0xbc] sm:$0xff]
  %v2582 = vld [vmem:[%s1 + $0xc4] sm:$0xff]
  %v2583 = vld [vmem:[%s1 + $0xcc] sm:$0xff]
  %v2584 = vld [vmem:[%s1 + $0xd4] sm:$0xff]
  %v2585 = vld [vmem:[%s1 + $0xdc] sm:$0xff]
  %v2586 = vld [vmem:[%s1 + $0xe4] sm:$0xff]
  %v2587 = vld [vmem:[%s1 + $0xec] sm:$0xff]
  %v2588 = vld [vmem:[%s1 + $0xf4] sm:$0xff]
  %v2589 = vld [vmem:[%s1 + $0xfc] sm:$0xff]
  %v2590 = vld [vmem:[%s1 + $0x104] sm:$0xff]
  %v2591 = vld [vmem:[%s1 + $0x10c] sm:$0xff]
  %v2592 = vld [vmem:[%s1 + $0x114] sm:$0xff]
  %v2593 = vld [vmem:[%s1 + $0x11c] sm:$0xff]
  %v2594 = vld [vmem:[%s1 + $0x124] sm:$0xff]
  %v2595 = vld [vmem:[%s1 + $0x12c] sm:$0xff]
  %v2596 = vld [vmem:[%s1 + $0x134] sm:$0xff]
  %v2597 = vld [vmem:[%s1 + $0x13c] sm:$0xff]
  %s2598 = scalar_lea.vmem %s2, 24
  %v2599 = vld [vmem:[%s2598] sm:$0x7]
  %v2601 = vsel %vm128, %v2562, 0
  %v2604 = vsel %vm128, %v2563, 0
  %v2607 = vsel %vm128, %v2564, 0
  %v2610 = vsel %vm128, %v2565, 0
  %v2613 = vsel %vm128, %v2566, 0
  %v2616 = vsel %vm128, %v2567, 0
  %v2619 = vsel %vm128, %v2568, 0
  %v2622 = vsel %vm128, %v2569, 0
  %v2625 = vsel %vm128, %v2570, 0
  %v2628 = vsel %vm128, %v2571, 0
  %v2631 = vsel %vm128, %v2572, 0
  %v2634 = vsel %vm128, %v2573, 0
  %v2637 = vsel %vm128, %v2574, 0
  %v2640 = vsel %vm128, %v2575, 0
  %v2643 = vsel %vm128, %v2576, 0
  %v2646 = vsel %vm128, %v2577, 0
  %v2649 = vsel %vm128, %v2578, 0
  %v2652 = vsel %vm128, %v2579, 0
  %v2655 = vsel %vm128, %v2580, 0
  %v2658 = vsel %vm128, %v2581, 0
  %v2661 = vsel %vm128, %v2582, 0
  %v2664 = vsel %vm128, %v2583, 0
  %v2667 = vsel %vm128, %v2584, 0
  %v2670 = vsel %vm128, %v2585, 0
  %v2673 = vsel %vm128, %v2586, 0
  %v2676 = vsel %vm128, %v2587, 0
  %v2679 = vsel %vm128, %v2588, 0
  %v2682 = vsel %vm128, %v2589, 0
  %v2685 = vsel %vm128, %v2590, 0
  %v2688 = vsel %vm128, %v2591, 0
  %v2691 = vsel %vm128, %v2592, 0
  %v2694 = vsel %vm128, %v2593, 0
  %v2697 = vsel %vm128, %v2594, 0
  %v2700 = vsel %vm128, %v2595, 0
  %v2703 = vsel %vm128, %v2596, 0
  %v2706 = vsel %vm128, %v2597, 0
  %v2709 = vsel %vm237, %v2599, 0
  %2711 = vmatprep.subr.mxu0 0.0
  %2712 = vmatpush1.msra.mxu0 %v2709
  %2713 = vmatprep.subr.mxu0 0.0
  %2714 = vmatpush1.msra.mxu0 0.0
  %2715 = vmatprep.subr.mxu0 0.0
  %2716 = vmatpush1.msra.mxu0 0.0
  %2717 = vmatprep.subr.mxu0 0.0
  %2718 = vmatpush1.msra.mxu0 0.0
  %2719 = vmatprep.subr.mxu0 0.0
  %2720 = vmatpush1.msra.mxu0 0.0
  %2721 = vmatprep.subr.mxu0 0.0
  %2722 = vmatpush1.msra.mxu0 0.0
  %2723 = vmatprep.subr.mxu0 0.0
  %2724 = vmatpush1.msra.mxu0 0.0
  %2725 = vmatprep.subr.mxu0 0.0
  %2726 = vmatpush1.msra.mxu0 0.0
  %2727 = vmatprep.subr.mxu0 0.0
  %2728 = vmatpush1.msra.mxu0 0.0
  %2729 = vmatprep.subr.mxu0 0.0
  %2730 = vmatpush1.msra.mxu0 0.0
  %2731 = vmatprep.subr.mxu0 0.0
  %2732 = vmatpush1.msra.mxu0 0.0
  %2733 = vmatprep.subr.mxu0 0.0
  %2734 = vmatpush1.msra.mxu0 0.0
  %2735 = vmatprep.subr.mxu0 0.0
  %2736 = vmatpush1.msra.mxu0 0.0
  %2737 = vmatprep.subr.mxu0 0.0
  %2738 = vmatpush1.msra.mxu0 0.0
  %2739 = vmatprep.subr.mxu0 0.0
  %2740 = vmatpush1.msra.mxu0 0.0
  %2741 = vmatprep.subr.mxu0 0.0
  %2742 = vmatpush1.msra.mxu0 0.0
  %2743 = vmatprep.subr.mxu0 0.0
  %2744 = vmatpush1.msra.mxu0 0.0
  %2745 = vmatprep.subr.mxu0 0.0
  %2746 = vmatpush1.msra.mxu0 0.0
  %2747 = vmatprep.subr.mxu0 0.0
  %2748 = vmatpush1.msra.mxu0 0.0
  %2749 = vmatprep.subr.mxu0 0.0
  %2750 = vmatpush1.msra.mxu0 0.0
  %2751 = vmatprep.subr.mxu0 0.0
  %2752 = vmatpush1.msra.mxu0 0.0
  %2753 = vmatprep.subr.mxu0 0.0
  %2754 = vmatpush1.msra.mxu0 0.0
  %2755 = vmatprep.subr.mxu0 0.0
  %2756 = vmatpush1.msra.mxu0 0.0
  %2757 = vmatprep.subr.mxu0 0.0
  %2758 = vmatpush1.msra.mxu0 0.0
  %2759 = vmatprep.subr.mxu0 0.0
  %2760 = vmatpush1.msra.mxu0 0.0
  %2761 = vmatprep.subr.mxu0 0.0
  %2762 = vmatpush1.msra.mxu0 0.0
  %2763 = vmatprep.subr.mxu0 0.0
  %2764 = vmatpush1.msra.mxu0 0.0
  %2765 = vmatprep.subr.mxu0 0.0
  %2766 = vmatpush1.msra.mxu0 0.0
  %2767 = vmatprep.subr.mxu0 0.0
  %2768 = vmatpush1.msra.mxu0 0.0
  %2769 = vmatprep.subr.mxu0 0.0
  %2770 = vmatpush1.msra.mxu0 0.0
  %2771 = vmatprep.subr.mxu0 0.0
  %2772 = vmatpush1.msra.mxu0 0.0
  %2773 = vmatprep.subr.mxu0 0.0
  %2774 = vmatpush1.msra.mxu0 0.0
  %2775 = vmatprep.mubr.f32.mxu0 0.0
  %2776 = vmatmul.mubr.f32.gmra.mrb[0].mxu0 %v2601
  %v2777 = vpop.f32.mrb[0].mxu0
  %v2778 = vadd.f32 0.0, %v2777
  %v2779 = vpop.f32.mrb[0].mxu0
  %2780 = vmatprep.mubr.f32.mxu0 0.0
  %2781 = vmatmul.mubr.f32.gmra.mrb[0].mxu0 %v2604
  %v2782 = vpop.f32.mrb[0].mxu0
  %v2783 = vadd.f32 0.0, %v2782
  %v2784 = vpop.f32.mrb[0].mxu0
  %2785 = vmatprep.mubr.f32.mxu0 0.0
  %2786 = vmatmul.mubr.f32.gmra.mrb[0].mxu0 %v2607
  %v2787 = vpop.f32.mrb[0].mxu0
  %v2788 = vadd.f32 0.0, %v2787
  %v2789 = vpop.f32.mrb[0].mxu0
  %2790 = vmatprep.mubr.f32.mxu0 0.0
  %2791 = vmatmul.mubr.f32.gmra.mrb[0].mxu0 %v2610
  %v2792 = vpop.f32.mrb[0].mxu0
  %v2793 = vadd.f32 0.0, %v2792
  %v2794 = vpop.f32.mrb[0].mxu0
  %2795 = vmatprep.mubr.f32.mxu0 0.0
  %2796 = vmatmul.mubr.f32.gmra.mrb[0].mxu0 %v2613
  %v2797 = vpop.f32.mrb[0].mxu0
  %v2798 = vadd.f32 0.0, %v2797
  %v2799 = vpop.f32.mrb[0].mxu0
  %2800 = vmatprep.mubr.f32.mxu0 0.0
  %2801 = vmatmul.mubr.f32.gmra.mrb[0].mxu0 %v2616
  %v2802 = vpop.f32.mrb[0].mxu0
  %v2803 = vadd.f32 0.0, %v2802
  %v2804 = vpop.f32.mrb[0].mxu0
  %2805 = vmatprep.mubr.f32.mxu0 0.0
  %2806 = vmatmul.mubr.f32.gmra.mrb[0].mxu0 %v2619
  %v2807 = vpop.f32.mrb[0].mxu0
  %v2808 = vadd.f32 0.0, %v2807
  %v2809 = vpop.f32.mrb[0].mxu0
  %2810 = vmatprep.mubr.f32.mxu0 0.0
  %2811 = vmatmul.mubr.f32.gmra.mrb[0].mxu0 %v2622
  %v2812 = vpop.f32.mrb[0].mxu0
  %v2813 = vadd.f32 0.0, %v2812
  %v2814 = vpop.f32.mrb[0].mxu0
  %2815 = vmatprep.mubr.f32.mxu0 0.0
  %2816 = vmatmul.mubr.f32.gmra.mrb[0].mxu0 %v2625
  %v2817 = vpop.f32.mrb[0].mxu0
  %v2818 = vadd.f32 0.0, %v2817
  %v2819 = vpop.f32.mrb[0].mxu0
  %2820 = vmatprep.mubr.f32.mxu0 0.0
  %2821 = vmatmul.mubr.f32.gmra.mrb[0].mxu0 %v2628
  %v2822 = vpop.f32.mrb[0].mxu0
  %v2823 = vadd.f32 0.0, %v2822
  %v2824 = vpop.f32.mrb[0].mxu0
  %2825 = vmatprep.mubr.f32.mxu0 0.0
  %2826 = vmatmul.mubr.f32.gmra.mrb[0].mxu0 %v2631
  %v2827 = vpop.f32.mrb[0].mxu0
  %v2828 = vadd.f32 0.0, %v2827
  %v2829 = vpop.f32.mrb[0].mxu0
  %2830 = vmatprep.mubr.f32.mxu0 0.0
  %2831 = vmatmul.mubr.f32.gmra.mrb[0].mxu0 %v2634
  %v2832 = vpop.f32.mrb[0].mxu0
  %v2833 = vadd.f32 0.0, %v2832
  %v2834 = vpop.f32.mrb[0].mxu0
  %2835 = vmatprep.mubr.f32.mxu0 0.0
  %2836 = vmatmul.mubr.f32.gmra.mrb[0].mxu0 %v2637
  %v2837 = vpop.f32.mrb[0].mxu0
  %v2838 = vadd.f32 0.0, %v2837
  %v2839 = vpop.f32.mrb[0].mxu0
  %2840 = vmatprep.mubr.f32.mxu0 0.0
  %2841 = vmatmul.mubr.f32.gmra.mrb[0].mxu0 %v2640
  %v2842 = vpop.f32.mrb[0].mxu0
  %v2843 = vadd.f32 0.0, %v2842
  %v2844 = vpop.f32.mrb[0].mxu0
  %2845 = vmatprep.mubr.f32.mxu0 0.0
  %2846 = vmatmul.mubr.f32.gmra.mrb[0].mxu0 %v2643
  %v2847 = vpop.f32.mrb[0].mxu0
  %v2848 = vadd.f32 0.0, %v2847
  %v2849 = vpop.f32.mrb[0].mxu0
  %2850 = vmatprep.mubr.f32.mxu0 0.0
  %2851 = vmatmul.mubr.f32.gmra.mrb[0].mxu0 %v2646
  %v2852 = vpop.f32.mrb[0].mxu0
  %v2853 = vadd.f32 0.0, %v2852
  %v2854 = vpop.f32.mrb[0].mxu0
  %2855 = vmatprep.mubr.f32.mxu0 0.0
  %2856 = vmatmul.mubr.f32.gmra.mrb[0].mxu0 %v2649
  %v2857 = vpop.f32.mrb[0].mxu0
  %v2858 = vadd.f32 0.0, %v2857
  %v2859 = vpop.f32.mrb[0].mxu0
  %2860 = vmatprep.mubr.f32.mxu0 0.0
  %2861 = vmatmul.mubr.f32.gmra.mrb[0].mxu0 %v2652
  %v2862 = vpop.f32.mrb[0].mxu0
  %v2863 = vadd.f32 0.0, %v2862
  %v2864 = vpop.f32.mrb[0].mxu0
  %2865 = vmatprep.mubr.f32.mxu0 0.0
  %2866 = vmatmul.mubr.f32.gmra.mrb[0].mxu0 %v2655
  %v2867 = vpop.f32.mrb[0].mxu0
  %v2868 = vadd.f32 0.0, %v2867
  %v2869 = vpop.f32.mrb[0].mxu0
  %2870 = vmatprep.mubr.f32.mxu0 0.0
  %2871 = vmatmul.mubr.f32.gmra.mrb[0].mxu0 %v2658
  %v2872 = vpop.f32.mrb[0].mxu0
  %v2873 = vadd.f32 0.0, %v2872
  %v2874 = vpop.f32.mrb[0].mxu0
  %2875 = vmatprep.mubr.f32.mxu0 0.0
  %2876 = vmatmul.mubr.f32.gmra.mrb[0].mxu0 %v2661
  %v2877 = vpop.f32.mrb[0].mxu0
  %v2878 = vadd.f32 0.0, %v2877
  %v2879 = vpop.f32.mrb[0].mxu0
  %2880 = vmatprep.mubr.f32.mxu0 0.0
  %2881 = vmatmul.mubr.f32.gmra.mrb[0].mxu0 %v2664
  %v2882 = vpop.f32.mrb[0].mxu0
  %v2883 = vadd.f32 0.0, %v2882
  %v2884 = vpop.f32.mrb[0].mxu0
  %2885 = vmatprep.mubr.f32.mxu0 0.0
  %2886 = vmatmul.mubr.f32.gmra.mrb[0].mxu0 %v2667
  %v2887 = vpop.f32.mrb[0].mxu0
  %v2888 = vadd.f32 0.0, %v2887
  %v2889 = vpop.f32.mrb[0].mxu0
  %2890 = vmatprep.mubr.f32.mxu0 0.0
  %2891 = vmatmul.mubr.f32.gmra.mrb[0].mxu0 %v2670
  %v2892 = vpop.f32.mrb[0].mxu0
  %v2893 = vadd.f32 0.0, %v2892
  %v2894 = vpop.f32.mrb[0].mxu0
  %2895 = vmatprep.mubr.f32.mxu0 0.0
  %2896 = vmatmul.mubr.f32.gmra.mrb[0].mxu0 %v2673
  %v2897 = vpop.f32.mrb[0].mxu0
  %v2898 = vadd.f32 0.0, %v2897
  %v2899 = vpop.f32.mrb[0].mxu0
  %2900 = vmatprep.mubr.f32.mxu0 0.0
  %2901 = vmatmul.mubr.f32.gmra.mrb[0].mxu0 %v2676
  %v2902 = vpop.f32.mrb[0].mxu0
  %v2903 = vadd.f32 0.0, %v2902
  %v2904 = vpop.f32.mrb[0].mxu0
  %2905 = vmatprep.mubr.f32.mxu0 0.0
  %2906 = vmatmul.mubr.f32.gmra.mrb[0].mxu0 %v2679
  %v2907 = vpop.f32.mrb[0].mxu0
  %v2908 = vadd.f32 0.0, %v2907
  %v2909 = vpop.f32.mrb[0].mxu0
  %2910 = vmatprep.mubr.f32.mxu0 0.0
  %2911 = vmatmul.mubr.f32.gmra.mrb[0].mxu0 %v2682
  %v2912 = vpop.f32.mrb[0].mxu0
  %v2913 = vadd.f32 0.0, %v2912
  %v2914 = vpop.f32.mrb[0].mxu0
  %2915 = vmatprep.mubr.f32.mxu0 0.0
  %2916 = vmatmul.mubr.f32.gmra.mrb[0].mxu0 %v2685
  %v2917 = vpop.f32.mrb[0].mxu0
  %v2918 = vadd.f32 0.0, %v2917
  %v2919 = vpop.f32.mrb[0].mxu0
  %2920 = vmatprep.mubr.f32.mxu0 0.0
  %2921 = vmatmul.mubr.f32.gmra.mrb[0].mxu0 %v2688
  %v2922 = vpop.f32.mrb[0].mxu0
  %v2923 = vadd.f32 0.0, %v2922
  %v2924 = vpop.f32.mrb[0].mxu0
  %2925 = vmatprep.mubr.f32.mxu0 0.0
  %2926 = vmatmul.mubr.f32.gmra.mrb[0].mxu0 %v2691
  %v2927 = vpop.f32.mrb[0].mxu0
  %v2928 = vadd.f32 0.0, %v2927
  %v2929 = vpop.f32.mrb[0].mxu0
  %2930 = vmatprep.mubr.f32.mxu0 0.0
  %2931 = vmatmul.mubr.f32.gmra.mrb[0].mxu0 %v2694
  %v2932 = vpop.f32.mrb[0].mxu0
  %v2933 = vadd.f32 0.0, %v2932
  %v2934 = vpop.f32.mrb[0].mxu0
  %2935 = vmatprep.mubr.f32.mxu0 0.0
  %2936 = vmatmul.mubr.f32.gmra.mrb[0].mxu0 %v2697
  %v2937 = vpop.f32.mrb[0].mxu0
  %v2938 = vadd.f32 0.0, %v2937
  %v2939 = vpop.f32.mrb[0].mxu0
  %2940 = vmatprep.mubr.f32.mxu0 0.0
  %2941 = vmatmul.mubr.f32.gmra.mrb[0].mxu0 %v2700
  %v2942 = vpop.f32.mrb[0].mxu0
  %v2943 = vadd.f32 0.0, %v2942
  %v2944 = vpop.f32.mrb[0].mxu0
  %2945 = vmatprep.mubr.f32.mxu0 0.0
  %2946 = vmatmul.mubr.f32.gmra.mrb[0].mxu0 %v2703
  %v2947 = vpop.f32.mrb[0].mxu0
  %v2948 = vadd.f32 0.0, %v2947
  %v2949 = vpop.f32.mrb[0].mxu0
  %2950 = vmatprep.mubr.f32.mxu0 0.0
  %2951 = vmatmul.mubr.f32.gmra.mrb[0].mxu0 %v2706
  %v2952 = vpop.f32.mrb[0].mxu0
  %v2953 = vadd.f32 0.0, %v2952
  %v2954 = vpop.f32.mrb[0].mxu0
  %2955 = vdwg.mxu0
  %v2956 = vadd.f32 %v2526, %v2778
  %v2957 = vadd.f32 %v2527, %v2783
  %v2958 = vadd.f32 %v2528, %v2788
  %v2959 = vadd.f32 %v2529, %v2793
  %v2960 = vadd.f32 %v2530, %v2798
  %v2961 = vadd.f32 %v2531, %v2803
  %v2962 = vadd.f32 %v2532, %v2808
  %v2963 = vadd.f32 %v2533, %v2813
  %v2964 = vadd.f32 %v2534, %v2818
  %v2965 = vadd.f32 %v2535, %v2823
  %v2966 = vadd.f32 %v2536, %v2828
  %v2967 = vadd.f32 %v2537, %v2833
  %v2968 = vadd.f32 %v2538, %v2838
  %v2969 = vadd.f32 %v2539, %v2843
  %v2970 = vadd.f32 %v2540, %v2848
  %v2971 = vadd.f32 %v2541, %v2853
  %v2972 = vadd.f32 %v2542, %v2858
  %v2973 = vadd.f32 %v2543, %v2863
  %v2974 = vadd.f32 %v2544, %v2868
  %v2975 = vadd.f32 %v2545, %v2873
  %v2976 = vadd.f32 %v2546, %v2878
  %v2977 = vadd.f32 %v2547, %v2883
  %v2978 = vadd.f32 %v2548, %v2888
  %v2979 = vadd.f32 %v2549, %v2893
  %v2980 = vadd.f32 %v2550, %v2898
  %v2981 = vadd.f32 %v2551, %v2903
  %v2982 = vadd.f32 %v2552, %v2908
  %v2983 = vadd.f32 %v2553, %v2913
  %v2984 = vadd.f32 %v2554, %v2918
  %v2985 = vadd.f32 %v2555, %v2923
  %v2986 = vadd.f32 %v2556, %v2928
  %v2987 = vadd.f32 %v2557, %v2933
  %v2988 = vadd.f32 %v2558, %v2938
  %v2989 = vadd.f32 %v2559, %v2943
  %v2990 = vadd.f32 %v2560, %v2948
  %v2991 = vadd.f32 %v2561, %v2953
  %v2992 = vld [vmem:[%s1 + $0x25] sm:$0xff]
  %v2993 = vld [vmem:[%s1 + $0x2d] sm:$0xff]
  %v2994 = vld [vmem:[%s1 + $0x35] sm:$0xff]
  %v2995 = vld [vmem:[%s1 + $0x3d] sm:$0xff]
  %v2996 = vld [vmem:[%s1 + $0x45] sm:$0xff]
  %v2997 = vld [vmem:[%s1 + $0x4d] sm:$0xff]
  %v2998 = vld [vmem:[%s1 + $0x55] sm:$0xff]
  %v2999 = vld [vmem:[%s1 + $0x5d] sm:$0xff]
  %v3000 = vld [vmem:[%s1 + $0x65] sm:$0xff]
  %v3001 = vld [vmem:[%s1 + $0x6d] sm:$0xff]
  %v3002 = vld [vmem:[%s1 + $0x75] sm:$0xff]
  %v3003 = vld [vmem:[%s1 + $0x7d] sm:$0xff]
  %v3004 = vld [vmem:[%s1 + $0x85] sm:$0xff]
  %v3005 = vld [vmem:[%s1 + $0x8d] sm:$0xff]
  %v3006 = vld [vmem:[%s1 + $0x95] sm:$0xff]
  %v3007 = vld [vmem:[%s1 + $0x9d] sm:$0xff]
  %v3008 = vld [vmem:[%s1 + $0xa5] sm:$0xff]
  %v3009 = vld [vmem:[%s1 + $0xad] sm:$0xff]
  %v3010 = vld [vmem:[%s1 + $0xb5] sm:$0xff]
  %v3011 = vld [vmem:[%s1 + $0xbd] sm:$0xff]
  %v3012 = vld [vmem:[%s1 + $0xc5] sm:$0xff]
  %v3013 = vld [vmem:[%s1 + $0xcd] sm:$0xff]
  %v3014 = vld [vmem:[%s1 + $0xd5] sm:$0xff]
  %v3015 = vld [vmem:[%s1 + $0xdd] sm:$0xff]
  %v3016 = vld [vmem:[%s1 + $0xe5] sm:$0xff]
  %v3017 = vld [vmem:[%s1 + $0xed] sm:$0xff]
  %v3018 = vld [vmem:[%s1 + $0xf5] sm:$0xff]
  %v3019 = vld [vmem:[%s1 + $0xfd] sm:$0xff]
  %v3020 = vld [vmem:[%s1 + $0x105] sm:$0xff]
  %v3021 = vld [vmem:[%s1 + $0x10d] sm:$0xff]
  %v3022 = vld [vmem:[%s1 + $0x115] sm:$0xff]
  %v3023 = vld [vmem:[%s1 + $0x11d] sm:$0xff]
  %v3024 = vld [vmem:[%s1 + $0x125] sm:$0xff]
  %v3025 = vld [vmem:[%s1 + $0x12d] sm:$0xff]
  %v3026 = vld [vmem:[%s1 + $0x135] sm:$0xff]
  %v3027 = vld [vmem:[%s1 + $0x13d] sm:$0xff]
  %s3028 = scalar_lea.vmem %s2, 28
  %v3029 = vld [vmem:[%s3028] sm:$0x7]
  %v3031 = vsel %vm128, %v2992, 0
  %v3034 = vsel %vm128, %v2993, 0
  %v3037 = vsel %vm128, %v2994, 0
  %v3040 = vsel %vm128, %v2995, 0
  %v3043 = vsel %vm128, %v2996, 0
  %v3046 = vsel %vm128, %v2997, 0
  %v3049 = vsel %vm128, %v2998, 0
  %v3052 = vsel %vm128, %v2999, 0
  %v3055 = vsel %vm128, %v3000, 0
  %v3058 = vsel %vm128, %v3001, 0
  %v3061 = vsel %vm128, %v3002, 0
  %v3064 = vsel %vm128, %v3003, 0
  %v3067 = vsel %vm128, %v3004, 0
  %v3070 = vsel %vm128, %v3005, 0
  %v3073 = vsel %vm128, %v3006, 0
  %v3076 = vsel %vm128, %v3007, 0
  %v3079 = vsel %vm128, %v3008, 0
  %v3082 = vsel %vm128, %v3009, 0
  %v3085 = vsel %vm128, %v3010, 0
  %v3088 = vsel %vm128, %v3011, 0
  %v3091 = vsel %vm128, %v3012, 0
  %v3094 = vsel %vm128, %v3013, 0
  %v3097 = vsel %vm128, %v3014, 0
  %v3100 = vsel %vm128, %v3015, 0
  %v3103 = vsel %vm128, %v3016, 0
  %v3106 = vsel %vm128, %v3017, 0
  %v3109 = vsel %vm128, %v3018, 0
  %v3112 = vsel %vm128, %v3019, 0
  %v3115 = vsel %vm128, %v3020, 0
  %v3118 = vsel %vm128, %v3021, 0
  %v3121 = vsel %vm128, %v3022, 0
  %v3124 = vsel %vm128, %v3023, 0
  %v3127 = vsel %vm128, %v3024, 0
  %v3130 = vsel %vm128, %v3025, 0
  %v3133 = vsel %vm128, %v3026, 0
  %v3136 = vsel %vm128, %v3027, 0
  %v3139 = vsel %vm237, %v3029, 0
  %3141 = vmatprep.subr.mxu0 0.0
  %3142 = vmatpush1.msra.mxu0 %v3139
  %3143 = vmatprep.subr.mxu0 0.0
  %3144 = vmatpush1.msra.mxu0 0.0
  %3145 = vmatprep.subr.mxu0 0.0
  %3146 = vmatpush1.msra.mxu0 0.0
  %3147 = vmatprep.subr.mxu0 0.0
  %3148 = vmatpush1.msra.mxu0 0.0
  %3149 = vmatprep.subr.mxu0 0.0
  %3150 = vmatpush1.msra.mxu0 0.0
  %3151 = vmatprep.subr.mxu0 0.0
  %3152 = vmatpush1.msra.mxu0 0.0
  %3153 = vmatprep.subr.mxu0 0.0
  %3154 = vmatpush1.msra.mxu0 0.0
  %3155 = vmatprep.subr.mxu0 0.0
  %3156 = vmatpush1.msra.mxu0 0.0
  %3157 = vmatprep.subr.mxu0 0.0
  %3158 = vmatpush1.msra.mxu0 0.0
  %3159 = vmatprep.subr.mxu0 0.0
  %3160 = vmatpush1.msra.mxu0 0.0
  %3161 = vmatprep.subr.mxu0 0.0
  %3162 = vmatpush1.msra.mxu0 0.0
  %3163 = vmatprep.subr.mxu0 0.0
  %3164 = vmatpush1.msra.mxu0 0.0
  %3165 = vmatprep.subr.mxu0 0.0
  %3166 = vmatpush1.msra.mxu0 0.0
  %3167 = vmatprep.subr.mxu0 0.0
  %3168 = vmatpush1.msra.mxu0 0.0
  %3169 = vmatprep.subr.mxu0 0.0
  %3170 = vmatpush1.msra.mxu0 0.0
  %3171 = vmatprep.subr.mxu0 0.0
  %3172 = vmatpush1.msra.mxu0 0.0
  %3173 = vmatprep.subr.mxu0 0.0
  %3174 = vmatpush1.msra.mxu0 0.0
  %3175 = vmatprep.subr.mxu0 0.0
  %3176 = vmatpush1.msra.mxu0 0.0
  %3177 = vmatprep.subr.mxu0 0.0
  %3178 = vmatpush1.msra.mxu0 0.0
  %3179 = vmatprep.subr.mxu0 0.0
  %3180 = vmatpush1.msra.mxu0 0.0
  %3181 = vmatprep.subr.mxu0 0.0
  %3182 = vmatpush1.msra.mxu0 0.0
  %3183 = vmatprep.subr.mxu0 0.0
  %3184 = vmatpush1.msra.mxu0 0.0
  %3185 = vmatprep.subr.mxu0 0.0
  %3186 = vmatpush1.msra.mxu0 0.0
  %3187 = vmatprep.subr.mxu0 0.0
  %3188 = vmatpush1.msra.mxu0 0.0
  %3189 = vmatprep.subr.mxu0 0.0
  %3190 = vmatpush1.msra.mxu0 0.0
  %3191 = vmatprep.subr.mxu0 0.0
  %3192 = vmatpush1.msra.mxu0 0.0
  %3193 = vmatprep.subr.mxu0 0.0
  %3194 = vmatpush1.msra.mxu0 0.0
  %3195 = vmatprep.subr.mxu0 0.0
  %3196 = vmatpush1.msra.mxu0 0.0
  %3197 = vmatprep.subr.mxu0 0.0
  %3198 = vmatpush1.msra.mxu0 0.0
  %3199 = vmatprep.subr.mxu0 0.0
  %3200 = vmatpush1.msra.mxu0 0.0
  %3201 = vmatprep.subr.mxu0 0.0
  %3202 = vmatpush1.msra.mxu0 0.0
  %3203 = vmatprep.subr.mxu0 0.0
  %3204 = vmatpush1.msra.mxu0 0.0
  %3205 = vmatprep.mubr.f32.mxu0 0.0
  %3206 = vmatmul.mubr.f32.gmra.mrb[0].mxu0 %v3031
  %v3207 = vpop.f32.mrb[0].mxu0
  %v3208 = vadd.f32 0.0, %v3207
  %v3209 = vpop.f32.mrb[0].mxu0
  %3210 = vmatprep.mubr.f32.mxu0 0.0
  %3211 = vmatmul.mubr.f32.gmra.mrb[0].mxu0 %v3034
  %v3212 = vpop.f32.mrb[0].mxu0
  %v3213 = vadd.f32 0.0, %v3212
  %v3214 = vpop.f32.mrb[0].mxu0
  %3215 = vmatprep.mubr.f32.mxu0 0.0
  %3216 = vmatmul.mubr.f32.gmra.mrb[0].mxu0 %v3037
  %v3217 = vpop.f32.mrb[0].mxu0
  %v3218 = vadd.f32 0.0, %v3217
  %v3219 = vpop.f32.mrb[0].mxu0
  %3220 = vmatprep.mubr.f32.mxu0 0.0
  %3221 = vmatmul.mubr.f32.gmra.mrb[0].mxu0 %v3040
  %v3222 = vpop.f32.mrb[0].mxu0
  %v3223 = vadd.f32 0.0, %v3222
  %v3224 = vpop.f32.mrb[0].mxu0
  %3225 = vmatprep.mubr.f32.mxu0 0.0
  %3226 = vmatmul.mubr.f32.gmra.mrb[0].mxu0 %v3043
  %v3227 = vpop.f32.mrb[0].mxu0
  %v3228 = vadd.f32 0.0, %v3227
  %v3229 = vpop.f32.mrb[0].mxu0
  %3230 = vmatprep.mubr.f32.mxu0 0.0
  %3231 = vmatmul.mubr.f32.gmra.mrb[0].mxu0 %v3046
  %v3232 = vpop.f32.mrb[0].mxu0
  %v3233 = vadd.f32 0.0, %v3232
  %v3234 = vpop.f32.mrb[0].mxu0
  %3235 = vmatprep.mubr.f32.mxu0 0.0
  %3236 = vmatmul.mubr.f32.gmra.mrb[0].mxu0 %v3049
  %v3237 = vpop.f32.mrb[0].mxu0
  %v3238 = vadd.f32 0.0, %v3237
  %v3239 = vpop.f32.mrb[0].mxu0
  %3240 = vmatprep.mubr.f32.mxu0 0.0
  %3241 = vmatmul.mubr.f32.gmra.mrb[0].mxu0 %v3052
  %v3242 = vpop.f32.mrb[0].mxu0
  %v3243 = vadd.f32 0.0, %v3242
  %v3244 = vpop.f32.mrb[0].mxu0
  %3245 = vmatprep.mubr.f32.mxu0 0.0
  %3246 = vmatmul.mubr.f32.gmra.mrb[0].mxu0 %v3055
  %v3247 = vpop.f32.mrb[0].mxu0
  %v3248 = vadd.f32 0.0, %v3247
  %v3249 = vpop.f32.mrb[0].mxu0
  %3250 = vmatprep.mubr.f32.mxu0 0.0
  %3251 = vmatmul.mubr.f32.gmra.mrb[0].mxu0 %v3058
  %v3252 = vpop.f32.mrb[0].mxu0
  %v3253 = vadd.f32 0.0, %v3252
  %v3254 = vpop.f32.mrb[0].mxu0
  %3255 = vmatprep.mubr.f32.mxu0 0.0
  %3256 = vmatmul.mubr.f32.gmra.mrb[0].mxu0 %v3061
  %v3257 = vpop.f32.mrb[0].mxu0
  %v3258 = vadd.f32 0.0, %v3257
  %v3259 = vpop.f32.mrb[0].mxu0
  %3260 = vmatprep.mubr.f32.mxu0 0.0
  %3261 = vmatmul.mubr.f32.gmra.mrb[0].mxu0 %v3064
  %v3262 = vpop.f32.mrb[0].mxu0
  %v3263 = vadd.f32 0.0, %v3262
  %v3264 = vpop.f32.mrb[0].mxu0
  %3265 = vmatprep.mubr.f32.mxu0 0.0
  %3266 = vmatmul.mubr.f32.gmra.mrb[0].mxu0 %v3067
  %v3267 = vpop.f32.mrb[0].mxu0
  %v3268 = vadd.f32 0.0, %v3267
  %v3269 = vpop.f32.mrb[0].mxu0
  %3270 = vmatprep.mubr.f32.mxu0 0.0
  %3271 = vmatmul.mubr.f32.gmra.mrb[0].mxu0 %v3070
  %v3272 = vpop.f32.mrb[0].mxu0
  %v3273 = vadd.f32 0.0, %v3272
  %v3274 = vpop.f32.mrb[0].mxu0
  %3275 = vmatprep.mubr.f32.mxu0 0.0
  %3276 = vmatmul.mubr.f32.gmra.mrb[0].mxu0 %v3073
  %v3277 = vpop.f32.mrb[0].mxu0
  %v3278 = vadd.f32 0.0, %v3277
  %v3279 = vpop.f32.mrb[0].mxu0
  %3280 = vmatprep.mubr.f32.mxu0 0.0
  %3281 = vmatmul.mubr.f32.gmra.mrb[0].mxu0 %v3076
  %v3282 = vpop.f32.mrb[0].mxu0
  %v3283 = vadd.f32 0.0, %v3282
  %v3284 = vpop.f32.mrb[0].mxu0
  %3285 = vmatprep.mubr.f32.mxu0 0.0
  %3286 = vmatmul.mubr.f32.gmra.mrb[0].mxu0 %v3079
  %v3287 = vpop.f32.mrb[0].mxu0
  %v3288 = vadd.f32 0.0, %v3287
  %v3289 = vpop.f32.mrb[0].mxu0
  %3290 = vmatprep.mubr.f32.mxu0 0.0
  %3291 = vmatmul.mubr.f32.gmra.mrb[0].mxu0 %v3082
  %v3292 = vpop.f32.mrb[0].mxu0
  %v3293 = vadd.f32 0.0, %v3292
  %v3294 = vpop.f32.mrb[0].mxu0
  %3295 = vmatprep.mubr.f32.mxu0 0.0
  %3296 = vmatmul.mubr.f32.gmra.mrb[0].mxu0 %v3085
  %v3297 = vpop.f32.mrb[0].mxu0
  %v3298 = vadd.f32 0.0, %v3297
  %v3299 = vpop.f32.mrb[0].mxu0
  %3300 = vmatprep.mubr.f32.mxu0 0.0
  %3301 = vmatmul.mubr.f32.gmra.mrb[0].mxu0 %v3088
  %v3302 = vpop.f32.mrb[0].mxu0
  %v3303 = vadd.f32 0.0, %v3302
  %v3304 = vpop.f32.mrb[0].mxu0
  %3305 = vmatprep.mubr.f32.mxu0 0.0
  %3306 = vmatmul.mubr.f32.gmra.mrb[0].mxu0 %v3091
  %v3307 = vpop.f32.mrb[0].mxu0
  %v3308 = vadd.f32 0.0, %v3307
  %v3309 = vpop.f32.mrb[0].mxu0
  %3310 = vmatprep.mubr.f32.mxu0 0.0
  %3311 = vmatmul.mubr.f32.gmra.mrb[0].mxu0 %v3094
  %v3312 = vpop.f32.mrb[0].mxu0
  %v3313 = vadd.f32 0.0, %v3312
  %v3314 = vpop.f32.mrb[0].mxu0
  %3315 = vmatprep.mubr.f32.mxu0 0.0
  %3316 = vmatmul.mubr.f32.gmra.mrb[0].mxu0 %v3097
  %v3317 = vpop.f32.mrb[0].mxu0
  %v3318 = vadd.f32 0.0, %v3317
  %v3319 = vpop.f32.mrb[0].mxu0
  %3320 = vmatprep.mubr.f32.mxu0 0.0
  %3321 = vmatmul.mubr.f32.gmra.mrb[0].mxu0 %v3100
  %v3322 = vpop.f32.mrb[0].mxu0
  %v3323 = vadd.f32 0.0, %v3322
  %v3324 = vpop.f32.mrb[0].mxu0
  %3325 = vmatprep.mubr.f32.mxu0 0.0
  %3326 = vmatmul.mubr.f32.gmra.mrb[0].mxu0 %v3103
  %v3327 = vpop.f32.mrb[0].mxu0
  %v3328 = vadd.f32 0.0, %v3327
  %v3329 = vpop.f32.mrb[0].mxu0
  %3330 = vmatprep.mubr.f32.mxu0 0.0
  %3331 = vmatmul.mubr.f32.gmra.mrb[0].mxu0 %v3106
  %v3332 = vpop.f32.mrb[0].mxu0
  %v3333 = vadd.f32 0.0, %v3332
  %v3334 = vpop.f32.mrb[0].mxu0
  %3335 = vmatprep.mubr.f32.mxu0 0.0
  %3336 = vmatmul.mubr.f32.gmra.mrb[0].mxu0 %v3109
  %v3337 = vpop.f32.mrb[0].mxu0
  %v3338 = vadd.f32 0.0, %v3337
  %v3339 = vpop.f32.mrb[0].mxu0
  %3340 = vmatprep.mubr.f32.mxu0 0.0
  %3341 = vmatmul.mubr.f32.gmra.mrb[0].mxu0 %v3112
  %v3342 = vpop.f32.mrb[0].mxu0
  %v3343 = vadd.f32 0.0, %v3342
  %v3344 = vpop.f32.mrb[0].mxu0
  %3345 = vmatprep.mubr.f32.mxu0 0.0
  %3346 = vmatmul.mubr.f32.gmra.mrb[0].mxu0 %v3115
  %v3347 = vpop.f32.mrb[0].mxu0
  %v3348 = vadd.f32 0.0, %v3347
  %v3349 = vpop.f32.mrb[0].mxu0
  %3350 = vmatprep.mubr.f32.mxu0 0.0
  %3351 = vmatmul.mubr.f32.gmra.mrb[0].mxu0 %v3118
  %v3352 = vpop.f32.mrb[0].mxu0
  %v3353 = vadd.f32 0.0, %v3352
  %v3354 = vpop.f32.mrb[0].mxu0
  %3355 = vmatprep.mubr.f32.mxu0 0.0
  %3356 = vmatmul.mubr.f32.gmra.mrb[0].mxu0 %v3121
  %v3357 = vpop.f32.mrb[0].mxu0
  %v3358 = vadd.f32 0.0, %v3357
  %v3359 = vpop.f32.mrb[0].mxu0
  %3360 = vmatprep.mubr.f32.mxu0 0.0
  %3361 = vmatmul.mubr.f32.gmra.mrb[0].mxu0 %v3124
  %v3362 = vpop.f32.mrb[0].mxu0
  %v3363 = vadd.f32 0.0, %v3362
  %v3364 = vpop.f32.mrb[0].mxu0
  %3365 = vmatprep.mubr.f32.mxu0 0.0
  %3366 = vmatmul.mubr.f32.gmra.mrb[0].mxu0 %v3127
  %v3367 = vpop.f32.mrb[0].mxu0
  %v3368 = vadd.f32 0.0, %v3367
  %v3369 = vpop.f32.mrb[0].mxu0
  %3370 = vmatprep.mubr.f32.mxu0 0.0
  %3371 = vmatmul.mubr.f32.gmra.mrb[0].mxu0 %v3130
  %v3372 = vpop.f32.mrb[0].mxu0
  %v3373 = vadd.f32 0.0, %v3372
  %v3374 = vpop.f32.mrb[0].mxu0
  %3375 = vmatprep.mubr.f32.mxu0 0.0
  %3376 = vmatmul.mubr.f32.gmra.mrb[0].mxu0 %v3133
  %v3377 = vpop.f32.mrb[0].mxu0
  %v3378 = vadd.f32 0.0, %v3377
  %v3379 = vpop.f32.mrb[0].mxu0
  %3380 = vmatprep.mubr.f32.mxu0 0.0
  %3381 = vmatmul.mubr.f32.gmra.mrb[0].mxu0 %v3136
  %v3382 = vpop.f32.mrb[0].mxu0
  %v3383 = vadd.f32 0.0, %v3382
  %v3384 = vpop.f32.mrb[0].mxu0
  %3385 = vdwg.mxu0
  %v3386 = vadd.f32 %v2956, %v3208
  %v3387 = vadd.f32 %v2957, %v3213
  %v3388 = vadd.f32 %v2958, %v3218
  %v3389 = vadd.f32 %v2959, %v3223
  %v3390 = vadd.f32 %v2960, %v3228
  %v3391 = vadd.f32 %v2961, %v3233
  %v3392 = vadd.f32 %v2962, %v3238
  %v3393 = vadd.f32 %v2963, %v3243
  %v3394 = vadd.f32 %v2964, %v3248
  %v3395 = vadd.f32 %v2965, %v3253
  %v3396 = vadd.f32 %v2966, %v3258
  %v3397 = vadd.f32 %v2967, %v3263
  %v3398 = vadd.f32 %v2968, %v3268
  %v3399 = vadd.f32 %v2969, %v3273
  %v3400 = vadd.f32 %v2970, %v3278
  %v3401 = vadd.f32 %v2971, %v3283
  %v3402 = vadd.f32 %v2972, %v3288
  %v3403 = vadd.f32 %v2973, %v3293
  %v3404 = vadd.f32 %v2974, %v3298
  %v3405 = vadd.f32 %v2975, %v3303
  %v3406 = vadd.f32 %v2976, %v3308
  %v3407 = vadd.f32 %v2977, %v3313
  %v3408 = vadd.f32 %v2978, %v3318
  %v3409 = vadd.f32 %v2979, %v3323
  %v3410 = vadd.f32 %v2980, %v3328
  %v3411 = vadd.f32 %v2981, %v3333
  %v3412 = vadd.f32 %v2982, %v3338
  %v3413 = vadd.f32 %v2983, %v3343
  %v3414 = vadd.f32 %v2984, %v3348
  %v3415 = vadd.f32 %v2985, %v3353
  %v3416 = vadd.f32 %v2986, %v3358
  %v3417 = vadd.f32 %v2987, %v3363
  %v3418 = vadd.f32 %v2988, %v3368
  %v3419 = vadd.f32 %v2989, %v3373
  %v3420 = vadd.f32 %v2990, %v3378
  %v3421 = vadd.f32 %v2991, %v3383
  %v3422 = vld [vmem:[%s1 + $0x26] sm:$0xff]
  %v3423 = vld [vmem:[%s1 + $0x2e] sm:$0xff]
  %v3424 = vld [vmem:[%s1 + $0x36] sm:$0xff]
  %v3425 = vld [vmem:[%s1 + $0x3e] sm:$0xff]
  %v3426 = vld [vmem:[%s1 + $0x46] sm:$0xff]
  %v3427 = vld [vmem:[%s1 + $0x4e] sm:$0xff]
  %v3428 = vld [vmem:[%s1 + $0x56] sm:$0xff]
  %v3429 = vld [vmem:[%s1 + $0x5e] sm:$0xff]
  %v3430 = vld [vmem:[%s1 + $0x66] sm:$0xff]
  %v3431 = vld [vmem:[%s1 + $0x6e] sm:$0xff]
  %v3432 = vld [vmem:[%s1 + $0x76] sm:$0xff]
  %v3433 = vld [vmem:[%s1 + $0x7e] sm:$0xff]
  %v3434 = vld [vmem:[%s1 + $0x86] sm:$0xff]
  %v3435 = vld [vmem:[%s1 + $0x8e] sm:$0xff]
  %v3436 = vld [vmem:[%s1 + $0x96] sm:$0xff]
  %v3437 = vld [vmem:[%s1 + $0x9e] sm:$0xff]
  %v3438 = vld [vmem:[%s1 + $0xa6] sm:$0xff]
  %v3439 = vld [vmem:[%s1 + $0xae] sm:$0xff]
  %v3440 = vld [vmem:[%s1 + $0xb6] sm:$0xff]
  %v3441 = vld [vmem:[%s1 + $0xbe] sm:$0xff]
  %v3442 = vld [vmem:[%s1 + $0xc6] sm:$0xff]
  %v3443 = vld [vmem:[%s1 + $0xce] sm:$0xff]
  %v3444 = vld [vmem:[%s1 + $0xd6] sm:$0xff]
  %v3445 = vld [vmem:[%s1 + $0xde] sm:$0xff]
  %v3446 = vld [vmem:[%s1 + $0xe6] sm:$0xff]
  %v3447 = vld [vmem:[%s1 + $0xee] sm:$0xff]
  %v3448 = vld [vmem:[%s1 + $0xf6] sm:$0xff]
  %v3449 = vld [vmem:[%s1 + $0xfe] sm:$0xff]
  %v3450 = vld [vmem:[%s1 + $0x106] sm:$0xff]
  %v3451 = vld [vmem:[%s1 + $0x10e] sm:$0xff]
  %v3452 = vld [vmem:[%s1 + $0x116] sm:$0xff]
  %v3453 = vld [vmem:[%s1 + $0x11e] sm:$0xff]
  %v3454 = vld [vmem:[%s1 + $0x126] sm:$0xff]
  %v3455 = vld [vmem:[%s1 + $0x12e] sm:$0xff]
  %v3456 = vld [vmem:[%s1 + $0x136] sm:$0xff]
  %v3457 = vld [vmem:[%s1 + $0x13e] sm:$0xff]
  %s3458 = scalar_lea.vmem %s2, 32
  %v3459 = vld [vmem:[%s3458] sm:$0x7]
  %v3461 = vsel %vm128, %v3422, 0
  %v3464 = vsel %vm128, %v3423, 0
  %v3467 = vsel %vm128, %v3424, 0
  %v3470 = vsel %vm128, %v3425, 0
  %v3473 = vsel %vm128, %v3426, 0
  %v3476 = vsel %vm128, %v3427, 0
  %v3479 = vsel %vm128, %v3428, 0
  %v3482 = vsel %vm128, %v3429, 0
  %v3485 = vsel %vm128, %v3430, 0
  %v3488 = vsel %vm128, %v3431, 0
  %v3491 = vsel %vm128, %v3432, 0
  %v3494 = vsel %vm128, %v3433, 0
  %v3497 = vsel %vm128, %v3434, 0
  %v3500 = vsel %vm128, %v3435, 0
  %v3503 = vsel %vm128, %v3436, 0
  %v3506 = vsel %vm128, %v3437, 0
  %v3509 = vsel %vm128, %v3438, 0
  %v3512 = vsel %vm128, %v3439, 0
  %v3515 = vsel %vm128, %v3440, 0
  %v3518 = vsel %vm128, %v3441, 0
  %v3521 = vsel %vm128, %v3442, 0
  %v3524 = vsel %vm128, %v3443, 0
  %v3527 = vsel %vm128, %v3444, 0
  %v3530 = vsel %vm128, %v3445, 0
  %v3533 = vsel %vm128, %v3446, 0
  %v3536 = vsel %vm128, %v3447, 0
  %v3539 = vsel %vm128, %v3448, 0
  %v3542 = vsel %vm128, %v3449, 0
  %v3545 = vsel %vm128, %v3450, 0
  %v3548 = vsel %vm128, %v3451, 0
  %v3551 = vsel %vm128, %v3452, 0
  %v3554 = vsel %vm128, %v3453, 0
  %v3557 = vsel %vm128, %v3454, 0
  %v3560 = vsel %vm128, %v3455, 0
  %v3563 = vsel %vm128, %v3456, 0
  %v3566 = vsel %vm128, %v3457, 0
  %v3569 = vsel %vm237, %v3459, 0
  %3571 = vmatprep.subr.mxu0 0.0
  %3572 = vmatpush1.msra.mxu0 %v3569
  %3573 = vmatprep.subr.mxu0 0.0
  %3574 = vmatpush1.msra.mxu0 0.0
  %3575 = vmatprep.subr.mxu0 0.0
  %3576 = vmatpush1.msra.mxu0 0.0
  %3577 = vmatprep.subr.mxu0 0.0
  %3578 = vmatpush1.msra.mxu0 0.0
  %3579 = vmatprep.subr.mxu0 0.0
  %3580 = vmatpush1.msra.mxu0 0.0
  %3581 = vmatprep.subr.mxu0 0.0
  %3582 = vmatpush1.msra.mxu0 0.0
  %3583 = vmatprep.subr.mxu0 0.0
  %3584 = vmatpush1.msra.mxu0 0.0
  %3585 = vmatprep.subr.mxu0 0.0
  %3586 = vmatpush1.msra.mxu0 0.0
  %3587 = vmatprep.subr.mxu0 0.0
  %3588 = vmatpush1.msra.mxu0 0.0
  %3589 = vmatprep.subr.mxu0 0.0
  %3590 = vmatpush1.msra.mxu0 0.0
  %3591 = vmatprep.subr.mxu0 0.0
  %3592 = vmatpush1.msra.mxu0 0.0
  %3593 = vmatprep.subr.mxu0 0.0
  %3594 = vmatpush1.msra.mxu0 0.0
  %3595 = vmatprep.subr.mxu0 0.0
  %3596 = vmatpush1.msra.mxu0 0.0
  %3597 = vmatprep.subr.mxu0 0.0
  %3598 = vmatpush1.msra.mxu0 0.0
  %3599 = vmatprep.subr.mxu0 0.0
  %3600 = vmatpush1.msra.mxu0 0.0
  %3601 = vmatprep.subr.mxu0 0.0
  %3602 = vmatpush1.msra.mxu0 0.0
  %3603 = vmatprep.subr.mxu0 0.0
  %3604 = vmatpush1.msra.mxu0 0.0
  %3605 = vmatprep.subr.mxu0 0.0
  %3606 = vmatpush1.msra.mxu0 0.0
  %3607 = vmatprep.subr.mxu0 0.0
  %3608 = vmatpush1.msra.mxu0 0.0
  %3609 = vmatprep.subr.mxu0 0.0
  %3610 = vmatpush1.msra.mxu0 0.0
  %3611 = vmatprep.subr.mxu0 0.0
  %3612 = vmatpush1.msra.mxu0 0.0
  %3613 = vmatprep.subr.mxu0 0.0
  %3614 = vmatpush1.msra.mxu0 0.0
  %3615 = vmatprep.subr.mxu0 0.0
  %3616 = vmatpush1.msra.mxu0 0.0
  %3617 = vmatprep.subr.mxu0 0.0
  %3618 = vmatpush1.msra.mxu0 0.0
  %3619 = vmatprep.subr.mxu0 0.0
  %3620 = vmatpush1.msra.mxu0 0.0
  %3621 = vmatprep.subr.mxu0 0.0
  %3622 = vmatpush1.msra.mxu0 0.0
  %3623 = vmatprep.subr.mxu0 0.0
  %3624 = vmatpush1.msra.mxu0 0.0
  %3625 = vmatprep.subr.mxu0 0.0
  %3626 = vmatpush1.msra.mxu0 0.0
  %3627 = vmatprep.subr.mxu0 0.0
  %3628 = vmatpush1.msra.mxu0 0.0
  %3629 = vmatprep.subr.mxu0 0.0
  %3630 = vmatpush1.msra.mxu0 0.0
  %3631 = vmatprep.subr.mxu0 0.0
  %3632 = vmatpush1.msra.mxu0 0.0
  %3633 = vmatprep.subr.mxu0 0.0
  %3634 = vmatpush1.msra.mxu0 0.0
  %3635 = vmatprep.mubr.f32.mxu0 0.0
  %3636 = vmatmul.mubr.f32.gmra.mrb[0].mxu0 %v3461
  %v3637 = vpop.f32.mrb[0].mxu0
  %v3638 = vadd.f32 0.0, %v3637
  %v3639 = vpop.f32.mrb[0].mxu0
  %3640 = vmatprep.mubr.f32.mxu0 0.0
  %3641 = vmatmul.mubr.f32.gmra.mrb[0].mxu0 %v3464
  %v3642 = vpop.f32.mrb[0].mxu0
  %v3643 = vadd.f32 0.0, %v3642
  %v3644 = vpop.f32.mrb[0].mxu0
  %3645 = vmatprep.mubr.f32.mxu0 0.0
  %3646 = vmatmul.mubr.f32.gmra.mrb[0].mxu0 %v3467
  %v3647 = vpop.f32.mrb[0].mxu0
  %v3648 = vadd.f32 0.0, %v3647
  %v3649 = vpop.f32.mrb[0].mxu0
  %3650 = vmatprep.mubr.f32.mxu0 0.0
  %3651 = vmatmul.mubr.f32.gmra.mrb[0].mxu0 %v3470
  %v3652 = vpop.f32.mrb[0].mxu0
  %v3653 = vadd.f32 0.0, %v3652
  %v3654 = vpop.f32.mrb[0].mxu0
  %3655 = vmatprep.mubr.f32.mxu0 0.0
  %3656 = vmatmul.mubr.f32.gmra.mrb[0].mxu0 %v3473
  %v3657 = vpop.f32.mrb[0].mxu0
  %v3658 = vadd.f32 0.0, %v3657
  %v3659 = vpop.f32.mrb[0].mxu0
  %3660 = vmatprep.mubr.f32.mxu0 0.0
  %3661 = vmatmul.mubr.f32.gmra.mrb[0].mxu0 %v3476
  %v3662 = vpop.f32.mrb[0].mxu0
  %v3663 = vadd.f32 0.0, %v3662
  %v3664 = vpop.f32.mrb[0].mxu0
  %3665 = vmatprep.mubr.f32.mxu0 0.0
  %3666 = vmatmul.mubr.f32.gmra.mrb[0].mxu0 %v3479
  %v3667 = vpop.f32.mrb[0].mxu0
  %v3668 = vadd.f32 0.0, %v3667
  %v3669 = vpop.f32.mrb[0].mxu0
  %3670 = vmatprep.mubr.f32.mxu0 0.0
  %3671 = vmatmul.mubr.f32.gmra.mrb[0].mxu0 %v3482
  %v3672 = vpop.f32.mrb[0].mxu0
  %v3673 = vadd.f32 0.0, %v3672
  %v3674 = vpop.f32.mrb[0].mxu0
  %3675 = vmatprep.mubr.f32.mxu0 0.0
  %3676 = vmatmul.mubr.f32.gmra.mrb[0].mxu0 %v3485
  %v3677 = vpop.f32.mrb[0].mxu0
  %v3678 = vadd.f32 0.0, %v3677
  %v3679 = vpop.f32.mrb[0].mxu0
  %3680 = vmatprep.mubr.f32.mxu0 0.0
  %3681 = vmatmul.mubr.f32.gmra.mrb[0].mxu0 %v3488
  %v3682 = vpop.f32.mrb[0].mxu0
  %v3683 = vadd.f32 0.0, %v3682
  %v3684 = vpop.f32.mrb[0].mxu0
  %3685 = vmatprep.mubr.f32.mxu0 0.0
  %3686 = vmatmul.mubr.f32.gmra.mrb[0].mxu0 %v3491
  %v3687 = vpop.f32.mrb[0].mxu0
  %v3688 = vadd.f32 0.0, %v3687
  %v3689 = vpop.f32.mrb[0].mxu0
  %3690 = vmatprep.mubr.f32.mxu0 0.0
  %3691 = vmatmul.mubr.f32.gmra.mrb[0].mxu0 %v3494
  %v3692 = vpop.f32.mrb[0].mxu0
  %v3693 = vadd.f32 0.0, %v3692
  %v3694 = vpop.f32.mrb[0].mxu0
  %3695 = vmatprep.mubr.f32.mxu0 0.0
  %3696 = vmatmul.mubr.f32.gmra.mrb[0].mxu0 %v3497
  %v3697 = vpop.f32.mrb[0].mxu0
  %v3698 = vadd.f32 0.0, %v3697
  %v3699 = vpop.f32.mrb[0].mxu0
  %3700 = vmatprep.mubr.f32.mxu0 0.0
  %3701 = vmatmul.mubr.f32.gmra.mrb[0].mxu0 %v3500
  %v3702 = vpop.f32.mrb[0].mxu0
  %v3703 = vadd.f32 0.0, %v3702
  %v3704 = vpop.f32.mrb[0].mxu0
  %3705 = vmatprep.mubr.f32.mxu0 0.0
  %3706 = vmatmul.mubr.f32.gmra.mrb[0].mxu0 %v3503
  %v3707 = vpop.f32.mrb[0].mxu0
  %v3708 = vadd.f32 0.0, %v3707
  %v3709 = vpop.f32.mrb[0].mxu0
  %3710 = vmatprep.mubr.f32.mxu0 0.0
  %3711 = vmatmul.mubr.f32.gmra.mrb[0].mxu0 %v3506
  %v3712 = vpop.f32.mrb[0].mxu0
  %v3713 = vadd.f32 0.0, %v3712
  %v3714 = vpop.f32.mrb[0].mxu0
  %3715 = vmatprep.mubr.f32.mxu0 0.0
  %3716 = vmatmul.mubr.f32.gmra.mrb[0].mxu0 %v3509
  %v3717 = vpop.f32.mrb[0].mxu0
  %v3718 = vadd.f32 0.0, %v3717
  %v3719 = vpop.f32.mrb[0].mxu0
  %3720 = vmatprep.mubr.f32.mxu0 0.0
  %3721 = vmatmul.mubr.f32.gmra.mrb[0].mxu0 %v3512
  %v3722 = vpop.f32.mrb[0].mxu0
  %v3723 = vadd.f32 0.0, %v3722
  %v3724 = vpop.f32.mrb[0].mxu0
  %3725 = vmatprep.mubr.f32.mxu0 0.0
  %3726 = vmatmul.mubr.f32.gmra.mrb[0].mxu0 %v3515
  %v3727 = vpop.f32.mrb[0].mxu0
  %v3728 = vadd.f32 0.0, %v3727
  %v3729 = vpop.f32.mrb[0].mxu0
  %3730 = vmatprep.mubr.f32.mxu0 0.0
  %3731 = vmatmul.mubr.f32.gmra.mrb[0].mxu0 %v3518
  %v3732 = vpop.f32.mrb[0].mxu0
  %v3733 = vadd.f32 0.0, %v3732
  %v3734 = vpop.f32.mrb[0].mxu0
  %3735 = vmatprep.mubr.f32.mxu0 0.0
  %3736 = vmatmul.mubr.f32.gmra.mrb[0].mxu0 %v3521
  %v3737 = vpop.f32.mrb[0].mxu0
  %v3738 = vadd.f32 0.0, %v3737
  %v3739 = vpop.f32.mrb[0].mxu0
  %3740 = vmatprep.mubr.f32.mxu0 0.0
  %3741 = vmatmul.mubr.f32.gmra.mrb[0].mxu0 %v3524
  %v3742 = vpop.f32.mrb[0].mxu0
  %v3743 = vadd.f32 0.0, %v3742
  %v3744 = vpop.f32.mrb[0].mxu0
  %3745 = vmatprep.mubr.f32.mxu0 0.0
  %3746 = vmatmul.mubr.f32.gmra.mrb[0].mxu0 %v3527
  %v3747 = vpop.f32.mrb[0].mxu0
  %v3748 = vadd.f32 0.0, %v3747
  %v3749 = vpop.f32.mrb[0].mxu0
  %3750 = vmatprep.mubr.f32.mxu0 0.0
  %3751 = vmatmul.mubr.f32.gmra.mrb[0].mxu0 %v3530
  %v3752 = vpop.f32.mrb[0].mxu0
  %v3753 = vadd.f32 0.0, %v3752
  %v3754 = vpop.f32.mrb[0].mxu0
  %3755 = vmatprep.mubr.f32.mxu0 0.0
  %3756 = vmatmul.mubr.f32.gmra.mrb[0].mxu0 %v3533
  %v3757 = vpop.f32.mrb[0].mxu0
  %v3758 = vadd.f32 0.0, %v3757
  %v3759 = vpop.f32.mrb[0].mxu0
  %3760 = vmatprep.mubr.f32.mxu0 0.0
  %3761 = vmatmul.mubr.f32.gmra.mrb[0].mxu0 %v3536
  %v3762 = vpop.f32.mrb[0].mxu0
  %v3763 = vadd.f32 0.0, %v3762
  %v3764 = vpop.f32.mrb[0].mxu0
  %3765 = vmatprep.mubr.f32.mxu0 0.0
  %3766 = vmatmul.mubr.f32.gmra.mrb[0].mxu0 %v3539
  %v3767 = vpop.f32.mrb[0].mxu0
  %v3768 = vadd.f32 0.0, %v3767
  %v3769 = vpop.f32.mrb[0].mxu0
  %3770 = vmatprep.mubr.f32.mxu0 0.0
  %3771 = vmatmul.mubr.f32.gmra.mrb[0].mxu0 %v3542
  %v3772 = vpop.f32.mrb[0].mxu0
  %v3773 = vadd.f32 0.0, %v3772
  %v3774 = vpop.f32.mrb[0].mxu0
  %3775 = vmatprep.mubr.f32.mxu0 0.0
  %3776 = vmatmul.mubr.f32.gmra.mrb[0].mxu0 %v3545
  %v3777 = vpop.f32.mrb[0].mxu0
  %v3778 = vadd.f32 0.0, %v3777
  %v3779 = vpop.f32.mrb[0].mxu0
  %3780 = vmatprep.mubr.f32.mxu0 0.0
  %3781 = vmatmul.mubr.f32.gmra.mrb[0].mxu0 %v3548
  %v3782 = vpop.f32.mrb[0].mxu0
  %v3783 = vadd.f32 0.0, %v3782
  %v3784 = vpop.f32.mrb[0].mxu0
  %3785 = vmatprep.mubr.f32.mxu0 0.0
  %3786 = vmatmul.mubr.f32.gmra.mrb[0].mxu0 %v3551
  %v3787 = vpop.f32.mrb[0].mxu0
  %v3788 = vadd.f32 0.0, %v3787
  %v3789 = vpop.f32.mrb[0].mxu0
  %3790 = vmatprep.mubr.f32.mxu0 0.0
  %3791 = vmatmul.mubr.f32.gmra.mrb[0].mxu0 %v3554
  %v3792 = vpop.f32.mrb[0].mxu0
  %v3793 = vadd.f32 0.0, %v3792
  %v3794 = vpop.f32.mrb[0].mxu0
  %3795 = vmatprep.mubr.f32.mxu0 0.0
  %3796 = vmatmul.mubr.f32.gmra.mrb[0].mxu0 %v3557
  %v3797 = vpop.f32.mrb[0].mxu0
  %v3798 = vadd.f32 0.0, %v3797
  %v3799 = vpop.f32.mrb[0].mxu0
  %3800 = vmatprep.mubr.f32.mxu0 0.0
  %3801 = vmatmul.mubr.f32.gmra.mrb[0].mxu0 %v3560
  %v3802 = vpop.f32.mrb[0].mxu0
  %v3803 = vadd.f32 0.0, %v3802
  %v3804 = vpop.f32.mrb[0].mxu0
  %3805 = vmatprep.mubr.f32.mxu0 0.0
  %3806 = vmatmul.mubr.f32.gmra.mrb[0].mxu0 %v3563
  %v3807 = vpop.f32.mrb[0].mxu0
  %v3808 = vadd.f32 0.0, %v3807
  %v3809 = vpop.f32.mrb[0].mxu0
  %3810 = vmatprep.mubr.f32.mxu0 0.0
  %3811 = vmatmul.mubr.f32.gmra.mrb[0].mxu0 %v3566
  %v3812 = vpop.f32.mrb[0].mxu0
  %v3813 = vadd.f32 0.0, %v3812
  %v3814 = vpop.f32.mrb[0].mxu0
  %3815 = vdwg.mxu0
  %v3816 = vadd.f32 %v3386, %v3638
  %v3817 = vadd.f32 %v3387, %v3643
  %v3818 = vadd.f32 %v3388, %v3648
  %v3819 = vadd.f32 %v3389, %v3653
  %v3820 = vadd.f32 %v3390, %v3658
  %v3821 = vadd.f32 %v3391, %v3663
  %v3822 = vadd.f32 %v3392, %v3668
  %v3823 = vadd.f32 %v3393, %v3673
  %v3824 = vadd.f32 %v3394, %v3678
  %v3825 = vadd.f32 %v3395, %v3683
  %v3826 = vadd.f32 %v3396, %v3688
  %v3827 = vadd.f32 %v3397, %v3693
  %v3828 = vadd.f32 %v3398, %v3698
  %v3829 = vadd.f32 %v3399, %v3703
  %v3830 = vadd.f32 %v3400, %v3708
  %v3831 = vadd.f32 %v3401, %v3713
  %v3832 = vadd.f32 %v3402, %v3718
  %v3833 = vadd.f32 %v3403, %v3723
  %v3834 = vadd.f32 %v3404, %v3728
  %v3835 = vadd.f32 %v3405, %v3733
  %v3836 = vadd.f32 %v3406, %v3738
  %v3837 = vadd.f32 %v3407, %v3743
  %v3838 = vadd.f32 %v3408, %v3748
  %v3839 = vadd.f32 %v3409, %v3753
  %v3840 = vadd.f32 %v3410, %v3758
  %v3841 = vadd.f32 %v3411, %v3763
  %v3842 = vadd.f32 %v3412, %v3768
  %v3843 = vadd.f32 %v3413, %v3773
  %v3844 = vadd.f32 %v3414, %v3778
  %v3845 = vadd.f32 %v3415, %v3783
  %v3846 = vadd.f32 %v3416, %v3788
  %v3847 = vadd.f32 %v3417, %v3793
  %v3848 = vadd.f32 %v3418, %v3798
  %v3849 = vadd.f32 %v3419, %v3803
  %v3850 = vadd.f32 %v3420, %v3808
  %v3851 = vadd.f32 %v3421, %v3813
  %vm3852 = vcmask 130048
  %3853 = vst.msk [vmem:[#allocation2] sm:$0xff] %vm3852, 0.0
  %3854 = vst.msk [vmem:[#allocation2 + $0x8] sm:$0xff] %vm3852, 0.0
  %vm3855 = vcmask 124928
  %3856 = vst.msk [vmem:[#allocation2 + $0x10] sm:$0x7] %vm3855, 0.0
  %3858 = vset.pattern.permute.xlu0 0
  %3859 = vperm.xlu0 %3858, %v17
  %v3860 = vpop.permute.xlu0 %3859
  %3863 = vset.pattern.permute.xlu0 0
  %3864 = vperm.xlu0 %3863, %v18
  %v3865 = vpop.permute.xlu0 %3864
  %3868 = vset.pattern.permute.xlu0 0
  %3869 = vperm.xlu0 %3868, %v19
  %v3870 = vpop.permute.xlu0 %3869
  %3873 = vset.pattern.permute.xlu0 0
  %3874 = vperm.xlu0 %3873, %v20
  %v3875 = vpop.permute.xlu0 %3874
  %3878 = vset.pattern.permute.xlu0 0
  %3879 = vperm.xlu0 %3878, %v21
  %v3880 = vpop.permute.xlu0 %3879
  %3883 = vset.pattern.permute.xlu0 0
  %3884 = vperm.xlu0 %3883, %v22
  %v3885 = vpop.permute.xlu0 %3884
  %3888 = vset.pattern.permute.xlu0 0
  %3889 = vperm.xlu0 %3888, %v23
  %v3890 = vpop.permute.xlu0 %3889
  %3893 = vset.pattern.permute.xlu0 0
  %3894 = vperm.xlu0 %3893, %v24
  %v3895 = vpop.permute.xlu0 %3894
  %3898 = vset.pattern.permute.xlu0 0
  %3899 = vperm.xlu0 %3898, %v25
  %v3900 = vpop.permute.xlu0 %3899
  %3903 = vset.pattern.permute.xlu0 0
  %3904 = vperm.xlu0 %3903, %v26
  %v3905 = vpop.permute.xlu0 %3904
  %3908 = vset.pattern.permute.xlu0 0
  %3909 = vperm.xlu0 %3908, %v27
  %v3910 = vpop.permute.xlu0 %3909
  %3913 = vset.pattern.permute.xlu0 0
  %3914 = vperm.xlu0 %3913, %v28
  %v3915 = vpop.permute.xlu0 %3914
  %3918 = vset.pattern.permute.xlu0 0
  %3919 = vperm.xlu0 %3918, %v29
  %v3920 = vpop.permute.xlu0 %3919
  %3923 = vset.pattern.permute.xlu0 0
  %3924 = vperm.xlu0 %3923, %v30
  %v3925 = vpop.permute.xlu0 %3924
  %3928 = vset.pattern.permute.xlu0 0
  %3929 = vperm.xlu0 %3928, %v31
  %v3930 = vpop.permute.xlu0 %3929
  %3933 = vset.pattern.permute.xlu0 0
  %3934 = vperm.xlu0 %3933, %v32
  %v3935 = vpop.permute.xlu0 %3934
  %3938 = vset.pattern.permute.xlu0 0
  %3939 = vperm.xlu0 %3938, %v33
  %v3940 = vpop.permute.xlu0 %3939
  %3943 = vset.pattern.permute.xlu0 0
  %3944 = vperm.xlu0 %3943, %v34
  %v3945 = vpop.permute.xlu0 %3944
  %3948 = vset.pattern.permute.xlu0 0
  %3949 = vperm.xlu0 %3948, %v35
  %v3950 = vpop.permute.xlu0 %3949
  %3953 = vset.pattern.permute.xlu0 0
  %3954 = vperm.xlu0 %3953, %v36
  %v3955 = vpop.permute.xlu0 %3954
  %3958 = vset.pattern.permute.xlu0 0
  %3959 = vperm.xlu0 %3958, %v37
  %v3960 = vpop.permute.xlu0 %3959
  %3963 = vset.pattern.permute.xlu0 0
  %3964 = vperm.xlu0 %3963, %v38
  %v3965 = vpop.permute.xlu0 %3964
  %3968 = vset.pattern.permute.xlu0 0
  %3969 = vperm.xlu0 %3968, %v39
  %v3970 = vpop.permute.xlu0 %3969
  %3973 = vset.pattern.permute.xlu0 0
  %3974 = vperm.xlu0 %3973, %v40
  %v3975 = vpop.permute.xlu0 %3974
  %3978 = vset.pattern.permute.xlu0 0
  %3979 = vperm.xlu0 %3978, %v41
  %v3980 = vpop.permute.xlu0 %3979
  %3983 = vset.pattern.permute.xlu0 0
  %3984 = vperm.xlu0 %3983, %v42
  %v3985 = vpop.permute.xlu0 %3984
  %3988 = vset.pattern.permute.xlu0 0
  %3989 = vperm.xlu0 %3988, %v43
  %v3990 = vpop.permute.xlu0 %3989
  %3993 = vset.pattern.permute.xlu0 0
  %3994 = vperm.xlu0 %3993, %v44
  %v3995 = vpop.permute.xlu0 %3994
  %3998 = vset.pattern.permute.xlu0 0
  %3999 = vperm.xlu0 %3998, %v45
  %v4000 = vpop.permute.xlu0 %3999
  %4003 = vset.pattern.permute.xlu0 0
  %4004 = vperm.xlu0 %4003, %v46
  %v4005 = vpop.permute.xlu0 %4004
  %4008 = vset.pattern.permute.xlu0 0
  %4009 = vperm.xlu0 %4008, %v47
  %v4010 = vpop.permute.xlu0 %4009
  %4013 = vset.pattern.permute.xlu0 0
  %4014 = vperm.xlu0 %4013, %v48
  %v4015 = vpop.permute.xlu0 %4014
  %4018 = vset.pattern.permute.xlu0 0
  %4019 = vperm.xlu0 %4018, %v49
  %v4020 = vpop.permute.xlu0 %4019
  %4023 = vset.pattern.permute.xlu0 0
  %4024 = vperm.xlu0 %4023, %v50
  %v4025 = vpop.permute.xlu0 %4024
  %4028 = vset.pattern.permute.xlu0 0
  %4029 = vperm.xlu0 %4028, %v51
  %v4030 = vpop.permute.xlu0 %4029
  %4033 = vset.pattern.permute.xlu0 0
  %4034 = vperm.xlu0 %4033, %v52
  %v4035 = vpop.permute.xlu0 %4034
  %v4037 = vmul.f32 %v3816, %v3860
  %v4038 = vmul.f32 %v3817, %v3865
  %v4039 = vmul.f32 %v3818, %v3870
  %v4040 = vmul.f32 %v3819, %v3875
  %v4041 = vmul.f32 %v3820, %v3880
  %v4042 = vmul.f32 %v3821, %v3885
  %v4043 = vmul.f32 %v3822, %v3890
  %v4044 = vmul.f32 %v3823, %v3895
  %v4045 = vmul.f32 %v3824, %v3900
  %v4046 = vmul.f32 %v3825, %v3905
  %v4047 = vmul.f32 %v3826, %v3910
  %v4048 = vmul.f32 %v3827, %v3915
  %v4049 = vmul.f32 %v3828, %v3920
  %v4050 = vmul.f32 %v3829, %v3925
  %v4051 = vmul.f32 %v3830, %v3930
  %v4052 = vmul.f32 %v3831, %v3935
  %v4053 = vmul.f32 %v3832, %v3940
  %v4054 = vmul.f32 %v3833, %v3945
  %v4055 = vmul.f32 %v3834, %v3950
  %v4056 = vmul.f32 %v3835, %v3955
  %v4057 = vmul.f32 %v3836, %v3960
  %v4058 = vmul.f32 %v3837, %v3965
  %v4059 = vmul.f32 %v3838, %v3970
  %v4060 = vmul.f32 %v3839, %v3975
  %v4061 = vmul.f32 %v3840, %v3980
  %v4062 = vmul.f32 %v3841, %v3985
  %v4063 = vmul.f32 %v3842, %v3990
  %v4064 = vmul.f32 %v3843, %v3995
  %v4065 = vmul.f32 %v3844, %v4000
  %v4066 = vmul.f32 %v3845, %v4005
  %v4067 = vmul.f32 %v3846, %v4010
  %v4068 = vmul.f32 %v3847, %v4015
  %v4069 = vmul.f32 %v3848, %v4020
  %v4070 = vmul.f32 %v3849, %v4025
  %v4071 = vmul.f32 %v3850, %v4030
  %v4072 = vmul.f32 %v3851, %v4035
  %4073 = vst.msk [vmem:[#allocation2 + $0x13] sm:$0xff] %vm3852, %v4037
  %4074 = vst.msk [vmem:[#allocation2 + $0x1b] sm:$0xff] %vm3852, %v4038
  %4075 = vst.msk [vmem:[#allocation2 + $0x23] sm:$0xff] %vm3852, %v4039
  %4076 = vst.msk [vmem:[#allocation2 + $0x2b] sm:$0xff] %vm3852, %v4040
  %4077 = vst.msk [vmem:[#allocation2 + $0x33] sm:$0xff] %vm3852, %v4041
  %4078 = vst.msk [vmem:[#allocation2 + $0x3b] sm:$0xff] %vm3852, %v4042
  %4079 = vst.msk [vmem:[#allocation2 + $0x43] sm:$0xff] %vm3852, %v4043
  %4080 = vst.msk [vmem:[#allocation2 + $0x4b] sm:$0xff] %vm3852, %v4044
  %4081 = vst.msk [vmem:[#allocation2 + $0x53] sm:$0xff] %vm3852, %v4045
  %4082 = vst.msk [vmem:[#allocation2 + $0x5b] sm:$0xff] %vm3852, %v4046
  %4083 = vst.msk [vmem:[#allocation2 + $0x63] sm:$0xff] %vm3852, %v4047
  %4084 = vst.msk [vmem:[#allocation2 + $0x6b] sm:$0xff] %vm3852, %v4048
  %4085 = vst.msk [vmem:[#allocation2 + $0x73] sm:$0xff] %vm3852, %v4049
  %4086 = vst.msk [vmem:[#allocation2 + $0x7b] sm:$0xff] %vm3852, %v4050
  %4087 = vst.msk [vmem:[#allocation2 + $0x83] sm:$0xff] %vm3852, %v4051
  %4088 = vst.msk [vmem:[#allocation2 + $0x8b] sm:$0xff] %vm3852, %v4052
  %4089 = vst.msk [vmem:[#allocation2 + $0x93] sm:$0xff] %vm3852, %v4053
  %4090 = vst.msk [vmem:[#allocation2 + $0x9b] sm:$0xff] %vm3852, %v4054
  %4091 = vst.msk [vmem:[#allocation2 + $0xa3] sm:$0xff] %vm3852, %v4055
  %4092 = vst.msk [vmem:[#allocation2 + $0xab] sm:$0xff] %vm3852, %v4056
  %4093 = vst.msk [vmem:[#allocation2 + $0xb3] sm:$0xff] %vm3852, %v4057
  %4094 = vst.msk [vmem:[#allocation2 + $0xbb] sm:$0xff] %vm3852, %v4058
  %4095 = vst.msk [vmem:[#allocation2 + $0xc3] sm:$0xff] %vm3852, %v4059
  %4096 = vst.msk [vmem:[#allocation2 + $0xcb] sm:$0xff] %vm3852, %v4060
  %4097 = vst.msk [vmem:[#allocation2 + $0xd3] sm:$0xff] %vm3852, %v4061
  %4098 = vst.msk [vmem:[#allocation2 + $0xdb] sm:$0xff] %vm3852, %v4062
  %4099 = vst.msk [vmem:[#allocation2 + $0xe3] sm:$0xff] %vm3852, %v4063
  %4100 = vst.msk [vmem:[#allocation2 + $0xeb] sm:$0xff] %vm3852, %v4064
  %4101 = vst.msk [vmem:[#allocation2 + $0xf3] sm:$0xff] %vm3852, %v4065
  %4102 = vst.msk [vmem:[#allocation2 + $0xfb] sm:$0xff] %vm3852, %v4066
  %4103 = vst.msk [vmem:[#allocation2 + $0x103] sm:$0xff] %vm3852, %v4067
  %4104 = vst.msk [vmem:[#allocation2 + $0x10b] sm:$0xff] %vm3852, %v4068
  %4105 = vst.msk [vmem:[#allocation2 + $0x113] sm:$0xff] %vm3852, %v4069
  %4106 = vst.msk [vmem:[#allocation2 + $0x11b] sm:$0xff] %vm3852, %v4070
  %4107 = vst.msk [vmem:[#allocation2 + $0x123] sm:$0xff] %vm3852, %v4071
  %4108 = vst.msk [vmem:[#allocation2 + $0x12b] sm:$0xff] %vm3852, %v4072
  %4109 = vst.msk [vmem:[#allocation2 + $0x133] sm:$0xff] %vm3852, 0.0
  %4110 = vst.msk [vmem:[#allocation2 + $0x13b] sm:$0xff] %vm3852, 0.0
  %4111 = vst.msk [vmem:[#allocation2 + $0x143] sm:$0xff] %vm3852, 0.0
  %4112 = vst.msk [vmem:[#allocation2 + $0x14b] sm:$0xff] %vm3852, 0.0
  %4113 = vst.msk [vmem:[#allocation2 + $0x153] sm:$0x7] %vm3855, 0.0
  %v4114 = vld [vmem:[#allocation2] sm:$0xff]
  %v4115 = vld [vmem:[#allocation2 + $0x8] sm:$0xff]
  %v4116 = vld [vmem:[#allocation2 + $0x10] sm:$0xff]
  %v4117 = vld [vmem:[#allocation2 + $0x18] sm:$0xff]
  %v4118 = vld [vmem:[#allocation2 + $0x20] sm:$0xff]
  %v4119 = vld [vmem:[#allocation2 + $0x28] sm:$0xff]
  %v4120 = vld [vmem:[#allocation2 + $0x30] sm:$0xff]
  %v4121 = vld [vmem:[#allocation2 + $0x38] sm:$0xff]
  %v4122 = vld [vmem:[#allocation2 + $0x40] sm:$0xff]
  %v4123 = vld [vmem:[#allocation2 + $0x48] sm:$0xff]
  %v4124 = vld [vmem:[#allocation2 + $0x50] sm:$0xff]
  %v4125 = vld [vmem:[#allocation2 + $0x58] sm:$0xff]
  %v4126 = vld [vmem:[#allocation2 + $0x60] sm:$0xff]
  %v4127 = vld [vmem:[#allocation2 + $0x68] sm:$0xff]
  %v4128 = vld [vmem:[#allocation2 + $0x70] sm:$0xff]
  %v4129 = vld [vmem:[#allocation2 + $0x78] sm:$0xff]
  %v4130 = vld [vmem:[#allocation2 + $0x80] sm:$0xff]
  %v4131 = vld [vmem:[#allocation2 + $0x88] sm:$0xff]
  %v4132 = vld [vmem:[#allocation2 + $0x90] sm:$0xff]
  %v4133 = vld [vmem:[#allocation2 + $0x98] sm:$0xff]
  %v4134 = vld [vmem:[#allocation2 + $0xa0] sm:$0xff]
  %v4135 = vld [vmem:[#allocation2 + $0xa8] sm:$0xff]
  %v4136 = vld [vmem:[#allocation2 + $0xb0] sm:$0xff]
  %v4137 = vld [vmem:[#allocation2 + $0xb8] sm:$0xff]
  %v4138 = vld [vmem:[#allocation2 + $0xc0] sm:$0xff]
  %v4139 = vld [vmem:[#allocation2 + $0xc8] sm:$0xff]
  %v4140 = vld [vmem:[#allocation2 + $0xd0] sm:$0xff]
  %v4141 = vld [vmem:[#allocation2 + $0xd8] sm:$0xff]
  %v4142 = vld [vmem:[#allocation2 + $0xe0] sm:$0xff]
  %v4143 = vld [vmem:[#allocation2 + $0xe8] sm:$0xff]
  %v4144 = vld [vmem:[#allocation2 + $0xf0] sm:$0xff]
  %v4145 = vld [vmem:[#allocation2 + $0xf8] sm:$0xff]
  %v4146 = vld [vmem:[#allocation2 + $0x100] sm:$0xff]
  %v4147 = vld [vmem:[#allocation2 + $0x108] sm:$0xff]
  %v4148 = vld [vmem:[#allocation2 + $0x110] sm:$0xff]
  %v4149 = vld [vmem:[#allocation2 + $0x118] sm:$0xff]
  %v4150 = vld [vmem:[%s3] sm:$0xff]
  %v4151 = vld [vmem:[%s3 + $0x8] sm:$0xff]
  %v4152 = vld [vmem:[#allocation2 + $0x1] sm:$0xff]
  %v4153 = vld [vmem:[#allocation2 + $0x9] sm:$0xff]
  %v4154 = vld [vmem:[#allocation2 + $0x11] sm:$0xff]
  %v4155 = vld [vmem:[#allocation2 + $0x19] sm:$0xff]
  %v4156 = vld [vmem:[#allocation2 + $0x21] sm:$0xff]
  %v4157 = vld [vmem:[#allocation2 + $0x29] sm:$0xff]
  %v4158 = vld [vmem:[#allocation2 + $0x31] sm:$0xff]
  %v4159 = vld [vmem:[#allocation2 + $0x39] sm:$0xff]
  %v4160 = vld [vmem:[#allocation2 + $0x41] sm:$0xff]
  %v4161 = vld [vmem:[#allocation2 + $0x49] sm:$0xff]
  %v4162 = vld [vmem:[#allocation2 + $0x51] sm:$0xff]
  %v4163 = vld [vmem:[#allocation2 + $0x59] sm:$0xff]
  %v4164 = vld [vmem:[#allocation2 + $0x61] sm:$0xff]
  %v4165 = vld [vmem:[#allocation2 + $0x69] sm:$0xff]
  %v4166 = vld [vmem:[#allocation2 + $0x71] sm:$0xff]
  %v4167 = vld [vmem:[#allocation2 + $0x79] sm:$0xff]
  %v4168 = vld [vmem:[#allocation2 + $0x81] sm:$0xff]
  %v4169 = vld [vmem:[#allocation2 + $0x89] sm:$0xff]
  %v4170 = vld [vmem:[#allocation2 + $0x91] sm:$0xff]
  %v4171 = vld [vmem:[#allocation2 + $0x99] sm:$0xff]
  %v4172 = vld [vmem:[#allocation2 + $0xa1] sm:$0xff]
  %v4173 = vld [vmem:[#allocation2 + $0xa9] sm:$0xff]
  %v4174 = vld [vmem:[#allocation2 + $0xb1] sm:$0xff]
  %v4175 = vld [vmem:[#allocation2 + $0xb9] sm:$0xff]
  %v4176 = vld [vmem:[#allocation2 + $0xc1] sm:$0xff]
  %v4177 = vld [vmem:[#allocation2 + $0xc9] sm:$0xff]
  %v4178 = vld [vmem:[#allocation2 + $0xd1] sm:$0xff]
  %v4179 = vld [vmem:[#allocation2 + $0xd9] sm:$0xff]
  %v4180 = vld [vmem:[#allocation2 + $0xe1] sm:$0xff]
  %v4181 = vld [vmem:[#allocation2 + $0xe9] sm:$0xff]
  %v4182 = vld [vmem:[#allocation2 + $0xf1] sm:$0xff]
  %v4183 = vld [vmem:[#allocation2 + $0xf9] sm:$0xff]
  %v4184 = vld [vmem:[#allocation2 + $0x101] sm:$0xff]
  %v4185 = vld [vmem:[#allocation2 + $0x109] sm:$0xff]
  %v4186 = vld [vmem:[#allocation2 + $0x111] sm:$0xff]
  %v4187 = vld [vmem:[#allocation2 + $0x119] sm:$0xff]
  %s4188 = scalar_lea.vmem %s3, 16
  %v4189 = vld [vmem:[%s4188] sm:$0xff]
  %v4190 = vld [vmem:[%s4188 + $0x8] sm:$0xff]
  %v4192 = vsel %vm3852, %v4152, 0
  %v4195 = vsel %vm3852, %v4153, 0
  %v4198 = vsel %vm3852, %v4154, 0
  %v4201 = vsel %vm3852, %v4155, 0
  %v4204 = vsel %vm3852, %v4156, 0
  %v4207 = vsel %vm3852, %v4157, 0
  %v4210 = vsel %vm3852, %v4158, 0
  %v4213 = vsel %vm3852, %v4159, 0
  %v4216 = vsel %vm3852, %v4160, 0
  %v4219 = vsel %vm3852, %v4161, 0
  %v4222 = vsel %vm3852, %v4162, 0
  %v4225 = vsel %vm3852, %v4163, 0
  %v4228 = vsel %vm3852, %v4164, 0
  %v4231 = vsel %vm3852, %v4165, 0
  %v4234 = vsel %vm3852, %v4166, 0
  %v4237 = vsel %vm3852, %v4167, 0
  %v4240 = vsel %vm3852, %v4168, 0
  %v4243 = vsel %vm3852, %v4169, 0
  %v4246 = vsel %vm3852, %v4170, 0
  %v4249 = vsel %vm3852, %v4171, 0
  %v4252 = vsel %vm3852, %v4172, 0
  %v4255 = vsel %vm3852, %v4173, 0
  %v4258 = vsel %vm3852, %v4174, 0
  %v4261 = vsel %vm3852, %v4175, 0
  %v4264 = vsel %vm3852, %v4176, 0
  %v4267 = vsel %vm3852, %v4177, 0
  %v4270 = vsel %vm3852, %v4178, 0
  %v4273 = vsel %vm3852, %v4179, 0
  %v4276 = vsel %vm3852, %v4180, 0
  %v4279 = vsel %vm3852, %v4181, 0
  %v4282 = vsel %vm3852, %v4182, 0
  %v4285 = vsel %vm3852, %v4183, 0
  %v4288 = vsel %vm3852, %v4184, 0
  %v4291 = vsel %vm3852, %v4185, 0
  %v4294 = vsel %vm3852, %v4186, 0
  %v4297 = vsel %vm3852, %v4187, 0
  %4299 = vmatprep.subr.mxu0 0.0
  %4300 = vmatpush1.msra.mxu0 %v4189
  %4301 = vmatprep.subr.mxu0 0.0
  %4302 = vmatpush1.msra.mxu0 %v4190
  %4303 = vmatprep.subr.mxu0 0.0
  %4304 = vmatpush1.msra.mxu0 0.0
  %4305 = vmatprep.subr.mxu0 0.0
  %4306 = vmatpush1.msra.mxu0 0.0
  %4307 = vmatprep.subr.mxu0 0.0
  %4308 = vmatpush1.msra.mxu0 0.0
  %4309 = vmatprep.subr.mxu0 0.0
  %4310 = vmatpush1.msra.mxu0 0.0
  %4311 = vmatprep.subr.mxu0 0.0
  %4312 = vmatpush1.msra.mxu0 0.0
  %4313 = vmatprep.subr.mxu0 0.0
  %4314 = vmatpush1.msra.mxu0 0.0
  %4315 = vmatprep.subr.mxu0 0.0
  %4316 = vmatpush1.msra.mxu0 0.0
  %4317 = vmatprep.subr.mxu0 0.0
  %4318 = vmatpush1.msra.mxu0 0.0
  %4319 = vmatprep.subr.mxu0 0.0
  %4320 = vmatpush1.msra.mxu0 0.0
  %4321 = vmatprep.subr.mxu0 0.0
  %4322 = vmatpush1.msra.mxu0 0.0
  %4323 = vmatprep.subr.mxu0 0.0
  %4324 = vmatpush1.msra.mxu0 0.0
  %4325 = vmatprep.subr.mxu0 0.0
  %4326 = vmatpush1.msra.mxu0 0.0
  %4327 = vmatprep.subr.mxu0 0.0
  %4328 = vmatpush1.msra.mxu0 0.0
  %4329 = vmatprep.subr.mxu0 0.0
  %4330 = vmatpush1.msra.mxu0 0.0
  %4331 = vmatprep.subr.mxu0 0.0
  %4332 = vmatpush1.msra.mxu0 0.0
  %4333 = vmatprep.subr.mxu0 0.0
  %4334 = vmatpush1.msra.mxu0 0.0
  %4335 = vmatprep.subr.mxu0 0.0
  %4336 = vmatpush1.msra.mxu0 0.0
  %4337 = vmatprep.subr.mxu0 0.0
  %4338 = vmatpush1.msra.mxu0 0.0
  %4339 = vmatprep.subr.mxu0 0.0
  %4340 = vmatpush1.msra.mxu0 0.0
  %4341 = vmatprep.subr.mxu0 0.0
  %4342 = vmatpush1.msra.mxu0 0.0
  %4343 = vmatprep.subr.mxu0 0.0
  %4344 = vmatpush1.msra.mxu0 0.0
  %4345 = vmatprep.subr.mxu0 0.0
  %4346 = vmatpush1.msra.mxu0 0.0
  %4347 = vmatprep.subr.mxu0 0.0
  %4348 = vmatpush1.msra.mxu0 0.0
  %4349 = vmatprep.subr.mxu0 0.0
  %4350 = vmatpush1.msra.mxu0 0.0
  %4351 = vmatprep.subr.mxu0 0.0
  %4352 = vmatpush1.msra.mxu0 0.0
  %4353 = vmatprep.subr.mxu0 0.0
  %4354 = vmatpush1.msra.mxu0 0.0
  %4355 = vmatprep.subr.mxu0 0.0
  %4356 = vmatpush1.msra.mxu0 0.0
  %4357 = vmatprep.subr.mxu0 0.0
  %4358 = vmatpush1.msra.mxu0 0.0
  %4359 = vmatprep.subr.mxu0 0.0
  %4360 = vmatpush1.msra.mxu0 0.0
  %4361 = vmatprep.subr.mxu0 0.0
  %4362 = vmatpush1.msra.mxu0 0.0
  %4363 = vmatprep.mubr.f32.mxu0 0.0
  %4364 = vmatmul.mubr.f32.gmra.mrb[0].mxu0 %v4192
  %v4365 = vpop.f32.mrb[0].mxu0
  %v4366 = vadd.f32 0.0, %v4365
  %v4367 = vpop.f32.mrb[0].mxu0
  %4368 = vmatprep.mubr.f32.mxu0 0.0
  %4369 = vmatmul.mubr.f32.gmra.mrb[0].mxu0 %v4195
  %v4370 = vpop.f32.mrb[0].mxu0
  %v4371 = vadd.f32 0.0, %v4370
  %v4372 = vpop.f32.mrb[0].mxu0
  %4373 = vmatprep.mubr.f32.mxu0 0.0
  %4374 = vmatmul.mubr.f32.gmra.mrb[0].mxu0 %v4198
  %v4375 = vpop.f32.mrb[0].mxu0
  %v4376 = vadd.f32 0.0, %v4375
  %v4377 = vpop.f32.mrb[0].mxu0
  %4378 = vmatprep.mubr.f32.mxu0 0.0
  %4379 = vmatmul.mubr.f32.gmra.mrb[0].mxu0 %v4201
  %v4380 = vpop.f32.mrb[0].mxu0
  %v4381 = vadd.f32 0.0, %v4380
  %v4382 = vpop.f32.mrb[0].mxu0
  %4383 = vmatprep.mubr.f32.mxu0 0.0
  %4384 = vmatmul.mubr.f32.gmra.mrb[0].mxu0 %v4204
  %v4385 = vpop.f32.mrb[0].mxu0
  %v4386 = vadd.f32 0.0, %v4385
  %v4387 = vpop.f32.mrb[0].mxu0
  %4388 = vmatprep.mubr.f32.mxu0 0.0
  %4389 = vmatmul.mubr.f32.gmra.mrb[0].mxu0 %v4207
  %v4390 = vpop.f32.mrb[0].mxu0
  %v4391 = vadd.f32 0.0, %v4390
  %v4392 = vpop.f32.mrb[0].mxu0
  %4393 = vmatprep.mubr.f32.mxu0 0.0
  %4394 = vmatmul.mubr.f32.gmra.mrb[0].mxu0 %v4210
  %v4395 = vpop.f32.mrb[0].mxu0
  %v4396 = vadd.f32 0.0, %v4395
  %v4397 = vpop.f32.mrb[0].mxu0
  %4398 = vmatprep.mubr.f32.mxu0 0.0
  %4399 = vmatmul.mubr.f32.gmra.mrb[0].mxu0 %v4213
  %v4400 = vpop.f32.mrb[0].mxu0
  %v4401 = vadd.f32 0.0, %v4400
  %v4402 = vpop.f32.mrb[0].mxu0
  %4403 = vmatprep.mubr.f32.mxu0 0.0
  %4404 = vmatmul.mubr.f32.gmra.mrb[0].mxu0 %v4216
  %v4405 = vpop.f32.mrb[0].mxu0
  %v4406 = vadd.f32 0.0, %v4405
  %v4407 = vpop.f32.mrb[0].mxu0
  %4408 = vmatprep.mubr.f32.mxu0 0.0
  %4409 = vmatmul.mubr.f32.gmra.mrb[0].mxu0 %v4219
  %v4410 = vpop.f32.mrb[0].mxu0
  %v4411 = vadd.f32 0.0, %v4410
  %v4412 = vpop.f32.mrb[0].mxu0
  %4413 = vmatprep.mubr.f32.mxu0 0.0
  %4414 = vmatmul.mubr.f32.gmra.mrb[0].mxu0 %v4222
  %v4415 = vpop.f32.mrb[0].mxu0
  %v4416 = vadd.f32 0.0, %v4415
  %v4417 = vpop.f32.mrb[0].mxu0
  %4418 = vmatprep.mubr.f32.mxu0 0.0
  %4419 = vmatmul.mubr.f32.gmra.mrb[0].mxu0 %v4225
  %v4420 = vpop.f32.mrb[0].mxu0
  %v4421 = vadd.f32 0.0, %v4420
  %v4422 = vpop.f32.mrb[0].mxu0
  %4423 = vmatprep.mubr.f32.mxu0 0.0
  %4424 = vmatmul.mubr.f32.gmra.mrb[0].mxu0 %v4228
  %v4425 = vpop.f32.mrb[0].mxu0
  %v4426 = vadd.f32 0.0, %v4425
  %v4427 = vpop.f32.mrb[0].mxu0
  %4428 = vmatprep.mubr.f32.mxu0 0.0
  %4429 = vmatmul.mubr.f32.gmra.mrb[0].mxu0 %v4231
  %v4430 = vpop.f32.mrb[0].mxu0
  %v4431 = vadd.f32 0.0, %v4430
  %v4432 = vpop.f32.mrb[0].mxu0
  %4433 = vmatprep.mubr.f32.mxu0 0.0
  %4434 = vmatmul.mubr.f32.gmra.mrb[0].mxu0 %v4234
  %v4435 = vpop.f32.mrb[0].mxu0
  %v4436 = vadd.f32 0.0, %v4435
  %v4437 = vpop.f32.mrb[0].mxu0
  %4438 = vmatprep.mubr.f32.mxu0 0.0
  %4439 = vmatmul.mubr.f32.gmra.mrb[0].mxu0 %v4237
  %v4440 = vpop.f32.mrb[0].mxu0
  %v4441 = vadd.f32 0.0, %v4440
  %v4442 = vpop.f32.mrb[0].mxu0
  %4443 = vmatprep.mubr.f32.mxu0 0.0
  %4444 = vmatmul.mubr.f32.gmra.mrb[0].mxu0 %v4240
  %v4445 = vpop.f32.mrb[0].mxu0
  %v4446 = vadd.f32 0.0, %v4445
  %v4447 = vpop.f32.mrb[0].mxu0
  %4448 = vmatprep.mubr.f32.mxu0 0.0
  %4449 = vmatmul.mubr.f32.gmra.mrb[0].mxu0 %v4243
  %v4450 = vpop.f32.mrb[0].mxu0
  %v4451 = vadd.f32 0.0, %v4450
  %v4452 = vpop.f32.mrb[0].mxu0
  %4453 = vmatprep.mubr.f32.mxu0 0.0
  %4454 = vmatmul.mubr.f32.gmra.mrb[0].mxu0 %v4246
  %v4455 = vpop.f32.mrb[0].mxu0
  %v4456 = vadd.f32 0.0, %v4455
  %v4457 = vpop.f32.mrb[0].mxu0
  %4458 = vmatprep.mubr.f32.mxu0 0.0
  %4459 = vmatmul.mubr.f32.gmra.mrb[0].mxu0 %v4249
  %v4460 = vpop.f32.mrb[0].mxu0
  %v4461 = vadd.f32 0.0, %v4460
  %v4462 = vpop.f32.mrb[0].mxu0
  %4463 = vmatprep.mubr.f32.mxu0 0.0
  %4464 = vmatmul.mubr.f32.gmra.mrb[0].mxu0 %v4252
  %v4465 = vpop.f32.mrb[0].mxu0
  %v4466 = vadd.f32 0.0, %v4465
  %v4467 = vpop.f32.mrb[0].mxu0
  %4468 = vmatprep.mubr.f32.mxu0 0.0
  %4469 = vmatmul.mubr.f32.gmra.mrb[0].mxu0 %v4255
  %v4470 = vpop.f32.mrb[0].mxu0
  %v4471 = vadd.f32 0.0, %v4470
  %v4472 = vpop.f32.mrb[0].mxu0
  %4473 = vmatprep.mubr.f32.mxu0 0.0
  %4474 = vmatmul.mubr.f32.gmra.mrb[0].mxu0 %v4258
  %v4475 = vpop.f32.mrb[0].mxu0
  %v4476 = vadd.f32 0.0, %v4475
  %v4477 = vpop.f32.mrb[0].mxu0
  %4478 = vmatprep.mubr.f32.mxu0 0.0
  %4479 = vmatmul.mubr.f32.gmra.mrb[0].mxu0 %v4261
  %v4480 = vpop.f32.mrb[0].mxu0
  %v4481 = vadd.f32 0.0, %v4480
  %v4482 = vpop.f32.mrb[0].mxu0
  %4483 = vmatprep.mubr.f32.mxu0 0.0
  %4484 = vmatmul.mubr.f32.gmra.mrb[0].mxu0 %v4264
  %v4485 = vpop.f32.mrb[0].mxu0
  %v4486 = vadd.f32 0.0, %v4485
  %v4487 = vpop.f32.mrb[0].mxu0
  %4488 = vmatprep.mubr.f32.mxu0 0.0
  %4489 = vmatmul.mubr.f32.gmra.mrb[0].mxu0 %v4267
  %v4490 = vpop.f32.mrb[0].mxu0
  %v4491 = vadd.f32 0.0, %v4490
  %v4492 = vpop.f32.mrb[0].mxu0
  %4493 = vmatprep.mubr.f32.mxu0 0.0
  %4494 = vmatmul.mubr.f32.gmra.mrb[0].mxu0 %v4270
  %v4495 = vpop.f32.mrb[0].mxu0
  %v4496 = vadd.f32 0.0, %v4495
  %v4497 = vpop.f32.mrb[0].mxu0
  %4498 = vmatprep.mubr.f32.mxu0 0.0
  %4499 = vmatmul.mubr.f32.gmra.mrb[0].mxu0 %v4273
  %v4500 = vpop.f32.mrb[0].mxu0
  %v4501 = vadd.f32 0.0, %v4500
  %v4502 = vpop.f32.mrb[0].mxu0
  %4503 = vmatprep.mubr.f32.mxu0 0.0
  %4504 = vmatmul.mubr.f32.gmra.mrb[0].mxu0 %v4276
  %v4505 = vpop.f32.mrb[0].mxu0
  %v4506 = vadd.f32 0.0, %v4505
  %v4507 = vpop.f32.mrb[0].mxu0
  %4508 = vmatprep.mubr.f32.mxu0 0.0
  %4509 = vmatmul.mubr.f32.gmra.mrb[0].mxu0 %v4279
  %v4510 = vpop.f32.mrb[0].mxu0
  %v4511 = vadd.f32 0.0, %v4510
  %v4512 = vpop.f32.mrb[0].mxu0
  %4513 = vmatprep.mubr.f32.mxu0 0.0
  %4514 = vmatmul.mubr.f32.gmra.mrb[0].mxu0 %v4282
  %v4515 = vpop.f32.mrb[0].mxu0
  %v4516 = vadd.f32 0.0, %v4515
  %v4517 = vpop.f32.mrb[0].mxu0
  %4518 = vmatprep.mubr.f32.mxu0 0.0
  %4519 = vmatmul.mubr.f32.gmra.mrb[0].mxu0 %v4285
  %v4520 = vpop.f32.mrb[0].mxu0
  %v4521 = vadd.f32 0.0, %v4520
  %v4522 = vpop.f32.mrb[0].mxu0
  %4523 = vmatprep.mubr.f32.mxu0 0.0
  %4524 = vmatmul.mubr.f32.gmra.mrb[0].mxu0 %v4288
  %v4525 = vpop.f32.mrb[0].mxu0
  %v4526 = vadd.f32 0.0, %v4525
  %v4527 = vpop.f32.mrb[0].mxu0
  %4528 = vmatprep.mubr.f32.mxu0 0.0
  %4529 = vmatmul.mubr.f32.gmra.mrb[0].mxu0 %v4291
  %v4530 = vpop.f32.mrb[0].mxu0
  %v4531 = vadd.f32 0.0, %v4530
  %v4532 = vpop.f32.mrb[0].mxu0
  %4533 = vmatprep.mubr.f32.mxu0 0.0
  %4534 = vmatmul.mubr.f32.gmra.mrb[0].mxu0 %v4294
  %v4535 = vpop.f32.mrb[0].mxu0
  %v4536 = vadd.f32 0.0, %v4535
  %v4537 = vpop.f32.mrb[0].mxu0
  %4538 = vmatprep.mubr.f32.mxu0 0.0
  %4539 = vmatmul.mubr.f32.gmra.mrb[0].mxu0 %v4297
  %v4540 = vpop.f32.mrb[0].mxu0
  %v4541 = vadd.f32 0.0, %v4540
  %v4542 = vpop.f32.mrb[0].mxu0
  %4543 = vdwg.mxu0
  %v4545 = vsel %vm3852, %v4114, 0
  %v4548 = vsel %vm3852, %v4115, 0
  %v4551 = vsel %vm3852, %v4116, 0
  %v4554 = vsel %vm3852, %v4117, 0
  %v4557 = vsel %vm3852, %v4118, 0
  %v4560 = vsel %vm3852, %v4119, 0
  %v4563 = vsel %vm3852, %v4120, 0
  %v4566 = vsel %vm3852, %v4121, 0
  %v4569 = vsel %vm3852, %v4122, 0
  %v4572 = vsel %vm3852, %v4123, 0
  %v4575 = vsel %vm3852, %v4124, 0
  %v4578 = vsel %vm3852, %v4125, 0
  %v4581 = vsel %vm3852, %v4126, 0
  %v4584 = vsel %vm3852, %v4127, 0
  %v4587 = vsel %vm3852, %v4128, 0
  %v4590 = vsel %vm3852, %v4129, 0
  %v4593 = vsel %vm3852, %v4130, 0
  %v4596 = vsel %vm3852, %v4131, 0
  %v4599 = vsel %vm3852, %v4132, 0
  %v4602 = vsel %vm3852, %v4133, 0
  %v4605 = vsel %vm3852, %v4134, 0
  %v4608 = vsel %vm3852, %v4135, 0
  %v4611 = vsel %vm3852, %v4136, 0
  %v4614 = vsel %vm3852, %v4137, 0
  %v4617 = vsel %vm3852, %v4138, 0
  %v4620 = vsel %vm3852, %v4139, 0
  %v4623 = vsel %vm3852, %v4140, 0
  %v4626 = vsel %vm3852, %v4141, 0
  %v4629 = vsel %vm3852, %v4142, 0
  %v4632 = vsel %vm3852, %v4143, 0
  %v4635 = vsel %vm3852, %v4144, 0
  %v4638 = vsel %vm3852, %v4145, 0
  %v4641 = vsel %vm3852, %v4146, 0
  %v4644 = vsel %vm3852, %v4147, 0
  %v4647 = vsel %vm3852, %v4148, 0
  %v4650 = vsel %vm3852, %v4149, 0
  %4652 = vmatprep.subr.mxu0 0.0
  %4653 = vmatpush1.msra.mxu0 %v4150
  %4654 = vmatprep.subr.mxu0 0.0
  %4655 = vmatpush1.msra.mxu0 %v4151
  %4656 = vmatprep.subr.mxu0 0.0
  %4657 = vmatpush1.msra.mxu0 0.0
  %4658 = vmatprep.subr.mxu0 0.0
  %4659 = vmatpush1.msra.mxu0 0.0
  %4660 = vmatprep.subr.mxu0 0.0
  %4661 = vmatpush1.msra.mxu0 0.0
  %4662 = vmatprep.subr.mxu0 0.0
  %4663 = vmatpush1.msra.mxu0 0.0
  %4664 = vmatprep.subr.mxu0 0.0
  %4665 = vmatpush1.msra.mxu0 0.0
  %4666 = vmatprep.subr.mxu0 0.0
  %4667 = vmatpush1.msra.mxu0 0.0
  %4668 = vmatprep.subr.mxu0 0.0
  %4669 = vmatpush1.msra.mxu0 0.0
  %4670 = vmatprep.subr.mxu0 0.0
  %4671 = vmatpush1.msra.mxu0 0.0
  %4672 = vmatprep.subr.mxu0 0.0
  %4673 = vmatpush1.msra.mxu0 0.0
  %4674 = vmatprep.subr.mxu0 0.0
  %4675 = vmatpush1.msra.mxu0 0.0
  %4676 = vmatprep.subr.mxu0 0.0
  %4677 = vmatpush1.msra.mxu0 0.0
  %4678 = vmatprep.subr.mxu0 0.0
  %4679 = vmatpush1.msra.mxu0 0.0
  %4680 = vmatprep.subr.mxu0 0.0
  %4681 = vmatpush1.msra.mxu0 0.0
  %4682 = vmatprep.subr.mxu0 0.0
  %4683 = vmatpush1.msra.mxu0 0.0
  %4684 = vmatprep.subr.mxu0 0.0
  %4685 = vmatpush1.msra.mxu0 0.0
  %4686 = vmatprep.subr.mxu0 0.0
  %4687 = vmatpush1.msra.mxu0 0.0
  %4688 = vmatprep.subr.mxu0 0.0
  %4689 = vmatpush1.msra.mxu0 0.0
  %4690 = vmatprep.subr.mxu0 0.0
  %4691 = vmatpush1.msra.mxu0 0.0
  %4692 = vmatprep.subr.mxu0 0.0
  %4693 = vmatpush1.msra.mxu0 0.0
  %4694 = vmatprep.subr.mxu0 0.0
  %4695 = vmatpush1.msra.mxu0 0.0
  %4696 = vmatprep.subr.mxu0 0.0
  %4697 = vmatpush1.msra.mxu0 0.0
  %4698 = vmatprep.subr.mxu0 0.0
  %4699 = vmatpush1.msra.mxu0 0.0
  %4700 = vmatprep.subr.mxu0 0.0
  %4701 = vmatpush1.msra.mxu0 0.0
  %4702 = vmatprep.subr.mxu0 0.0
  %4703 = vmatpush1.msra.mxu0 0.0
  %4704 = vmatprep.subr.mxu0 0.0
  %4705 = vmatpush1.msra.mxu0 0.0
  %4706 = vmatprep.subr.mxu0 0.0
  %4707 = vmatpush1.msra.mxu0 0.0
  %4708 = vmatprep.subr.mxu0 0.0
  %4709 = vmatpush1.msra.mxu0 0.0
  %4710 = vmatprep.subr.mxu0 0.0
  %4711 = vmatpush1.msra.mxu0 0.0
  %4712 = vmatprep.subr.mxu0 0.0
  %4713 = vmatpush1.msra.mxu0 0.0
  %4714 = vmatprep.subr.mxu0 0.0
  %4715 = vmatpush1.msra.mxu0 0.0
  %4716 = vmatprep.mubr.f32.mxu0 0.0
  %4717 = vmatmul.mubr.f32.gmra.mrb[0].mxu0 %v4545
  %v4718 = vpop.f32.mrb[0].mxu0
  %v4719 = vadd.f32 %v4366, %v4718
  %v4720 = vpop.f32.mrb[0].mxu0
  %4721 = vmatprep.mubr.f32.mxu0 0.0
  %4722 = vmatmul.mubr.f32.gmra.mrb[0].mxu0 %v4548
  %v4723 = vpop.f32.mrb[0].mxu0
  %v4724 = vadd.f32 %v4371, %v4723
  %v4725 = vpop.f32.mrb[0].mxu0
  %4726 = vmatprep.mubr.f32.mxu0 0.0
  %4727 = vmatmul.mubr.f32.gmra.mrb[0].mxu0 %v4551
  %v4728 = vpop.f32.mrb[0].mxu0
  %v4729 = vadd.f32 %v4376, %v4728
  %v4730 = vpop.f32.mrb[0].mxu0
  %4731 = vmatprep.mubr.f32.mxu0 0.0
  %4732 = vmatmul.mubr.f32.gmra.mrb[0].mxu0 %v4554
  %v4733 = vpop.f32.mrb[0].mxu0
  %v4734 = vadd.f32 %v4381, %v4733
  %v4735 = vpop.f32.mrb[0].mxu0
  %4736 = vmatprep.mubr.f32.mxu0 0.0
  %4737 = vmatmul.mubr.f32.gmra.mrb[0].mxu0 %v4557
  %v4738 = vpop.f32.mrb[0].mxu0
  %v4739 = vadd.f32 %v4386, %v4738
  %v4740 = vpop.f32.mrb[0].mxu0
  %4741 = vmatprep.mubr.f32.mxu0 0.0
  %4742 = vmatmul.mubr.f32.gmra.mrb[0].mxu0 %v4560
  %v4743 = vpop.f32.mrb[0].mxu0
  %v4744 = vadd.f32 %v4391, %v4743
  %v4745 = vpop.f32.mrb[0].mxu0
  %4746 = vmatprep.mubr.f32.mxu0 0.0
  %4747 = vmatmul.mubr.f32.gmra.mrb[0].mxu0 %v4563
  %v4748 = vpop.f32.mrb[0].mxu0
  %v4749 = vadd.f32 %v4396, %v4748
  %v4750 = vpop.f32.mrb[0].mxu0
  %4751 = vmatprep.mubr.f32.mxu0 0.0
  %4752 = vmatmul.mubr.f32.gmra.mrb[0].mxu0 %v4566
  %v4753 = vpop.f32.mrb[0].mxu0
  %v4754 = vadd.f32 %v4401, %v4753
  %v4755 = vpop.f32.mrb[0].mxu0
  %4756 = vmatprep.mubr.f32.mxu0 0.0
  %4757 = vmatmul.mubr.f32.gmra.mrb[0].mxu0 %v4569
  %v4758 = vpop.f32.mrb[0].mxu0
  %v4759 = vadd.f32 %v4406, %v4758
  %v4760 = vpop.f32.mrb[0].mxu0
  %4761 = vmatprep.mubr.f32.mxu0 0.0
  %4762 = vmatmul.mubr.f32.gmra.mrb[0].mxu0 %v4572
  %v4763 = vpop.f32.mrb[0].mxu0
  %v4764 = vadd.f32 %v4411, %v4763
  %v4765 = vpop.f32.mrb[0].mxu0
  %4766 = vmatprep.mubr.f32.mxu0 0.0
  %4767 = vmatmul.mubr.f32.gmra.mrb[0].mxu0 %v4575
  %v4768 = vpop.f32.mrb[0].mxu0
  %v4769 = vadd.f32 %v4416, %v4768
  %v4770 = vpop.f32.mrb[0].mxu0
  %4771 = vmatprep.mubr.f32.mxu0 0.0
  %4772 = vmatmul.mubr.f32.gmra.mrb[0].mxu0 %v4578
  %v4773 = vpop.f32.mrb[0].mxu0
  %v4774 = vadd.f32 %v4421, %v4773
  %v4775 = vpop.f32.mrb[0].mxu0
  %4776 = vmatprep.mubr.f32.mxu0 0.0
  %4777 = vmatmul.mubr.f32.gmra.mrb[0].mxu0 %v4581
  %v4778 = vpop.f32.mrb[0].mxu0
  %v4779 = vadd.f32 %v4426, %v4778
  %v4780 = vpop.f32.mrb[0].mxu0
  %4781 = vmatprep.mubr.f32.mxu0 0.0
  %4782 = vmatmul.mubr.f32.gmra.mrb[0].mxu0 %v4584
  %v4783 = vpop.f32.mrb[0].mxu0
  %v4784 = vadd.f32 %v4431, %v4783
  %v4785 = vpop.f32.mrb[0].mxu0
  %4786 = vmatprep.mubr.f32.mxu0 0.0
  %4787 = vmatmul.mubr.f32.gmra.mrb[0].mxu0 %v4587
  %v4788 = vpop.f32.mrb[0].mxu0
  %v4789 = vadd.f32 %v4436, %v4788
  %v4790 = vpop.f32.mrb[0].mxu0
  %4791 = vmatprep.mubr.f32.mxu0 0.0
  %4792 = vmatmul.mubr.f32.gmra.mrb[0].mxu0 %v4590
  %v4793 = vpop.f32.mrb[0].mxu0
  %v4794 = vadd.f32 %v4441, %v4793
  %v4795 = vpop.f32.mrb[0].mxu0
  %4796 = vmatprep.mubr.f32.mxu0 0.0
  %4797 = vmatmul.mubr.f32.gmra.mrb[0].mxu0 %v4593
  %v4798 = vpop.f32.mrb[0].mxu0
  %v4799 = vadd.f32 %v4446, %v4798
  %v4800 = vpop.f32.mrb[0].mxu0
  %4801 = vmatprep.mubr.f32.mxu0 0.0
  %4802 = vmatmul.mubr.f32.gmra.mrb[0].mxu0 %v4596
  %v4803 = vpop.f32.mrb[0].mxu0
  %v4804 = vadd.f32 %v4451, %v4803
  %v4805 = vpop.f32.mrb[0].mxu0
  %4806 = vmatprep.mubr.f32.mxu0 0.0
  %4807 = vmatmul.mubr.f32.gmra.mrb[0].mxu0 %v4599
  %v4808 = vpop.f32.mrb[0].mxu0
  %v4809 = vadd.f32 %v4456, %v4808
  %v4810 = vpop.f32.mrb[0].mxu0
  %4811 = vmatprep.mubr.f32.mxu0 0.0
  %4812 = vmatmul.mubr.f32.gmra.mrb[0].mxu0 %v4602
  %v4813 = vpop.f32.mrb[0].mxu0
  %v4814 = vadd.f32 %v4461, %v4813
  %v4815 = vpop.f32.mrb[0].mxu0
  %4816 = vmatprep.mubr.f32.mxu0 0.0
  %4817 = vmatmul.mubr.f32.gmra.mrb[0].mxu0 %v4605
  %v4818 = vpop.f32.mrb[0].mxu0
  %v4819 = vadd.f32 %v4466, %v4818
  %v4820 = vpop.f32.mrb[0].mxu0
  %4821 = vmatprep.mubr.f32.mxu0 0.0
  %4822 = vmatmul.mubr.f32.gmra.mrb[0].mxu0 %v4608
  %v4823 = vpop.f32.mrb[0].mxu0
  %v4824 = vadd.f32 %v4471, %v4823
  %v4825 = vpop.f32.mrb[0].mxu0
  %4826 = vmatprep.mubr.f32.mxu0 0.0
  %4827 = vmatmul.mubr.f32.gmra.mrb[0].mxu0 %v4611
  %v4828 = vpop.f32.mrb[0].mxu0
  %v4829 = vadd.f32 %v4476, %v4828
  %v4830 = vpop.f32.mrb[0].mxu0
  %4831 = vmatprep.mubr.f32.mxu0 0.0
  %4832 = vmatmul.mubr.f32.gmra.mrb[0].mxu0 %v4614
  %v4833 = vpop.f32.mrb[0].mxu0
  %v4834 = vadd.f32 %v4481, %v4833
  %v4835 = vpop.f32.mrb[0].mxu0
  %4836 = vmatprep.mubr.f32.mxu0 0.0
  %4837 = vmatmul.mubr.f32.gmra.mrb[0].mxu0 %v4617
  %v4838 = vpop.f32.mrb[0].mxu0
  %v4839 = vadd.f32 %v4486, %v4838
  %v4840 = vpop.f32.mrb[0].mxu0
  %4841 = vmatprep.mubr.f32.mxu0 0.0
  %4842 = vmatmul.mubr.f32.gmra.mrb[0].mxu0 %v4620
  %v4843 = vpop.f32.mrb[0].mxu0
  %v4844 = vadd.f32 %v4491, %v4843
  %v4845 = vpop.f32.mrb[0].mxu0
  %4846 = vmatprep.mubr.f32.mxu0 0.0
  %4847 = vmatmul.mubr.f32.gmra.mrb[0].mxu0 %v4623
  %v4848 = vpop.f32.mrb[0].mxu0
  %v4849 = vadd.f32 %v4496, %v4848
  %v4850 = vpop.f32.mrb[0].mxu0
  %4851 = vmatprep.mubr.f32.mxu0 0.0
  %4852 = vmatmul.mubr.f32.gmra.mrb[0].mxu0 %v4626
  %v4853 = vpop.f32.mrb[0].mxu0
  %v4854 = vadd.f32 %v4501, %v4853
  %v4855 = vpop.f32.mrb[0].mxu0
  %4856 = vmatprep.mubr.f32.mxu0 0.0
  %4857 = vmatmul.mubr.f32.gmra.mrb[0].mxu0 %v4629
  %v4858 = vpop.f32.mrb[0].mxu0
  %v4859 = vadd.f32 %v4506, %v4858
  %v4860 = vpop.f32.mrb[0].mxu0
  %4861 = vmatprep.mubr.f32.mxu0 0.0
  %4862 = vmatmul.mubr.f32.gmra.mrb[0].mxu0 %v4632
  %v4863 = vpop.f32.mrb[0].mxu0
  %v4864 = vadd.f32 %v4511, %v4863
  %v4865 = vpop.f32.mrb[0].mxu0
  %4866 = vmatprep.mubr.f32.mxu0 0.0
  %4867 = vmatmul.mubr.f32.gmra.mrb[0].mxu0 %v4635
  %v4868 = vpop.f32.mrb[0].mxu0
  %v4869 = vadd.f32 %v4516, %v4868
  %v4870 = vpop.f32.mrb[0].mxu0
  %4871 = vmatprep.mubr.f32.mxu0 0.0
  %4872 = vmatmul.mubr.f32.gmra.mrb[0].mxu0 %v4638
  %v4873 = vpop.f32.mrb[0].mxu0
  %v4874 = vadd.f32 %v4521, %v4873
  %v4875 = vpop.f32.mrb[0].mxu0
  %4876 = vmatprep.mubr.f32.mxu0 0.0
  %4877 = vmatmul.mubr.f32.gmra.mrb[0].mxu0 %v4641
  %v4878 = vpop.f32.mrb[0].mxu0
  %v4879 = vadd.f32 %v4526, %v4878
  %v4880 = vpop.f32.mrb[0].mxu0
  %4881 = vmatprep.mubr.f32.mxu0 0.0
  %4882 = vmatmul.mubr.f32.gmra.mrb[0].mxu0 %v4644
  %v4883 = vpop.f32.mrb[0].mxu0
  %v4884 = vadd.f32 %v4531, %v4883
  %v4885 = vpop.f32.mrb[0].mxu0
  %4886 = vmatprep.mubr.f32.mxu0 0.0
  %4887 = vmatmul.mubr.f32.gmra.mrb[0].mxu0 %v4647
  %v4888 = vpop.f32.mrb[0].mxu0
  %v4889 = vadd.f32 %v4536, %v4888
  %v4890 = vpop.f32.mrb[0].mxu0
  %4891 = vmatprep.mubr.f32.mxu0 0.0
  %4892 = vmatmul.mubr.f32.gmra.mrb[0].mxu0 %v4650
  %v4893 = vpop.f32.mrb[0].mxu0
  %v4894 = vadd.f32 %v4541, %v4893
  %v4895 = vpop.f32.mrb[0].mxu0
  %4896 = vdwg.mxu0
  %v4897 = vld [vmem:[#allocation2 + $0x2] sm:$0xff]
  %v4898 = vld [vmem:[#allocation2 + $0xa] sm:$0xff]
  %v4899 = vld [vmem:[#allocation2 + $0x12] sm:$0xff]
  %v4900 = vld [vmem:[#allocation2 + $0x1a] sm:$0xff]
  %v4901 = vld [vmem:[#allocation2 + $0x22] sm:$0xff]
  %v4902 = vld [vmem:[#allocation2 + $0x2a] sm:$0xff]
  %v4903 = vld [vmem:[#allocation2 + $0x32] sm:$0xff]
  %v4904 = vld [vmem:[#allocation2 + $0x3a] sm:$0xff]
  %v4905 = vld [vmem:[#allocation2 + $0x42] sm:$0xff]
  %v4906 = vld [vmem:[#allocation2 + $0x4a] sm:$0xff]
  %v4907 = vld [vmem:[#allocation2 + $0x52] sm:$0xff]
  %v4908 = vld [vmem:[#allocation2 + $0x5a] sm:$0xff]
  %v4909 = vld [vmem:[#allocation2 + $0x62] sm:$0xff]
  %v4910 = vld [vmem:[#allocation2 + $0x6a] sm:$0xff]
  %v4911 = vld [vmem:[#allocation2 + $0x72] sm:$0xff]
  %v4912 = vld [vmem:[#allocation2 + $0x7a] sm:$0xff]
  %v4913 = vld [vmem:[#allocation2 + $0x82] sm:$0xff]
  %v4914 = vld [vmem:[#allocation2 + $0x8a] sm:$0xff]
  %v4915 = vld [vmem:[#allocation2 + $0x92] sm:$0xff]
  %v4916 = vld [vmem:[#allocation2 + $0x9a] sm:$0xff]
  %v4917 = vld [vmem:[#allocation2 + $0xa2] sm:$0xff]
  %v4918 = vld [vmem:[#allocation2 + $0xaa] sm:$0xff]
  %v4919 = vld [vmem:[#allocation2 + $0xb2] sm:$0xff]
  %v4920 = vld [vmem:[#allocation2 + $0xba] sm:$0xff]
  %v4921 = vld [vmem:[#allocation2 + $0xc2] sm:$0xff]
  %v4922 = vld [vmem:[#allocation2 + $0xca] sm:$0xff]
  %v4923 = vld [vmem:[#allocation2 + $0xd2] sm:$0xff]
  %v4924 = vld [vmem:[#allocation2 + $0xda] sm:$0xff]
  %v4925 = vld [vmem:[#allocation2 + $0xe2] sm:$0xff]
  %v4926 = vld [vmem:[#allocation2 + $0xea] sm:$0xff]
  %v4927 = vld [vmem:[#allocation2 + $0xf2] sm:$0xff]
  %v4928 = vld [vmem:[#allocation2 + $0xfa] sm:$0xff]
  %v4929 = vld [vmem:[#allocation2 + $0x102] sm:$0xff]
  %v4930 = vld [vmem:[#allocation2 + $0x10a] sm:$0xff]
  %v4931 = vld [vmem:[#allocation2 + $0x112] sm:$0xff]
  %v4932 = vld [vmem:[#allocation2 + $0x11a] sm:$0xff]
  %s4933 = scalar_lea.vmem %s3, 32
  %v4934 = vld [vmem:[%s4933] sm:$0xff]
  %v4935 = vld [vmem:[%s4933 + $0x8] sm:$0xff]
  %v4937 = vsel %vm3852, %v4897, 0
  %v4940 = vsel %vm3852, %v4898, 0
  %v4943 = vsel %vm3852, %v4899, 0
  %v4946 = vsel %vm3852, %v4900, 0
  %v4949 = vsel %vm3852, %v4901, 0
  %v4952 = vsel %vm3852, %v4902, 0
  %v4955 = vsel %vm3852, %v4903, 0
  %v4958 = vsel %vm3852, %v4904, 0
  %v4961 = vsel %vm3852, %v4905, 0
  %v4964 = vsel %vm3852, %v4906, 0
  %v4967 = vsel %vm3852, %v4907, 0
  %v4970 = vsel %vm3852, %v4908, 0
  %v4973 = vsel %vm3852, %v4909, 0
  %v4976 = vsel %vm3852, %v4910, 0
  %v4979 = vsel %vm3852, %v4911, 0
  %v4982 = vsel %vm3852, %v4912, 0
  %v4985 = vsel %vm3852, %v4913, 0
  %v4988 = vsel %vm3852, %v4914, 0
  %v4991 = vsel %vm3852, %v4915, 0
  %v4994 = vsel %vm3852, %v4916, 0
  %v4997 = vsel %vm3852, %v4917, 0
  %v5000 = vsel %vm3852, %v4918, 0
  %v5003 = vsel %vm3852, %v4919, 0
  %v5006 = vsel %vm3852, %v4920, 0
  %v5009 = vsel %vm3852, %v4921, 0
  %v5012 = vsel %vm3852, %v4922, 0
  %v5015 = vsel %vm3852, %v4923, 0
  %v5018 = vsel %vm3852, %v4924, 0
  %v5021 = vsel %vm3852, %v4925, 0
  %v5024 = vsel %vm3852, %v4926, 0
  %v5027 = vsel %vm3852, %v4927, 0
  %v5030 = vsel %vm3852, %v4928, 0
  %v5033 = vsel %vm3852, %v4929, 0
  %v5036 = vsel %vm3852, %v4930, 0
  %v5039 = vsel %vm3852, %v4931, 0
  %v5042 = vsel %vm3852, %v4932, 0
  %5044 = vmatprep.subr.mxu0 0.0
  %5045 = vmatpush1.msra.mxu0 %v4934
  %5046 = vmatprep.subr.mxu0 0.0
  %5047 = vmatpush1.msra.mxu0 %v4935
  %5048 = vmatprep.subr.mxu0 0.0
  %5049 = vmatpush1.msra.mxu0 0.0
  %5050 = vmatprep.subr.mxu0 0.0
  %5051 = vmatpush1.msra.mxu0 0.0
  %5052 = vmatprep.subr.mxu0 0.0
  %5053 = vmatpush1.msra.mxu0 0.0
  %5054 = vmatprep.subr.mxu0 0.0
  %5055 = vmatpush1.msra.mxu0 0.0
  %5056 = vmatprep.subr.mxu0 0.0
  %5057 = vmatpush1.msra.mxu0 0.0
  %5058 = vmatprep.subr.mxu0 0.0
  %5059 = vmatpush1.msra.mxu0 0.0
  %5060 = vmatprep.subr.mxu0 0.0
  %5061 = vmatpush1.msra.mxu0 0.0
  %5062 = vmatprep.subr.mxu0 0.0
  %5063 = vmatpush1.msra.mxu0 0.0
  %5064 = vmatprep.subr.mxu0 0.0
  %5065 = vmatpush1.msra.mxu0 0.0
  %5066 = vmatprep.subr.mxu0 0.0
  %5067 = vmatpush1.msra.mxu0 0.0
  %5068 = vmatprep.subr.mxu0 0.0
  %5069 = vmatpush1.msra.mxu0 0.0
  %5070 = vmatprep.subr.mxu0 0.0
  %5071 = vmatpush1.msra.mxu0 0.0
  %5072 = vmatprep.subr.mxu0 0.0
  %5073 = vmatpush1.msra.mxu0 0.0
  %5074 = vmatprep.subr.mxu0 0.0
  %5075 = vmatpush1.msra.mxu0 0.0
  %5076 = vmatprep.subr.mxu0 0.0
  %5077 = vmatpush1.msra.mxu0 0.0
  %5078 = vmatprep.subr.mxu0 0.0
  %5079 = vmatpush1.msra.mxu0 0.0
  %5080 = vmatprep.subr.mxu0 0.0
  %5081 = vmatpush1.msra.mxu0 0.0
  %5082 = vmatprep.subr.mxu0 0.0
  %5083 = vmatpush1.msra.mxu0 0.0
  %5084 = vmatprep.subr.mxu0 0.0
  %5085 = vmatpush1.msra.mxu0 0.0
  %5086 = vmatprep.subr.mxu0 0.0
  %5087 = vmatpush1.msra.mxu0 0.0
  %5088 = vmatprep.subr.mxu0 0.0
  %5089 = vmatpush1.msra.mxu0 0.0
  %5090 = vmatprep.subr.mxu0 0.0
  %5091 = vmatpush1.msra.mxu0 0.0
  %5092 = vmatprep.subr.mxu0 0.0
  %5093 = vmatpush1.msra.mxu0 0.0
  %5094 = vmatprep.subr.mxu0 0.0
  %5095 = vmatpush1.msra.mxu0 0.0
  %5096 = vmatprep.subr.mxu0 0.0
  %5097 = vmatpush1.msra.mxu0 0.0
  %5098 = vmatprep.subr.mxu0 0.0
  %5099 = vmatpush1.msra.mxu0 0.0
  %5100 = vmatprep.subr.mxu0 0.0
  %5101 = vmatpush1.msra.mxu0 0.0
  %5102 = vmatprep.subr.mxu0 0.0
  %5103 = vmatpush1.msra.mxu0 0.0
  %5104 = vmatprep.subr.mxu0 0.0
  %5105 = vmatpush1.msra.mxu0 0.0
  %5106 = vmatprep.subr.mxu0 0.0
  %5107 = vmatpush1.msra.mxu0 0.0
  %5108 = vmatprep.mubr.f32.mxu0 0.0
  %5109 = vmatmul.mubr.f32.gmra.mrb[0].mxu0 %v4937
  %v5110 = vpop.f32.mrb[0].mxu0
  %v5111 = vadd.f32 0.0, %v5110
  %v5112 = vpop.f32.mrb[0].mxu0
  %5113 = vmatprep.mubr.f32.mxu0 0.0
  %5114 = vmatmul.mubr.f32.gmra.mrb[0].mxu0 %v4940
  %v5115 = vpop.f32.mrb[0].mxu0
  %v5116 = vadd.f32 0.0, %v5115
  %v5117 = vpop.f32.mrb[0].mxu0
  %5118 = vmatprep.mubr.f32.mxu0 0.0
  %5119 = vmatmul.mubr.f32.gmra.mrb[0].mxu0 %v4943
  %v5120 = vpop.f32.mrb[0].mxu0
  %v5121 = vadd.f32 0.0, %v5120
  %v5122 = vpop.f32.mrb[0].mxu0
  %5123 = vmatprep.mubr.f32.mxu0 0.0
  %5124 = vmatmul.mubr.f32.gmra.mrb[0].mxu0 %v4946
  %v5125 = vpop.f32.mrb[0].mxu0
  %v5126 = vadd.f32 0.0, %v5125
  %v5127 = vpop.f32.mrb[0].mxu0
  %5128 = vmatprep.mubr.f32.mxu0 0.0
  %5129 = vmatmul.mubr.f32.gmra.mrb[0].mxu0 %v4949
  %v5130 = vpop.f32.mrb[0].mxu0
  %v5131 = vadd.f32 0.0, %v5130
  %v5132 = vpop.f32.mrb[0].mxu0
  %5133 = vmatprep.mubr.f32.mxu0 0.0
  %5134 = vmatmul.mubr.f32.gmra.mrb[0].mxu0 %v4952
  %v5135 = vpop.f32.mrb[0].mxu0
  %v5136 = vadd.f32 0.0, %v5135
  %v5137 = vpop.f32.mrb[0].mxu0
  %5138 = vmatprep.mubr.f32.mxu0 0.0
  %5139 = vmatmul.mubr.f32.gmra.mrb[0].mxu0 %v4955
  %v5140 = vpop.f32.mrb[0].mxu0
  %v5141 = vadd.f32 0.0, %v5140
  %v5142 = vpop.f32.mrb[0].mxu0
  %5143 = vmatprep.mubr.f32.mxu0 0.0
  %5144 = vmatmul.mubr.f32.gmra.mrb[0].mxu0 %v4958
  %v5145 = vpop.f32.mrb[0].mxu0
  %v5146 = vadd.f32 0.0, %v5145
  %v5147 = vpop.f32.mrb[0].mxu0
  %5148 = vmatprep.mubr.f32.mxu0 0.0
  %5149 = vmatmul.mubr.f32.gmra.mrb[0].mxu0 %v4961
  %v5150 = vpop.f32.mrb[0].mxu0
  %v5151 = vadd.f32 0.0, %v5150
  %v5152 = vpop.f32.mrb[0].mxu0
  %5153 = vmatprep.mubr.f32.mxu0 0.0
  %5154 = vmatmul.mubr.f32.gmra.mrb[0].mxu0 %v4964
  %v5155 = vpop.f32.mrb[0].mxu0
  %v5156 = vadd.f32 0.0, %v5155
  %v5157 = vpop.f32.mrb[0].mxu0
  %5158 = vmatprep.mubr.f32.mxu0 0.0
  %5159 = vmatmul.mubr.f32.gmra.mrb[0].mxu0 %v4967
  %v5160 = vpop.f32.mrb[0].mxu0
  %v5161 = vadd.f32 0.0, %v5160
  %v5162 = vpop.f32.mrb[0].mxu0
  %5163 = vmatprep.mubr.f32.mxu0 0.0
  %5164 = vmatmul.mubr.f32.gmra.mrb[0].mxu0 %v4970
  %v5165 = vpop.f32.mrb[0].mxu0
  %v5166 = vadd.f32 0.0, %v5165
  %v5167 = vpop.f32.mrb[0].mxu0
  %5168 = vmatprep.mubr.f32.mxu0 0.0
  %5169 = vmatmul.mubr.f32.gmra.mrb[0].mxu0 %v4973
  %v5170 = vpop.f32.mrb[0].mxu0
  %v5171 = vadd.f32 0.0, %v5170
  %v5172 = vpop.f32.mrb[0].mxu0
  %5173 = vmatprep.mubr.f32.mxu0 0.0
  %5174 = vmatmul.mubr.f32.gmra.mrb[0].mxu0 %v4976
  %v5175 = vpop.f32.mrb[0].mxu0
  %v5176 = vadd.f32 0.0, %v5175
  %v5177 = vpop.f32.mrb[0].mxu0
  %5178 = vmatprep.mubr.f32.mxu0 0.0
  %5179 = vmatmul.mubr.f32.gmra.mrb[0].mxu0 %v4979
  %v5180 = vpop.f32.mrb[0].mxu0
  %v5181 = vadd.f32 0.0, %v5180
  %v5182 = vpop.f32.mrb[0].mxu0
  %5183 = vmatprep.mubr.f32.mxu0 0.0
  %5184 = vmatmul.mubr.f32.gmra.mrb[0].mxu0 %v4982
  %v5185 = vpop.f32.mrb[0].mxu0
  %v5186 = vadd.f32 0.0, %v5185
  %v5187 = vpop.f32.mrb[0].mxu0
  %5188 = vmatprep.mubr.f32.mxu0 0.0
  %5189 = vmatmul.mubr.f32.gmra.mrb[0].mxu0 %v4985
  %v5190 = vpop.f32.mrb[0].mxu0
  %v5191 = vadd.f32 0.0, %v5190
  %v5192 = vpop.f32.mrb[0].mxu0
  %5193 = vmatprep.mubr.f32.mxu0 0.0
  %5194 = vmatmul.mubr.f32.gmra.mrb[0].mxu0 %v4988
  %v5195 = vpop.f32.mrb[0].mxu0
  %v5196 = vadd.f32 0.0, %v5195
  %v5197 = vpop.f32.mrb[0].mxu0
  %5198 = vmatprep.mubr.f32.mxu0 0.0
  %5199 = vmatmul.mubr.f32.gmra.mrb[0].mxu0 %v4991
  %v5200 = vpop.f32.mrb[0].mxu0
  %v5201 = vadd.f32 0.0, %v5200
  %v5202 = vpop.f32.mrb[0].mxu0
  %5203 = vmatprep.mubr.f32.mxu0 0.0
  %5204 = vmatmul.mubr.f32.gmra.mrb[0].mxu0 %v4994
  %v5205 = vpop.f32.mrb[0].mxu0
  %v5206 = vadd.f32 0.0, %v5205
  %v5207 = vpop.f32.mrb[0].mxu0
  %5208 = vmatprep.mubr.f32.mxu0 0.0
  %5209 = vmatmul.mubr.f32.gmra.mrb[0].mxu0 %v4997
  %v5210 = vpop.f32.mrb[0].mxu0
  %v5211 = vadd.f32 0.0, %v5210
  %v5212 = vpop.f32.mrb[0].mxu0
  %5213 = vmatprep.mubr.f32.mxu0 0.0
  %5214 = vmatmul.mubr.f32.gmra.mrb[0].mxu0 %v5000
  %v5215 = vpop.f32.mrb[0].mxu0
  %v5216 = vadd.f32 0.0, %v5215
  %v5217 = vpop.f32.mrb[0].mxu0
  %5218 = vmatprep.mubr.f32.mxu0 0.0
  %5219 = vmatmul.mubr.f32.gmra.mrb[0].mxu0 %v5003
  %v5220 = vpop.f32.mrb[0].mxu0
  %v5221 = vadd.f32 0.0, %v5220
  %v5222 = vpop.f32.mrb[0].mxu0
  %5223 = vmatprep.mubr.f32.mxu0 0.0
  %5224 = vmatmul.mubr.f32.gmra.mrb[0].mxu0 %v5006
  %v5225 = vpop.f32.mrb[0].mxu0
  %v5226 = vadd.f32 0.0, %v5225
  %v5227 = vpop.f32.mrb[0].mxu0
  %5228 = vmatprep.mubr.f32.mxu0 0.0
  %5229 = vmatmul.mubr.f32.gmra.mrb[0].mxu0 %v5009
  %v5230 = vpop.f32.mrb[0].mxu0
  %v5231 = vadd.f32 0.0, %v5230
  %v5232 = vpop.f32.mrb[0].mxu0
  %5233 = vmatprep.mubr.f32.mxu0 0.0
  %5234 = vmatmul.mubr.f32.gmra.mrb[0].mxu0 %v5012
  %v5235 = vpop.f32.mrb[0].mxu0
  %v5236 = vadd.f32 0.0, %v5235
  %v5237 = vpop.f32.mrb[0].mxu0
  %5238 = vmatprep.mubr.f32.mxu0 0.0
  %5239 = vmatmul.mubr.f32.gmra.mrb[0].mxu0 %v5015
  %v5240 = vpop.f32.mrb[0].mxu0
  %v5241 = vadd.f32 0.0, %v5240
  %v5242 = vpop.f32.mrb[0].mxu0
  %5243 = vmatprep.mubr.f32.mxu0 0.0
  %5244 = vmatmul.mubr.f32.gmra.mrb[0].mxu0 %v5018
  %v5245 = vpop.f32.mrb[0].mxu0
  %v5246 = vadd.f32 0.0, %v5245
  %v5247 = vpop.f32.mrb[0].mxu0
  %5248 = vmatprep.mubr.f32.mxu0 0.0
  %5249 = vmatmul.mubr.f32.gmra.mrb[0].mxu0 %v5021
  %v5250 = vpop.f32.mrb[0].mxu0
  %v5251 = vadd.f32 0.0, %v5250
  %v5252 = vpop.f32.mrb[0].mxu0
  %5253 = vmatprep.mubr.f32.mxu0 0.0
  %5254 = vmatmul.mubr.f32.gmra.mrb[0].mxu0 %v5024
  %v5255 = vpop.f32.mrb[0].mxu0
  %v5256 = vadd.f32 0.0, %v5255
  %v5257 = vpop.f32.mrb[0].mxu0
  %5258 = vmatprep.mubr.f32.mxu0 0.0
  %5259 = vmatmul.mubr.f32.gmra.mrb[0].mxu0 %v5027
  %v5260 = vpop.f32.mrb[0].mxu0
  %v5261 = vadd.f32 0.0, %v5260
  %v5262 = vpop.f32.mrb[0].mxu0
  %5263 = vmatprep.mubr.f32.mxu0 0.0
  %5264 = vmatmul.mubr.f32.gmra.mrb[0].mxu0 %v5030
  %v5265 = vpop.f32.mrb[0].mxu0
  %v5266 = vadd.f32 0.0, %v5265
  %v5267 = vpop.f32.mrb[0].mxu0
  %5268 = vmatprep.mubr.f32.mxu0 0.0
  %5269 = vmatmul.mubr.f32.gmra.mrb[0].mxu0 %v5033
  %v5270 = vpop.f32.mrb[0].mxu0
  %v5271 = vadd.f32 0.0, %v5270
  %v5272 = vpop.f32.mrb[0].mxu0
  %5273 = vmatprep.mubr.f32.mxu0 0.0
  %5274 = vmatmul.mubr.f32.gmra.mrb[0].mxu0 %v5036
  %v5275 = vpop.f32.mrb[0].mxu0
  %v5276 = vadd.f32 0.0, %v5275
  %v5277 = vpop.f32.mrb[0].mxu0
  %5278 = vmatprep.mubr.f32.mxu0 0.0
  %5279 = vmatmul.mubr.f32.gmra.mrb[0].mxu0 %v5039
  %v5280 = vpop.f32.mrb[0].mxu0
  %v5281 = vadd.f32 0.0, %v5280
  %v5282 = vpop.f32.mrb[0].mxu0
  %5283 = vmatprep.mubr.f32.mxu0 0.0
  %5284 = vmatmul.mubr.f32.gmra.mrb[0].mxu0 %v5042
  %v5285 = vpop.f32.mrb[0].mxu0
  %v5286 = vadd.f32 0.0, %v5285
  %v5287 = vpop.f32.mrb[0].mxu0
  %5288 = vdwg.mxu0
  %v5289 = vadd.f32 %v4719, %v5111
  %v5290 = vadd.f32 %v4724, %v5116
  %v5291 = vadd.f32 %v4729, %v5121
  %v5292 = vadd.f32 %v4734, %v5126
  %v5293 = vadd.f32 %v4739, %v5131
  %v5294 = vadd.f32 %v4744, %v5136
  %v5295 = vadd.f32 %v4749, %v5141
  %v5296 = vadd.f32 %v4754, %v5146
  %v5297 = vadd.f32 %v4759, %v5151
  %v5298 = vadd.f32 %v4764, %v5156
  %v5299 = vadd.f32 %v4769, %v5161
  %v5300 = vadd.f32 %v4774, %v5166
  %v5301 = vadd.f32 %v4779, %v5171
  %v5302 = vadd.f32 %v4784, %v5176
  %v5303 = vadd.f32 %v4789, %v5181
  %v5304 = vadd.f32 %v4794, %v5186
  %v5305 = vadd.f32 %v4799, %v5191
  %v5306 = vadd.f32 %v4804, %v5196
  %v5307 = vadd.f32 %v4809, %v5201
  %v5308 = vadd.f32 %v4814, %v5206
  %v5309 = vadd.f32 %v4819, %v5211
  %v5310 = vadd.f32 %v4824, %v5216
  %v5311 = vadd.f32 %v4829, %v5221
  %v5312 = vadd.f32 %v4834, %v5226
  %v5313 = vadd.f32 %v4839, %v5231
  %v5314 = vadd.f32 %v4844, %v5236
  %v5315 = vadd.f32 %v4849, %v5241
  %v5316 = vadd.f32 %v4854, %v5246
  %v5317 = vadd.f32 %v4859, %v5251
  %v5318 = vadd.f32 %v4864, %v5256
  %v5319 = vadd.f32 %v4869, %v5261
  %v5320 = vadd.f32 %v4874, %v5266
  %v5321 = vadd.f32 %v4879, %v5271
  %v5322 = vadd.f32 %v4884, %v5276
  %v5323 = vadd.f32 %v4889, %v5281
  %v5324 = vadd.f32 %v4894, %v5286
  %v5325 = vld [vmem:[#allocation2 + $0x12] sm:$0xff]
  %v5326 = vld [vmem:[#allocation2 + $0x1a] sm:$0xff]
  %v5327 = vld [vmem:[#allocation2 + $0x22] sm:$0xff]
  %v5328 = vld [vmem:[#allocation2 + $0x2a] sm:$0xff]
  %v5329 = vld [vmem:[#allocation2 + $0x32] sm:$0xff]
  %v5330 = vld [vmem:[#allocation2 + $0x3a] sm:$0xff]
  %v5331 = vld [vmem:[#allocation2 + $0x42] sm:$0xff]
  %v5332 = vld [vmem:[#allocation2 + $0x4a] sm:$0xff]
  %v5333 = vld [vmem:[#allocation2 + $0x52] sm:$0xff]
  %v5334 = vld [vmem:[#allocation2 + $0x5a] sm:$0xff]
  %v5335 = vld [vmem:[#allocation2 + $0x62] sm:$0xff]
  %v5336 = vld [vmem:[#allocation2 + $0x6a] sm:$0xff]
  %v5337 = vld [vmem:[#allocation2 + $0x72] sm:$0xff]
  %v5338 = vld [vmem:[#allocation2 + $0x7a] sm:$0xff]
  %v5339 = vld [vmem:[#allocation2 + $0x82] sm:$0xff]
  %v5340 = vld [vmem:[#allocation2 + $0x8a] sm:$0xff]
  %v5341 = vld [vmem:[#allocation2 + $0x92] sm:$0xff]
  %v5342 = vld [vmem:[#allocation2 + $0x9a] sm:$0xff]
  %v5343 = vld [vmem:[#allocation2 + $0xa2] sm:$0xff]
  %v5344 = vld [vmem:[#allocation2 + $0xaa] sm:$0xff]
  %v5345 = vld [vmem:[#allocation2 + $0xb2] sm:$0xff]
  %v5346 = vld [vmem:[#allocation2 + $0xba] sm:$0xff]
  %v5347 = vld [vmem:[#allocation2 + $0xc2] sm:$0xff]
  %v5348 = vld [vmem:[#allocation2 + $0xca] sm:$0xff]
  %v5349 = vld [vmem:[#allocation2 + $0xd2] sm:$0xff]
  %v5350 = vld [vmem:[#allocation2 + $0xda] sm:$0xff]
  %v5351 = vld [vmem:[#allocation2 + $0xe2] sm:$0xff]
  %v5352 = vld [vmem:[#allocation2 + $0xea] sm:$0xff]
  %v5353 = vld [vmem:[#allocation2 + $0xf2] sm:$0xff]
  %v5354 = vld [vmem:[#allocation2 + $0xfa] sm:$0xff]
  %v5355 = vld [vmem:[#allocation2 + $0x102] sm:$0xff]
  %v5356 = vld [vmem:[#allocation2 + $0x10a] sm:$0xff]
  %v5357 = vld [vmem:[#allocation2 + $0x112] sm:$0xff]
  %v5358 = vld [vmem:[#allocation2 + $0x11a] sm:$0xff]
  %v5359 = vld [vmem:[#allocation2 + $0x122] sm:$0xff]
  %v5360 = vld [vmem:[#allocation2 + $0x12a] sm:$0xff]
  %s5361 = scalar_lea.vmem %s3, 48
  %v5362 = vld [vmem:[%s5361] sm:$0xff]
  %v5363 = vld [vmem:[%s5361 + $0x8] sm:$0xff]
  %v5365 = vsel %vm3852, %v5325, 0
  %v5368 = vsel %vm3852, %v5326, 0
  %v5371 = vsel %vm3852, %v5327, 0
  %v5374 = vsel %vm3852, %v5328, 0
  %v5377 = vsel %vm3852, %v5329, 0
  %v5380 = vsel %vm3852, %v5330, 0
  %v5383 = vsel %vm3852, %v5331, 0
  %v5386 = vsel %vm3852, %v5332, 0
  %v5389 = vsel %vm3852, %v5333, 0
  %v5392 = vsel %vm3852, %v5334, 0
  %v5395 = vsel %vm3852, %v5335, 0
  %v5398 = vsel %vm3852, %v5336, 0
  %v5401 = vsel %vm3852, %v5337, 0
  %v5404 = vsel %vm3852, %v5338, 0
  %v5407 = vsel %vm3852, %v5339, 0
  %v5410 = vsel %vm3852, %v5340, 0
  %v5413 = vsel %vm3852, %v5341, 0
  %v5416 = vsel %vm3852, %v5342, 0
  %v5419 = vsel %vm3852, %v5343, 0
  %v5422 = vsel %vm3852, %v5344, 0
  %v5425 = vsel %vm3852, %v5345, 0
  %v5428 = vsel %vm3852, %v5346, 0
  %v5431 = vsel %vm3852, %v5347, 0
  %v5434 = vsel %vm3852, %v5348, 0
  %v5437 = vsel %vm3852, %v5349, 0
  %v5440 = vsel %vm3852, %v5350, 0
  %v5443 = vsel %vm3852, %v5351, 0
  %v5446 = vsel %vm3852, %v5352, 0
  %v5449 = vsel %vm3852, %v5353, 0
  %v5452 = vsel %vm3852, %v5354, 0
  %v5455 = vsel %vm3852, %v5355, 0
  %v5458 = vsel %vm3852, %v5356, 0
  %v5461 = vsel %vm3852, %v5357, 0
  %v5464 = vsel %vm3852, %v5358, 0
  %v5467 = vsel %vm3852, %v5359, 0
  %v5470 = vsel %vm3852, %v5360, 0
  %5472 = vmatprep.subr.mxu0 0.0
  %5473 = vmatpush1.msra.mxu0 %v5362
  %5474 = vmatprep.subr.mxu0 0.0
  %5475 = vmatpush1.msra.mxu0 %v5363
  %5476 = vmatprep.subr.mxu0 0.0
  %5477 = vmatpush1.msra.mxu0 0.0
  %5478 = vmatprep.subr.mxu0 0.0
  %5479 = vmatpush1.msra.mxu0 0.0
  %5480 = vmatprep.subr.mxu0 0.0
  %5481 = vmatpush1.msra.mxu0 0.0
  %5482 = vmatprep.subr.mxu0 0.0
  %5483 = vmatpush1.msra.mxu0 0.0
  %5484 = vmatprep.subr.mxu0 0.0
  %5485 = vmatpush1.msra.mxu0 0.0
  %5486 = vmatprep.subr.mxu0 0.0
  %5487 = vmatpush1.msra.mxu0 0.0
  %5488 = vmatprep.subr.mxu0 0.0
  %5489 = vmatpush1.msra.mxu0 0.0
  %5490 = vmatprep.subr.mxu0 0.0
  %5491 = vmatpush1.msra.mxu0 0.0
  %5492 = vmatprep.subr.mxu0 0.0
  %5493 = vmatpush1.msra.mxu0 0.0
  %5494 = vmatprep.subr.mxu0 0.0
  %5495 = vmatpush1.msra.mxu0 0.0
  %5496 = vmatprep.subr.mxu0 0.0
  %5497 = vmatpush1.msra.mxu0 0.0
  %5498 = vmatprep.subr.mxu0 0.0
  %5499 = vmatpush1.msra.mxu0 0.0
  %5500 = vmatprep.subr.mxu0 0.0
  %5501 = vmatpush1.msra.mxu0 0.0
  %5502 = vmatprep.subr.mxu0 0.0
  %5503 = vmatpush1.msra.mxu0 0.0
  %5504 = vmatprep.subr.mxu0 0.0
  %5505 = vmatpush1.msra.mxu0 0.0
  %5506 = vmatprep.subr.mxu0 0.0
  %5507 = vmatpush1.msra.mxu0 0.0
  %5508 = vmatprep.subr.mxu0 0.0
  %5509 = vmatpush1.msra.mxu0 0.0
  %5510 = vmatprep.subr.mxu0 0.0
  %5511 = vmatpush1.msra.mxu0 0.0
  %5512 = vmatprep.subr.mxu0 0.0
  %5513 = vmatpush1.msra.mxu0 0.0
  %5514 = vmatprep.subr.mxu0 0.0
  %5515 = vmatpush1.msra.mxu0 0.0
  %5516 = vmatprep.subr.mxu0 0.0
  %5517 = vmatpush1.msra.mxu0 0.0
  %5518 = vmatprep.subr.mxu0 0.0
  %5519 = vmatpush1.msra.mxu0 0.0
  %5520 = vmatprep.subr.mxu0 0.0
  %5521 = vmatpush1.msra.mxu0 0.0
  %5522 = vmatprep.subr.mxu0 0.0
  %5523 = vmatpush1.msra.mxu0 0.0
  %5524 = vmatprep.subr.mxu0 0.0
  %5525 = vmatpush1.msra.mxu0 0.0
  %5526 = vmatprep.subr.mxu0 0.0
  %5527 = vmatpush1.msra.mxu0 0.0
  %5528 = vmatprep.subr.mxu0 0.0
  %5529 = vmatpush1.msra.mxu0 0.0
  %5530 = vmatprep.subr.mxu0 0.0
  %5531 = vmatpush1.msra.mxu0 0.0
  %5532 = vmatprep.subr.mxu0 0.0
  %5533 = vmatpush1.msra.mxu0 0.0
  %5534 = vmatprep.subr.mxu0 0.0
  %5535 = vmatpush1.msra.mxu0 0.0
  %5536 = vmatprep.mubr.f32.mxu0 0.0
  %5537 = vmatmul.mubr.f32.gmra.mrb[0].mxu0 %v5365
  %v5538 = vpop.f32.mrb[0].mxu0
  %v5539 = vadd.f32 0.0, %v5538
  %v5540 = vpop.f32.mrb[0].mxu0
  %5541 = vmatprep.mubr.f32.mxu0 0.0
  %5542 = vmatmul.mubr.f32.gmra.mrb[0].mxu0 %v5368
  %v5543 = vpop.f32.mrb[0].mxu0
  %v5544 = vadd.f32 0.0, %v5543
  %v5545 = vpop.f32.mrb[0].mxu0
  %5546 = vmatprep.mubr.f32.mxu0 0.0
  %5547 = vmatmul.mubr.f32.gmra.mrb[0].mxu0 %v5371
  %v5548 = vpop.f32.mrb[0].mxu0
  %v5549 = vadd.f32 0.0, %v5548
  %v5550 = vpop.f32.mrb[0].mxu0
  %5551 = vmatprep.mubr.f32.mxu0 0.0
  %5552 = vmatmul.mubr.f32.gmra.mrb[0].mxu0 %v5374
  %v5553 = vpop.f32.mrb[0].mxu0
  %v5554 = vadd.f32 0.0, %v5553
  %v5555 = vpop.f32.mrb[0].mxu0
  %5556 = vmatprep.mubr.f32.mxu0 0.0
  %5557 = vmatmul.mubr.f32.gmra.mrb[0].mxu0 %v5377
  %v5558 = vpop.f32.mrb[0].mxu0
  %v5559 = vadd.f32 0.0, %v5558
  %v5560 = vpop.f32.mrb[0].mxu0
  %5561 = vmatprep.mubr.f32.mxu0 0.0
  %5562 = vmatmul.mubr.f32.gmra.mrb[0].mxu0 %v5380
  %v5563 = vpop.f32.mrb[0].mxu0
  %v5564 = vadd.f32 0.0, %v5563
  %v5565 = vpop.f32.mrb[0].mxu0
  %5566 = vmatprep.mubr.f32.mxu0 0.0
  %5567 = vmatmul.mubr.f32.gmra.mrb[0].mxu0 %v5383
  %v5568 = vpop.f32.mrb[0].mxu0
  %v5569 = vadd.f32 0.0, %v5568
  %v5570 = vpop.f32.mrb[0].mxu0
  %5571 = vmatprep.mubr.f32.mxu0 0.0
  %5572 = vmatmul.mubr.f32.gmra.mrb[0].mxu0 %v5386
  %v5573 = vpop.f32.mrb[0].mxu0
  %v5574 = vadd.f32 0.0, %v5573
  %v5575 = vpop.f32.mrb[0].mxu0
  %5576 = vmatprep.mubr.f32.mxu0 0.0
  %5577 = vmatmul.mubr.f32.gmra.mrb[0].mxu0 %v5389
  %v5578 = vpop.f32.mrb[0].mxu0
  %v5579 = vadd.f32 0.0, %v5578
  %v5580 = vpop.f32.mrb[0].mxu0
  %5581 = vmatprep.mubr.f32.mxu0 0.0
  %5582 = vmatmul.mubr.f32.gmra.mrb[0].mxu0 %v5392
  %v5583 = vpop.f32.mrb[0].mxu0
  %v5584 = vadd.f32 0.0, %v5583
  %v5585 = vpop.f32.mrb[0].mxu0
  %5586 = vmatprep.mubr.f32.mxu0 0.0
  %5587 = vmatmul.mubr.f32.gmra.mrb[0].mxu0 %v5395
  %v5588 = vpop.f32.mrb[0].mxu0
  %v5589 = vadd.f32 0.0, %v5588
  %v5590 = vpop.f32.mrb[0].mxu0
  %5591 = vmatprep.mubr.f32.mxu0 0.0
  %5592 = vmatmul.mubr.f32.gmra.mrb[0].mxu0 %v5398
  %v5593 = vpop.f32.mrb[0].mxu0
  %v5594 = vadd.f32 0.0, %v5593
  %v5595 = vpop.f32.mrb[0].mxu0
  %5596 = vmatprep.mubr.f32.mxu0 0.0
  %5597 = vmatmul.mubr.f32.gmra.mrb[0].mxu0 %v5401
  %v5598 = vpop.f32.mrb[0].mxu0
  %v5599 = vadd.f32 0.0, %v5598
  %v5600 = vpop.f32.mrb[0].mxu0
  %5601 = vmatprep.mubr.f32.mxu0 0.0
  %5602 = vmatmul.mubr.f32.gmra.mrb[0].mxu0 %v5404
  %v5603 = vpop.f32.mrb[0].mxu0
  %v5604 = vadd.f32 0.0, %v5603
  %v5605 = vpop.f32.mrb[0].mxu0
  %5606 = vmatprep.mubr.f32.mxu0 0.0
  %5607 = vmatmul.mubr.f32.gmra.mrb[0].mxu0 %v5407
  %v5608 = vpop.f32.mrb[0].mxu0
  %v5609 = vadd.f32 0.0, %v5608
  %v5610 = vpop.f32.mrb[0].mxu0
  %5611 = vmatprep.mubr.f32.mxu0 0.0
  %5612 = vmatmul.mubr.f32.gmra.mrb[0].mxu0 %v5410
  %v5613 = vpop.f32.mrb[0].mxu0
  %v5614 = vadd.f32 0.0, %v5613
  %v5615 = vpop.f32.mrb[0].mxu0
  %5616 = vmatprep.mubr.f32.mxu0 0.0
  %5617 = vmatmul.mubr.f32.gmra.mrb[0].mxu0 %v5413
  %v5618 = vpop.f32.mrb[0].mxu0
  %v5619 = vadd.f32 0.0, %v5618
  %v5620 = vpop.f32.mrb[0].mxu0
  %5621 = vmatprep.mubr.f32.mxu0 0.0
  %5622 = vmatmul.mubr.f32.gmra.mrb[0].mxu0 %v5416
  %v5623 = vpop.f32.mrb[0].mxu0
  %v5624 = vadd.f32 0.0, %v5623
  %v5625 = vpop.f32.mrb[0].mxu0
  %5626 = vmatprep.mubr.f32.mxu0 0.0
  %5627 = vmatmul.mubr.f32.gmra.mrb[0].mxu0 %v5419
  %v5628 = vpop.f32.mrb[0].mxu0
  %v5629 = vadd.f32 0.0, %v5628
  %v5630 = vpop.f32.mrb[0].mxu0
  %5631 = vmatprep.mubr.f32.mxu0 0.0
  %5632 = vmatmul.mubr.f32.gmra.mrb[0].mxu0 %v5422
  %v5633 = vpop.f32.mrb[0].mxu0
  %v5634 = vadd.f32 0.0, %v5633
  %v5635 = vpop.f32.mrb[0].mxu0
  %5636 = vmatprep.mubr.f32.mxu0 0.0
  %5637 = vmatmul.mubr.f32.gmra.mrb[0].mxu0 %v5425
  %v5638 = vpop.f32.mrb[0].mxu0
  %v5639 = vadd.f32 0.0, %v5638
  %v5640 = vpop.f32.mrb[0].mxu0
  %5641 = vmatprep.mubr.f32.mxu0 0.0
  %5642 = vmatmul.mubr.f32.gmra.mrb[0].mxu0 %v5428
  %v5643 = vpop.f32.mrb[0].mxu0
  %v5644 = vadd.f32 0.0, %v5643
  %v5645 = vpop.f32.mrb[0].mxu0
  %5646 = vmatprep.mubr.f32.mxu0 0.0
  %5647 = vmatmul.mubr.f32.gmra.mrb[0].mxu0 %v5431
  %v5648 = vpop.f32.mrb[0].mxu0
  %v5649 = vadd.f32 0.0, %v5648
  %v5650 = vpop.f32.mrb[0].mxu0
  %5651 = vmatprep.mubr.f32.mxu0 0.0
  %5652 = vmatmul.mubr.f32.gmra.mrb[0].mxu0 %v5434
  %v5653 = vpop.f32.mrb[0].mxu0
  %v5654 = vadd.f32 0.0, %v5653
  %v5655 = vpop.f32.mrb[0].mxu0
  %5656 = vmatprep.mubr.f32.mxu0 0.0
  %5657 = vmatmul.mubr.f32.gmra.mrb[0].mxu0 %v5437
  %v5658 = vpop.f32.mrb[0].mxu0
  %v5659 = vadd.f32 0.0, %v5658
  %v5660 = vpop.f32.mrb[0].mxu0
  %5661 = vmatprep.mubr.f32.mxu0 0.0
  %5662 = vmatmul.mubr.f32.gmra.mrb[0].mxu0 %v5440
  %v5663 = vpop.f32.mrb[0].mxu0
  %v5664 = vadd.f32 0.0, %v5663
  %v5665 = vpop.f32.mrb[0].mxu0
  %5666 = vmatprep.mubr.f32.mxu0 0.0
  %5667 = vmatmul.mubr.f32.gmra.mrb[0].mxu0 %v5443
  %v5668 = vpop.f32.mrb[0].mxu0
  %v5669 = vadd.f32 0.0, %v5668
  %v5670 = vpop.f32.mrb[0].mxu0
  %5671 = vmatprep.mubr.f32.mxu0 0.0
  %5672 = vmatmul.mubr.f32.gmra.mrb[0].mxu0 %v5446
  %v5673 = vpop.f32.mrb[0].mxu0
  %v5674 = vadd.f32 0.0, %v5673
  %v5675 = vpop.f32.mrb[0].mxu0
  %5676 = vmatprep.mubr.f32.mxu0 0.0
  %5677 = vmatmul.mubr.f32.gmra.mrb[0].mxu0 %v5449
  %v5678 = vpop.f32.mrb[0].mxu0
  %v5679 = vadd.f32 0.0, %v5678
  %v5680 = vpop.f32.mrb[0].mxu0
  %5681 = vmatprep.mubr.f32.mxu0 0.0
  %5682 = vmatmul.mubr.f32.gmra.mrb[0].mxu0 %v5452
  %v5683 = vpop.f32.mrb[0].mxu0
  %v5684 = vadd.f32 0.0, %v5683
  %v5685 = vpop.f32.mrb[0].mxu0
  %5686 = vmatprep.mubr.f32.mxu0 0.0
  %5687 = vmatmul.mubr.f32.gmra.mrb[0].mxu0 %v5455
  %v5688 = vpop.f32.mrb[0].mxu0
  %v5689 = vadd.f32 0.0, %v5688
  %v5690 = vpop.f32.mrb[0].mxu0
  %5691 = vmatprep.mubr.f32.mxu0 0.0
  %5692 = vmatmul.mubr.f32.gmra.mrb[0].mxu0 %v5458
  %v5693 = vpop.f32.mrb[0].mxu0
  %v5694 = vadd.f32 0.0, %v5693
  %v5695 = vpop.f32.mrb[0].mxu0
  %5696 = vmatprep.mubr.f32.mxu0 0.0
  %5697 = vmatmul.mubr.f32.gmra.mrb[0].mxu0 %v5461
  %v5698 = vpop.f32.mrb[0].mxu0
  %v5699 = vadd.f32 0.0, %v5698
  %v5700 = vpop.f32.mrb[0].mxu0
  %5701 = vmatprep.mubr.f32.mxu0 0.0
  %5702 = vmatmul.mubr.f32.gmra.mrb[0].mxu0 %v5464
  %v5703 = vpop.f32.mrb[0].mxu0
  %v5704 = vadd.f32 0.0, %v5703
  %v5705 = vpop.f32.mrb[0].mxu0
  %5706 = vmatprep.mubr.f32.mxu0 0.0
  %5707 = vmatmul.mubr.f32.gmra.mrb[0].mxu0 %v5467
  %v5708 = vpop.f32.mrb[0].mxu0
  %v5709 = vadd.f32 0.0, %v5708
  %v5710 = vpop.f32.mrb[0].mxu0
  %5711 = vmatprep.mubr.f32.mxu0 0.0
  %5712 = vmatmul.mubr.f32.gmra.mrb[0].mxu0 %v5470
  %v5713 = vpop.f32.mrb[0].mxu0
  %v5714 = vadd.f32 0.0, %v5713
  %v5715 = vpop.f32.mrb[0].mxu0
  %5716 = vdwg.mxu0
  %v5717 = vadd.f32 %v5289, %v5539
  %v5718 = vadd.f32 %v5290, %v5544
  %v5719 = vadd.f32 %v5291, %v5549
  %v5720 = vadd.f32 %v5292, %v5554
  %v5721 = vadd.f32 %v5293, %v5559
  %v5722 = vadd.f32 %v5294, %v5564
  %v5723 = vadd.f32 %v5295, %v5569
  %v5724 = vadd.f32 %v5296, %v5574
  %v5725 = vadd.f32 %v5297, %v5579
  %v5726 = vadd.f32 %v5298, %v5584
  %v5727 = vadd.f32 %v5299, %v5589
  %v5728 = vadd.f32 %v5300, %v5594
  %v5729 = vadd.f32 %v5301, %v5599
  %v5730 = vadd.f32 %v5302, %v5604
  %v5731 = vadd.f32 %v5303, %v5609
  %v5732 = vadd.f32 %v5304, %v5614
  %v5733 = vadd.f32 %v5305, %v5619
  %v5734 = vadd.f32 %v5306, %v5624
  %v5735 = vadd.f32 %v5307, %v5629
  %v5736 = vadd.f32 %v5308, %v5634
  %v5737 = vadd.f32 %v5309, %v5639
  %v5738 = vadd.f32 %v5310, %v5644
  %v5739 = vadd.f32 %v5311, %v5649
  %v5740 = vadd.f32 %v5312, %v5654
  %v5741 = vadd.f32 %v5313, %v5659
  %v5742 = vadd.f32 %v5314, %v5664
  %v5743 = vadd.f32 %v5315, %v5669
  %v5744 = vadd.f32 %v5316, %v5674
  %v5745 = vadd.f32 %v5317, %v5679
  %v5746 = vadd.f32 %v5318, %v5684
  %v5747 = vadd.f32 %v5319, %v5689
  %v5748 = vadd.f32 %v5320, %v5694
  %v5749 = vadd.f32 %v5321, %v5699
  %v5750 = vadd.f32 %v5322, %v5704
  %v5751 = vadd.f32 %v5323, %v5709
  %v5752 = vadd.f32 %v5324, %v5714
  %v5753 = vld [vmem:[#allocation2 + $0x13] sm:$0xff]
  %v5754 = vld [vmem:[#allocation2 + $0x1b] sm:$0xff]
  %v5755 = vld [vmem:[#allocation2 + $0x23] sm:$0xff]
  %v5756 = vld [vmem:[#allocation2 + $0x2b] sm:$0xff]
  %v5757 = vld [vmem:[#allocation2 + $0x33] sm:$0xff]
  %v5758 = vld [vmem:[#allocation2 + $0x3b] sm:$0xff]
  %v5759 = vld [vmem:[#allocation2 + $0x43] sm:$0xff]
  %v5760 = vld [vmem:[#allocation2 + $0x4b] sm:$0xff]
  %v5761 = vld [vmem:[#allocation2 + $0x53] sm:$0xff]
  %v5762 = vld [vmem:[#allocation2 + $0x5b] sm:$0xff]
  %v5763 = vld [vmem:[#allocation2 + $0x63] sm:$0xff]
  %v5764 = vld [vmem:[#allocation2 + $0x6b] sm:$0xff]
  %v5765 = vld [vmem:[#allocation2 + $0x73] sm:$0xff]
  %v5766 = vld [vmem:[#allocation2 + $0x7b] sm:$0xff]
  %v5767 = vld [vmem:[#allocation2 + $0x83] sm:$0xff]
  %v5768 = vld [vmem:[#allocation2 + $0x8b] sm:$0xff]
  %v5769 = vld [vmem:[#allocation2 + $0x93] sm:$0xff]
  %v5770 = vld [vmem:[#allocation2 + $0x9b] sm:$0xff]
  %v5771 = vld [vmem:[#allocation2 + $0xa3] sm:$0xff]
  %v5772 = vld [vmem:[#allocation2 + $0xab] sm:$0xff]
  %v5773 = vld [vmem:[#allocation2 + $0xb3] sm:$0xff]
  %v5774 = vld [vmem:[#allocation2 + $0xbb] sm:$0xff]
  %v5775 = vld [vmem:[#allocation2 + $0xc3] sm:$0xff]
  %v5776 = vld [vmem:[#allocation2 + $0xcb] sm:$0xff]
  %v5777 = vld [vmem:[#allocation2 + $0xd3] sm:$0xff]
  %v5778 = vld [vmem:[#allocation2 + $0xdb] sm:$0xff]
  %v5779 = vld [vmem:[#allocation2 + $0xe3] sm:$0xff]
  %v5780 = vld [vmem:[#allocation2 + $0xeb] sm:$0xff]
  %v5781 = vld [vmem:[#allocation2 + $0xf3] sm:$0xff]
  %v5782 = vld [vmem:[#allocation2 + $0xfb] sm:$0xff]
  %v5783 = vld [vmem:[#allocation2 + $0x103] sm:$0xff]
  %v5784 = vld [vmem:[#allocation2 + $0x10b] sm:$0xff]
  %v5785 = vld [vmem:[#allocation2 + $0x113] sm:$0xff]
  %v5786 = vld [vmem:[#allocation2 + $0x11b] sm:$0xff]
  %v5787 = vld [vmem:[#allocation2 + $0x123] sm:$0xff]
  %v5788 = vld [vmem:[#allocation2 + $0x12b] sm:$0xff]
  %s5789 = scalar_lea.vmem %s3, 64
  %v5790 = vld [vmem:[%s5789] sm:$0xff]
  %v5791 = vld [vmem:[%s5789 + $0x8] sm:$0xff]
  %v5793 = vsel %vm3852, %v5753, 0
  %v5796 = vsel %vm3852, %v5754, 0
  %v5799 = vsel %vm3852, %v5755, 0
  %v5802 = vsel %vm3852, %v5756, 0
  %v5805 = vsel %vm3852, %v5757, 0
  %v5808 = vsel %vm3852, %v5758, 0
  %v5811 = vsel %vm3852, %v5759, 0
  %v5814 = vsel %vm3852, %v5760, 0
  %v5817 = vsel %vm3852, %v5761, 0
  %v5820 = vsel %vm3852, %v5762, 0
  %v5823 = vsel %vm3852, %v5763, 0
  %v5826 = vsel %vm3852, %v5764, 0
  %v5829 = vsel %vm3852, %v5765, 0
  %v5832 = vsel %vm3852, %v5766, 0
  %v5835 = vsel %vm3852, %v5767, 0
  %v5838 = vsel %vm3852, %v5768, 0
  %v5841 = vsel %vm3852, %v5769, 0
  %v5844 = vsel %vm3852, %v5770, 0
  %v5847 = vsel %vm3852, %v5771, 0
  %v5850 = vsel %vm3852, %v5772, 0
  %v5853 = vsel %vm3852, %v5773, 0
  %v5856 = vsel %vm3852, %v5774, 0
  %v5859 = vsel %vm3852, %v5775, 0
  %v5862 = vsel %vm3852, %v5776, 0
  %v5865 = vsel %vm3852, %v5777, 0
  %v5868 = vsel %vm3852, %v5778, 0
  %v5871 = vsel %vm3852, %v5779, 0
  %v5874 = vsel %vm3852, %v5780, 0
  %v5877 = vsel %vm3852, %v5781, 0
  %v5880 = vsel %vm3852, %v5782, 0
  %v5883 = vsel %vm3852, %v5783, 0
  %v5886 = vsel %vm3852, %v5784, 0
  %v5889 = vsel %vm3852, %v5785, 0
  %v5892 = vsel %vm3852, %v5786, 0
  %v5895 = vsel %vm3852, %v5787, 0
  %v5898 = vsel %vm3852, %v5788, 0
  %5900 = vmatprep.subr.mxu0 0.0
  %5901 = vmatpush1.msra.mxu0 %v5790
  %5902 = vmatprep.subr.mxu0 0.0
  %5903 = vmatpush1.msra.mxu0 %v5791
  %5904 = vmatprep.subr.mxu0 0.0
  %5905 = vmatpush1.msra.mxu0 0.0
  %5906 = vmatprep.subr.mxu0 0.0
  %5907 = vmatpush1.msra.mxu0 0.0
  %5908 = vmatprep.subr.mxu0 0.0
  %5909 = vmatpush1.msra.mxu0 0.0
  %5910 = vmatprep.subr.mxu0 0.0
  %5911 = vmatpush1.msra.mxu0 0.0
  %5912 = vmatprep.subr.mxu0 0.0
  %5913 = vmatpush1.msra.mxu0 0.0
  %5914 = vmatprep.subr.mxu0 0.0
  %5915 = vmatpush1.msra.mxu0 0.0
  %5916 = vmatprep.subr.mxu0 0.0
  %5917 = vmatpush1.msra.mxu0 0.0
  %5918 = vmatprep.subr.mxu0 0.0
  %5919 = vmatpush1.msra.mxu0 0.0
  %5920 = vmatprep.subr.mxu0 0.0
  %5921 = vmatpush1.msra.mxu0 0.0
  %5922 = vmatprep.subr.mxu0 0.0
  %5923 = vmatpush1.msra.mxu0 0.0
  %5924 = vmatprep.subr.mxu0 0.0
  %5925 = vmatpush1.msra.mxu0 0.0
  %5926 = vmatprep.subr.mxu0 0.0
  %5927 = vmatpush1.msra.mxu0 0.0
  %5928 = vmatprep.subr.mxu0 0.0
  %5929 = vmatpush1.msra.mxu0 0.0
  %5930 = vmatprep.subr.mxu0 0.0
  %5931 = vmatpush1.msra.mxu0 0.0
  %5932 = vmatprep.subr.mxu0 0.0
  %5933 = vmatpush1.msra.mxu0 0.0
  %5934 = vmatprep.subr.mxu0 0.0
  %5935 = vmatpush1.msra.mxu0 0.0
  %5936 = vmatprep.subr.mxu0 0.0
  %5937 = vmatpush1.msra.mxu0 0.0
  %5938 = vmatprep.subr.mxu0 0.0
  %5939 = vmatpush1.msra.mxu0 0.0
  %5940 = vmatprep.subr.mxu0 0.0
  %5941 = vmatpush1.msra.mxu0 0.0
  %5942 = vmatprep.subr.mxu0 0.0
  %5943 = vmatpush1.msra.mxu0 0.0
  %5944 = vmatprep.subr.mxu0 0.0
  %5945 = vmatpush1.msra.mxu0 0.0
  %5946 = vmatprep.subr.mxu0 0.0
  %5947 = vmatpush1.msra.mxu0 0.0
  %5948 = vmatprep.subr.mxu0 0.0
  %5949 = vmatpush1.msra.mxu0 0.0
  %5950 = vmatprep.subr.mxu0 0.0
  %5951 = vmatpush1.msra.mxu0 0.0
  %5952 = vmatprep.subr.mxu0 0.0
  %5953 = vmatpush1.msra.mxu0 0.0
  %5954 = vmatprep.subr.mxu0 0.0
  %5955 = vmatpush1.msra.mxu0 0.0
  %5956 = vmatprep.subr.mxu0 0.0
  %5957 = vmatpush1.msra.mxu0 0.0
  %5958 = vmatprep.subr.mxu0 0.0
  %5959 = vmatpush1.msra.mxu0 0.0
  %5960 = vmatprep.subr.mxu0 0.0
  %5961 = vmatpush1.msra.mxu0 0.0
  %5962 = vmatprep.subr.mxu0 0.0
  %5963 = vmatpush1.msra.mxu0 0.0
  %5964 = vmatprep.mubr.f32.mxu0 0.0
  %5965 = vmatmul.mubr.f32.gmra.mrb[0].mxu0 %v5793
  %v5966 = vpop.f32.mrb[0].mxu0
  %v5967 = vadd.f32 0.0, %v5966
  %v5968 = vpop.f32.mrb[0].mxu0
  %5969 = vmatprep.mubr.f32.mxu0 0.0
  %5970 = vmatmul.mubr.f32.gmra.mrb[0].mxu0 %v5796
  %v5971 = vpop.f32.mrb[0].mxu0
  %v5972 = vadd.f32 0.0, %v5971
  %v5973 = vpop.f32.mrb[0].mxu0
  %5974 = vmatprep.mubr.f32.mxu0 0.0
  %5975 = vmatmul.mubr.f32.gmra.mrb[0].mxu0 %v5799
  %v5976 = vpop.f32.mrb[0].mxu0
  %v5977 = vadd.f32 0.0, %v5976
  %v5978 = vpop.f32.mrb[0].mxu0
  %5979 = vmatprep.mubr.f32.mxu0 0.0
  %5980 = vmatmul.mubr.f32.gmra.mrb[0].mxu0 %v5802
  %v5981 = vpop.f32.mrb[0].mxu0
  %v5982 = vadd.f32 0.0, %v5981
  %v5983 = vpop.f32.mrb[0].mxu0
  %5984 = vmatprep.mubr.f32.mxu0 0.0
  %5985 = vmatmul.mubr.f32.gmra.mrb[0].mxu0 %v5805
  %v5986 = vpop.f32.mrb[0].mxu0
  %v5987 = vadd.f32 0.0, %v5986
  %v5988 = vpop.f32.mrb[0].mxu0
  %5989 = vmatprep.mubr.f32.mxu0 0.0
  %5990 = vmatmul.mubr.f32.gmra.mrb[0].mxu0 %v5808
  %v5991 = vpop.f32.mrb[0].mxu0
  %v5992 = vadd.f32 0.0, %v5991
  %v5993 = vpop.f32.mrb[0].mxu0
  %5994 = vmatprep.mubr.f32.mxu0 0.0
  %5995 = vmatmul.mubr.f32.gmra.mrb[0].mxu0 %v5811
  %v5996 = vpop.f32.mrb[0].mxu0
  %v5997 = vadd.f32 0.0, %v5996
  %v5998 = vpop.f32.mrb[0].mxu0
  %5999 = vmatprep.mubr.f32.mxu0 0.0
  %6000 = vmatmul.mubr.f32.gmra.mrb[0].mxu0 %v5814
  %v6001 = vpop.f32.mrb[0].mxu0
  %v6002 = vadd.f32 0.0, %v6001
  %v6003 = vpop.f32.mrb[0].mxu0
  %6004 = vmatprep.mubr.f32.mxu0 0.0
  %6005 = vmatmul.mubr.f32.gmra.mrb[0].mxu0 %v5817
  %v6006 = vpop.f32.mrb[0].mxu0
  %v6007 = vadd.f32 0.0, %v6006
  %v6008 = vpop.f32.mrb[0].mxu0
  %6009 = vmatprep.mubr.f32.mxu0 0.0
  %6010 = vmatmul.mubr.f32.gmra.mrb[0].mxu0 %v5820
  %v6011 = vpop.f32.mrb[0].mxu0
  %v6012 = vadd.f32 0.0, %v6011
  %v6013 = vpop.f32.mrb[0].mxu0
  %6014 = vmatprep.mubr.f32.mxu0 0.0
  %6015 = vmatmul.mubr.f32.gmra.mrb[0].mxu0 %v5823
  %v6016 = vpop.f32.mrb[0].mxu0
  %v6017 = vadd.f32 0.0, %v6016
  %v6018 = vpop.f32.mrb[0].mxu0
  %6019 = vmatprep.mubr.f32.mxu0 0.0
  %6020 = vmatmul.mubr.f32.gmra.mrb[0].mxu0 %v5826
  %v6021 = vpop.f32.mrb[0].mxu0
  %v6022 = vadd.f32 0.0, %v6021
  %v6023 = vpop.f32.mrb[0].mxu0
  %6024 = vmatprep.mubr.f32.mxu0 0.0
  %6025 = vmatmul.mubr.f32.gmra.mrb[0].mxu0 %v5829
  %v6026 = vpop.f32.mrb[0].mxu0
  %v6027 = vadd.f32 0.0, %v6026
  %v6028 = vpop.f32.mrb[0].mxu0
  %6029 = vmatprep.mubr.f32.mxu0 0.0
  %6030 = vmatmul.mubr.f32.gmra.mrb[0].mxu0 %v5832
  %v6031 = vpop.f32.mrb[0].mxu0
  %v6032 = vadd.f32 0.0, %v6031
  %v6033 = vpop.f32.mrb[0].mxu0
  %6034 = vmatprep.mubr.f32.mxu0 0.0
  %6035 = vmatmul.mubr.f32.gmra.mrb[0].mxu0 %v5835
  %v6036 = vpop.f32.mrb[0].mxu0
  %v6037 = vadd.f32 0.0, %v6036
  %v6038 = vpop.f32.mrb[0].mxu0
  %6039 = vmatprep.mubr.f32.mxu0 0.0
  %6040 = vmatmul.mubr.f32.gmra.mrb[0].mxu0 %v5838
  %v6041 = vpop.f32.mrb[0].mxu0
  %v6042 = vadd.f32 0.0, %v6041
  %v6043 = vpop.f32.mrb[0].mxu0
  %6044 = vmatprep.mubr.f32.mxu0 0.0
  %6045 = vmatmul.mubr.f32.gmra.mrb[0].mxu0 %v5841
  %v6046 = vpop.f32.mrb[0].mxu0
  %v6047 = vadd.f32 0.0, %v6046
  %v6048 = vpop.f32.mrb[0].mxu0
  %6049 = vmatprep.mubr.f32.mxu0 0.0
  %6050 = vmatmul.mubr.f32.gmra.mrb[0].mxu0 %v5844
  %v6051 = vpop.f32.mrb[0].mxu0
  %v6052 = vadd.f32 0.0, %v6051
  %v6053 = vpop.f32.mrb[0].mxu0
  %6054 = vmatprep.mubr.f32.mxu0 0.0
  %6055 = vmatmul.mubr.f32.gmra.mrb[0].mxu0 %v5847
  %v6056 = vpop.f32.mrb[0].mxu0
  %v6057 = vadd.f32 0.0, %v6056
  %v6058 = vpop.f32.mrb[0].mxu0
  %6059 = vmatprep.mubr.f32.mxu0 0.0
  %6060 = vmatmul.mubr.f32.gmra.mrb[0].mxu0 %v5850
  %v6061 = vpop.f32.mrb[0].mxu0
  %v6062 = vadd.f32 0.0, %v6061
  %v6063 = vpop.f32.mrb[0].mxu0
  %6064 = vmatprep.mubr.f32.mxu0 0.0
  %6065 = vmatmul.mubr.f32.gmra.mrb[0].mxu0 %v5853
  %v6066 = vpop.f32.mrb[0].mxu0
  %v6067 = vadd.f32 0.0, %v6066
  %v6068 = vpop.f32.mrb[0].mxu0
  %6069 = vmatprep.mubr.f32.mxu0 0.0
  %6070 = vmatmul.mubr.f32.gmra.mrb[0].mxu0 %v5856
  %v6071 = vpop.f32.mrb[0].mxu0
  %v6072 = vadd.f32 0.0, %v6071
  %v6073 = vpop.f32.mrb[0].mxu0
  %6074 = vmatprep.mubr.f32.mxu0 0.0
  %6075 = vmatmul.mubr.f32.gmra.mrb[0].mxu0 %v5859
  %v6076 = vpop.f32.mrb[0].mxu0
  %v6077 = vadd.f32 0.0, %v6076
  %v6078 = vpop.f32.mrb[0].mxu0
  %6079 = vmatprep.mubr.f32.mxu0 0.0
  %6080 = vmatmul.mubr.f32.gmra.mrb[0].mxu0 %v5862
  %v6081 = vpop.f32.mrb[0].mxu0
  %v6082 = vadd.f32 0.0, %v6081
  %v6083 = vpop.f32.mrb[0].mxu0
  %6084 = vmatprep.mubr.f32.mxu0 0.0
  %6085 = vmatmul.mubr.f32.gmra.mrb[0].mxu0 %v5865
  %v6086 = vpop.f32.mrb[0].mxu0
  %v6087 = vadd.f32 0.0, %v6086
  %v6088 = vpop.f32.mrb[0].mxu0
  %6089 = vmatprep.mubr.f32.mxu0 0.0
  %6090 = vmatmul.mubr.f32.gmra.mrb[0].mxu0 %v5868
  %v6091 = vpop.f32.mrb[0].mxu0
  %v6092 = vadd.f32 0.0, %v6091
  %v6093 = vpop.f32.mrb[0].mxu0
  %6094 = vmatprep.mubr.f32.mxu0 0.0
  %6095 = vmatmul.mubr.f32.gmra.mrb[0].mxu0 %v5871
  %v6096 = vpop.f32.mrb[0].mxu0
  %v6097 = vadd.f32 0.0, %v6096
  %v6098 = vpop.f32.mrb[0].mxu0
  %6099 = vmatprep.mubr.f32.mxu0 0.0
  %6100 = vmatmul.mubr.f32.gmra.mrb[0].mxu0 %v5874
  %v6101 = vpop.f32.mrb[0].mxu0
  %v6102 = vadd.f32 0.0, %v6101
  %v6103 = vpop.f32.mrb[0].mxu0
  %6104 = vmatprep.mubr.f32.mxu0 0.0
  %6105 = vmatmul.mubr.f32.gmra.mrb[0].mxu0 %v5877
  %v6106 = vpop.f32.mrb[0].mxu0
  %v6107 = vadd.f32 0.0, %v6106
  %v6108 = vpop.f32.mrb[0].mxu0
  %6109 = vmatprep.mubr.f32.mxu0 0.0
  %6110 = vmatmul.mubr.f32.gmra.mrb[0].mxu0 %v5880
  %v6111 = vpop.f32.mrb[0].mxu0
  %v6112 = vadd.f32 0.0, %v6111
  %v6113 = vpop.f32.mrb[0].mxu0
  %6114 = vmatprep.mubr.f32.mxu0 0.0
  %6115 = vmatmul.mubr.f32.gmra.mrb[0].mxu0 %v5883
  %v6116 = vpop.f32.mrb[0].mxu0
  %v6117 = vadd.f32 0.0, %v6116
  %v6118 = vpop.f32.mrb[0].mxu0
  %6119 = vmatprep.mubr.f32.mxu0 0.0
  %6120 = vmatmul.mubr.f32.gmra.mrb[0].mxu0 %v5886
  %v6121 = vpop.f32.mrb[0].mxu0
  %v6122 = vadd.f32 0.0, %v6121
  %v6123 = vpop.f32.mrb[0].mxu0
  %6124 = vmatprep.mubr.f32.mxu0 0.0
  %6125 = vmatmul.mubr.f32.gmra.mrb[0].mxu0 %v5889
  %v6126 = vpop.f32.mrb[0].mxu0
  %v6127 = vadd.f32 0.0, %v6126
  %v6128 = vpop.f32.mrb[0].mxu0
  %6129 = vmatprep.mubr.f32.mxu0 0.0
  %6130 = vmatmul.mubr.f32.gmra.mrb[0].mxu0 %v5892
  %v6131 = vpop.f32.mrb[0].mxu0
  %v6132 = vadd.f32 0.0, %v6131
  %v6133 = vpop.f32.mrb[0].mxu0
  %6134 = vmatprep.mubr.f32.mxu0 0.0
  %6135 = vmatmul.mubr.f32.gmra.mrb[0].mxu0 %v5895
  %v6136 = vpop.f32.mrb[0].mxu0
  %v6137 = vadd.f32 0.0, %v6136
  %v6138 = vpop.f32.mrb[0].mxu0
  %6139 = vmatprep.mubr.f32.mxu0 0.0
  %6140 = vmatmul.mubr.f32.gmra.mrb[0].mxu0 %v5898
  %v6141 = vpop.f32.mrb[0].mxu0
  %v6142 = vadd.f32 0.0, %v6141
  %v6143 = vpop.f32.mrb[0].mxu0
  %6144 = vdwg.mxu0
  %v6145 = vadd.f32 %v5717, %v5967
  %v6146 = vadd.f32 %v5718, %v5972
  %v6147 = vadd.f32 %v5719, %v5977
  %v6148 = vadd.f32 %v5720, %v5982
  %v6149 = vadd.f32 %v5721, %v5987
  %v6150 = vadd.f32 %v5722, %v5992
  %v6151 = vadd.f32 %v5723, %v5997
  %v6152 = vadd.f32 %v5724, %v6002
  %v6153 = vadd.f32 %v5725, %v6007
  %v6154 = vadd.f32 %v5726, %v6012
  %v6155 = vadd.f32 %v5727, %v6017
  %v6156 = vadd.f32 %v5728, %v6022
  %v6157 = vadd.f32 %v5729, %v6027
  %v6158 = vadd.f32 %v5730, %v6032
  %v6159 = vadd.f32 %v5731, %v6037
  %v6160 = vadd.f32 %v5732, %v6042
  %v6161 = vadd.f32 %v5733, %v6047
  %v6162 = vadd.f32 %v5734, %v6052
  %v6163 = vadd.f32 %v5735, %v6057
  %v6164 = vadd.f32 %v5736, %v6062
  %v6165 = vadd.f32 %v5737, %v6067
  %v6166 = vadd.f32 %v5738, %v6072
  %v6167 = vadd.f32 %v5739, %v6077
  %v6168 = vadd.f32 %v5740, %v6082
  %v6169 = vadd.f32 %v5741, %v6087
  %v6170 = vadd.f32 %v5742, %v6092
  %v6171 = vadd.f32 %v5743, %v6097
  %v6172 = vadd.f32 %v5744, %v6102
  %v6173 = vadd.f32 %v5745, %v6107
  %v6174 = vadd.f32 %v5746, %v6112
  %v6175 = vadd.f32 %v5747, %v6117
  %v6176 = vadd.f32 %v5748, %v6122
  %v6177 = vadd.f32 %v5749, %v6127
  %v6178 = vadd.f32 %v5750, %v6132
  %v6179 = vadd.f32 %v5751, %v6137
  %v6180 = vadd.f32 %v5752, %v6142
  %v6181 = vld [vmem:[#allocation2 + $0x14] sm:$0xff]
  %v6182 = vld [vmem:[#allocation2 + $0x1c] sm:$0xff]
  %v6183 = vld [vmem:[#allocation2 + $0x24] sm:$0xff]
  %v6184 = vld [vmem:[#allocation2 + $0x2c] sm:$0xff]
  %v6185 = vld [vmem:[#allocation2 + $0x34] sm:$0xff]
  %v6186 = vld [vmem:[#allocation2 + $0x3c] sm:$0xff]
  %v6187 = vld [vmem:[#allocation2 + $0x44] sm:$0xff]
  %v6188 = vld [vmem:[#allocation2 + $0x4c] sm:$0xff]
  %v6189 = vld [vmem:[#allocation2 + $0x54] sm:$0xff]
  %v6190 = vld [vmem:[#allocation2 + $0x5c] sm:$0xff]
  %v6191 = vld [vmem:[#allocation2 + $0x64] sm:$0xff]
  %v6192 = vld [vmem:[#allocation2 + $0x6c] sm:$0xff]
  %v6193 = vld [vmem:[#allocation2 + $0x74] sm:$0xff]
  %v6194 = vld [vmem:[#allocation2 + $0x7c] sm:$0xff]
  %v6195 = vld [vmem:[#allocation2 + $0x84] sm:$0xff]
  %v6196 = vld [vmem:[#allocation2 + $0x8c] sm:$0xff]
  %v6197 = vld [vmem:[#allocation2 + $0x94] sm:$0xff]
  %v6198 = vld [vmem:[#allocation2 + $0x9c] sm:$0xff]
  %v6199 = vld [vmem:[#allocation2 + $0xa4] sm:$0xff]
  %v6200 = vld [vmem:[#allocation2 + $0xac] sm:$0xff]
  %v6201 = vld [vmem:[#allocation2 + $0xb4] sm:$0xff]
  %v6202 = vld [vmem:[#allocation2 + $0xbc] sm:$0xff]
  %v6203 = vld [vmem:[#allocation2 + $0xc4] sm:$0xff]
  %v6204 = vld [vmem:[#allocation2 + $0xcc] sm:$0xff]
  %v6205 = vld [vmem:[#allocation2 + $0xd4] sm:$0xff]
  %v6206 = vld [vmem:[#allocation2 + $0xdc] sm:$0xff]
  %v6207 = vld [vmem:[#allocation2 + $0xe4] sm:$0xff]
  %v6208 = vld [vmem:[#allocation2 + $0xec] sm:$0xff]
  %v6209 = vld [vmem:[#allocation2 + $0xf4] sm:$0xff]
  %v6210 = vld [vmem:[#allocation2 + $0xfc] sm:$0xff]
  %v6211 = vld [vmem:[#allocation2 + $0x104] sm:$0xff]
  %v6212 = vld [vmem:[#allocation2 + $0x10c] sm:$0xff]
  %v6213 = vld [vmem:[#allocation2 + $0x114] sm:$0xff]
  %v6214 = vld [vmem:[#allocation2 + $0x11c] sm:$0xff]
  %v6215 = vld [vmem:[#allocation2 + $0x124] sm:$0xff]
  %v6216 = vld [vmem:[#allocation2 + $0x12c] sm:$0xff]
  %s6217 = scalar_lea.vmem %s3, 80
  %v6218 = vld [vmem:[%s6217] sm:$0xff]
  %v6219 = vld [vmem:[%s6217 + $0x8] sm:$0xff]
  %v6221 = vsel %vm3852, %v6181, 0
  %v6224 = vsel %vm3852, %v6182, 0
  %v6227 = vsel %vm3852, %v6183, 0
  %v6230 = vsel %vm3852, %v6184, 0
  %v6233 = vsel %vm3852, %v6185, 0
  %v6236 = vsel %vm3852, %v6186, 0
  %v6239 = vsel %vm3852, %v6187, 0
  %v6242 = vsel %vm3852, %v6188, 0
  %v6245 = vsel %vm3852, %v6189, 0
  %v6248 = vsel %vm3852, %v6190, 0
  %v6251 = vsel %vm3852, %v6191, 0
  %v6254 = vsel %vm3852, %v6192, 0
  %v6257 = vsel %vm3852, %v6193, 0
  %v6260 = vsel %vm3852, %v6194, 0
  %v6263 = vsel %vm3852, %v6195, 0
  %v6266 = vsel %vm3852, %v6196, 0
  %v6269 = vsel %vm3852, %v6197, 0
  %v6272 = vsel %vm3852, %v6198, 0
  %v6275 = vsel %vm3852, %v6199, 0
  %v6278 = vsel %vm3852, %v6200, 0
  %v6281 = vsel %vm3852, %v6201, 0
  %v6284 = vsel %vm3852, %v6202, 0
  %v6287 = vsel %vm3852, %v6203, 0
  %v6290 = vsel %vm3852, %v6204, 0
  %v6293 = vsel %vm3852, %v6205, 0
  %v6296 = vsel %vm3852, %v6206, 0
  %v6299 = vsel %vm3852, %v6207, 0
  %v6302 = vsel %vm3852, %v6208, 0
  %v6305 = vsel %vm3852, %v6209, 0
  %v6308 = vsel %vm3852, %v6210, 0
  %v6311 = vsel %vm3852, %v6211, 0
  %v6314 = vsel %vm3852, %v6212, 0
  %v6317 = vsel %vm3852, %v6213, 0
  %v6320 = vsel %vm3852, %v6214, 0
  %v6323 = vsel %vm3852, %v6215, 0
  %v6326 = vsel %vm3852, %v6216, 0
  %6328 = vmatprep.subr.mxu0 0.0
  %6329 = vmatpush1.msra.mxu0 %v6218
  %6330 = vmatprep.subr.mxu0 0.0
  %6331 = vmatpush1.msra.mxu0 %v6219
  %6332 = vmatprep.subr.mxu0 0.0
  %6333 = vmatpush1.msra.mxu0 0.0
  %6334 = vmatprep.subr.mxu0 0.0
  %6335 = vmatpush1.msra.mxu0 0.0
  %6336 = vmatprep.subr.mxu0 0.0
  %6337 = vmatpush1.msra.mxu0 0.0
  %6338 = vmatprep.subr.mxu0 0.0
  %6339 = vmatpush1.msra.mxu0 0.0
  %6340 = vmatprep.subr.mxu0 0.0
  %6341 = vmatpush1.msra.mxu0 0.0
  %6342 = vmatprep.subr.mxu0 0.0
  %6343 = vmatpush1.msra.mxu0 0.0
  %6344 = vmatprep.subr.mxu0 0.0
  %6345 = vmatpush1.msra.mxu0 0.0
  %6346 = vmatprep.subr.mxu0 0.0
  %6347 = vmatpush1.msra.mxu0 0.0
  %6348 = vmatprep.subr.mxu0 0.0
  %6349 = vmatpush1.msra.mxu0 0.0
  %6350 = vmatprep.subr.mxu0 0.0
  %6351 = vmatpush1.msra.mxu0 0.0
  %6352 = vmatprep.subr.mxu0 0.0
  %6353 = vmatpush1.msra.mxu0 0.0
  %6354 = vmatprep.subr.mxu0 0.0
  %6355 = vmatpush1.msra.mxu0 0.0
  %6356 = vmatprep.subr.mxu0 0.0
  %6357 = vmatpush1.msra.mxu0 0.0
  %6358 = vmatprep.subr.mxu0 0.0
  %6359 = vmatpush1.msra.mxu0 0.0
  %6360 = vmatprep.subr.mxu0 0.0
  %6361 = vmatpush1.msra.mxu0 0.0
  %6362 = vmatprep.subr.mxu0 0.0
  %6363 = vmatpush1.msra.mxu0 0.0
  %6364 = vmatprep.subr.mxu0 0.0
  %6365 = vmatpush1.msra.mxu0 0.0
  %6366 = vmatprep.subr.mxu0 0.0
  %6367 = vmatpush1.msra.mxu0 0.0
  %6368 = vmatprep.subr.mxu0 0.0
  %6369 = vmatpush1.msra.mxu0 0.0
  %6370 = vmatprep.subr.mxu0 0.0
  %6371 = vmatpush1.msra.mxu0 0.0
  %6372 = vmatprep.subr.mxu0 0.0
  %6373 = vmatpush1.msra.mxu0 0.0
  %6374 = vmatprep.subr.mxu0 0.0
  %6375 = vmatpush1.msra.mxu0 0.0
  %6376 = vmatprep.subr.mxu0 0.0
  %6377 = vmatpush1.msra.mxu0 0.0
  %6378 = vmatprep.subr.mxu0 0.0
  %6379 = vmatpush1.msra.mxu0 0.0
  %6380 = vmatprep.subr.mxu0 0.0
  %6381 = vmatpush1.msra.mxu0 0.0
  %6382 = vmatprep.subr.mxu0 0.0
  %6383 = vmatpush1.msra.mxu0 0.0
  %6384 = vmatprep.subr.mxu0 0.0
  %6385 = vmatpush1.msra.mxu0 0.0
  %6386 = vmatprep.subr.mxu0 0.0
  %6387 = vmatpush1.msra.mxu0 0.0
  %6388 = vmatprep.subr.mxu0 0.0
  %6389 = vmatpush1.msra.mxu0 0.0
  %6390 = vmatprep.subr.mxu0 0.0
  %6391 = vmatpush1.msra.mxu0 0.0
  %6392 = vmatprep.mubr.f32.mxu0 0.0
  %6393 = vmatmul.mubr.f32.gmra.mrb[0].mxu0 %v6221
  %v6394 = vpop.f32.mrb[0].mxu0
  %v6395 = vadd.f32 0.0, %v6394
  %v6396 = vpop.f32.mrb[0].mxu0
  %6397 = vmatprep.mubr.f32.mxu0 0.0
  %6398 = vmatmul.mubr.f32.gmra.mrb[0].mxu0 %v6224
  %v6399 = vpop.f32.mrb[0].mxu0
  %v6400 = vadd.f32 0.0, %v6399
  %v6401 = vpop.f32.mrb[0].mxu0
  %6402 = vmatprep.mubr.f32.mxu0 0.0
  %6403 = vmatmul.mubr.f32.gmra.mrb[0].mxu0 %v6227
  %v6404 = vpop.f32.mrb[0].mxu0
  %v6405 = vadd.f32 0.0, %v6404
  %v6406 = vpop.f32.mrb[0].mxu0
  %6407 = vmatprep.mubr.f32.mxu0 0.0
  %6408 = vmatmul.mubr.f32.gmra.mrb[0].mxu0 %v6230
  %v6409 = vpop.f32.mrb[0].mxu0
  %v6410 = vadd.f32 0.0, %v6409
  %v6411 = vpop.f32.mrb[0].mxu0
  %6412 = vmatprep.mubr.f32.mxu0 0.0
  %6413 = vmatmul.mubr.f32.gmra.mrb[0].mxu0 %v6233
  %v6414 = vpop.f32.mrb[0].mxu0
  %v6415 = vadd.f32 0.0, %v6414
  %v6416 = vpop.f32.mrb[0].mxu0
  %6417 = vmatprep.mubr.f32.mxu0 0.0
  %6418 = vmatmul.mubr.f32.gmra.mrb[0].mxu0 %v6236
  %v6419 = vpop.f32.mrb[0].mxu0
  %v6420 = vadd.f32 0.0, %v6419
  %v6421 = vpop.f32.mrb[0].mxu0
  %6422 = vmatprep.mubr.f32.mxu0 0.0
  %6423 = vmatmul.mubr.f32.gmra.mrb[0].mxu0 %v6239
  %v6424 = vpop.f32.mrb[0].mxu0
  %v6425 = vadd.f32 0.0, %v6424
  %v6426 = vpop.f32.mrb[0].mxu0
  %6427 = vmatprep.mubr.f32.mxu0 0.0
  %6428 = vmatmul.mubr.f32.gmra.mrb[0].mxu0 %v6242
  %v6429 = vpop.f32.mrb[0].mxu0
  %v6430 = vadd.f32 0.0, %v6429
  %v6431 = vpop.f32.mrb[0].mxu0
  %6432 = vmatprep.mubr.f32.mxu0 0.0
  %6433 = vmatmul.mubr.f32.gmra.mrb[0].mxu0 %v6245
  %v6434 = vpop.f32.mrb[0].mxu0
  %v6435 = vadd.f32 0.0, %v6434
  %v6436 = vpop.f32.mrb[0].mxu0
  %6437 = vmatprep.mubr.f32.mxu0 0.0
  %6438 = vmatmul.mubr.f32.gmra.mrb[0].mxu0 %v6248
  %v6439 = vpop.f32.mrb[0].mxu0
  %v6440 = vadd.f32 0.0, %v6439
  %v6441 = vpop.f32.mrb[0].mxu0
  %6442 = vmatprep.mubr.f32.mxu0 0.0
  %6443 = vmatmul.mubr.f32.gmra.mrb[0].mxu0 %v6251
  %v6444 = vpop.f32.mrb[0].mxu0
  %v6445 = vadd.f32 0.0, %v6444
  %v6446 = vpop.f32.mrb[0].mxu0
  %6447 = vmatprep.mubr.f32.mxu0 0.0
  %6448 = vmatmul.mubr.f32.gmra.mrb[0].mxu0 %v6254
  %v6449 = vpop.f32.mrb[0].mxu0
  %v6450 = vadd.f32 0.0, %v6449
  %v6451 = vpop.f32.mrb[0].mxu0
  %6452 = vmatprep.mubr.f32.mxu0 0.0
  %6453 = vmatmul.mubr.f32.gmra.mrb[0].mxu0 %v6257
  %v6454 = vpop.f32.mrb[0].mxu0
  %v6455 = vadd.f32 0.0, %v6454
  %v6456 = vpop.f32.mrb[0].mxu0
  %6457 = vmatprep.mubr.f32.mxu0 0.0
  %6458 = vmatmul.mubr.f32.gmra.mrb[0].mxu0 %v6260
  %v6459 = vpop.f32.mrb[0].mxu0
  %v6460 = vadd.f32 0.0, %v6459
  %v6461 = vpop.f32.mrb[0].mxu0
  %6462 = vmatprep.mubr.f32.mxu0 0.0
  %6463 = vmatmul.mubr.f32.gmra.mrb[0].mxu0 %v6263
  %v6464 = vpop.f32.mrb[0].mxu0
  %v6465 = vadd.f32 0.0, %v6464
  %v6466 = vpop.f32.mrb[0].mxu0
  %6467 = vmatprep.mubr.f32.mxu0 0.0
  %6468 = vmatmul.mubr.f32.gmra.mrb[0].mxu0 %v6266
  %v6469 = vpop.f32.mrb[0].mxu0
  %v6470 = vadd.f32 0.0, %v6469
  %v6471 = vpop.f32.mrb[0].mxu0
  %6472 = vmatprep.mubr.f32.mxu0 0.0
  %6473 = vmatmul.mubr.f32.gmra.mrb[0].mxu0 %v6269
  %v6474 = vpop.f32.mrb[0].mxu0
  %v6475 = vadd.f32 0.0, %v6474
  %v6476 = vpop.f32.mrb[0].mxu0
  %6477 = vmatprep.mubr.f32.mxu0 0.0
  %6478 = vmatmul.mubr.f32.gmra.mrb[0].mxu0 %v6272
  %v6479 = vpop.f32.mrb[0].mxu0
  %v6480 = vadd.f32 0.0, %v6479
  %v6481 = vpop.f32.mrb[0].mxu0
  %6482 = vmatprep.mubr.f32.mxu0 0.0
  %6483 = vmatmul.mubr.f32.gmra.mrb[0].mxu0 %v6275
  %v6484 = vpop.f32.mrb[0].mxu0
  %v6485 = vadd.f32 0.0, %v6484
  %v6486 = vpop.f32.mrb[0].mxu0
  %6487 = vmatprep.mubr.f32.mxu0 0.0
  %6488 = vmatmul.mubr.f32.gmra.mrb[0].mxu0 %v6278
  %v6489 = vpop.f32.mrb[0].mxu0
  %v6490 = vadd.f32 0.0, %v6489
  %v6491 = vpop.f32.mrb[0].mxu0
  %6492 = vmatprep.mubr.f32.mxu0 0.0
  %6493 = vmatmul.mubr.f32.gmra.mrb[0].mxu0 %v6281
  %v6494 = vpop.f32.mrb[0].mxu0
  %v6495 = vadd.f32 0.0, %v6494
  %v6496 = vpop.f32.mrb[0].mxu0
  %6497 = vmatprep.mubr.f32.mxu0 0.0
  %6498 = vmatmul.mubr.f32.gmra.mrb[0].mxu0 %v6284
  %v6499 = vpop.f32.mrb[0].mxu0
  %v6500 = vadd.f32 0.0, %v6499
  %v6501 = vpop.f32.mrb[0].mxu0
  %6502 = vmatprep.mubr.f32.mxu0 0.0
  %6503 = vmatmul.mubr.f32.gmra.mrb[0].mxu0 %v6287
  %v6504 = vpop.f32.mrb[0].mxu0
  %v6505 = vadd.f32 0.0, %v6504
  %v6506 = vpop.f32.mrb[0].mxu0
  %6507 = vmatprep.mubr.f32.mxu0 0.0
  %6508 = vmatmul.mubr.f32.gmra.mrb[0].mxu0 %v6290
  %v6509 = vpop.f32.mrb[0].mxu0
  %v6510 = vadd.f32 0.0, %v6509
  %v6511 = vpop.f32.mrb[0].mxu0
  %6512 = vmatprep.mubr.f32.mxu0 0.0
  %6513 = vmatmul.mubr.f32.gmra.mrb[0].mxu0 %v6293
  %v6514 = vpop.f32.mrb[0].mxu0
  %v6515 = vadd.f32 0.0, %v6514
  %v6516 = vpop.f32.mrb[0].mxu0
  %6517 = vmatprep.mubr.f32.mxu0 0.0
  %6518 = vmatmul.mubr.f32.gmra.mrb[0].mxu0 %v6296
  %v6519 = vpop.f32.mrb[0].mxu0
  %v6520 = vadd.f32 0.0, %v6519
  %v6521 = vpop.f32.mrb[0].mxu0
  %6522 = vmatprep.mubr.f32.mxu0 0.0
  %6523 = vmatmul.mubr.f32.gmra.mrb[0].mxu0 %v6299
  %v6524 = vpop.f32.mrb[0].mxu0
  %v6525 = vadd.f32 0.0, %v6524
  %v6526 = vpop.f32.mrb[0].mxu0
  %6527 = vmatprep.mubr.f32.mxu0 0.0
  %6528 = vmatmul.mubr.f32.gmra.mrb[0].mxu0 %v6302
  %v6529 = vpop.f32.mrb[0].mxu0
  %v6530 = vadd.f32 0.0, %v6529
  %v6531 = vpop.f32.mrb[0].mxu0
  %6532 = vmatprep.mubr.f32.mxu0 0.0
  %6533 = vmatmul.mubr.f32.gmra.mrb[0].mxu0 %v6305
  %v6534 = vpop.f32.mrb[0].mxu0
  %v6535 = vadd.f32 0.0, %v6534
  %v6536 = vpop.f32.mrb[0].mxu0
  %6537 = vmatprep.mubr.f32.mxu0 0.0
  %6538 = vmatmul.mubr.f32.gmra.mrb[0].mxu0 %v6308
  %v6539 = vpop.f32.mrb[0].mxu0
  %v6540 = vadd.f32 0.0, %v6539
  %v6541 = vpop.f32.mrb[0].mxu0
  %6542 = vmatprep.mubr.f32.mxu0 0.0
  %6543 = vmatmul.mubr.f32.gmra.mrb[0].mxu0 %v6311
  %v6544 = vpop.f32.mrb[0].mxu0
  %v6545 = vadd.f32 0.0, %v6544
  %v6546 = vpop.f32.mrb[0].mxu0
  %6547 = vmatprep.mubr.f32.mxu0 0.0
  %6548 = vmatmul.mubr.f32.gmra.mrb[0].mxu0 %v6314
  %v6549 = vpop.f32.mrb[0].mxu0
  %v6550 = vadd.f32 0.0, %v6549
  %v6551 = vpop.f32.mrb[0].mxu0
  %6552 = vmatprep.mubr.f32.mxu0 0.0
  %6553 = vmatmul.mubr.f32.gmra.mrb[0].mxu0 %v6317
  %v6554 = vpop.f32.mrb[0].mxu0
  %v6555 = vadd.f32 0.0, %v6554
  %v6556 = vpop.f32.mrb[0].mxu0
  %6557 = vmatprep.mubr.f32.mxu0 0.0
  %6558 = vmatmul.mubr.f32.gmra.mrb[0].mxu0 %v6320
  %v6559 = vpop.f32.mrb[0].mxu0
  %v6560 = vadd.f32 0.0, %v6559
  %v6561 = vpop.f32.mrb[0].mxu0
  %6562 = vmatprep.mubr.f32.mxu0 0.0
  %6563 = vmatmul.mubr.f32.gmra.mrb[0].mxu0 %v6323
  %v6564 = vpop.f32.mrb[0].mxu0
  %v6565 = vadd.f32 0.0, %v6564
  %v6566 = vpop.f32.mrb[0].mxu0
  %6567 = vmatprep.mubr.f32.mxu0 0.0
  %6568 = vmatmul.mubr.f32.gmra.mrb[0].mxu0 %v6326
  %v6569 = vpop.f32.mrb[0].mxu0
  %v6570 = vadd.f32 0.0, %v6569
  %v6571 = vpop.f32.mrb[0].mxu0
  %6572 = vdwg.mxu0
  %v6573 = vadd.f32 %v6145, %v6395
  %v6574 = vadd.f32 %v6146, %v6400
  %v6575 = vadd.f32 %v6147, %v6405
  %v6576 = vadd.f32 %v6148, %v6410
  %v6577 = vadd.f32 %v6149, %v6415
  %v6578 = vadd.f32 %v6150, %v6420
  %v6579 = vadd.f32 %v6151, %v6425
  %v6580 = vadd.f32 %v6152, %v6430
  %v6581 = vadd.f32 %v6153, %v6435
  %v6582 = vadd.f32 %v6154, %v6440
  %v6583 = vadd.f32 %v6155, %v6445
  %v6584 = vadd.f32 %v6156, %v6450
  %v6585 = vadd.f32 %v6157, %v6455
  %v6586 = vadd.f32 %v6158, %v6460
  %v6587 = vadd.f32 %v6159, %v6465
  %v6588 = vadd.f32 %v6160, %v6470
  %v6589 = vadd.f32 %v6161, %v6475
  %v6590 = vadd.f32 %v6162, %v6480
  %v6591 = vadd.f32 %v6163, %v6485
  %v6592 = vadd.f32 %v6164, %v6490
  %v6593 = vadd.f32 %v6165, %v6495
  %v6594 = vadd.f32 %v6166, %v6500
  %v6595 = vadd.f32 %v6167, %v6505
  %v6596 = vadd.f32 %v6168, %v6510
  %v6597 = vadd.f32 %v6169, %v6515
  %v6598 = vadd.f32 %v6170, %v6520
  %v6599 = vadd.f32 %v6171, %v6525
  %v6600 = vadd.f32 %v6172, %v6530
  %v6601 = vadd.f32 %v6173, %v6535
  %v6602 = vadd.f32 %v6174, %v6540
  %v6603 = vadd.f32 %v6175, %v6545
  %v6604 = vadd.f32 %v6176, %v6550
  %v6605 = vadd.f32 %v6177, %v6555
  %v6606 = vadd.f32 %v6178, %v6560
  %v6607 = vadd.f32 %v6179, %v6565
  %v6608 = vadd.f32 %v6180, %v6570
  %v6609 = vld [vmem:[#allocation2 + $0x24] sm:$0xff]
  %v6610 = vld [vmem:[#allocation2 + $0x2c] sm:$0xff]
  %v6611 = vld [vmem:[#allocation2 + $0x34] sm:$0xff]
  %v6612 = vld [vmem:[#allocation2 + $0x3c] sm:$0xff]
  %v6613 = vld [vmem:[#allocation2 + $0x44] sm:$0xff]
  %v6614 = vld [vmem:[#allocation2 + $0x4c] sm:$0xff]
  %v6615 = vld [vmem:[#allocation2 + $0x54] sm:$0xff]
  %v6616 = vld [vmem:[#allocation2 + $0x5c] sm:$0xff]
  %v6617 = vld [vmem:[#allocation2 + $0x64] sm:$0xff]
  %v6618 = vld [vmem:[#allocation2 + $0x6c] sm:$0xff]
  %v6619 = vld [vmem:[#allocation2 + $0x74] sm:$0xff]
  %v6620 = vld [vmem:[#allocation2 + $0x7c] sm:$0xff]
  %v6621 = vld [vmem:[#allocation2 + $0x84] sm:$0xff]
  %v6622 = vld [vmem:[#allocation2 + $0x8c] sm:$0xff]
  %v6623 = vld [vmem:[#allocation2 + $0x94] sm:$0xff]
  %v6624 = vld [vmem:[#allocation2 + $0x9c] sm:$0xff]
  %v6625 = vld [vmem:[#allocation2 + $0xa4] sm:$0xff]
  %v6626 = vld [vmem:[#allocation2 + $0xac] sm:$0xff]
  %v6627 = vld [vmem:[#allocation2 + $0xb4] sm:$0xff]
  %v6628 = vld [vmem:[#allocation2 + $0xbc] sm:$0xff]
  %v6629 = vld [vmem:[#allocation2 + $0xc4] sm:$0xff]
  %v6630 = vld [vmem:[#allocation2 + $0xcc] sm:$0xff]
  %v6631 = vld [vmem:[#allocation2 + $0xd4] sm:$0xff]
  %v6632 = vld [vmem:[#allocation2 + $0xdc] sm:$0xff]
  %v6633 = vld [vmem:[#allocation2 + $0xe4] sm:$0xff]
  %v6634 = vld [vmem:[#allocation2 + $0xec] sm:$0xff]
  %v6635 = vld [vmem:[#allocation2 + $0xf4] sm:$0xff]
  %v6636 = vld [vmem:[#allocation2 + $0xfc] sm:$0xff]
  %v6637 = vld [vmem:[#allocation2 + $0x104] sm:$0xff]
  %v6638 = vld [vmem:[#allocation2 + $0x10c] sm:$0xff]
  %v6639 = vld [vmem:[#allocation2 + $0x114] sm:$0xff]
  %v6640 = vld [vmem:[#allocation2 + $0x11c] sm:$0xff]
  %v6641 = vld [vmem:[#allocation2 + $0x124] sm:$0xff]
  %v6642 = vld [vmem:[#allocation2 + $0x12c] sm:$0xff]
  %v6643 = vld [vmem:[#allocation2 + $0x134] sm:$0xff]
  %v6644 = vld [vmem:[#allocation2 + $0x13c] sm:$0xff]
  %s6645 = scalar_lea.vmem %s3, 96
  %v6646 = vld [vmem:[%s6645] sm:$0xff]
  %v6647 = vld [vmem:[%s6645 + $0x8] sm:$0xff]
  %v6649 = vsel %vm3852, %v6609, 0
  %v6652 = vsel %vm3852, %v6610, 0
  %v6655 = vsel %vm3852, %v6611, 0
  %v6658 = vsel %vm3852, %v6612, 0
  %v6661 = vsel %vm3852, %v6613, 0
  %v6664 = vsel %vm3852, %v6614, 0
  %v6667 = vsel %vm3852, %v6615, 0
  %v6670 = vsel %vm3852, %v6616, 0
  %v6673 = vsel %vm3852, %v6617, 0
  %v6676 = vsel %vm3852, %v6618, 0
  %v6679 = vsel %vm3852, %v6619, 0
  %v6682 = vsel %vm3852, %v6620, 0
  %v6685 = vsel %vm3852, %v6621, 0
  %v6688 = vsel %vm3852, %v6622, 0
  %v6691 = vsel %vm3852, %v6623, 0
  %v6694 = vsel %vm3852, %v6624, 0
  %v6697 = vsel %vm3852, %v6625, 0
  %v6700 = vsel %vm3852, %v6626, 0
  %v6703 = vsel %vm3852, %v6627, 0
  %v6706 = vsel %vm3852, %v6628, 0
  %v6709 = vsel %vm3852, %v6629, 0
  %v6712 = vsel %vm3852, %v6630, 0
  %v6715 = vsel %vm3852, %v6631, 0
  %v6718 = vsel %vm3852, %v6632, 0
  %v6721 = vsel %vm3852, %v6633, 0
  %v6724 = vsel %vm3852, %v6634, 0
  %v6727 = vsel %vm3852, %v6635, 0
  %v6730 = vsel %vm3852, %v6636, 0
  %v6733 = vsel %vm3852, %v6637, 0
  %v6736 = vsel %vm3852, %v6638, 0
  %v6739 = vsel %vm3852, %v6639, 0
  %v6742 = vsel %vm3852, %v6640, 0
  %v6745 = vsel %vm3852, %v6641, 0
  %v6748 = vsel %vm3852, %v6642, 0
  %v6751 = vsel %vm3852, %v6643, 0
  %v6754 = vsel %vm3852, %v6644, 0
  %6756 = vmatprep.subr.mxu0 0.0
  %6757 = vmatpush1.msra.mxu0 %v6646
  %6758 = vmatprep.subr.mxu0 0.0
  %6759 = vmatpush1.msra.mxu0 %v6647
  %6760 = vmatprep.subr.mxu0 0.0
  %6761 = vmatpush1.msra.mxu0 0.0
  %6762 = vmatprep.subr.mxu0 0.0
  %6763 = vmatpush1.msra.mxu0 0.0
  %6764 = vmatprep.subr.mxu0 0.0
  %6765 = vmatpush1.msra.mxu0 0.0
  %6766 = vmatprep.subr.mxu0 0.0
  %6767 = vmatpush1.msra.mxu0 0.0
  %6768 = vmatprep.subr.mxu0 0.0
  %6769 = vmatpush1.msra.mxu0 0.0
  %6770 = vmatprep.subr.mxu0 0.0
  %6771 = vmatpush1.msra.mxu0 0.0
  %6772 = vmatprep.subr.mxu0 0.0
  %6773 = vmatpush1.msra.mxu0 0.0
  %6774 = vmatprep.subr.mxu0 0.0
  %6775 = vmatpush1.msra.mxu0 0.0
  %6776 = vmatprep.subr.mxu0 0.0
  %6777 = vmatpush1.msra.mxu0 0.0
  %6778 = vmatprep.subr.mxu0 0.0
  %6779 = vmatpush1.msra.mxu0 0.0
  %6780 = vmatprep.subr.mxu0 0.0
  %6781 = vmatpush1.msra.mxu0 0.0
  %6782 = vmatprep.subr.mxu0 0.0
  %6783 = vmatpush1.msra.mxu0 0.0
  %6784 = vmatprep.subr.mxu0 0.0
  %6785 = vmatpush1.msra.mxu0 0.0
  %6786 = vmatprep.subr.mxu0 0.0
  %6787 = vmatpush1.msra.mxu0 0.0
  %6788 = vmatprep.subr.mxu0 0.0
  %6789 = vmatpush1.msra.mxu0 0.0
  %6790 = vmatprep.subr.mxu0 0.0
  %6791 = vmatpush1.msra.mxu0 0.0
  %6792 = vmatprep.subr.mxu0 0.0
  %6793 = vmatpush1.msra.mxu0 0.0
  %6794 = vmatprep.subr.mxu0 0.0
  %6795 = vmatpush1.msra.mxu0 0.0
  %6796 = vmatprep.subr.mxu0 0.0
  %6797 = vmatpush1.msra.mxu0 0.0
  %6798 = vmatprep.subr.mxu0 0.0
  %6799 = vmatpush1.msra.mxu0 0.0
  %6800 = vmatprep.subr.mxu0 0.0
  %6801 = vmatpush1.msra.mxu0 0.0
  %6802 = vmatprep.subr.mxu0 0.0
  %6803 = vmatpush1.msra.mxu0 0.0
  %6804 = vmatprep.subr.mxu0 0.0
  %6805 = vmatpush1.msra.mxu0 0.0
  %6806 = vmatprep.subr.mxu0 0.0
  %6807 = vmatpush1.msra.mxu0 0.0
  %6808 = vmatprep.subr.mxu0 0.0
  %6809 = vmatpush1.msra.mxu0 0.0
  %6810 = vmatprep.subr.mxu0 0.0
  %6811 = vmatpush1.msra.mxu0 0.0
  %6812 = vmatprep.subr.mxu0 0.0
  %6813 = vmatpush1.msra.mxu0 0.0
  %6814 = vmatprep.subr.mxu0 0.0
  %6815 = vmatpush1.msra.mxu0 0.0
  %6816 = vmatprep.subr.mxu0 0.0
  %6817 = vmatpush1.msra.mxu0 0.0
  %6818 = vmatprep.subr.mxu0 0.0
  %6819 = vmatpush1.msra.mxu0 0.0
  %6820 = vmatprep.mubr.f32.mxu0 0.0
  %6821 = vmatmul.mubr.f32.gmra.mrb[0].mxu0 %v6649
  %v6822 = vpop.f32.mrb[0].mxu0
  %v6823 = vadd.f32 0.0, %v6822
  %v6824 = vpop.f32.mrb[0].mxu0
  %6825 = vmatprep.mubr.f32.mxu0 0.0
  %6826 = vmatmul.mubr.f32.gmra.mrb[0].mxu0 %v6652
  %v6827 = vpop.f32.mrb[0].mxu0
  %v6828 = vadd.f32 0.0, %v6827
  %v6829 = vpop.f32.mrb[0].mxu0
  %6830 = vmatprep.mubr.f32.mxu0 0.0
  %6831 = vmatmul.mubr.f32.gmra.mrb[0].mxu0 %v6655
  %v6832 = vpop.f32.mrb[0].mxu0
  %v6833 = vadd.f32 0.0, %v6832
  %v6834 = vpop.f32.mrb[0].mxu0
  %6835 = vmatprep.mubr.f32.mxu0 0.0
  %6836 = vmatmul.mubr.f32.gmra.mrb[0].mxu0 %v6658
  %v6837 = vpop.f32.mrb[0].mxu0
  %v6838 = vadd.f32 0.0, %v6837
  %v6839 = vpop.f32.mrb[0].mxu0
  %6840 = vmatprep.mubr.f32.mxu0 0.0
  %6841 = vmatmul.mubr.f32.gmra.mrb[0].mxu0 %v6661
  %v6842 = vpop.f32.mrb[0].mxu0
  %v6843 = vadd.f32 0.0, %v6842
  %v6844 = vpop.f32.mrb[0].mxu0
  %6845 = vmatprep.mubr.f32.mxu0 0.0
  %6846 = vmatmul.mubr.f32.gmra.mrb[0].mxu0 %v6664
  %v6847 = vpop.f32.mrb[0].mxu0
  %v6848 = vadd.f32 0.0, %v6847
  %v6849 = vpop.f32.mrb[0].mxu0
  %6850 = vmatprep.mubr.f32.mxu0 0.0
  %6851 = vmatmul.mubr.f32.gmra.mrb[0].mxu0 %v6667
  %v6852 = vpop.f32.mrb[0].mxu0
  %v6853 = vadd.f32 0.0, %v6852
  %v6854 = vpop.f32.mrb[0].mxu0
  %6855 = vmatprep.mubr.f32.mxu0 0.0
  %6856 = vmatmul.mubr.f32.gmra.mrb[0].mxu0 %v6670
  %v6857 = vpop.f32.mrb[0].mxu0
  %v6858 = vadd.f32 0.0, %v6857
  %v6859 = vpop.f32.mrb[0].mxu0
  %6860 = vmatprep.mubr.f32.mxu0 0.0
  %6861 = vmatmul.mubr.f32.gmra.mrb[0].mxu0 %v6673
  %v6862 = vpop.f32.mrb[0].mxu0
  %v6863 = vadd.f32 0.0, %v6862
  %v6864 = vpop.f32.mrb[0].mxu0
  %6865 = vmatprep.mubr.f32.mxu0 0.0
  %6866 = vmatmul.mubr.f32.gmra.mrb[0].mxu0 %v6676
  %v6867 = vpop.f32.mrb[0].mxu0
  %v6868 = vadd.f32 0.0, %v6867
  %v6869 = vpop.f32.mrb[0].mxu0
  %6870 = vmatprep.mubr.f32.mxu0 0.0
  %6871 = vmatmul.mubr.f32.gmra.mrb[0].mxu0 %v6679
  %v6872 = vpop.f32.mrb[0].mxu0
  %v6873 = vadd.f32 0.0, %v6872
  %v6874 = vpop.f32.mrb[0].mxu0
  %6875 = vmatprep.mubr.f32.mxu0 0.0
  %6876 = vmatmul.mubr.f32.gmra.mrb[0].mxu0 %v6682
  %v6877 = vpop.f32.mrb[0].mxu0
  %v6878 = vadd.f32 0.0, %v6877
  %v6879 = vpop.f32.mrb[0].mxu0
  %6880 = vmatprep.mubr.f32.mxu0 0.0
  %6881 = vmatmul.mubr.f32.gmra.mrb[0].mxu0 %v6685
  %v6882 = vpop.f32.mrb[0].mxu0
  %v6883 = vadd.f32 0.0, %v6882
  %v6884 = vpop.f32.mrb[0].mxu0
  %6885 = vmatprep.mubr.f32.mxu0 0.0
  %6886 = vmatmul.mubr.f32.gmra.mrb[0].mxu0 %v6688
  %v6887 = vpop.f32.mrb[0].mxu0
  %v6888 = vadd.f32 0.0, %v6887
  %v6889 = vpop.f32.mrb[0].mxu0
  %6890 = vmatprep.mubr.f32.mxu0 0.0
  %6891 = vmatmul.mubr.f32.gmra.mrb[0].mxu0 %v6691
  %v6892 = vpop.f32.mrb[0].mxu0
  %v6893 = vadd.f32 0.0, %v6892
  %v6894 = vpop.f32.mrb[0].mxu0
  %6895 = vmatprep.mubr.f32.mxu0 0.0
  %6896 = vmatmul.mubr.f32.gmra.mrb[0].mxu0 %v6694
  %v6897 = vpop.f32.mrb[0].mxu0
  %v6898 = vadd.f32 0.0, %v6897
  %v6899 = vpop.f32.mrb[0].mxu0
  %6900 = vmatprep.mubr.f32.mxu0 0.0
  %6901 = vmatmul.mubr.f32.gmra.mrb[0].mxu0 %v6697
  %v6902 = vpop.f32.mrb[0].mxu0
  %v6903 = vadd.f32 0.0, %v6902
  %v6904 = vpop.f32.mrb[0].mxu0
  %6905 = vmatprep.mubr.f32.mxu0 0.0
  %6906 = vmatmul.mubr.f32.gmra.mrb[0].mxu0 %v6700
  %v6907 = vpop.f32.mrb[0].mxu0
  %v6908 = vadd.f32 0.0, %v6907
  %v6909 = vpop.f32.mrb[0].mxu0
  %6910 = vmatprep.mubr.f32.mxu0 0.0
  %6911 = vmatmul.mubr.f32.gmra.mrb[0].mxu0 %v6703
  %v6912 = vpop.f32.mrb[0].mxu0
  %v6913 = vadd.f32 0.0, %v6912
  %v6914 = vpop.f32.mrb[0].mxu0
  %6915 = vmatprep.mubr.f32.mxu0 0.0
  %6916 = vmatmul.mubr.f32.gmra.mrb[0].mxu0 %v6706
  %v6917 = vpop.f32.mrb[0].mxu0
  %v6918 = vadd.f32 0.0, %v6917
  %v6919 = vpop.f32.mrb[0].mxu0
  %6920 = vmatprep.mubr.f32.mxu0 0.0
  %6921 = vmatmul.mubr.f32.gmra.mrb[0].mxu0 %v6709
  %v6922 = vpop.f32.mrb[0].mxu0
  %v6923 = vadd.f32 0.0, %v6922
  %v6924 = vpop.f32.mrb[0].mxu0
  %6925 = vmatprep.mubr.f32.mxu0 0.0
  %6926 = vmatmul.mubr.f32.gmra.mrb[0].mxu0 %v6712
  %v6927 = vpop.f32.mrb[0].mxu0
  %v6928 = vadd.f32 0.0, %v6927
  %v6929 = vpop.f32.mrb[0].mxu0
  %6930 = vmatprep.mubr.f32.mxu0 0.0
  %6931 = vmatmul.mubr.f32.gmra.mrb[0].mxu0 %v6715
  %v6932 = vpop.f32.mrb[0].mxu0
  %v6933 = vadd.f32 0.0, %v6932
  %v6934 = vpop.f32.mrb[0].mxu0
  %6935 = vmatprep.mubr.f32.mxu0 0.0
  %6936 = vmatmul.mubr.f32.gmra.mrb[0].mxu0 %v6718
  %v6937 = vpop.f32.mrb[0].mxu0
  %v6938 = vadd.f32 0.0, %v6937
  %v6939 = vpop.f32.mrb[0].mxu0
  %6940 = vmatprep.mubr.f32.mxu0 0.0
  %6941 = vmatmul.mubr.f32.gmra.mrb[0].mxu0 %v6721
  %v6942 = vpop.f32.mrb[0].mxu0
  %v6943 = vadd.f32 0.0, %v6942
  %v6944 = vpop.f32.mrb[0].mxu0
  %6945 = vmatprep.mubr.f32.mxu0 0.0
  %6946 = vmatmul.mubr.f32.gmra.mrb[0].mxu0 %v6724
  %v6947 = vpop.f32.mrb[0].mxu0
  %v6948 = vadd.f32 0.0, %v6947
  %v6949 = vpop.f32.mrb[0].mxu0
  %6950 = vmatprep.mubr.f32.mxu0 0.0
  %6951 = vmatmul.mubr.f32.gmra.mrb[0].mxu0 %v6727
  %v6952 = vpop.f32.mrb[0].mxu0
  %v6953 = vadd.f32 0.0, %v6952
  %v6954 = vpop.f32.mrb[0].mxu0
  %6955 = vmatprep.mubr.f32.mxu0 0.0
  %6956 = vmatmul.mubr.f32.gmra.mrb[0].mxu0 %v6730
  %v6957 = vpop.f32.mrb[0].mxu0
  %v6958 = vadd.f32 0.0, %v6957
  %v6959 = vpop.f32.mrb[0].mxu0
  %6960 = vmatprep.mubr.f32.mxu0 0.0
  %6961 = vmatmul.mubr.f32.gmra.mrb[0].mxu0 %v6733
  %v6962 = vpop.f32.mrb[0].mxu0
  %v6963 = vadd.f32 0.0, %v6962
  %v6964 = vpop.f32.mrb[0].mxu0
  %6965 = vmatprep.mubr.f32.mxu0 0.0
  %6966 = vmatmul.mubr.f32.gmra.mrb[0].mxu0 %v6736
  %v6967 = vpop.f32.mrb[0].mxu0
  %v6968 = vadd.f32 0.0, %v6967
  %v6969 = vpop.f32.mrb[0].mxu0
  %6970 = vmatprep.mubr.f32.mxu0 0.0
  %6971 = vmatmul.mubr.f32.gmra.mrb[0].mxu0 %v6739
  %v6972 = vpop.f32.mrb[0].mxu0
  %v6973 = vadd.f32 0.0, %v6972
  %v6974 = vpop.f32.mrb[0].mxu0
  %6975 = vmatprep.mubr.f32.mxu0 0.0
  %6976 = vmatmul.mubr.f32.gmra.mrb[0].mxu0 %v6742
  %v6977 = vpop.f32.mrb[0].mxu0
  %v6978 = vadd.f32 0.0, %v6977
  %v6979 = vpop.f32.mrb[0].mxu0
  %6980 = vmatprep.mubr.f32.mxu0 0.0
  %6981 = vmatmul.mubr.f32.gmra.mrb[0].mxu0 %v6745
  %v6982 = vpop.f32.mrb[0].mxu0
  %v6983 = vadd.f32 0.0, %v6982
  %v6984 = vpop.f32.mrb[0].mxu0
  %6985 = vmatprep.mubr.f32.mxu0 0.0
  %6986 = vmatmul.mubr.f32.gmra.mrb[0].mxu0 %v6748
  %v6987 = vpop.f32.mrb[0].mxu0
  %v6988 = vadd.f32 0.0, %v6987
  %v6989 = vpop.f32.mrb[0].mxu0
  %6990 = vmatprep.mubr.f32.mxu0 0.0
  %6991 = vmatmul.mubr.f32.gmra.mrb[0].mxu0 %v6751
  %v6992 = vpop.f32.mrb[0].mxu0
  %v6993 = vadd.f32 0.0, %v6992
  %v6994 = vpop.f32.mrb[0].mxu0
  %6995 = vmatprep.mubr.f32.mxu0 0.0
  %6996 = vmatmul.mubr.f32.gmra.mrb[0].mxu0 %v6754
  %v6997 = vpop.f32.mrb[0].mxu0
  %v6998 = vadd.f32 0.0, %v6997
  %v6999 = vpop.f32.mrb[0].mxu0
  %7000 = vdwg.mxu0
  %v7001 = vadd.f32 %v6573, %v6823
  %v7002 = vadd.f32 %v6574, %v6828
  %v7003 = vadd.f32 %v6575, %v6833
  %v7004 = vadd.f32 %v6576, %v6838
  %v7005 = vadd.f32 %v6577, %v6843
  %v7006 = vadd.f32 %v6578, %v6848
  %v7007 = vadd.f32 %v6579, %v6853
  %v7008 = vadd.f32 %v6580, %v6858
  %v7009 = vadd.f32 %v6581, %v6863
  %v7010 = vadd.f32 %v6582, %v6868
  %v7011 = vadd.f32 %v6583, %v6873
  %v7012 = vadd.f32 %v6584, %v6878
  %v7013 = vadd.f32 %v6585, %v6883
  %v7014 = vadd.f32 %v6586, %v6888
  %v7015 = vadd.f32 %v6587, %v6893
  %v7016 = vadd.f32 %v6588, %v6898
  %v7017 = vadd.f32 %v6589, %v6903
  %v7018 = vadd.f32 %v6590, %v6908
  %v7019 = vadd.f32 %v6591, %v6913
  %v7020 = vadd.f32 %v6592, %v6918
  %v7021 = vadd.f32 %v6593, %v6923
  %v7022 = vadd.f32 %v6594, %v6928
  %v7023 = vadd.f32 %v6595, %v6933
  %v7024 = vadd.f32 %v6596, %v6938
  %v7025 = vadd.f32 %v6597, %v6943
  %v7026 = vadd.f32 %v6598, %v6948
  %v7027 = vadd.f32 %v6599, %v6953
  %v7028 = vadd.f32 %v6600, %v6958
  %v7029 = vadd.f32 %v6601, %v6963
  %v7030 = vadd.f32 %v6602, %v6968
  %v7031 = vadd.f32 %v6603, %v6973
  %v7032 = vadd.f32 %v6604, %v6978
  %v7033 = vadd.f32 %v6605, %v6983
  %v7034 = vadd.f32 %v6606, %v6988
  %v7035 = vadd.f32 %v6607, %v6993
  %v7036 = vadd.f32 %v6608, %v6998
  %v7037 = vld [vmem:[#allocation2 + $0x25] sm:$0xff]
  %v7038 = vld [vmem:[#allocation2 + $0x2d] sm:$0xff]
  %v7039 = vld [vmem:[#allocation2 + $0x35] sm:$0xff]
  %v7040 = vld [vmem:[#allocation2 + $0x3d] sm:$0xff]
  %v7041 = vld [vmem:[#allocation2 + $0x45] sm:$0xff]
  %v7042 = vld [vmem:[#allocation2 + $0x4d] sm:$0xff]
  %v7043 = vld [vmem:[#allocation2 + $0x55] sm:$0xff]
  %v7044 = vld [vmem:[#allocation2 + $0x5d] sm:$0xff]
  %v7045 = vld [vmem:[#allocation2 + $0x65] sm:$0xff]
  %v7046 = vld [vmem:[#allocation2 + $0x6d] sm:$0xff]
  %v7047 = vld [vmem:[#allocation2 + $0x75] sm:$0xff]
  %v7048 = vld [vmem:[#allocation2 + $0x7d] sm:$0xff]
  %v7049 = vld [vmem:[#allocation2 + $0x85] sm:$0xff]
  %v7050 = vld [vmem:[#allocation2 + $0x8d] sm:$0xff]
  %v7051 = vld [vmem:[#allocation2 + $0x95] sm:$0xff]
  %v7052 = vld [vmem:[#allocation2 + $0x9d] sm:$0xff]
  %v7053 = vld [vmem:[#allocation2 + $0xa5] sm:$0xff]
  %v7054 = vld [vmem:[#allocation2 + $0xad] sm:$0xff]
  %v7055 = vld [vmem:[#allocation2 + $0xb5] sm:$0xff]
  %v7056 = vld [vmem:[#allocation2 + $0xbd] sm:$0xff]
  %v7057 = vld [vmem:[#allocation2 + $0xc5] sm:$0xff]
  %v7058 = vld [vmem:[#allocation2 + $0xcd] sm:$0xff]
  %v7059 = vld [vmem:[#allocation2 + $0xd5] sm:$0xff]
  %v7060 = vld [vmem:[#allocation2 + $0xdd] sm:$0xff]
  %v7061 = vld [vmem:[#allocation2 + $0xe5] sm:$0xff]
  %v7062 = vld [vmem:[#allocation2 + $0xed] sm:$0xff]
  %v7063 = vld [vmem:[#allocation2 + $0xf5] sm:$0xff]
  %v7064 = vld [vmem:[#allocation2 + $0xfd] sm:$0xff]
  %v7065 = vld [vmem:[#allocation2 + $0x105] sm:$0xff]
  %v7066 = vld [vmem:[#allocation2 + $0x10d] sm:$0xff]
  %v7067 = vld [vmem:[#allocation2 + $0x115] sm:$0xff]
  %v7068 = vld [vmem:[#allocation2 + $0x11d] sm:$0xff]
  %v7069 = vld [vmem:[#allocation2 + $0x125] sm:$0xff]
  %v7070 = vld [vmem:[#allocation2 + $0x12d] sm:$0xff]
  %v7071 = vld [vmem:[#allocation2 + $0x135] sm:$0xff]
  %v7072 = vld [vmem:[#allocation2 + $0x13d] sm:$0xff]
  %s7073 = scalar_lea.vmem %s3, 112
  %v7074 = vld [vmem:[%s7073] sm:$0xff]
  %v7075 = vld [vmem:[%s7073 + $0x8] sm:$0xff]
  %v7077 = vsel %vm3852, %v7037, 0
  %v7080 = vsel %vm3852, %v7038, 0
  %v7083 = vsel %vm3852, %v7039, 0
  %v7086 = vsel %vm3852, %v7040, 0
  %v7089 = vsel %vm3852, %v7041, 0
  %v7092 = vsel %vm3852, %v7042, 0
  %v7095 = vsel %vm3852, %v7043, 0
  %v7098 = vsel %vm3852, %v7044, 0
  %v7101 = vsel %vm3852, %v7045, 0
  %v7104 = vsel %vm3852, %v7046, 0
  %v7107 = vsel %vm3852, %v7047, 0
  %v7110 = vsel %vm3852, %v7048, 0
  %v7113 = vsel %vm3852, %v7049, 0
  %v7116 = vsel %vm3852, %v7050, 0
  %v7119 = vsel %vm3852, %v7051, 0
  %v7122 = vsel %vm3852, %v7052, 0
  %v7125 = vsel %vm3852, %v7053, 0
  %v7128 = vsel %vm3852, %v7054, 0
  %v7131 = vsel %vm3852, %v7055, 0
  %v7134 = vsel %vm3852, %v7056, 0
  %v7137 = vsel %vm3852, %v7057, 0
  %v7140 = vsel %vm3852, %v7058, 0
  %v7143 = vsel %vm3852, %v7059, 0
  %v7146 = vsel %vm3852, %v7060, 0
  %v7149 = vsel %vm3852, %v7061, 0
  %v7152 = vsel %vm3852, %v7062, 0
  %v7155 = vsel %vm3852, %v7063, 0
  %v7158 = vsel %vm3852, %v7064, 0
  %v7161 = vsel %vm3852, %v7065, 0
  %v7164 = vsel %vm3852, %v7066, 0
  %v7167 = vsel %vm3852, %v7067, 0
  %v7170 = vsel %vm3852, %v7068, 0
  %v7173 = vsel %vm3852, %v7069, 0
  %v7176 = vsel %vm3852, %v7070, 0
  %v7179 = vsel %vm3852, %v7071, 0
  %v7182 = vsel %vm3852, %v7072, 0
  %7184 = vmatprep.subr.mxu0 0.0
  %7185 = vmatpush1.msra.mxu0 %v7074
  %7186 = vmatprep.subr.mxu0 0.0
  %7187 = vmatpush1.msra.mxu0 %v7075
  %7188 = vmatprep.subr.mxu0 0.0
  %7189 = vmatpush1.msra.mxu0 0.0
  %7190 = vmatprep.subr.mxu0 0.0
  %7191 = vmatpush1.msra.mxu0 0.0
  %7192 = vmatprep.subr.mxu0 0.0
  %7193 = vmatpush1.msra.mxu0 0.0
  %7194 = vmatprep.subr.mxu0 0.0
  %7195 = vmatpush1.msra.mxu0 0.0
  %7196 = vmatprep.subr.mxu0 0.0
  %7197 = vmatpush1.msra.mxu0 0.0
  %7198 = vmatprep.subr.mxu0 0.0
  %7199 = vmatpush1.msra.mxu0 0.0
  %7200 = vmatprep.subr.mxu0 0.0
  %7201 = vmatpush1.msra.mxu0 0.0
  %7202 = vmatprep.subr.mxu0 0.0
  %7203 = vmatpush1.msra.mxu0 0.0
  %7204 = vmatprep.subr.mxu0 0.0
  %7205 = vmatpush1.msra.mxu0 0.0
  %7206 = vmatprep.subr.mxu0 0.0
  %7207 = vmatpush1.msra.mxu0 0.0
  %7208 = vmatprep.subr.mxu0 0.0
  %7209 = vmatpush1.msra.mxu0 0.0
  %7210 = vmatprep.subr.mxu0 0.0
  %7211 = vmatpush1.msra.mxu0 0.0
  %7212 = vmatprep.subr.mxu0 0.0
  %7213 = vmatpush1.msra.mxu0 0.0
  %7214 = vmatprep.subr.mxu0 0.0
  %7215 = vmatpush1.msra.mxu0 0.0
  %7216 = vmatprep.subr.mxu0 0.0
  %7217 = vmatpush1.msra.mxu0 0.0
  %7218 = vmatprep.subr.mxu0 0.0
  %7219 = vmatpush1.msra.mxu0 0.0
  %7220 = vmatprep.subr.mxu0 0.0
  %7221 = vmatpush1.msra.mxu0 0.0
  %7222 = vmatprep.subr.mxu0 0.0
  %7223 = vmatpush1.msra.mxu0 0.0
  %7224 = vmatprep.subr.mxu0 0.0
  %7225 = vmatpush1.msra.mxu0 0.0
  %7226 = vmatprep.subr.mxu0 0.0
  %7227 = vmatpush1.msra.mxu0 0.0
  %7228 = vmatprep.subr.mxu0 0.0
  %7229 = vmatpush1.msra.mxu0 0.0
  %7230 = vmatprep.subr.mxu0 0.0
  %7231 = vmatpush1.msra.mxu0 0.0
  %7232 = vmatprep.subr.mxu0 0.0
  %7233 = vmatpush1.msra.mxu0 0.0
  %7234 = vmatprep.subr.mxu0 0.0
  %7235 = vmatpush1.msra.mxu0 0.0
  %7236 = vmatprep.subr.mxu0 0.0
  %7237 = vmatpush1.msra.mxu0 0.0
  %7238 = vmatprep.subr.mxu0 0.0
  %7239 = vmatpush1.msra.mxu0 0.0
  %7240 = vmatprep.subr.mxu0 0.0
  %7241 = vmatpush1.msra.mxu0 0.0
  %7242 = vmatprep.subr.mxu0 0.0
  %7243 = vmatpush1.msra.mxu0 0.0
  %7244 = vmatprep.subr.mxu0 0.0
  %7245 = vmatpush1.msra.mxu0 0.0
  %7246 = vmatprep.subr.mxu0 0.0
  %7247 = vmatpush1.msra.mxu0 0.0
  %7248 = vmatprep.mubr.f32.mxu0 0.0
  %7249 = vmatmul.mubr.f32.gmra.mrb[0].mxu0 %v7077
  %v7250 = vpop.f32.mrb[0].mxu0
  %v7251 = vadd.f32 0.0, %v7250
  %v7252 = vpop.f32.mrb[0].mxu0
  %7253 = vmatprep.mubr.f32.mxu0 0.0
  %7254 = vmatmul.mubr.f32.gmra.mrb[0].mxu0 %v7080
  %v7255 = vpop.f32.mrb[0].mxu0
  %v7256 = vadd.f32 0.0, %v7255
  %v7257 = vpop.f32.mrb[0].mxu0
  %7258 = vmatprep.mubr.f32.mxu0 0.0
  %7259 = vmatmul.mubr.f32.gmra.mrb[0].mxu0 %v7083
  %v7260 = vpop.f32.mrb[0].mxu0
  %v7261 = vadd.f32 0.0, %v7260
  %v7262 = vpop.f32.mrb[0].mxu0
  %7263 = vmatprep.mubr.f32.mxu0 0.0
  %7264 = vmatmul.mubr.f32.gmra.mrb[0].mxu0 %v7086
  %v7265 = vpop.f32.mrb[0].mxu0
  %v7266 = vadd.f32 0.0, %v7265
  %v7267 = vpop.f32.mrb[0].mxu0
  %7268 = vmatprep.mubr.f32.mxu0 0.0
  %7269 = vmatmul.mubr.f32.gmra.mrb[0].mxu0 %v7089
  %v7270 = vpop.f32.mrb[0].mxu0
  %v7271 = vadd.f32 0.0, %v7270
  %v7272 = vpop.f32.mrb[0].mxu0
  %7273 = vmatprep.mubr.f32.mxu0 0.0
  %7274 = vmatmul.mubr.f32.gmra.mrb[0].mxu0 %v7092
  %v7275 = vpop.f32.mrb[0].mxu0
  %v7276 = vadd.f32 0.0, %v7275
  %v7277 = vpop.f32.mrb[0].mxu0
  %7278 = vmatprep.mubr.f32.mxu0 0.0
  %7279 = vmatmul.mubr.f32.gmra.mrb[0].mxu0 %v7095
  %v7280 = vpop.f32.mrb[0].mxu0
  %v7281 = vadd.f32 0.0, %v7280
  %v7282 = vpop.f32.mrb[0].mxu0
  %7283 = vmatprep.mubr.f32.mxu0 0.0
  %7284 = vmatmul.mubr.f32.gmra.mrb[0].mxu0 %v7098
  %v7285 = vpop.f32.mrb[0].mxu0
  %v7286 = vadd.f32 0.0, %v7285
  %v7287 = vpop.f32.mrb[0].mxu0
  %7288 = vmatprep.mubr.f32.mxu0 0.0
  %7289 = vmatmul.mubr.f32.gmra.mrb[0].mxu0 %v7101
  %v7290 = vpop.f32.mrb[0].mxu0
  %v7291 = vadd.f32 0.0, %v7290
  %v7292 = vpop.f32.mrb[0].mxu0
  %7293 = vmatprep.mubr.f32.mxu0 0.0
  %7294 = vmatmul.mubr.f32.gmra.mrb[0].mxu0 %v7104
  %v7295 = vpop.f32.mrb[0].mxu0
  %v7296 = vadd.f32 0.0, %v7295
  %v7297 = vpop.f32.mrb[0].mxu0
  %7298 = vmatprep.mubr.f32.mxu0 0.0
  %7299 = vmatmul.mubr.f32.gmra.mrb[0].mxu0 %v7107
  %v7300 = vpop.f32.mrb[0].mxu0
  %v7301 = vadd.f32 0.0, %v7300
  %v7302 = vpop.f32.mrb[0].mxu0
  %7303 = vmatprep.mubr.f32.mxu0 0.0
  %7304 = vmatmul.mubr.f32.gmra.mrb[0].mxu0 %v7110
  %v7305 = vpop.f32.mrb[0].mxu0
  %v7306 = vadd.f32 0.0, %v7305
  %v7307 = vpop.f32.mrb[0].mxu0
  %7308 = vmatprep.mubr.f32.mxu0 0.0
  %7309 = vmatmul.mubr.f32.gmra.mrb[0].mxu0 %v7113
  %v7310 = vpop.f32.mrb[0].mxu0
  %v7311 = vadd.f32 0.0, %v7310
  %v7312 = vpop.f32.mrb[0].mxu0
  %7313 = vmatprep.mubr.f32.mxu0 0.0
  %7314 = vmatmul.mubr.f32.gmra.mrb[0].mxu0 %v7116
  %v7315 = vpop.f32.mrb[0].mxu0
  %v7316 = vadd.f32 0.0, %v7315
  %v7317 = vpop.f32.mrb[0].mxu0
  %7318 = vmatprep.mubr.f32.mxu0 0.0
  %7319 = vmatmul.mubr.f32.gmra.mrb[0].mxu0 %v7119
  %v7320 = vpop.f32.mrb[0].mxu0
  %v7321 = vadd.f32 0.0, %v7320
  %v7322 = vpop.f32.mrb[0].mxu0
  %7323 = vmatprep.mubr.f32.mxu0 0.0
  %7324 = vmatmul.mubr.f32.gmra.mrb[0].mxu0 %v7122
  %v7325 = vpop.f32.mrb[0].mxu0
  %v7326 = vadd.f32 0.0, %v7325
  %v7327 = vpop.f32.mrb[0].mxu0
  %7328 = vmatprep.mubr.f32.mxu0 0.0
  %7329 = vmatmul.mubr.f32.gmra.mrb[0].mxu0 %v7125
  %v7330 = vpop.f32.mrb[0].mxu0
  %v7331 = vadd.f32 0.0, %v7330
  %v7332 = vpop.f32.mrb[0].mxu0
  %7333 = vmatprep.mubr.f32.mxu0 0.0
  %7334 = vmatmul.mubr.f32.gmra.mrb[0].mxu0 %v7128
  %v7335 = vpop.f32.mrb[0].mxu0
  %v7336 = vadd.f32 0.0, %v7335
  %v7337 = vpop.f32.mrb[0].mxu0
  %7338 = vmatprep.mubr.f32.mxu0 0.0
  %7339 = vmatmul.mubr.f32.gmra.mrb[0].mxu0 %v7131
  %v7340 = vpop.f32.mrb[0].mxu0
  %v7341 = vadd.f32 0.0, %v7340
  %v7342 = vpop.f32.mrb[0].mxu0
  %7343 = vmatprep.mubr.f32.mxu0 0.0
  %7344 = vmatmul.mubr.f32.gmra.mrb[0].mxu0 %v7134
  %v7345 = vpop.f32.mrb[0].mxu0
  %v7346 = vadd.f32 0.0, %v7345
  %v7347 = vpop.f32.mrb[0].mxu0
  %7348 = vmatprep.mubr.f32.mxu0 0.0
  %7349 = vmatmul.mubr.f32.gmra.mrb[0].mxu0 %v7137
  %v7350 = vpop.f32.mrb[0].mxu0
  %v7351 = vadd.f32 0.0, %v7350
  %v7352 = vpop.f32.mrb[0].mxu0
  %7353 = vmatprep.mubr.f32.mxu0 0.0
  %7354 = vmatmul.mubr.f32.gmra.mrb[0].mxu0 %v7140
  %v7355 = vpop.f32.mrb[0].mxu0
  %v7356 = vadd.f32 0.0, %v7355
  %v7357 = vpop.f32.mrb[0].mxu0
  %7358 = vmatprep.mubr.f32.mxu0 0.0
  %7359 = vmatmul.mubr.f32.gmra.mrb[0].mxu0 %v7143
  %v7360 = vpop.f32.mrb[0].mxu0
  %v7361 = vadd.f32 0.0, %v7360
  %v7362 = vpop.f32.mrb[0].mxu0
  %7363 = vmatprep.mubr.f32.mxu0 0.0
  %7364 = vmatmul.mubr.f32.gmra.mrb[0].mxu0 %v7146
  %v7365 = vpop.f32.mrb[0].mxu0
  %v7366 = vadd.f32 0.0, %v7365
  %v7367 = vpop.f32.mrb[0].mxu0
  %7368 = vmatprep.mubr.f32.mxu0 0.0
  %7369 = vmatmul.mubr.f32.gmra.mrb[0].mxu0 %v7149
  %v7370 = vpop.f32.mrb[0].mxu0
  %v7371 = vadd.f32 0.0, %v7370
  %v7372 = vpop.f32.mrb[0].mxu0
  %7373 = vmatprep.mubr.f32.mxu0 0.0
  %7374 = vmatmul.mubr.f32.gmra.mrb[0].mxu0 %v7152
  %v7375 = vpop.f32.mrb[0].mxu0
  %v7376 = vadd.f32 0.0, %v7375
  %v7377 = vpop.f32.mrb[0].mxu0
  %7378 = vmatprep.mubr.f32.mxu0 0.0
  %7379 = vmatmul.mubr.f32.gmra.mrb[0].mxu0 %v7155
  %v7380 = vpop.f32.mrb[0].mxu0
  %v7381 = vadd.f32 0.0, %v7380
  %v7382 = vpop.f32.mrb[0].mxu0
  %7383 = vmatprep.mubr.f32.mxu0 0.0
  %7384 = vmatmul.mubr.f32.gmra.mrb[0].mxu0 %v7158
  %v7385 = vpop.f32.mrb[0].mxu0
  %v7386 = vadd.f32 0.0, %v7385
  %v7387 = vpop.f32.mrb[0].mxu0
  %7388 = vmatprep.mubr.f32.mxu0 0.0
  %7389 = vmatmul.mubr.f32.gmra.mrb[0].mxu0 %v7161
  %v7390 = vpop.f32.mrb[0].mxu0
  %v7391 = vadd.f32 0.0, %v7390
  %v7392 = vpop.f32.mrb[0].mxu0
  %7393 = vmatprep.mubr.f32.mxu0 0.0
  %7394 = vmatmul.mubr.f32.gmra.mrb[0].mxu0 %v7164
  %v7395 = vpop.f32.mrb[0].mxu0
  %v7396 = vadd.f32 0.0, %v7395
  %v7397 = vpop.f32.mrb[0].mxu0
  %7398 = vmatprep.mubr.f32.mxu0 0.0
  %7399 = vmatmul.mubr.f32.gmra.mrb[0].mxu0 %v7167
  %v7400 = vpop.f32.mrb[0].mxu0
  %v7401 = vadd.f32 0.0, %v7400
  %v7402 = vpop.f32.mrb[0].mxu0
  %7403 = vmatprep.mubr.f32.mxu0 0.0
  %7404 = vmatmul.mubr.f32.gmra.mrb[0].mxu0 %v7170
  %v7405 = vpop.f32.mrb[0].mxu0
  %v7406 = vadd.f32 0.0, %v7405
  %v7407 = vpop.f32.mrb[0].mxu0
  %7408 = vmatprep.mubr.f32.mxu0 0.0
  %7409 = vmatmul.mubr.f32.gmra.mrb[0].mxu0 %v7173
  %v7410 = vpop.f32.mrb[0].mxu0
  %v7411 = vadd.f32 0.0, %v7410
  %v7412 = vpop.f32.mrb[0].mxu0
  %7413 = vmatprep.mubr.f32.mxu0 0.0
  %7414 = vmatmul.mubr.f32.gmra.mrb[0].mxu0 %v7176
  %v7415 = vpop.f32.mrb[0].mxu0
  %v7416 = vadd.f32 0.0, %v7415
  %v7417 = vpop.f32.mrb[0].mxu0
  %7418 = vmatprep.mubr.f32.mxu0 0.0
  %7419 = vmatmul.mubr.f32.gmra.mrb[0].mxu0 %v7179
  %v7420 = vpop.f32.mrb[0].mxu0
  %v7421 = vadd.f32 0.0, %v7420
  %v7422 = vpop.f32.mrb[0].mxu0
  %7423 = vmatprep.mubr.f32.mxu0 0.0
  %7424 = vmatmul.mubr.f32.gmra.mrb[0].mxu0 %v7182
  %v7425 = vpop.f32.mrb[0].mxu0
  %v7426 = vadd.f32 0.0, %v7425
  %v7427 = vpop.f32.mrb[0].mxu0
  %7428 = vdwg.mxu0
  %v7429 = vadd.f32 %v7001, %v7251
  %v7430 = vadd.f32 %v7002, %v7256
  %v7431 = vadd.f32 %v7003, %v7261
  %v7432 = vadd.f32 %v7004, %v7266
  %v7433 = vadd.f32 %v7005, %v7271
  %v7434 = vadd.f32 %v7006, %v7276
  %v7435 = vadd.f32 %v7007, %v7281
  %v7436 = vadd.f32 %v7008, %v7286
  %v7437 = vadd.f32 %v7009, %v7291
  %v7438 = vadd.f32 %v7010, %v7296
  %v7439 = vadd.f32 %v7011, %v7301
  %v7440 = vadd.f32 %v7012, %v7306
  %v7441 = vadd.f32 %v7013, %v7311
  %v7442 = vadd.f32 %v7014, %v7316
  %v7443 = vadd.f32 %v7015, %v7321
  %v7444 = vadd.f32 %v7016, %v7326
  %v7445 = vadd.f32 %v7017, %v7331
  %v7446 = vadd.f32 %v7018, %v7336
  %v7447 = vadd.f32 %v7019, %v7341
  %v7448 = vadd.f32 %v7020, %v7346
  %v7449 = vadd.f32 %v7021, %v7351
  %v7450 = vadd.f32 %v7022, %v7356
  %v7451 = vadd.f32 %v7023, %v7361
  %v7452 = vadd.f32 %v7024, %v7366
  %v7453 = vadd.f32 %v7025, %v7371
  %v7454 = vadd.f32 %v7026, %v7376
  %v7455 = vadd.f32 %v7027, %v7381
  %v7456 = vadd.f32 %v7028, %v7386
  %v7457 = vadd.f32 %v7029, %v7391
  %v7458 = vadd.f32 %v7030, %v7396
  %v7459 = vadd.f32 %v7031, %v7401
  %v7460 = vadd.f32 %v7032, %v7406
  %v7461 = vadd.f32 %v7033, %v7411
  %v7462 = vadd.f32 %v7034, %v7416
  %v7463 = vadd.f32 %v7035, %v7421
  %v7464 = vadd.f32 %v7036, %v7426
  %v7465 = vld [vmem:[#allocation2 + $0x26] sm:$0xff]
  %v7466 = vld [vmem:[#allocation2 + $0x2e] sm:$0xff]
  %v7467 = vld [vmem:[#allocation2 + $0x36] sm:$0xff]
  %v7468 = vld [vmem:[#allocation2 + $0x3e] sm:$0xff]
  %v7469 = vld [vmem:[#allocation2 + $0x46] sm:$0xff]
  %v7470 = vld [vmem:[#allocation2 + $0x4e] sm:$0xff]
  %v7471 = vld [vmem:[#allocation2 + $0x56] sm:$0xff]
  %v7472 = vld [vmem:[#allocation2 + $0x5e] sm:$0xff]
  %v7473 = vld [vmem:[#allocation2 + $0x66] sm:$0xff]
  %v7474 = vld [vmem:[#allocation2 + $0x6e] sm:$0xff]
  %v7475 = vld [vmem:[#allocation2 + $0x76] sm:$0xff]
  %v7476 = vld [vmem:[#allocation2 + $0x7e] sm:$0xff]
  %v7477 = vld [vmem:[#allocation2 + $0x86] sm:$0xff]
  %v7478 = vld [vmem:[#allocation2 + $0x8e] sm:$0xff]
  %v7479 = vld [vmem:[#allocation2 + $0x96] sm:$0xff]
  %v7480 = vld [vmem:[#allocation2 + $0x9e] sm:$0xff]
  %v7481 = vld [vmem:[#allocation2 + $0xa6] sm:$0xff]
  %v7482 = vld [vmem:[#allocation2 + $0xae] sm:$0xff]
  %v7483 = vld [vmem:[#allocation2 + $0xb6] sm:$0xff]
  %v7484 = vld [vmem:[#allocation2 + $0xbe] sm:$0xff]
  %v7485 = vld [vmem:[#allocation2 + $0xc6] sm:$0xff]
  %v7486 = vld [vmem:[#allocation2 + $0xce] sm:$0xff]
  %v7487 = vld [vmem:[#allocation2 + $0xd6] sm:$0xff]
  %v7488 = vld [vmem:[#allocation2 + $0xde] sm:$0xff]
  %v7489 = vld [vmem:[#allocation2 + $0xe6] sm:$0xff]
  %v7490 = vld [vmem:[#allocation2 + $0xee] sm:$0xff]
  %v7491 = vld [vmem:[#allocation2 + $0xf6] sm:$0xff]
  %v7492 = vld [vmem:[#allocation2 + $0xfe] sm:$0xff]
  %v7493 = vld [vmem:[#allocation2 + $0x106] sm:$0xff]
  %v7494 = vld [vmem:[#allocation2 + $0x10e] sm:$0xff]
  %v7495 = vld [vmem:[#allocation2 + $0x116] sm:$0xff]
  %v7496 = vld [vmem:[#allocation2 + $0x11e] sm:$0xff]
  %v7497 = vld [vmem:[#allocation2 + $0x126] sm:$0xff]
  %v7498 = vld [vmem:[#allocation2 + $0x12e] sm:$0xff]
  %v7499 = vld [vmem:[#allocation2 + $0x136] sm:$0xff]
  %v7500 = vld [vmem:[#allocation2 + $0x13e] sm:$0xff]
  %s7501 = scalar_lea.vmem %s3, 128
  %v7502 = vld [vmem:[%s7501] sm:$0xff]
  %v7503 = vld [vmem:[%s7501 + $0x8] sm:$0xff]
  %v7505 = vsel %vm3852, %v7465, 0
  %v7508 = vsel %vm3852, %v7466, 0
  %v7511 = vsel %vm3852, %v7467, 0
  %v7514 = vsel %vm3852, %v7468, 0
  %v7517 = vsel %vm3852, %v7469, 0
  %v7520 = vsel %vm3852, %v7470, 0
  %v7523 = vsel %vm3852, %v7471, 0
  %v7526 = vsel %vm3852, %v7472, 0
  %v7529 = vsel %vm3852, %v7473, 0
  %v7532 = vsel %vm3852, %v7474, 0
  %v7535 = vsel %vm3852, %v7475, 0
  %v7538 = vsel %vm3852, %v7476, 0
  %v7541 = vsel %vm3852, %v7477, 0
  %v7544 = vsel %vm3852, %v7478, 0
  %v7547 = vsel %vm3852, %v7479, 0
  %v7550 = vsel %vm3852, %v7480, 0
  %v7553 = vsel %vm3852, %v7481, 0
  %v7556 = vsel %vm3852, %v7482, 0
  %v7559 = vsel %vm3852, %v7483, 0
  %v7562 = vsel %vm3852, %v7484, 0
  %v7565 = vsel %vm3852, %v7485, 0
  %v7568 = vsel %vm3852, %v7486, 0
  %v7571 = vsel %vm3852, %v7487, 0
  %v7574 = vsel %vm3852, %v7488, 0
  %v7577 = vsel %vm3852, %v7489, 0
  %v7580 = vsel %vm3852, %v7490, 0
  %v7583 = vsel %vm3852, %v7491, 0
  %v7586 = vsel %vm3852, %v7492, 0
  %v7589 = vsel %vm3852, %v7493, 0
  %v7592 = vsel %vm3852, %v7494, 0
  %v7595 = vsel %vm3852, %v7495, 0
  %v7598 = vsel %vm3852, %v7496, 0
  %v7601 = vsel %vm3852, %v7497, 0
  %v7604 = vsel %vm3852, %v7498, 0
  %v7607 = vsel %vm3852, %v7499, 0
  %v7610 = vsel %vm3852, %v7500, 0
  %7612 = vmatprep.subr.mxu0 0.0
  %7613 = vmatpush1.msra.mxu0 %v7502
  %7614 = vmatprep.subr.mxu0 0.0
  %7615 = vmatpush1.msra.mxu0 %v7503
  %7616 = vmatprep.subr.mxu0 0.0
  %7617 = vmatpush1.msra.mxu0 0.0
  %7618 = vmatprep.subr.mxu0 0.0
  %7619 = vmatpush1.msra.mxu0 0.0
  %7620 = vmatprep.subr.mxu0 0.0
  %7621 = vmatpush1.msra.mxu0 0.0
  %7622 = vmatprep.subr.mxu0 0.0
  %7623 = vmatpush1.msra.mxu0 0.0
  %7624 = vmatprep.subr.mxu0 0.0
  %7625 = vmatpush1.msra.mxu0 0.0
  %7626 = vmatprep.subr.mxu0 0.0
  %7627 = vmatpush1.msra.mxu0 0.0
  %7628 = vmatprep.subr.mxu0 0.0
  %7629 = vmatpush1.msra.mxu0 0.0
  %7630 = vmatprep.subr.mxu0 0.0
  %7631 = vmatpush1.msra.mxu0 0.0
  %7632 = vmatprep.subr.mxu0 0.0
  %7633 = vmatpush1.msra.mxu0 0.0
  %7634 = vmatprep.subr.mxu0 0.0
  %7635 = vmatpush1.msra.mxu0 0.0
  %7636 = vmatprep.subr.mxu0 0.0
  %7637 = vmatpush1.msra.mxu0 0.0
  %7638 = vmatprep.subr.mxu0 0.0
  %7639 = vmatpush1.msra.mxu0 0.0
  %7640 = vmatprep.subr.mxu0 0.0
  %7641 = vmatpush1.msra.mxu0 0.0
  %7642 = vmatprep.subr.mxu0 0.0
  %7643 = vmatpush1.msra.mxu0 0.0
  %7644 = vmatprep.subr.mxu0 0.0
  %7645 = vmatpush1.msra.mxu0 0.0
  %7646 = vmatprep.subr.mxu0 0.0
  %7647 = vmatpush1.msra.mxu0 0.0
  %7648 = vmatprep.subr.mxu0 0.0
  %7649 = vmatpush1.msra.mxu0 0.0
  %7650 = vmatprep.subr.mxu0 0.0
  %7651 = vmatpush1.msra.mxu0 0.0
  %7652 = vmatprep.subr.mxu0 0.0
  %7653 = vmatpush1.msra.mxu0 0.0
  %7654 = vmatprep.subr.mxu0 0.0
  %7655 = vmatpush1.msra.mxu0 0.0
  %7656 = vmatprep.subr.mxu0 0.0
  %7657 = vmatpush1.msra.mxu0 0.0
  %7658 = vmatprep.subr.mxu0 0.0
  %7659 = vmatpush1.msra.mxu0 0.0
  %7660 = vmatprep.subr.mxu0 0.0
  %7661 = vmatpush1.msra.mxu0 0.0
  %7662 = vmatprep.subr.mxu0 0.0
  %7663 = vmatpush1.msra.mxu0 0.0
  %7664 = vmatprep.subr.mxu0 0.0
  %7665 = vmatpush1.msra.mxu0 0.0
  %7666 = vmatprep.subr.mxu0 0.0
  %7667 = vmatpush1.msra.mxu0 0.0
  %7668 = vmatprep.subr.mxu0 0.0
  %7669 = vmatpush1.msra.mxu0 0.0
  %7670 = vmatprep.subr.mxu0 0.0
  %7671 = vmatpush1.msra.mxu0 0.0
  %7672 = vmatprep.subr.mxu0 0.0
  %7673 = vmatpush1.msra.mxu0 0.0
  %7674 = vmatprep.subr.mxu0 0.0
  %7675 = vmatpush1.msra.mxu0 0.0
  %7676 = vmatprep.mubr.f32.mxu0 0.0
  %7677 = vmatmul.mubr.f32.gmra.mrb[0].mxu0 %v7505
  %v7678 = vpop.f32.mrb[0].mxu0
  %v7679 = vadd.f32 0.0, %v7678
  %v7680 = vpop.f32.mrb[0].mxu0
  %7681 = vmatprep.mubr.f32.mxu0 0.0
  %7682 = vmatmul.mubr.f32.gmra.mrb[0].mxu0 %v7508
  %v7683 = vpop.f32.mrb[0].mxu0
  %v7684 = vadd.f32 0.0, %v7683
  %v7685 = vpop.f32.mrb[0].mxu0
  %7686 = vmatprep.mubr.f32.mxu0 0.0
  %7687 = vmatmul.mubr.f32.gmra.mrb[0].mxu0 %v7511
  %v7688 = vpop.f32.mrb[0].mxu0
  %v7689 = vadd.f32 0.0, %v7688
  %v7690 = vpop.f32.mrb[0].mxu0
  %7691 = vmatprep.mubr.f32.mxu0 0.0
  %7692 = vmatmul.mubr.f32.gmra.mrb[0].mxu0 %v7514
  %v7693 = vpop.f32.mrb[0].mxu0
  %v7694 = vadd.f32 0.0, %v7693
  %v7695 = vpop.f32.mrb[0].mxu0
  %7696 = vmatprep.mubr.f32.mxu0 0.0
  %7697 = vmatmul.mubr.f32.gmra.mrb[0].mxu0 %v7517
  %v7698 = vpop.f32.mrb[0].mxu0
  %v7699 = vadd.f32 0.0, %v7698
  %v7700 = vpop.f32.mrb[0].mxu0
  %7701 = vmatprep.mubr.f32.mxu0 0.0
  %7702 = vmatmul.mubr.f32.gmra.mrb[0].mxu0 %v7520
  %v7703 = vpop.f32.mrb[0].mxu0
  %v7704 = vadd.f32 0.0, %v7703
  %v7705 = vpop.f32.mrb[0].mxu0
  %7706 = vmatprep.mubr.f32.mxu0 0.0
  %7707 = vmatmul.mubr.f32.gmra.mrb[0].mxu0 %v7523
  %v7708 = vpop.f32.mrb[0].mxu0
  %v7709 = vadd.f32 0.0, %v7708
  %v7710 = vpop.f32.mrb[0].mxu0
  %7711 = vmatprep.mubr.f32.mxu0 0.0
  %7712 = vmatmul.mubr.f32.gmra.mrb[0].mxu0 %v7526
  %v7713 = vpop.f32.mrb[0].mxu0
  %v7714 = vadd.f32 0.0, %v7713
  %v7715 = vpop.f32.mrb[0].mxu0
  %7716 = vmatprep.mubr.f32.mxu0 0.0
  %7717 = vmatmul.mubr.f32.gmra.mrb[0].mxu0 %v7529
  %v7718 = vpop.f32.mrb[0].mxu0
  %v7719 = vadd.f32 0.0, %v7718
  %v7720 = vpop.f32.mrb[0].mxu0
  %7721 = vmatprep.mubr.f32.mxu0 0.0
  %7722 = vmatmul.mubr.f32.gmra.mrb[0].mxu0 %v7532
  %v7723 = vpop.f32.mrb[0].mxu0
  %v7724 = vadd.f32 0.0, %v7723
  %v7725 = vpop.f32.mrb[0].mxu0
  %7726 = vmatprep.mubr.f32.mxu0 0.0
  %7727 = vmatmul.mubr.f32.gmra.mrb[0].mxu0 %v7535
  %v7728 = vpop.f32.mrb[0].mxu0
  %v7729 = vadd.f32 0.0, %v7728
  %v7730 = vpop.f32.mrb[0].mxu0
  %7731 = vmatprep.mubr.f32.mxu0 0.0
  %7732 = vmatmul.mubr.f32.gmra.mrb[0].mxu0 %v7538
  %v7733 = vpop.f32.mrb[0].mxu0
  %v7734 = vadd.f32 0.0, %v7733
  %v7735 = vpop.f32.mrb[0].mxu0
  %7736 = vmatprep.mubr.f32.mxu0 0.0
  %7737 = vmatmul.mubr.f32.gmra.mrb[0].mxu0 %v7541
  %v7738 = vpop.f32.mrb[0].mxu0
  %v7739 = vadd.f32 0.0, %v7738
  %v7740 = vpop.f32.mrb[0].mxu0
  %7741 = vmatprep.mubr.f32.mxu0 0.0
  %7742 = vmatmul.mubr.f32.gmra.mrb[0].mxu0 %v7544
  %v7743 = vpop.f32.mrb[0].mxu0
  %v7744 = vadd.f32 0.0, %v7743
  %v7745 = vpop.f32.mrb[0].mxu0
  %7746 = vmatprep.mubr.f32.mxu0 0.0
  %7747 = vmatmul.mubr.f32.gmra.mrb[0].mxu0 %v7547
  %v7748 = vpop.f32.mrb[0].mxu0
  %v7749 = vadd.f32 0.0, %v7748
  %v7750 = vpop.f32.mrb[0].mxu0
  %7751 = vmatprep.mubr.f32.mxu0 0.0
  %7752 = vmatmul.mubr.f32.gmra.mrb[0].mxu0 %v7550
  %v7753 = vpop.f32.mrb[0].mxu0
  %v7754 = vadd.f32 0.0, %v7753
  %v7755 = vpop.f32.mrb[0].mxu0
  %7756 = vmatprep.mubr.f32.mxu0 0.0
  %7757 = vmatmul.mubr.f32.gmra.mrb[0].mxu0 %v7553
  %v7758 = vpop.f32.mrb[0].mxu0
  %v7759 = vadd.f32 0.0, %v7758
  %v7760 = vpop.f32.mrb[0].mxu0
  %7761 = vmatprep.mubr.f32.mxu0 0.0
  %7762 = vmatmul.mubr.f32.gmra.mrb[0].mxu0 %v7556
  %v7763 = vpop.f32.mrb[0].mxu0
  %v7764 = vadd.f32 0.0, %v7763
  %v7765 = vpop.f32.mrb[0].mxu0
  %7766 = vmatprep.mubr.f32.mxu0 0.0
  %7767 = vmatmul.mubr.f32.gmra.mrb[0].mxu0 %v7559
  %v7768 = vpop.f32.mrb[0].mxu0
  %v7769 = vadd.f32 0.0, %v7768
  %v7770 = vpop.f32.mrb[0].mxu0
  %7771 = vmatprep.mubr.f32.mxu0 0.0
  %7772 = vmatmul.mubr.f32.gmra.mrb[0].mxu0 %v7562
  %v7773 = vpop.f32.mrb[0].mxu0
  %v7774 = vadd.f32 0.0, %v7773
  %v7775 = vpop.f32.mrb[0].mxu0
  %7776 = vmatprep.mubr.f32.mxu0 0.0
  %7777 = vmatmul.mubr.f32.gmra.mrb[0].mxu0 %v7565
  %v7778 = vpop.f32.mrb[0].mxu0
  %v7779 = vadd.f32 0.0, %v7778
  %v7780 = vpop.f32.mrb[0].mxu0
  %7781 = vmatprep.mubr.f32.mxu0 0.0
  %7782 = vmatmul.mubr.f32.gmra.mrb[0].mxu0 %v7568
  %v7783 = vpop.f32.mrb[0].mxu0
  %v7784 = vadd.f32 0.0, %v7783
  %v7785 = vpop.f32.mrb[0].mxu0
  %7786 = vmatprep.mubr.f32.mxu0 0.0
  %7787 = vmatmul.mubr.f32.gmra.mrb[0].mxu0 %v7571
  %v7788 = vpop.f32.mrb[0].mxu0
  %v7789 = vadd.f32 0.0, %v7788
  %v7790 = vpop.f32.mrb[0].mxu0
  %7791 = vmatprep.mubr.f32.mxu0 0.0
  %7792 = vmatmul.mubr.f32.gmra.mrb[0].mxu0 %v7574
  %v7793 = vpop.f32.mrb[0].mxu0
  %v7794 = vadd.f32 0.0, %v7793
  %v7795 = vpop.f32.mrb[0].mxu0
  %7796 = vmatprep.mubr.f32.mxu0 0.0
  %7797 = vmatmul.mubr.f32.gmra.mrb[0].mxu0 %v7577
  %v7798 = vpop.f32.mrb[0].mxu0
  %v7799 = vadd.f32 0.0, %v7798
  %v7800 = vpop.f32.mrb[0].mxu0
  %7801 = vmatprep.mubr.f32.mxu0 0.0
  %7802 = vmatmul.mubr.f32.gmra.mrb[0].mxu0 %v7580
  %v7803 = vpop.f32.mrb[0].mxu0
  %v7804 = vadd.f32 0.0, %v7803
  %v7805 = vpop.f32.mrb[0].mxu0
  %7806 = vmatprep.mubr.f32.mxu0 0.0
  %7807 = vmatmul.mubr.f32.gmra.mrb[0].mxu0 %v7583
  %v7808 = vpop.f32.mrb[0].mxu0
  %v7809 = vadd.f32 0.0, %v7808
  %v7810 = vpop.f32.mrb[0].mxu0
  %7811 = vmatprep.mubr.f32.mxu0 0.0
  %7812 = vmatmul.mubr.f32.gmra.mrb[0].mxu0 %v7586
  %v7813 = vpop.f32.mrb[0].mxu0
  %v7814 = vadd.f32 0.0, %v7813
  %v7815 = vpop.f32.mrb[0].mxu0
  %7816 = vmatprep.mubr.f32.mxu0 0.0
  %7817 = vmatmul.mubr.f32.gmra.mrb[0].mxu0 %v7589
  %v7818 = vpop.f32.mrb[0].mxu0
  %v7819 = vadd.f32 0.0, %v7818
  %v7820 = vpop.f32.mrb[0].mxu0
  %7821 = vmatprep.mubr.f32.mxu0 0.0
  %7822 = vmatmul.mubr.f32.gmra.mrb[0].mxu0 %v7592
  %v7823 = vpop.f32.mrb[0].mxu0
  %v7824 = vadd.f32 0.0, %v7823
  %v7825 = vpop.f32.mrb[0].mxu0
  %7826 = vmatprep.mubr.f32.mxu0 0.0
  %7827 = vmatmul.mubr.f32.gmra.mrb[0].mxu0 %v7595
  %v7828 = vpop.f32.mrb[0].mxu0
  %v7829 = vadd.f32 0.0, %v7828
  %v7830 = vpop.f32.mrb[0].mxu0
  %7831 = vmatprep.mubr.f32.mxu0 0.0
  %7832 = vmatmul.mubr.f32.gmra.mrb[0].mxu0 %v7598
  %v7833 = vpop.f32.mrb[0].mxu0
  %v7834 = vadd.f32 0.0, %v7833
  %v7835 = vpop.f32.mrb[0].mxu0
  %7836 = vmatprep.mubr.f32.mxu0 0.0
  %7837 = vmatmul.mubr.f32.gmra.mrb[0].mxu0 %v7601
  %v7838 = vpop.f32.mrb[0].mxu0
  %v7839 = vadd.f32 0.0, %v7838
  %v7840 = vpop.f32.mrb[0].mxu0
  %7841 = vmatprep.mubr.f32.mxu0 0.0
  %7842 = vmatmul.mubr.f32.gmra.mrb[0].mxu0 %v7604
  %v7843 = vpop.f32.mrb[0].mxu0
  %v7844 = vadd.f32 0.0, %v7843
  %v7845 = vpop.f32.mrb[0].mxu0
  %7846 = vmatprep.mubr.f32.mxu0 0.0
  %7847 = vmatmul.mubr.f32.gmra.mrb[0].mxu0 %v7607
  %v7848 = vpop.f32.mrb[0].mxu0
  %v7849 = vadd.f32 0.0, %v7848
  %v7850 = vpop.f32.mrb[0].mxu0
  %7851 = vmatprep.mubr.f32.mxu0 0.0
  %7852 = vmatmul.mubr.f32.gmra.mrb[0].mxu0 %v7610
  %v7853 = vpop.f32.mrb[0].mxu0
  %v7854 = vadd.f32 0.0, %v7853
  %v7855 = vpop.f32.mrb[0].mxu0
  %7856 = vdwg.mxu0
  %v7857 = vadd.f32 %v7429, %v7679
  %v7858 = vadd.f32 %v7430, %v7684
  %v7859 = vadd.f32 %v7431, %v7689
  %v7860 = vadd.f32 %v7432, %v7694
  %v7861 = vadd.f32 %v7433, %v7699
  %v7862 = vadd.f32 %v7434, %v7704
  %v7863 = vadd.f32 %v7435, %v7709
  %v7864 = vadd.f32 %v7436, %v7714
  %v7865 = vadd.f32 %v7437, %v7719
  %v7866 = vadd.f32 %v7438, %v7724
  %v7867 = vadd.f32 %v7439, %v7729
  %v7868 = vadd.f32 %v7440, %v7734
  %v7869 = vadd.f32 %v7441, %v7739
  %v7870 = vadd.f32 %v7442, %v7744
  %v7871 = vadd.f32 %v7443, %v7749
  %v7872 = vadd.f32 %v7444, %v7754
  %v7873 = vadd.f32 %v7445, %v7759
  %v7874 = vadd.f32 %v7446, %v7764
  %v7875 = vadd.f32 %v7447, %v7769
  %v7876 = vadd.f32 %v7448, %v7774
  %v7877 = vadd.f32 %v7449, %v7779
  %v7878 = vadd.f32 %v7450, %v7784
  %v7879 = vadd.f32 %v7451, %v7789
  %v7880 = vadd.f32 %v7452, %v7794
  %v7881 = vadd.f32 %v7453, %v7799
  %v7882 = vadd.f32 %v7454, %v7804
  %v7883 = vadd.f32 %v7455, %v7809
  %v7884 = vadd.f32 %v7456, %v7814
  %v7885 = vadd.f32 %v7457, %v7819
  %v7886 = vadd.f32 %v7458, %v7824
  %v7887 = vadd.f32 %v7459, %v7829
  %v7888 = vadd.f32 %v7460, %v7834
  %v7889 = vadd.f32 %v7461, %v7839
  %v7890 = vadd.f32 %v7462, %v7844
  %v7891 = vadd.f32 %v7463, %v7849
  %v7892 = vadd.f32 %v7464, %v7854
  %7893 = vst.msk [vmem:[%s4] sm:$0xff] %vm128, 0.0
  %7894 = vst.msk [vmem:[%s4 + $0x8] sm:$0xff] %vm128, 0.0
  %vm7895 = vcmask 18432
  %7896 = vst.msk [vmem:[%s4 + $0x10] sm:$0x7] %vm7895, 0.0
  %v7897 = vmul.f32 %v7857, %v3860
  %v7898 = vmul.f32 %v7858, %v3865
  %v7899 = vmul.f32 %v7859, %v3870
  %v7900 = vmul.f32 %v7860, %v3875
  %v7901 = vmul.f32 %v7861, %v3880
  %v7902 = vmul.f32 %v7862, %v3885
  %v7903 = vmul.f32 %v7863, %v3890
  %v7904 = vmul.f32 %v7864, %v3895
  %v7905 = vmul.f32 %v7865, %v3900
  %v7906 = vmul.f32 %v7866, %v3905
  %v7907 = vmul.f32 %v7867, %v3910
  %v7908 = vmul.f32 %v7868, %v3915
  %v7909 = vmul.f32 %v7869, %v3920
  %v7910 = vmul.f32 %v7870, %v3925
  %v7911 = vmul.f32 %v7871, %v3930
  %v7912 = vmul.f32 %v7872, %v3935
  %v7913 = vmul.f32 %v7873, %v3940
  %v7914 = vmul.f32 %v7874, %v3945
  %v7915 = vmul.f32 %v7875, %v3950
  %v7916 = vmul.f32 %v7876, %v3955
  %v7917 = vmul.f32 %v7877, %v3960
  %v7918 = vmul.f32 %v7878, %v3965
  %v7919 = vmul.f32 %v7879, %v3970
  %v7920 = vmul.f32 %v7880, %v3975
  %v7921 = vmul.f32 %v7881, %v3980
  %v7922 = vmul.f32 %v7882, %v3985
  %v7923 = vmul.f32 %v7883, %v3990
  %v7924 = vmul.f32 %v7884, %v3995
  %v7925 = vmul.f32 %v7885, %v4000
  %v7926 = vmul.f32 %v7886, %v4005
  %v7927 = vmul.f32 %v7887, %v4010
  %v7928 = vmul.f32 %v7888, %v4015
  %v7929 = vmul.f32 %v7889, %v4020
  %v7930 = vmul.f32 %v7890, %v4025
  %v7931 = vmul.f32 %v7891, %v4030
  %v7932 = vmul.f32 %v7892, %v4035
  %7933 = vst.msk [vmem:[%s4 + $0x13] sm:$0xff] %vm128, %v7897
  %7934 = vst.msk [vmem:[%s4 + $0x1b] sm:$0xff] %vm128, %v7898
  %7935 = vst.msk [vmem:[%s4 + $0x23] sm:$0xff] %vm128, %v7899
  %7936 = vst.msk [vmem:[%s4 + $0x2b] sm:$0xff] %vm128, %v7900
  %7937 = vst.msk [vmem:[%s4 + $0x33] sm:$0xff] %vm128, %v7901
  %7938 = vst.msk [vmem:[%s4 + $0x3b] sm:$0xff] %vm128, %v7902
  %7939 = vst.msk [vmem:[%s4 + $0x43] sm:$0xff] %vm128, %v7903
  %7940 = vst.msk [vmem:[%s4 + $0x4b] sm:$0xff] %vm128, %v7904
  %7941 = vst.msk [vmem:[%s4 + $0x53] sm:$0xff] %vm128, %v7905
  %7942 = vst.msk [vmem:[%s4 + $0x5b] sm:$0xff] %vm128, %v7906
  %7943 = vst.msk [vmem:[%s4 + $0x63] sm:$0xff] %vm128, %v7907
  %7944 = vst.msk [vmem:[%s4 + $0x6b] sm:$0xff] %vm128, %v7908
  %7945 = vst.msk [vmem:[%s4 + $0x73] sm:$0xff] %vm128, %v7909
  %7946 = vst.msk [vmem:[%s4 + $0x7b] sm:$0xff] %vm128, %v7910
  %7947 = vst.msk [vmem:[%s4 + $0x83] sm:$0xff] %vm128, %v7911
  %7948 = vst.msk [vmem:[%s4 + $0x8b] sm:$0xff] %vm128, %v7912
  %7949 = vst.msk [vmem:[%s4 + $0x93] sm:$0xff] %vm128, %v7913
  %7950 = vst.msk [vmem:[%s4 + $0x9b] sm:$0xff] %vm128, %v7914
  %7951 = vst.msk [vmem:[%s4 + $0xa3] sm:$0xff] %vm128, %v7915
  %7952 = vst.msk [vmem:[%s4 + $0xab] sm:$0xff] %vm128, %v7916
  %7953 = vst.msk [vmem:[%s4 + $0xb3] sm:$0xff] %vm128, %v7917
  %7954 = vst.msk [vmem:[%s4 + $0xbb] sm:$0xff] %vm128, %v7918
  %7955 = vst.msk [vmem:[%s4 + $0xc3] sm:$0xff] %vm128, %v7919
  %7956 = vst.msk [vmem:[%s4 + $0xcb] sm:$0xff] %vm128, %v7920
  %7957 = vst.msk [vmem:[%s4 + $0xd3] sm:$0xff] %vm128, %v7921
  %7958 = vst.msk [vmem:[%s4 + $0xdb] sm:$0xff] %vm128, %v7922
  %7959 = vst.msk [vmem:[%s4 + $0xe3] sm:$0xff] %vm128, %v7923
  %7960 = vst.msk [vmem:[%s4 + $0xeb] sm:$0xff] %vm128, %v7924
  %7961 = vst.msk [vmem:[%s4 + $0xf3] sm:$0xff] %vm128, %v7925
  %7962 = vst.msk [vmem:[%s4 + $0xfb] sm:$0xff] %vm128, %v7926
  %7963 = vst.msk [vmem:[%s4 + $0x103] sm:$0xff] %vm128, %v7927
  %7964 = vst.msk [vmem:[%s4 + $0x10b] sm:$0xff] %vm128, %v7928
  %7965 = vst.msk [vmem:[%s4 + $0x113] sm:$0xff] %vm128, %v7929
  %7966 = vst.msk [vmem:[%s4 + $0x11b] sm:$0xff] %vm128, %v7930
  %7967 = vst.msk [vmem:[%s4 + $0x123] sm:$0xff] %vm128, %v7931
  %7968 = vst.msk [vmem:[%s4 + $0x12b] sm:$0xff] %vm128, %v7932
  %7969 = vst.msk [vmem:[%s4 + $0x133] sm:$0xff] %vm128, 0.0
  %7970 = vst.msk [vmem:[%s4 + $0x13b] sm:$0xff] %vm128, 0.0
  %7971 = vst.msk [vmem:[%s4 + $0x143] sm:$0xff] %vm128, 0.0
  %7972 = vst.msk [vmem:[%s4 + $0x14b] sm:$0xff] %vm128, 0.0
  %7973 = vst.msk [vmem:[%s4 + $0x153] sm:$0x7] %vm7895, 0.0
  // Predicated region
  $region18: #{body.6} parent=0 // pred_check
    _
  $region19: #{body.6} parent=0 // pred_check_branch
    %7975 = sbr.rel (0) target = $region21
  $region20: #{body.6} parent=0 // pred_region
    _
  $region21: #{body.6} parent=0 // pred_fallthru
    _
  // Predicated region
  $region22: #{body.6} parent=0 // pred_check
    _
  $region23: #{body.6} parent=0 // pred_check_branch
    %7977 = sbr.rel (0) target = $region25
  $region24: #{body.6} parent=0 // pred_region
    _
  $region25: #{body.6} parent=0 // pred_fallthru
    _

</llo_original>
